<compile_context>
chip_gen: v5e
topology: v5e:2x2
jax: 0.10.0
libtpu: 0.0.40
codegen_flags: <defaults>
</compile_context>

<pallas_src>
import jax
import jax.numpy as jnp
import numpy as np
from jax.experimental import pallas as pl
from jax.experimental.pallas import tpu as pltpu


# ----------------------------------------------------------------------------
# Interpolation matrices for nn.Upsample(scale_factor=2, bilinear,
# align_corners=True)
# ----------------------------------------------------------------------------
def _interp_matrix(n_out, n_in):
    """1-D interpolation matrix matching bilinear align_corners=True."""
    if n_in == 1:
        return jnp.ones((n_out, 1), jnp.float32)
    src = jnp.arange(n_out, dtype=jnp.float32) * (n_in - 1) / (n_out - 1)
    lo = jnp.clip(jnp.floor(src).astype(jnp.int32), 0, n_in - 2)
    frac = src - lo.astype(jnp.float32)
    idx = jnp.arange(n_out)
    m = jnp.zeros((n_out, n_in), jnp.float32)
    m = m.at[idx, lo].add(1.0 - frac)
    m = m.at[idx, lo + 1].add(frac)
    return m


def _upsample_matrix_T(H, W):
    """(H*W, 2H*2W) matrix U with  x_flat @ U == flatten(bilinear_up2x(x))."""
    mh = _interp_matrix(2 * H, H)          # (Ho, H)
    mw = _interp_matrix(2 * W, W)          # (Wo, W)
    # out[yo*Wo+xo, yi*W+xi] = mh[yo, yi] * mw[xo, xi]  ==  kron(mh, mw)
    # TODO(synk): for large H, W switch to two separable interpolation matmuls;
    # the Kronecker matrix is O(H*W * Ho*Wo) and only suits small decoder tiles.
    return jnp.kron(mh, mw).T              # (H*W, Ho*Wo)


# ----------------------------------------------------------------------------
# Fused Up forward: upsample + concat + conv3x3+ReLU + conv3x3+ReLU
# ----------------------------------------------------------------------------
def up_forward(x1, x2, w1k, b1k, w2k, b2k, upT):
    """x1: [B,C1,H,W], x2: [B,C2,2H,2W] (NCHW). Returns [B,Co,2H,2W] (NCHW).

    w1k: (9, Co, C1+C2)  taps ordered t = dy*3+dx, input channels ordered
                          [x1_upsampled, x2]  (== torch.cat order)
    w2k: (9, Co, Co),  b1k/b2k: (Co, 1),  upT: (H*W, 2H*2W)
    """
    B, C1, H, W = x1.shape
    _, C2, Ho, Wo = x2.shape
    assert (Ho, Wo) == (2 * H, 2 * W)
    Cm = C1 + C2
    Co = w1k.shape[1]
    Hp, Wp = Ho + 2, Wo + 2
    S = Ho * Wo                                   # flattened spatial = lane dim

    def kernel(x1_ref, x2_ref, up_ref, w1_ref, b1_ref, w2_ref, b2_ref,
               o_ref, pad1_ref, pad2_ref, acc_ref):
        # Zero the halo buffers (the borders ARE the conv "padding=1"; the
        # interiors are overwritten below).  Unconditional so it stays correct
        # when the batch axis is sharded across two TensorCores.
        pad1_ref[...] = jnp.zeros_like(pad1_ref)
        pad2_ref[...] = jnp.zeros_like(pad2_ref)

        # ---- bilinear 2x upsample: all C1 channels in one lane-dense dot ----
        x1u = jnp.dot(x1_ref[0], up_ref[...],
                      preferred_element_type=jnp.float32)          # (C1, Ho*Wo)

        # ---- fused concat + pad: both sources go into one padded scratch ----
        pad1_ref[0:C1, 1:1 + Ho, 1:1 + Wo] = x1u.reshape(C1, Ho, Wo)
        pad1_ref[C1:Cm, 1:1 + Ho, 1:1 + Wo] = x2_ref[0].astype(jnp.float32)

        def conv3x3_relu(pad_ref, w_ref, b_ref):
            cin = pad_ref.shape[0]
            acc_ref[...] = jnp.zeros_like(acc_ref)
            for t in range(9):                                     # 9 static taps
                dy, dx = divmod(t, 3)
                # (cin, Ho, Wo) halo-shifted window -> (cin, Ho*Wo) matmul rhs
                patch = pad_ref[:, dy:dy + Ho, dx:dx + Wo].reshape(cin, S)
                # NOTE: on v6e/v7x cast w/patch to bf16 here (f32 accumulate).
                acc_ref[...] += jnp.dot(w_ref[t], patch,
                                        preferred_element_type=jnp.float32)
            # bias broadcasts along the lane (spatial) axis; fused ReLU.
            return jnp.maximum(acc_ref[...] + b_ref[...], 0.0)     # (Co, Ho*Wo)

        y1 = conv3x3_relu(pad1_ref, w1_ref, b1_ref)
        pad2_ref[:, 1:1 + Ho, 1:1 + Wo] = y1.reshape(Co, Ho, Wo)   # stays in VMEM
        y2 = conv3x3_relu(pad2_ref, w2_ref, b2_ref)
        o_ref[0] = y2.astype(o_ref.dtype)                          # lane-dense store

    out_flat = pl.pallas_call(
        kernel,
        out_shape=jax.ShapeDtypeStruct((B, Co, S), x1.dtype),
        grid=(B,),
        in_specs=[
            pl.BlockSpec((1, C1, H * W), lambda b: (b, 0, 0)),       # x1 (flat)
            pl.BlockSpec((1, C2, Ho, Wo), lambda b: (b, 0, 0, 0)),   # x2
            pl.BlockSpec((H * W, S), lambda b: (0, 0)),              # upsample mat
            pl.BlockSpec((9, Co, Cm), lambda b: (0, 0, 0)),          # w1 taps
            pl.BlockSpec((Co, 1), lambda b: (0, 0)),                 # b1
            pl.BlockSpec((9, Co, Co), lambda b: (0, 0, 0)),          # w2 taps
            pl.BlockSpec((Co, 1), lambda b: (0, 0)),                 # b2
        ],
        out_specs=pl.BlockSpec((1, Co, S), lambda b: (b, 0, 0)),
        scratch_shapes=[
            pltpu.VMEM((Cm, Hp, Wp), jnp.float32),   # padded concat(x1_up, x2)
            pltpu.VMEM((Co, Hp, Wp), jnp.float32),   # padded conv1 output
            pltpu.VMEM((Co, S), jnp.float32),        # conv accumulator
        ],
        compiler_params=pltpu.CompilerParams(
            dimension_semantics=("parallel",),       # shard batch over 2 TCs (v7x)
            vmem_limit_bytes=32 * 1024 * 1024),
    )(x1.reshape(B, C1, H * W), x2, upT, w1k, b1k, w2k, b2k)

    return out_flat.reshape(B, Co, Ho, Wo)           # free metadata reshape


# ----------------------------------------------------------------------------
# Up module wrapper (batch_norm=False, residual=False -> DoubleConv path)
# ----------------------------------------------------------------------------
class UpPallas:
    def __init__(self, in_size, out_size, key):
        k1, k2, k3, k4 = jax.random.split(key, 4)
        self.in_size, self.out_size = in_size, out_size
        # HWIO parameters (also used by the pure-JAX reference).
        self.w1 = jax.random.normal(k1, (3, 3, in_size, out_size), jnp.float32) * 0.1
        self.b1 = jax.random.normal(k2, (out_size,), jnp.float32) * 0.1
        self.w2 = jax.random.normal(k3, (3, 3, out_size, out_size), jnp.float32) * 0.1
        self.b2 = jax.random.normal(k4, (out_size,), jnp.float32) * 0.1
        # Kernel layout: (tap=dy*3+dx, Cout, Cin) -> weights-stationary matmuls
        # against (Cin, Ho*Wo) patches.  The Cin split [0:C1]=x1_up, [C1:]=x2
        # replaces the materialized channel concat.
        self.w1k = jnp.transpose(self.w1, (0, 1, 3, 2)).reshape(9, out_size, in_size)
        self.w2k = jnp.transpose(self.w2, (0, 1, 3, 2)).reshape(9, out_size, out_size)
        self.b1k = self.b1.reshape(out_size, 1)
        self.b2k = self.b2.reshape(out_size, 1)
        # TODO(synk): batch_norm=True / residual=True (ResBlock) variants are not
        # implemented; module defaults are False so only DoubleConv is exercised.

    def __call__(self, x1, x2):
        B, C1, H, W = x1.shape
        assert C1 + x2.shape[1] == self.in_size
        upT = _upsample_matrix_T(H, W)
        return up_forward(x1, x2, self.w1k, self.b1k, self.w2k, self.b2k, upT)


# ----------------------------------------------------------------------------
# Pure-JAX reference for verification
# ----------------------------------------------------------------------------
def _reference(x1, x2, w1, b1, w2, b2):
    B, C, H, W = x1.shape
    mh = _interp_matrix(2 * H, H)
    mw = _interp_matrix(2 * W, W)
    x1u = jnp.einsum('oh,bchw,vw->bcov', mh, x1, mw,
                     precision=jax.lax.Precision.HIGHEST)
    x = jnp.concatenate([x1u, x2], axis=1)
    xh = jnp.transpose(x, (0, 2, 3, 1))

    def conv(xh, w, b):
        y = jax.lax.conv_general_dilated(
            xh, w, window_strides=(1, 1), padding='SAME',
            dimension_numbers=('NHWC', 'HWIO', 'NHWC'),
            precision=jax.lax.Precision.HIGHEST)
        return jnp.maximum(y + b.reshape(1, 1, 1, -1), 0.0)

    xh = conv(xh, w1, b1)
    xh = conv(xh, w2, b2)
    return jnp.transpose(xh, (0, 3, 1, 2))


if __name__ == "__main__":
    key = jax.random.PRNGKey(0)
    kx1, kx2, kp = jax.random.split(key, 3)

    B, C1, H, W = 2, 4, 8, 8      # decoder feature (to be upsampled)
    C2 = 4                        # skip-connection feature
    x1 = jax.random.normal(kx1, (B, C1, H, W), jnp.float32)
    x2 = jax.random.normal(kx2, (B, C2, 2 * H, 2 * W), jnp.float32)

    up = UpPallas(in_size=C1 + C2, out_size=8, key=kp)
    out = jax.block_until_ready(up(x1, x2))

    assert out.shape == (B, 8, 2 * H, 2 * W), out.shape
    ref = _reference(x1, x2, up.w1, up.b1, up.w2, up.b2)
    np.testing.assert_allclose(np.asarray(out), np.asarray(ref),
                               rtol=1e-3, atol=1e-3)
    print("KERNEL_OK")
</pallas_src>

<mosaic_0001>
module attributes {stable_mosaic.version = 11 : i64} {
  func.func @kernel(%arg0: i32, %arg1: memref<1x4x64xf32, #tpu.memory_space<vmem>>, %arg2: memref<1x4x16x16xf32, #tpu.memory_space<vmem>>, %arg3: memref<64x256xf32, #tpu.memory_space<vmem>>, %arg4: memref<9x8x8xf32, #tpu.memory_space<vmem>>, %arg5: memref<8x1xf32, #tpu.memory_space<vmem>>, %arg6: memref<9x8x8xf32, #tpu.memory_space<vmem>>, %arg7: memref<8x1xf32, #tpu.memory_space<vmem>>, %arg8: memref<1x8x256xf32, #tpu.memory_space<vmem>>, %arg9: memref<8x18x18xf32, #tpu.memory_space<vmem>>, %arg10: memref<8x18x18xf32, #tpu.memory_space<vmem>>, %arg11: memref<8x256xf32, #tpu.memory_space<vmem>>) attributes {dimension_semantics = [#tpu.dimension_semantics<parallel>], iteration_bounds = array<i64: 2>, scalar_prefetch = 0 : i64, scratch_operands = 3 : i64, tpu.core_type = #tpu.core_type<tc>, window_params = [{transform_indices = @transform_0, window_bounds = array<i64: 1, 4, 64>}, {transform_indices = @transform_1, window_bounds = array<i64: 1, 4, 16, 16>}, {pipeline_mode = #tpu.pipeline_mode<synchronous>, transform_indices = @transform_2, window_bounds = array<i64: 64, 256>}, {pipeline_mode = #tpu.pipeline_mode<synchronous>, transform_indices = @transform_3, window_bounds = array<i64: 9, 8, 8>}, {pipeline_mode = #tpu.pipeline_mode<synchronous>, transform_indices = @transform_4, window_bounds = array<i64: 8, 1>}, {pipeline_mode = #tpu.pipeline_mode<synchronous>, transform_indices = @transform_5, window_bounds = array<i64: 9, 8, 8>}, {pipeline_mode = #tpu.pipeline_mode<synchronous>, transform_indices = @transform_6, window_bounds = array<i64: 8, 1>}, {transform_indices = @transform_7, window_bounds = array<i64: 1, 8, 256>}]} {
    %cst = arith.constant 0.000000e+00 : f32
    %0 = vector.broadcast %cst : f32 to vector<8x18x18xf32>
    %c0 = arith.constant 0 : index
    %c0_0 = arith.constant 0 : index
    %c0_1 = arith.constant 0 : index
    %1 = vector.load %arg9[%c0, %c0_0, %c0_1] : memref<8x18x18xf32, #tpu.memory_space<vmem>>, vector<8x18x18xf32>
    tpu.vector_store %arg9[%c0, %c0_0, %c0_1], %0 {strides = array<i32>} : memref<8x18x18xf32, #tpu.memory_space<vmem>>, vector<8x18x18xf32>,
    %cst_2 = arith.constant 0.000000e+00 : f32
    %2 = vector.broadcast %cst_2 : f32 to vector<8x18x18xf32>
    %c0_3 = arith.constant 0 : index
    %c0_4 = arith.constant 0 : index
    %c0_5 = arith.constant 0 : index
    %3 = vector.load %arg10[%c0_3, %c0_4, %c0_5] : memref<8x18x18xf32, #tpu.memory_space<vmem>>, vector<8x18x18xf32>
    tpu.vector_store %arg10[%c0_3, %c0_4, %c0_5], %2 {strides = array<i32>} : memref<8x18x18xf32, #tpu.memory_space<vmem>>, vector<8x18x18xf32>,
    %c0_6 = arith.constant 0 : index
    %c0_7 = arith.constant 0 : index
    %c0_8 = arith.constant 0 : index
    %4 = vector.load %arg1[%c0_6, %c0_7, %c0_8] : memref<1x4x64xf32, #tpu.memory_space<vmem>>, vector<1x4x64xf32>
    %5 = vector.shape_cast %4 : vector<1x4x64xf32> to vector<4x64xf32>
    %c0_9 = arith.constant 0 : index
    %c0_10 = arith.constant 0 : index
    %6 = vector.load %arg3[%c0_9, %c0_10] : memref<64x256xf32, #tpu.memory_space<vmem>>, vector<64x256xf32>
    %cst_11 = arith.constant dense<0.000000e+00> : vector<4x256xf32>
    %7 = tpu.matmul %5, %6, %cst_11 {dimension_numbers = #tpu.dot_dimension_numbers<[1], [0], [0], [1], [0, 0, 1, 1], [], []>} : vector<4x64xf32>, vector<64x256xf32>, vector<4x256xf32> -> vector<4x256xf32>
    %8 = vector.shape_cast %7 : vector<4x256xf32> to vector<4x16x16xf32>
    %c0_12 = arith.constant 0 : index
    %c1 = arith.constant 1 : index
    %c1_13 = arith.constant 1 : index
    %9 = vector.load %arg9[%c0_12, %c1, %c1_13] : memref<8x18x18xf32, #tpu.memory_space<vmem>>, vector<4x16x16xf32>
    tpu.vector_store %arg9[%c0_12, %c1, %c1_13], %8 {strides = array<i32>} : memref<8x18x18xf32, #tpu.memory_space<vmem>>, vector<4x16x16xf32>,
    %c0_14 = arith.constant 0 : index
    %c0_15 = arith.constant 0 : index
    %c0_16 = arith.constant 0 : index
    %c0_17 = arith.constant 0 : index
    %10 = vector.load %arg2[%c0_14, %c0_15, %c0_16, %c0_17] : memref<1x4x16x16xf32, #tpu.memory_space<vmem>>, vector<1x4x16x16xf32>
    %11 = vector.shape_cast %10 : vector<1x4x16x16xf32> to vector<4x16x16xf32>
    %c4 = arith.constant 4 : index
    %c1_18 = arith.constant 1 : index
    %c1_19 = arith.constant 1 : index
    %12 = vector.load %arg9[%c4, %c1_18, %c1_19] : memref<8x18x18xf32, #tpu.memory_space<vmem>>, vector<4x16x16xf32>
    tpu.vector_store %arg9[%c4, %c1_18, %c1_19], %11 {strides = array<i32>} : memref<8x18x18xf32, #tpu.memory_space<vmem>>, vector<4x16x16xf32>,
    %cst_20 = arith.constant 0.000000e+00 : f32
    %13 = vector.broadcast %cst_20 : f32 to vector<8x256xf32>
    %c0_21 = arith.constant 0 : index
    %c0_22 = arith.constant 0 : index
    %14 = vector.load %arg11[%c0_21, %c0_22] : memref<8x256xf32, #tpu.memory_space<vmem>>, vector<8x256xf32>
    tpu.vector_store %arg11[%c0_21, %c0_22], %13 {strides = array<i32>} : memref<8x256xf32, #tpu.memory_space<vmem>>, vector<8x256xf32>,
    %c0_23 = arith.constant 0 : index
    %c0_24 = arith.constant 0 : index
    %c0_25 = arith.constant 0 : index
    %15 = vector.load %arg9[%c0_23, %c0_24, %c0_25] : memref<8x18x18xf32, #tpu.memory_space<vmem>>, vector<8x16x16xf32>
    %16 = vector.shape_cast %15 : vector<8x16x16xf32> to vector<8x256xf32>
    %c0_26 = arith.constant 0 : index
    %c0_27 = arith.constant 0 : index
    %17 = vector.load %arg11[%c0_26, %c0_27] : memref<8x256xf32, #tpu.memory_space<vmem>>, vector<8x256xf32>
    %c0_28 = arith.constant 0 : index
    %c0_29 = arith.constant 0 : index
    %c0_30 = arith.constant 0 : index
    %18 = vector.load %arg4[%c0_28, %c0_29, %c0_30] : memref<9x8x8xf32, #tpu.memory_space<vmem>>, vector<1x8x8xf32>
    %19 = vector.shape_cast %18 : vector<1x8x8xf32> to vector<8x8xf32>
    %cst_31 = arith.constant dense<0.000000e+00> : vector<8x256xf32>
    %20 = tpu.matmul %19, %16, %cst_31 {dimension_numbers = #tpu.dot_dimension_numbers<[1], [0], [0], [1], [0, 0, 1, 1], [], []>} : vector<8x8xf32>, vector<8x256xf32>, vector<8x256xf32> -> vector<8x256xf32>
    %21 = arith.addf %17, %20 : vector<8x256xf32>
    %c0_32 = arith.constant 0 : index
    %c0_33 = arith.constant 0 : index
    %22 = vector.load %arg11[%c0_32, %c0_33] : memref<8x256xf32, #tpu.memory_space<vmem>>, vector<8x256xf32>
    tpu.vector_store %arg11[%c0_32, %c0_33], %21 {strides = array<i32>} : memref<8x256xf32, #tpu.memory_space<vmem>>, vector<8x256xf32>,
    %c0_34 = arith.constant 0 : index
    %c0_35 = arith.constant 0 : index
    %c1_36 = arith.constant 1 : index
    %23 = vector.load %arg9[%c0_34, %c0_35, %c1_36] : memref<8x18x18xf32, #tpu.memory_space<vmem>>, vector<8x16x16xf32>
    %24 = vector.shape_cast %23 : vector<8x16x16xf32> to vector<8x256xf32>
    %c0_37 = arith.constant 0 : index
    %c0_38 = arith.constant 0 : index
    %25 = vector.load %arg11[%c0_37, %c0_38] : memref<8x256xf32, #tpu.memory_space<vmem>>, vector<8x256xf32>
    %c1_39 = arith.constant 1 : index
    %c0_40 = arith.constant 0 : index
    %c0_41 = arith.constant 0 : index
    %26 = vector.load %arg4[%c1_39, %c0_40, %c0_41] : memref<9x8x8xf32, #tpu.memory_space<vmem>>, vector<1x8x8xf32>
    %27 = vector.shape_cast %26 : vector<1x8x8xf32> to vector<8x8xf32>
    %cst_42 = arith.constant dense<0.000000e+00> : vector<8x256xf32>
    %28 = tpu.matmul %27, %24, %cst_42 {dimension_numbers = #tpu.dot_dimension_numbers<[1], [0], [0], [1], [0, 0, 1, 1], [], []>} : vector<8x8xf32>, vector<8x256xf32>, vector<8x256xf32> -> vector<8x256xf32>
    %29 = arith.addf %25, %28 : vector<8x256xf32>
    %c0_43 = arith.constant 0 : index
    %c0_44 = arith.constant 0 : index
    %30 = vector.load %arg11[%c0_43, %c0_44] : memref<8x256xf32, #tpu.memory_space<vmem>>, vector<8x256xf32>
    tpu.vector_store %arg11[%c0_43, %c0_44], %29 {strides = array<i32>} : memref<8x256xf32, #tpu.memory_space<vmem>>, vector<8x256xf32>,
    %c0_45 = arith.constant 0 : index
    %c0_46 = arith.constant 0 : index
    %c2 = arith.constant 2 : index
    %31 = vector.load %arg9[%c0_45, %c0_46, %c2] : memref<8x18x18xf32, #tpu.memory_space<vmem>>, vector<8x16x16xf32>
    %32 = vector.shape_cast %31 : vector<8x16x16xf32> to vector<8x256xf32>
    %c0_47 = arith.constant 0 : index
    %c0_48 = arith.constant 0 : index
    %33 = vector.load %arg11[%c0_47, %c0_48] : memref<8x256xf32, #tpu.memory_space<vmem>>, vector<8x256xf32>
    %c2_49 = arith.constant 2 : index
    %c0_50 = arith.constant 0 : index
    %c0_51 = arith.constant 0 : index
    %34 = vector.load %arg4[%c2_49, %c0_50, %c0_51] : memref<9x8x8xf32, #tpu.memory_space<vmem>>, vector<1x8x8xf32>
    %35 = vector.shape_cast %34 : vector<1x8x8xf32> to vector<8x8xf32>
    %cst_52 = arith.constant dense<0.000000e+00> : vector<8x256xf32>
    %36 = tpu.matmul %35, %32, %cst_52 {dimension_numbers = #tpu.dot_dimension_numbers<[1], [0], [0], [1], [0, 0, 1, 1], [], []>} : vector<8x8xf32>, vector<8x256xf32>, vector<8x256xf32> -> vector<8x256xf32>
    %37 = arith.addf %33, %36 : vector<8x256xf32>
    %c0_53 = arith.constant 0 : index
    %c0_54 = arith.constant 0 : index
    %38 = vector.load %arg11[%c0_53, %c0_54] : memref<8x256xf32, #tpu.memory_space<vmem>>, vector<8x256xf32>
    tpu.vector_store %arg11[%c0_53, %c0_54], %37 {strides = array<i32>} : memref<8x256xf32, #tpu.memory_space<vmem>>, vector<8x256xf32>,
    %c0_55 = arith.constant 0 : index
    %c1_56 = arith.constant 1 : index
    %c0_57 = arith.constant 0 : index
    %39 = vector.load %arg9[%c0_55, %c1_56, %c0_57] : memref<8x18x18xf32, #tpu.memory_space<vmem>>, vector<8x16x16xf32>
    %40 = vector.shape_cast %39 : vector<8x16x16xf32> to vector<8x256xf32>
    %c0_58 = arith.constant 0 : index
    %c0_59 = arith.constant 0 : index
    %41 = vector.load %arg11[%c0_58, %c0_59] : memref<8x256xf32, #tpu.memory_space<vmem>>, vector<8x256xf32>
    %c3 = arith.constant 3 : index
    %c0_60 = arith.constant 0 : index
    %c0_61 = arith.constant 0 : index
    %42 = vector.load %arg4[%c3, %c0_60, %c0_61] : memref<9x8x8xf32, #tpu.memory_space<vmem>>, vector<1x8x8xf32>
    %43 = vector.shape_cast %42 : vector<1x8x8xf32> to vector<8x8xf32>
    %cst_62 = arith.constant dense<0.000000e+00> : vector<8x256xf32>
    %44 = tpu.matmul %43, %40, %cst_62 {dimension_numbers = #tpu.dot_dimension_numbers<[1], [0], [0], [1], [0, 0, 1, 1], [], []>} : vector<8x8xf32>, vector<8x256xf32>, vector<8x256xf32> -> vector<8x256xf32>
    %45 = arith.addf %41, %44 : vector<8x256xf32>
    %c0_63 = arith.constant 0 : index
    %c0_64 = arith.constant 0 : index
    %46 = vector.load %arg11[%c0_63, %c0_64] : memref<8x256xf32, #tpu.memory_space<vmem>>, vector<8x256xf32>
    tpu.vector_store %arg11[%c0_63, %c0_64], %45 {strides = array<i32>} : memref<8x256xf32, #tpu.memory_space<vmem>>, vector<8x256xf32>,
    %c0_65 = arith.constant 0 : index
    %c1_66 = arith.constant 1 : index
    %c1_67 = arith.constant 1 : index
    %47 = vector.load %arg9[%c0_65, %c1_66, %c1_67] : memref<8x18x18xf32, #tpu.memory_space<vmem>>, vector<8x16x16xf32>
    %48 = vector.shape_cast %47 : vector<8x16x16xf32> to vector<8x256xf32>
    %c0_68 = arith.constant 0 : index
    %c0_69 = arith.constant 0 : index
    %49 = vector.load %arg11[%c0_68, %c0_69] : memref<8x256xf32, #tpu.memory_space<vmem>>, vector<8x256xf32>
    %c4_70 = arith.constant 4 : index
    %c0_71 = arith.constant 0 : index
    %c0_72 = arith.constant 0 : index
    %50 = vector.load %arg4[%c4_70, %c0_71, %c0_72] : memref<9x8x8xf32, #tpu.memory_space<vmem>>, vector<1x8x8xf32>
    %51 = vector.shape_cast %50 : vector<1x8x8xf32> to vector<8x8xf32>
    %cst_73 = arith.constant dense<0.000000e+00> : vector<8x256xf32>
    %52 = tpu.matmul %51, %48, %cst_73 {dimension_numbers = #tpu.dot_dimension_numbers<[1], [0], [0], [1], [0, 0, 1, 1], [], []>} : vector<8x8xf32>, vector<8x256xf32>, vector<8x256xf32> -> vector<8x256xf32>
    %53 = arith.addf %49, %52 : vector<8x256xf32>
    %c0_74 = arith.constant 0 : index
    %c0_75 = arith.constant 0 : index
    %54 = vector.load %arg11[%c0_74, %c0_75] : memref<8x256xf32, #tpu.memory_space<vmem>>, vector<8x256xf32>
    tpu.vector_store %arg11[%c0_74, %c0_75], %53 {strides = array<i32>} : memref<8x256xf32, #tpu.memory_space<vmem>>, vector<8x256xf32>,
    %c0_76 = arith.constant 0 : index
    %c1_77 = arith.constant 1 : index
    %c2_78 = arith.constant 2 : index
    %55 = vector.load %arg9[%c0_76, %c1_77, %c2_78] : memref<8x18x18xf32, #tpu.memory_space<vmem>>, vector<8x16x16xf32>
    %56 = vector.shape_cast %55 : vector<8x16x16xf32> to vector<8x256xf32>
    %c0_79 = arith.constant 0 : index
    %c0_80 = arith.constant 0 : index
    %57 = vector.load %arg11[%c0_79, %c0_80] : memref<8x256xf32, #tpu.memory_space<vmem>>, vector<8x256xf32>
    %c5 = arith.constant 5 : index
    %c0_81 = arith.constant 0 : index
    %c0_82 = arith.constant 0 : index
    %58 = vector.load %arg4[%c5, %c0_81, %c0_82] : memref<9x8x8xf32, #tpu.memory_space<vmem>>, vector<1x8x8xf32>
    %59 = vector.shape_cast %58 : vector<1x8x8xf32> to vector<8x8xf32>
    %cst_83 = arith.constant dense<0.000000e+00> : vector<8x256xf32>
    %60 = tpu.matmul %59, %56, %cst_83 {dimension_numbers = #tpu.dot_dimension_numbers<[1], [0], [0], [1], [0, 0, 1, 1], [], []>} : vector<8x8xf32>, vector<8x256xf32>, vector<8x256xf32> -> vector<8x256xf32>
    %61 = arith.addf %57, %60 : vector<8x256xf32>
    %c0_84 = arith.constant 0 : index
    %c0_85 = arith.constant 0 : index
    %62 = vector.load %arg11[%c0_84, %c0_85] : memref<8x256xf32, #tpu.memory_space<vmem>>, vector<8x256xf32>
    tpu.vector_store %arg11[%c0_84, %c0_85], %61 {strides = array<i32>} : memref<8x256xf32, #tpu.memory_space<vmem>>, vector<8x256xf32>,
    %c0_86 = arith.constant 0 : index
    %c2_87 = arith.constant 2 : index
    %c0_88 = arith.constant 0 : index
    %63 = vector.load %arg9[%c0_86, %c2_87, %c0_88] : memref<8x18x18xf32, #tpu.memory_space<vmem>>, vector<8x16x16xf32>
    %64 = vector.shape_cast %63 : vector<8x16x16xf32> to vector<8x256xf32>
    %c0_89 = arith.constant 0 : index
    %c0_90 = arith.constant 0 : index
    %65 = vector.load %arg11[%c0_89, %c0_90] : memref<8x256xf32, #tpu.memory_space<vmem>>, vector<8x256xf32>
    %c6 = arith.constant 6 : index
    %c0_91 = arith.constant 0 : index
    %c0_92 = arith.constant 0 : index
    %66 = vector.load %arg4[%c6, %c0_91, %c0_92] : memref<9x8x8xf32, #tpu.memory_space<vmem>>, vector<1x8x8xf32>
    %67 = vector.shape_cast %66 : vector<1x8x8xf32> to vector<8x8xf32>
    %cst_93 = arith.constant dense<0.000000e+00> : vector<8x256xf32>
    %68 = tpu.matmul %67, %64, %cst_93 {dimension_numbers = #tpu.dot_dimension_numbers<[1], [0], [0], [1], [0, 0, 1, 1], [], []>} : vector<8x8xf32>, vector<8x256xf32>, vector<8x256xf32> -> vector<8x256xf32>
    %69 = arith.addf %65, %68 : vector<8x256xf32>
    %c0_94 = arith.constant 0 : index
    %c0_95 = arith.constant 0 : index
    %70 = vector.load %arg11[%c0_94, %c0_95] : memref<8x256xf32, #tpu.memory_space<vmem>>, vector<8x256xf32>
    tpu.vector_store %arg11[%c0_94, %c0_95], %69 {strides = array<i32>} : memref<8x256xf32, #tpu.memory_space<vmem>>, vector<8x256xf32>,
    %c0_96 = arith.constant 0 : index
    %c2_97 = arith.constant 2 : index
    %c1_98 = arith.constant 1 : index
    %71 = vector.load %arg9[%c0_96, %c2_97, %c1_98] : memref<8x18x18xf32, #tpu.memory_space<vmem>>, vector<8x16x16xf32>
    %72 = vector.shape_cast %71 : vector<8x16x16xf32> to vector<8x256xf32>
    %c0_99 = arith.constant 0 : index
    %c0_100 = arith.constant 0 : index
    %73 = vector.load %arg11[%c0_99, %c0_100] : memref<8x256xf32, #tpu.memory_space<vmem>>, vector<8x256xf32>
    %c7 = arith.constant 7 : index
    %c0_101 = arith.constant 0 : index
    %c0_102 = arith.constant 0 : index
    %74 = vector.load %arg4[%c7, %c0_101, %c0_102] : memref<9x8x8xf32, #tpu.memory_space<vmem>>, vector<1x8x8xf32>
    %75 = vector.shape_cast %74 : vector<1x8x8xf32> to vector<8x8xf32>
    %cst_103 = arith.constant dense<0.000000e+00> : vector<8x256xf32>
    %76 = tpu.matmul %75, %72, %cst_103 {dimension_numbers = #tpu.dot_dimension_numbers<[1], [0], [0], [1], [0, 0, 1, 1], [], []>} : vector<8x8xf32>, vector<8x256xf32>, vector<8x256xf32> -> vector<8x256xf32>
    %77 = arith.addf %73, %76 : vector<8x256xf32>
    %c0_104 = arith.constant 0 : index
    %c0_105 = arith.constant 0 : index
    %78 = vector.load %arg11[%c0_104, %c0_105] : memref<8x256xf32, #tpu.memory_space<vmem>>, vector<8x256xf32>
    tpu.vector_store %arg11[%c0_104, %c0_105], %77 {strides = array<i32>} : memref<8x256xf32, #tpu.memory_space<vmem>>, vector<8x256xf32>,
    %c0_106 = arith.constant 0 : index
    %c2_107 = arith.constant 2 : index
    %c2_108 = arith.constant 2 : index
    %79 = vector.load %arg9[%c0_106, %c2_107, %c2_108] : memref<8x18x18xf32, #tpu.memory_space<vmem>>, vector<8x16x16xf32>
    %80 = vector.shape_cast %79 : vector<8x16x16xf32> to vector<8x256xf32>
    %c0_109 = arith.constant 0 : index
    %c0_110 = arith.constant 0 : index
    %81 = vector.load %arg11[%c0_109, %c0_110] : memref<8x256xf32, #tpu.memory_space<vmem>>, vector<8x256xf32>
    %c8 = arith.constant 8 : index
    %c0_111 = arith.constant 0 : index
    %c0_112 = arith.constant 0 : index
    %82 = vector.load %arg4[%c8, %c0_111, %c0_112] : memref<9x8x8xf32, #tpu.memory_space<vmem>>, vector<1x8x8xf32>
    %83 = vector.shape_cast %82 : vector<1x8x8xf32> to vector<8x8xf32>
    %cst_113 = arith.constant dense<0.000000e+00> : vector<8x256xf32>
    %84 = tpu.matmul %83, %80, %cst_113 {dimension_numbers = #tpu.dot_dimension_numbers<[1], [0], [0], [1], [0, 0, 1, 1], [], []>} : vector<8x8xf32>, vector<8x256xf32>, vector<8x256xf32> -> vector<8x256xf32>
    %85 = arith.addf %81, %84 : vector<8x256xf32>
    %c0_114 = arith.constant 0 : index
    %c0_115 = arith.constant 0 : index
    %86 = vector.load %arg11[%c0_114, %c0_115] : memref<8x256xf32, #tpu.memory_space<vmem>>, vector<8x256xf32>
    tpu.vector_store %arg11[%c0_114, %c0_115], %85 {strides = array<i32>} : memref<8x256xf32, #tpu.memory_space<vmem>>, vector<8x256xf32>,
    %c0_116 = arith.constant 0 : index
    %c0_117 = arith.constant 0 : index
    %87 = vector.load %arg11[%c0_116, %c0_117] : memref<8x256xf32, #tpu.memory_space<vmem>>, vector<8x256xf32>
    %c0_118 = arith.constant 0 : index
    %c0_119 = arith.constant 0 : index
    %88 = vector.load %arg5[%c0_118, %c0_119] : memref<8x1xf32, #tpu.memory_space<vmem>>, vector<8x1xf32>
    %89 = vector.broadcast %88 : vector<8x1xf32> to vector<8x256xf32>
    %90 = arith.addf %87, %89 : vector<8x256xf32>
    %cst_120 = arith.constant 0.000000e+00 : f32
    %91 = vector.broadcast %cst_120 : f32 to vector<8x256xf32>
    %92 = arith.maximumf %90, %91 : vector<8x256xf32>
    %93 = vector.shape_cast %92 : vector<8x256xf32> to vector<8x16x16xf32>
    %c0_121 = arith.constant 0 : index
    %c1_122 = arith.constant 1 : index
    %c1_123 = arith.constant 1 : index
    %94 = vector.load %arg10[%c0_121, %c1_122, %c1_123] : memref<8x18x18xf32, #tpu.memory_space<vmem>>, vector<8x16x16xf32>
    tpu.vector_store %arg10[%c0_121, %c1_122, %c1_123], %93 {strides = array<i32>} : memref<8x18x18xf32, #tpu.memory_space<vmem>>, vector<8x16x16xf32>,
    %cst_124 = arith.constant 0.000000e+00 : f32
    %95 = vector.broadcast %cst_124 : f32 to vector<8x256xf32>
    %c0_125 = arith.constant 0 : index
    %c0_126 = arith.constant 0 : index
    %96 = vector.load %arg11[%c0_125, %c0_126] : memref<8x256xf32, #tpu.memory_space<vmem>>, vector<8x256xf32>
    tpu.vector_store %arg11[%c0_125, %c0_126], %95 {strides = array<i32>} : memref<8x256xf32, #tpu.memory_space<vmem>>, vector<8x256xf32>,
    %c0_127 = arith.constant 0 : index
    %c0_128 = arith.constant 0 : index
    %c0_129 = arith.constant 0 : index
    %97 = vector.load %arg10[%c0_127, %c0_128, %c0_129] : memref<8x18x18xf32, #tpu.memory_space<vmem>>, vector<8x16x16xf32>
    %98 = vector.shape_cast %97 : vector<8x16x16xf32> to vector<8x256xf32>
    %c0_130 = arith.constant 0 : index
    %c0_131 = arith.constant 0 : index
    %99 = vector.load %arg11[%c0_130, %c0_131] : memref<8x256xf32, #tpu.memory_space<vmem>>, vector<8x256xf32>
    %c0_132 = arith.constant 0 : index
    %c0_133 = arith.constant 0 : index
    %c0_134 = arith.constant 0 : index
    %100 = vector.load %arg6[%c0_132, %c0_133, %c0_134] : memref<9x8x8xf32, #tpu.memory_space<vmem>>, vector<1x8x8xf32>
    %101 = vector.shape_cast %100 : vector<1x8x8xf32> to vector<8x8xf32>
    %cst_135 = arith.constant dense<0.000000e+00> : vector<8x256xf32>
    %102 = tpu.matmul %101, %98, %cst_135 {dimension_numbers = #tpu.dot_dimension_numbers<[1], [0], [0], [1], [0, 0, 1, 1], [], []>} : vector<8x8xf32>, vector<8x256xf32>, vector<8x256xf32> -> vector<8x256xf32>
    %103 = arith.addf %99, %102 : vector<8x256xf32>
    %c0_136 = arith.constant 0 : index
    %c0_137 = arith.constant 0 : index
    %104 = vector.load %arg11[%c0_136, %c0_137] : memref<8x256xf32, #tpu.memory_space<vmem>>, vector<8x256xf32>
    tpu.vector_store %arg11[%c0_136, %c0_137], %103 {strides = array<i32>} : memref<8x256xf32, #tpu.memory_space<vmem>>, vector<8x256xf32>,
    %c0_138 = arith.constant 0 : index
    %c0_139 = arith.constant 0 : index
    %c1_140 = arith.constant 1 : index
    %105 = vector.load %arg10[%c0_138, %c0_139, %c1_140] : memref<8x18x18xf32, #tpu.memory_space<vmem>>, vector<8x16x16xf32>
    %106 = vector.shape_cast %105 : vector<8x16x16xf32> to vector<8x256xf32>
    %c0_141 = arith.constant 0 : index
    %c0_142 = arith.constant 0 : index
    %107 = vector.load %arg11[%c0_141, %c0_142] : memref<8x256xf32, #tpu.memory_space<vmem>>, vector<8x256xf32>
    %c1_143 = arith.constant 1 : index
    %c0_144 = arith.constant 0 : index
    %c0_145 = arith.constant 0 : index
    %108 = vector.load %arg6[%c1_143, %c0_144, %c0_145] : memref<9x8x8xf32, #tpu.memory_space<vmem>>, vector<1x8x8xf32>
    %109 = vector.shape_cast %108 : vector<1x8x8xf32> to vector<8x8xf32>
    %cst_146 = arith.constant dense<0.000000e+00> : vector<8x256xf32>
    %110 = tpu.matmul %109, %106, %cst_146 {dimension_numbers = #tpu.dot_dimension_numbers<[1], [0], [0], [1], [0, 0, 1, 1], [], []>} : vector<8x8xf32>, vector<8x256xf32>, vector<8x256xf32> -> vector<8x256xf32>
    %111 = arith.addf %107, %110 : vector<8x256xf32>
    %c0_147 = arith.constant 0 : index
    %c0_148 = arith.constant 0 : index
    %112 = vector.load %arg11[%c0_147, %c0_148] : memref<8x256xf32, #tpu.memory_space<vmem>>, vector<8x256xf32>
    tpu.vector_store %arg11[%c0_147, %c0_148], %111 {strides = array<i32>} : memref<8x256xf32, #tpu.memory_space<vmem>>, vector<8x256xf32>,
    %c0_149 = arith.constant 0 : index
    %c0_150 = arith.constant 0 : index
    %c2_151 = arith.constant 2 : index
    %113 = vector.load %arg10[%c0_149, %c0_150, %c2_151] : memref<8x18x18xf32, #tpu.memory_space<vmem>>, vector<8x16x16xf32>
    %114 = vector.shape_cast %113 : vector<8x16x16xf32> to vector<8x256xf32>
    %c0_152 = arith.constant 0 : index
    %c0_153 = arith.constant 0 : index
    %115 = vector.load %arg11[%c0_152, %c0_153] : memref<8x256xf32, #tpu.memory_space<vmem>>, vector<8x256xf32>
    %c2_154 = arith.constant 2 : index
    %c0_155 = arith.constant 0 : index
    %c0_156 = arith.constant 0 : index
    %116 = vector.load %arg6[%c2_154, %c0_155, %c0_156] : memref<9x8x8xf32, #tpu.memory_space<vmem>>, vector<1x8x8xf32>
    %117 = vector.shape_cast %116 : vector<1x8x8xf32> to vector<8x8xf32>
    %cst_157 = arith.constant dense<0.000000e+00> : vector<8x256xf32>
    %118 = tpu.matmul %117, %114, %cst_157 {dimension_numbers = #tpu.dot_dimension_numbers<[1], [0], [0], [1], [0, 0, 1, 1], [], []>} : vector<8x8xf32>, vector<8x256xf32>, vector<8x256xf32> -> vector<8x256xf32>
    %119 = arith.addf %115, %118 : vector<8x256xf32>
    %c0_158 = arith.constant 0 : index
    %c0_159 = arith.constant 0 : index
    %120 = vector.load %arg11[%c0_158, %c0_159] : memref<8x256xf32, #tpu.memory_space<vmem>>, vector<8x256xf32>
    tpu.vector_store %arg11[%c0_158, %c0_159], %119 {strides = array<i32>} : memref<8x256xf32, #tpu.memory_space<vmem>>, vector<8x256xf32>,
    %c0_160 = arith.constant 0 : index
    %c1_161 = arith.constant 1 : index
    %c0_162 = arith.constant 0 : index
    %121 = vector.load %arg10[%c0_160, %c1_161, %c0_162] : memref<8x18x18xf32, #tpu.memory_space<vmem>>, vector<8x16x16xf32>
    %122 = vector.shape_cast %121 : vector<8x16x16xf32> to vector<8x256xf32>
    %c0_163 = arith.constant 0 : index
    %c0_164 = arith.constant 0 : index
    %123 = vector.load %arg11[%c0_163, %c0_164] : memref<8x256xf32, #tpu.memory_space<vmem>>, vector<8x256xf32>
    %c3_165 = arith.constant 3 : index
    %c0_166 = arith.constant 0 : index
    %c0_167 = arith.constant 0 : index
    %124 = vector.load %arg6[%c3_165, %c0_166, %c0_167] : memref<9x8x8xf32, #tpu.memory_space<vmem>>, vector<1x8x8xf32>
    %125 = vector.shape_cast %124 : vector<1x8x8xf32> to vector<8x8xf32>
    %cst_168 = arith.constant dense<0.000000e+00> : vector<8x256xf32>
    %126 = tpu.matmul %125, %122, %cst_168 {dimension_numbers = #tpu.dot_dimension_numbers<[1], [0], [0], [1], [0, 0, 1, 1], [], []>} : vector<8x8xf32>, vector<8x256xf32>, vector<8x256xf32> -> vector<8x256xf32>
    %127 = arith.addf %123, %126 : vector<8x256xf32>
    %c0_169 = arith.constant 0 : index
    %c0_170 = arith.constant 0 : index
    %128 = vector.load %arg11[%c0_169, %c0_170] : memref<8x256xf32, #tpu.memory_space<vmem>>, vector<8x256xf32>
    tpu.vector_store %arg11[%c0_169, %c0_170], %127 {strides = array<i32>} : memref<8x256xf32, #tpu.memory_space<vmem>>, vector<8x256xf32>,
    %c0_171 = arith.constant 0 : index
    %c1_172 = arith.constant 1 : index
    %c1_173 = arith.constant 1 : index
    %129 = vector.load %arg10[%c0_171, %c1_172, %c1_173] : memref<8x18x18xf32, #tpu.memory_space<vmem>>, vector<8x16x16xf32>
    %130 = vector.shape_cast %129 : vector<8x16x16xf32> to vector<8x256xf32>
    %c0_174 = arith.constant 0 : index
    %c0_175 = arith.constant 0 : index
    %131 = vector.load %arg11[%c0_174, %c0_175] : memref<8x256xf32, #tpu.memory_space<vmem>>, vector<8x256xf32>
    %c4_176 = arith.constant 4 : index
    %c0_177 = arith.constant 0 : index
    %c0_178 = arith.constant 0 : index
    %132 = vector.load %arg6[%c4_176, %c0_177, %c0_178] : memref<9x8x8xf32, #tpu.memory_space<vmem>>, vector<1x8x8xf32>
    %133 = vector.shape_cast %132 : vector<1x8x8xf32> to vector<8x8xf32>
    %cst_179 = arith.constant dense<0.000000e+00> : vector<8x256xf32>
    %134 = tpu.matmul %133, %130, %cst_179 {dimension_numbers = #tpu.dot_dimension_numbers<[1], [0], [0], [1], [0, 0, 1, 1], [], []>} : vector<8x8xf32>, vector<8x256xf32>, vector<8x256xf32> -> vector<8x256xf32>
    %135 = arith.addf %131, %134 : vector<8x256xf32>
    %c0_180 = arith.constant 0 : index
    %c0_181 = arith.constant 0 : index
    %136 = vector.load %arg11[%c0_180, %c0_181] : memref<8x256xf32, #tpu.memory_space<vmem>>, vector<8x256xf32>
    tpu.vector_store %arg11[%c0_180, %c0_181], %135 {strides = array<i32>} : memref<8x256xf32, #tpu.memory_space<vmem>>, vector<8x256xf32>,
    %c0_182 = arith.constant 0 : index
    %c1_183 = arith.constant 1 : index
    %c2_184 = arith.constant 2 : index
    %137 = vector.load %arg10[%c0_182, %c1_183, %c2_184] : memref<8x18x18xf32, #tpu.memory_space<vmem>>, vector<8x16x16xf32>
    %138 = vector.shape_cast %137 : vector<8x16x16xf32> to vector<8x256xf32>
    %c0_185 = arith.constant 0 : index
    %c0_186 = arith.constant 0 : index
    %139 = vector.load %arg11[%c0_185, %c0_186] : memref<8x256xf32, #tpu.memory_space<vmem>>, vector<8x256xf32>
    %c5_187 = arith.constant 5 : index
    %c0_188 = arith.constant 0 : index
    %c0_189 = arith.constant 0 : index
    %140 = vector.load %arg6[%c5_187, %c0_188, %c0_189] : memref<9x8x8xf32, #tpu.memory_space<vmem>>, vector<1x8x8xf32>
    %141 = vector.shape_cast %140 : vector<1x8x8xf32> to vector<8x8xf32>
    %cst_190 = arith.constant dense<0.000000e+00> : vector<8x256xf32>
    %142 = tpu.matmul %141, %138, %cst_190 {dimension_numbers = #tpu.dot_dimension_numbers<[1], [0], [0], [1], [0, 0, 1, 1], [], []>} : vector<8x8xf32>, vector<8x256xf32>, vector<8x256xf32> -> vector<8x256xf32>
    %143 = arith.addf %139, %142 : vector<8x256xf32>
    %c0_191 = arith.constant 0 : index
    %c0_192 = arith.constant 0 : index
    %144 = vector.load %arg11[%c0_191, %c0_192] : memref<8x256xf32, #tpu.memory_space<vmem>>, vector<8x256xf32>
    tpu.vector_store %arg11[%c0_191, %c0_192], %143 {strides = array<i32>} : memref<8x256xf32, #tpu.memory_space<vmem>>, vector<8x256xf32>,
    %c0_193 = arith.constant 0 : index
    %c2_194 = arith.constant 2 : index
    %c0_195 = arith.constant 0 : index
    %145 = vector.load %arg10[%c0_193, %c2_194, %c0_195] : memref<8x18x18xf32, #tpu.memory_space<vmem>>, vector<8x16x16xf32>
    %146 = vector.shape_cast %145 : vector<8x16x16xf32> to vector<8x256xf32>
    %c0_196 = arith.constant 0 : index
    %c0_197 = arith.constant 0 : index
    %147 = vector.load %arg11[%c0_196, %c0_197] : memref<8x256xf32, #tpu.memory_space<vmem>>, vector<8x256xf32>
    %c6_198 = arith.constant 6 : index
    %c0_199 = arith.constant 0 : index
    %c0_200 = arith.constant 0 : index
    %148 = vector.load %arg6[%c6_198, %c0_199, %c0_200] : memref<9x8x8xf32, #tpu.memory_space<vmem>>, vector<1x8x8xf32>
    %149 = vector.shape_cast %148 : vector<1x8x8xf32> to vector<8x8xf32>
    %cst_201 = arith.constant dense<0.000000e+00> : vector<8x256xf32>
    %150 = tpu.matmul %149, %146, %cst_201 {dimension_numbers = #tpu.dot_dimension_numbers<[1], [0], [0], [1], [0, 0, 1, 1], [], []>} : vector<8x8xf32>, vector<8x256xf32>, vector<8x256xf32> -> vector<8x256xf32>
    %151 = arith.addf %147, %150 : vector<8x256xf32>
    %c0_202 = arith.constant 0 : index
    %c0_203 = arith.constant 0 : index
    %152 = vector.load %arg11[%c0_202, %c0_203] : memref<8x256xf32, #tpu.memory_space<vmem>>, vector<8x256xf32>
    tpu.vector_store %arg11[%c0_202, %c0_203], %151 {strides = array<i32>} : memref<8x256xf32, #tpu.memory_space<vmem>>, vector<8x256xf32>,
    %c0_204 = arith.constant 0 : index
    %c2_205 = arith.constant 2 : index
    %c1_206 = arith.constant 1 : index
    %153 = vector.load %arg10[%c0_204, %c2_205, %c1_206] : memref<8x18x18xf32, #tpu.memory_space<vmem>>, vector<8x16x16xf32>
    %154 = vector.shape_cast %153 : vector<8x16x16xf32> to vector<8x256xf32>
    %c0_207 = arith.constant 0 : index
    %c0_208 = arith.constant 0 : index
    %155 = vector.load %arg11[%c0_207, %c0_208] : memref<8x256xf32, #tpu.memory_space<vmem>>, vector<8x256xf32>
    %c7_209 = arith.constant 7 : index
    %c0_210 = arith.constant 0 : index
    %c0_211 = arith.constant 0 : index
    %156 = vector.load %arg6[%c7_209, %c0_210, %c0_211] : memref<9x8x8xf32, #tpu.memory_space<vmem>>, vector<1x8x8xf32>
    %157 = vector.shape_cast %156 : vector<1x8x8xf32> to vector<8x8xf32>
    %cst_212 = arith.constant dense<0.000000e+00> : vector<8x256xf32>
    %158 = tpu.matmul %157, %154, %cst_212 {dimension_numbers = #tpu.dot_dimension_numbers<[1], [0], [0], [1], [0, 0, 1, 1], [], []>} : vector<8x8xf32>, vector<8x256xf32>, vector<8x256xf32> -> vector<8x256xf32>
    %159 = arith.addf %155, %158 : vector<8x256xf32>
    %c0_213 = arith.constant 0 : index
    %c0_214 = arith.constant 0 : index
    %160 = vector.load %arg11[%c0_213, %c0_214] : memref<8x256xf32, #tpu.memory_space<vmem>>, vector<8x256xf32>
    tpu.vector_store %arg11[%c0_213, %c0_214], %159 {strides = array<i32>} : memref<8x256xf32, #tpu.memory_space<vmem>>, vector<8x256xf32>,
    %c0_215 = arith.constant 0 : index
    %c2_216 = arith.constant 2 : index
    %c2_217 = arith.constant 2 : index
    %161 = vector.load %arg10[%c0_215, %c2_216, %c2_217] : memref<8x18x18xf32, #tpu.memory_space<vmem>>, vector<8x16x16xf32>
    %162 = vector.shape_cast %161 : vector<8x16x16xf32> to vector<8x256xf32>
    %c0_218 = arith.constant 0 : index
    %c0_219 = arith.constant 0 : index
    %163 = vector.load %arg11[%c0_218, %c0_219] : memref<8x256xf32, #tpu.memory_space<vmem>>, vector<8x256xf32>
    %c8_220 = arith.constant 8 : index
    %c0_221 = arith.constant 0 : index
    %c0_222 = arith.constant 0 : index
    %164 = vector.load %arg6[%c8_220, %c0_221, %c0_222] : memref<9x8x8xf32, #tpu.memory_space<vmem>>, vector<1x8x8xf32>
    %165 = vector.shape_cast %164 : vector<1x8x8xf32> to vector<8x8xf32>
    %cst_223 = arith.constant dense<0.000000e+00> : vector<8x256xf32>
    %166 = tpu.matmul %165, %162, %cst_223 {dimension_numbers = #tpu.dot_dimension_numbers<[1], [0], [0], [1], [0, 0, 1, 1], [], []>} : vector<8x8xf32>, vector<8x256xf32>, vector<8x256xf32> -> vector<8x256xf32>
    %167 = arith.addf %163, %166 : vector<8x256xf32>
    %c0_224 = arith.constant 0 : index
    %c0_225 = arith.constant 0 : index
    %168 = vector.load %arg11[%c0_224, %c0_225] : memref<8x256xf32, #tpu.memory_space<vmem>>, vector<8x256xf32>
    tpu.vector_store %arg11[%c0_224, %c0_225], %167 {strides = array<i32>} : memref<8x256xf32, #tpu.memory_space<vmem>>, vector<8x256xf32>,
    %c0_226 = arith.constant 0 : index
    %c0_227 = arith.constant 0 : index
    %169 = vector.load %arg11[%c0_226, %c0_227] : memref<8x256xf32, #tpu.memory_space<vmem>>, vector<8x256xf32>
    %c0_228 = arith.constant 0 : index
    %c0_229 = arith.constant 0 : index
    %170 = vector.load %arg7[%c0_228, %c0_229] : memref<8x1xf32, #tpu.memory_space<vmem>>, vector<8x1xf32>
    %171 = vector.broadcast %170 : vector<8x1xf32> to vector<8x256xf32>
    %172 = arith.addf %169, %171 : vector<8x256xf32>
    %cst_230 = arith.constant 0.000000e+00 : f32
    %173 = vector.broadcast %cst_230 : f32 to vector<8x256xf32>
    %174 = arith.maximumf %172, %173 : vector<8x256xf32>
    %c0_231 = arith.constant 0 : index
    %c0_232 = arith.constant 0 : index
    %c0_233 = arith.constant 0 : index
    %175 = vector.load %arg8[%c0_231, %c0_232, %c0_233] : memref<1x8x256xf32, #tpu.memory_space<vmem>>, vector<1x8x256xf32>
    %176 = vector.shape_cast %175 : vector<1x8x256xf32> to vector<8x256xf32>
    %177 = vector.shape_cast %174 : vector<8x256xf32> to vector<1x8x256xf32>
    tpu.vector_store %arg8[%c0_231, %c0_232, %c0_233], %177 {strides = array<i32>} : memref<1x8x256xf32, #tpu.memory_space<vmem>>, vector<1x8x256xf32>,
    return
  }
  func.func @transform_0(%arg0: i32) -> (i32, i32, i32) {
    %c0_i32 = arith.constant 0 : i32
    %c0_i32_0 = arith.constant 0 : i32
    %c0_i32_1 = arith.constant 0 : i32
    return %arg0, %c0_i32, %c0_i32_0 : i32, i32, i32
  }
  func.func @transform_1(%arg0: i32) -> (i32, i32, i32, i32) {
    %c0_i32 = arith.constant 0 : i32
    %c0_i32_0 = arith.constant 0 : i32
    %c0_i32_1 = arith.constant 0 : i32
    %c0_i32_2 = arith.constant 0 : i32
    return %arg0, %c0_i32, %c0_i32_0, %c0_i32_1 : i32, i32, i32, i32
  }
  func.func @transform_2(%arg0: i32) -> (i32, i32) {
    %c0_i32 = arith.constant 0 : i32
    %c0_i32_0 = arith.constant 0 : i32
    %c0_i32_1 = arith.constant 0 : i32
    return %c0_i32, %c0_i32_0 : i32, i32
  }
  func.func @transform_3(%arg0: i32) -> (i32, i32, i32) {
    %c0_i32 = arith.constant 0 : i32
    %c0_i32_0 = arith.constant 0 : i32
    %c0_i32_1 = arith.constant 0 : i32
    %c0_i32_2 = arith.constant 0 : i32
    return %c0_i32, %c0_i32_0, %c0_i32_1 : i32, i32, i32
  }
  func.func @transform_4(%arg0: i32) -> (i32, i32) {
    %c0_i32 = arith.constant 0 : i32
    %c0_i32_0 = arith.constant 0 : i32
    %c0_i32_1 = arith.constant 0 : i32
    return %c0_i32, %c0_i32_0 : i32, i32
  }
  func.func @transform_5(%arg0: i32) -> (i32, i32, i32) {
    %c0_i32 = arith.constant 0 : i32
    %c0_i32_0 = arith.constant 0 : i32
    %c0_i32_1 = arith.constant 0 : i32
    %c0_i32_2 = arith.constant 0 : i32
    return %c0_i32, %c0_i32_0, %c0_i32_1 : i32, i32, i32
  }
  func.func @transform_6(%arg0: i32) -> (i32, i32) {
    %c0_i32 = arith.constant 0 : i32
    %c0_i32_0 = arith.constant 0 : i32
    %c0_i32_1 = arith.constant 0 : i32
    return %c0_i32, %c0_i32_0 : i32, i32
  }
  func.func @transform_7(%arg0: i32) -> (i32, i32, i32) {
    %c0_i32 = arith.constant 0 : i32
    %c0_i32_0 = arith.constant 0 : i32
    %c0_i32_1 = arith.constant 0 : i32
    return %arg0, %c0_i32, %c0_i32_0 : i32, i32, i32
  }
}

</mosaic_0001>

<llo_original>
// kernel: tpu_custom_call.1
$region0: #{tpu_custom_call.1}
  #allocation0 [shape = 'u32[]', space=smem, size = 0x4, offset = 0x4, fixed_abs, tag = 'smem constant byte address 0x4 - core index']
  #allocation1 [shape = 'u32[72,128]{1,0:T(1,128)}', space=vmem, size = 0x9000, scoped, tag = 'internal scratch']
  #allocation2 [shape = 'f32[8,18,18]{2,1,0:T(8,128)}', space=vmem, size = 0x18000, scoped, tag = 'scratch operand']
  #allocation3 [shape = 'f32[8,18,18]{2,1,0:T(8,128)}', space=vmem, size = 0x18000, scoped, tag = 'scratch operand']
  #allocation4 [shape = 'f32[8,256]{1,0:T(8,128)}', space=vmem, size = 0x2000, scoped, tag = 'scratch operand']
  %s0 = inlined_call_operand.vmem [shape: f32[2,4,64], index: 0, kind: input, shape index: {}]
  %s1 = inlined_call_operand.vmem [shape: f32[2,4,16,16], index: 1, kind: input, shape index: {}]
  %s2 = inlined_call_operand.hbm [shape: f32[64,256], index: 2, kind: input, shape index: {}]
  %s3 = inlined_call_operand.vmem [shape: f32[9,8,8], index: 3, kind: input, shape index: {}]
  %s4 = inlined_call_operand.vmem [shape: f32[8,1], index: 4, kind: input, shape index: {}]
  %s5 = inlined_call_operand.vmem [shape: f32[9,8,8], index: 5, kind: input, shape index: {}]
  %s6 = inlined_call_operand.vmem [shape: f32[8,1], index: 6, kind: input, shape index: {}]
  %s7 = inlined_call_operand.hbm [shape: f32[2,8,256], index: 7, kind: output, shape index: {}]
  %s8 = sld [smem:[#allocation0]]
  $region65: #{tpu_custom_call.1} parent=0
    _
  %s10 = ssub.s32 1, %s8
  %s11 = scalar_select 0, %s10, %s8
  $region1: #{tpu_custom_call.1} parent=0
    #allocation5 [shape = 'u8[65536]{0}', space=vmem, size = 0x10000, scoped, tag = 'input window, operand 2, single buffered']
    #allocation6 [shape = 's32[2]{0}', space=sflag, size = 0x8, scoped, tag = 'scoped memory for tpu_custom_call.1']
    #allocation7 [shape = 's32[2]{0}', space=sflag, size = 0x8, scoped, tag = 'scoped memory for tpu_custom_call.1']
    #allocation8 [shape = 'u8[16384]{0}', space=vmem, size = 0x4000, scoped, tag = 'output window, operand 0']
    %12 = vsyncpa [#allocation6], 0
    %13 = vsyncpa [#allocation7], 0
    %s14 = scalar_lea.sflag [#allocation7], 1
    %15 = vsyncpa %s14, 0
    loop: start=0, step=1, limit=4
    $region2: #{tpu_custom_call.1} parent=1 // loop_pre_header
      _
    $region3: #{tpu_custom_call.1} parent=1 // loop_header
      %s17 = sphi 0, %s21
      %p18 = scmp.ge.s32.totalorder %s17, 4
      %s27 = sphi 0, %s29
      %s30 = sphi 0, %s27
      %s31 = sphi 0, %s30
      %s47 = sphi 0, %s31
      %s53 = sphi 0, %s55
      %s56 = sphi 0, %s53
      %s57 = sphi 0, %s56
      %s73 = sphi 0, %s57
      %s77 = sphi 0, %s77
      %s79 = sphi 0, %s77
      %s80 = sphi 0, %s79
      %s94 = sphi 0, %s80
      %s98 = sphi 0, %s98
      %s100 = sphi 0, %s98
      %s101 = sphi 0, %s100
      %s115 = sphi 0, %s101
      %s119 = sphi 0, %s119
      %s121 = sphi 0, %s119
      %s122 = sphi 0, %s121
      %s136 = sphi 0, %s122
      %s140 = sphi 0, %s140
      %s142 = sphi 0, %s140
      %s143 = sphi 0, %s142
      %s157 = sphi 0, %s143
      %s161 = sphi 0, %s161
      %s163 = sphi 0, %s161
      %s164 = sphi 0, %s163
      %s178 = sphi 0, %s164
      %s184 = sphi 0, %s186
      %s187 = sphi 0, %s184
      %s188 = sphi 0, %s187
      %s204 = sphi 0, %s188
    $region4: #{tpu_custom_call.1} parent=1 // loop_header_branch
      %20 = sbr.rel (%p18) target = $region8
    $region5: #{tpu_custom_call.1} parent=1 // loop_body
      %s22 = ssub.s32 %s17, 1
      %s23 = ssub.s32 %s17, 2
      %s24 = sadd.s32 %s17, 1
      %s25 = ssub.s32 %s17, %s24
      %p26 = scmp.eq.s32.totalorder %s25, 0
      %s28 = sadd.s32 %s27, 1
      %s29 = scalar_select %p26, %s27, %s28
      %p32 = pneg %p26
      %p33 = scmp.eq.s32.totalorder %s17, 1
      %p34 = por %p32, %p33
      %p35 = scmp.ne.s32.totalorder %s27, %s30
      %p36 = scmp.eq.s32.totalorder %s17, 0
      %p37 = por %p35, %p36
      %p38 = scmp.ne.s32.totalorder %s27, %s30
      %p39 = scmp.eq.s32.totalorder %s22, 1
      %p40 = por %p38, %p39
      %p41 = scmp.ne.s32.totalorder %s30, %s31
      %p42 = scmp.eq.s32.totalorder %s22, 0
      %p43 = por %p41, %p42
      %p44 = scmp.ne.s32.totalorder %s30, %s31
      %p45 = scmp.eq.s32.totalorder %s23, 1
      %p46 = por %p44, %p45
      %p48 = scmp.ne.s32.totalorder %s31, %s47
      %p49 = scmp.eq.s32.totalorder %s23, 0
      %p50 = por %p48, %p49
      %s51 = ssub.s32 %s17, %s24
      %p52 = scmp.eq.s32.totalorder %s51, 0
      %s54 = sadd.s32 %s53, 1
      %s55 = scalar_select %p52, %s53, %s54
      %p58 = pneg %p52
      %p59 = scmp.eq.s32.totalorder %s17, 1
      %p60 = por %p58, %p59
      %p61 = scmp.ne.s32.totalorder %s53, %s56
      %p62 = scmp.eq.s32.totalorder %s17, 0
      %p63 = por %p61, %p62
      %p64 = scmp.ne.s32.totalorder %s53, %s56
      %p65 = scmp.eq.s32.totalorder %s22, 1
      %p66 = por %p64, %p65
      %p67 = scmp.ne.s32.totalorder %s56, %s57
      %p68 = scmp.eq.s32.totalorder %s22, 0
      %p69 = por %p67, %p68
      %p70 = scmp.ne.s32.totalorder %s56, %s57
      %p71 = scmp.eq.s32.totalorder %s23, 1
      %p72 = por %p70, %p71
      %p74 = scmp.ne.s32.totalorder %s57, %s73
      %p75 = scmp.eq.s32.totalorder %s23, 0
      %p76 = por %p74, %p75
      %s78 = sadd.s32 %s77, 1
      %p81 = scmp.eq.s32.totalorder %s17, 1
      %p82 = scmp.ne.s32.totalorder %s77, %s79
      %p83 = scmp.eq.s32.totalorder %s17, 0
      %p84 = por %p82, %p83
      %p85 = scmp.ne.s32.totalorder %s77, %s79
      %p86 = scmp.eq.s32.totalorder %s22, 1
      %p87 = por %p85, %p86
      %p88 = scmp.ne.s32.totalorder %s79, %s80
      %p89 = scmp.eq.s32.totalorder %s22, 0
      %p90 = por %p88, %p89
      %p91 = scmp.ne.s32.totalorder %s79, %s80
      %p92 = scmp.eq.s32.totalorder %s23, 1
      %p93 = por %p91, %p92
      %p95 = scmp.ne.s32.totalorder %s80, %s94
      %p96 = scmp.eq.s32.totalorder %s23, 0
      %p97 = por %p95, %p96
      %s99 = sadd.s32 %s98, 1
      %p102 = scmp.eq.s32.totalorder %s17, 1
      %p103 = scmp.ne.s32.totalorder %s98, %s100
      %p104 = scmp.eq.s32.totalorder %s17, 0
      %p105 = por %p103, %p104
      %p106 = scmp.ne.s32.totalorder %s98, %s100
      %p107 = scmp.eq.s32.totalorder %s22, 1
      %p108 = por %p106, %p107
      %p109 = scmp.ne.s32.totalorder %s100, %s101
      %p110 = scmp.eq.s32.totalorder %s22, 0
      %p111 = por %p109, %p110
      %p112 = scmp.ne.s32.totalorder %s100, %s101
      %p113 = scmp.eq.s32.totalorder %s23, 1
      %p114 = por %p112, %p113
      %p116 = scmp.ne.s32.totalorder %s101, %s115
      %p117 = scmp.eq.s32.totalorder %s23, 0
      %p118 = por %p116, %p117
      %s120 = sadd.s32 %s119, 1
      %p123 = scmp.eq.s32.totalorder %s17, 1
      %p124 = scmp.ne.s32.totalorder %s119, %s121
      %p125 = scmp.eq.s32.totalorder %s17, 0
      %p126 = por %p124, %p125
      %p127 = scmp.ne.s32.totalorder %s119, %s121
      %p128 = scmp.eq.s32.totalorder %s22, 1
      %p129 = por %p127, %p128
      %p130 = scmp.ne.s32.totalorder %s121, %s122
      %p131 = scmp.eq.s32.totalorder %s22, 0
      %p132 = por %p130, %p131
      %p133 = scmp.ne.s32.totalorder %s121, %s122
      %p134 = scmp.eq.s32.totalorder %s23, 1
      %p135 = por %p133, %p134
      %p137 = scmp.ne.s32.totalorder %s122, %s136
      %p138 = scmp.eq.s32.totalorder %s23, 0
      %p139 = por %p137, %p138
      %s141 = sadd.s32 %s140, 1
      %p144 = scmp.eq.s32.totalorder %s17, 1
      %p145 = scmp.ne.s32.totalorder %s140, %s142
      %p146 = scmp.eq.s32.totalorder %s17, 0
      %p147 = por %p145, %p146
      %p148 = scmp.ne.s32.totalorder %s140, %s142
      %p149 = scmp.eq.s32.totalorder %s22, 1
      %p150 = por %p148, %p149
      %p151 = scmp.ne.s32.totalorder %s142, %s143
      %p152 = scmp.eq.s32.totalorder %s22, 0
      %p153 = por %p151, %p152
      %p154 = scmp.ne.s32.totalorder %s142, %s143
      %p155 = scmp.eq.s32.totalorder %s23, 1
      %p156 = por %p154, %p155
      %p158 = scmp.ne.s32.totalorder %s143, %s157
      %p159 = scmp.eq.s32.totalorder %s23, 0
      %p160 = por %p158, %p159
      %s162 = sadd.s32 %s161, 1
      %p165 = scmp.eq.s32.totalorder %s17, 1
      %p166 = scmp.ne.s32.totalorder %s161, %s163
      %p167 = scmp.eq.s32.totalorder %s17, 0
      %p168 = por %p166, %p167
      %p169 = scmp.ne.s32.totalorder %s161, %s163
      %p170 = scmp.eq.s32.totalorder %s22, 1
      %p171 = por %p169, %p170
      %p172 = scmp.ne.s32.totalorder %s163, %s164
      %p173 = scmp.eq.s32.totalorder %s22, 0
      %p174 = por %p172, %p173
      %p175 = scmp.ne.s32.totalorder %s163, %s164
      %p176 = scmp.eq.s32.totalorder %s23, 1
      %p177 = por %p175, %p176
      %p179 = scmp.ne.s32.totalorder %s164, %s178
      %p180 = scmp.eq.s32.totalorder %s23, 0
      %p181 = por %p179, %p180
      %s182 = ssub.s32 %s17, %s24
      %p183 = scmp.eq.s32.totalorder %s182, 0
      %s185 = sadd.s32 %s184, 1
      %s186 = scalar_select %p183, %s184, %s185
      %p189 = pneg %p183
      %p190 = scmp.eq.s32.totalorder %s17, 1
      %p191 = por %p189, %p190
      %p192 = scmp.ne.s32.totalorder %s184, %s187
      %p193 = scmp.eq.s32.totalorder %s17, 0
      %p194 = por %p192, %p193
      %p195 = scmp.ne.s32.totalorder %s184, %s187
      %p196 = scmp.eq.s32.totalorder %s22, 1
      %p197 = por %p195, %p196
      %p198 = scmp.ne.s32.totalorder %s187, %s188
      %p199 = scmp.eq.s32.totalorder %s22, 0
      %p200 = por %p198, %p199
      %p201 = scmp.ne.s32.totalorder %s187, %s188
      %p202 = scmp.eq.s32.totalorder %s23, 1
      %p203 = por %p201, %p202
      %p205 = scmp.ne.s32.totalorder %s188, %s204
      %p206 = scmp.eq.s32.totalorder %s23, 0
      %p207 = por %p205, %p206
      %p208 = scmp.le.s32.totalorder 1, %s17
      %p209 = scmp.lt.s32.totalorder %s17, 3
      %p210 = pnand %p208, %p209
      %p211 = pneg %p210
      // Predicated region
      $region9: #{tpu_custom_call.1} parent=5 // pred_check
        _
      $region10: #{tpu_custom_call.1} parent=5 // pred_check_branch
        %213 = sbr.rel (%p210) target = $region12
      $region11: #{tpu_custom_call.1} parent=5 // pred_region
        %s214 = ssub.s32 %s17, 1
        // Predicated region
        $region13: #{tpu_custom_call.1} parent=11 // pred_check
          %p215 = pneg %p90
        $region14: #{tpu_custom_call.1} parent=11 // pred_check_branch
          %217 = sbr.rel (%p215) target = $region16
        $region15: #{tpu_custom_call.1} parent=11 // pred_region
          %219 = vsyncadd [#allocation6], 0
          %s220 = sshll.u32 %s2, 4
          %s221 = int_to_ptr.hbm [resolvable:$true] %s220
          %s222 = sshll.u32 [#allocation5], 4
          %s223 = int_to_ptr.vmem [resolvable:$true] %s222
          %228 = dma.hbm_to_vmem [thread:$0]  %s221, 2048, %s223, [#allocation6], 256, 256, 16
        $region16: #{tpu_custom_call.1} parent=11 // pred_fallthru
          _
        // Predicated region
        $region17: #{tpu_custom_call.1} parent=11 // pred_check
          %p229 = pneg %p111
        $region18: #{tpu_custom_call.1} parent=11 // pred_check_branch
          %231 = sbr.rel (%p229) target = $region20
        $region19: #{tpu_custom_call.1} parent=11 // pred_region
          _
        $region20: #{tpu_custom_call.1} parent=11 // pred_fallthru
          _
        // Predicated region
        $region21: #{tpu_custom_call.1} parent=11 // pred_check
          %p232 = pneg %p132
        $region22: #{tpu_custom_call.1} parent=11 // pred_check_branch
          %234 = sbr.rel (%p232) target = $region24
        $region23: #{tpu_custom_call.1} parent=11 // pred_region
          _
        $region24: #{tpu_custom_call.1} parent=11 // pred_fallthru
          _
        // Predicated region
        $region25: #{tpu_custom_call.1} parent=11 // pred_check
          %p235 = pneg %p153
        $region26: #{tpu_custom_call.1} parent=11 // pred_check_branch
          %237 = sbr.rel (%p235) target = $region28
        $region27: #{tpu_custom_call.1} parent=11 // pred_region
          _
        $region28: #{tpu_custom_call.1} parent=11 // pred_fallthru
          _
        // Predicated region
        $region29: #{tpu_custom_call.1} parent=11 // pred_check
          %p238 = pneg %p174
        $region30: #{tpu_custom_call.1} parent=11 // pred_check_branch
          %240 = sbr.rel (%p238) target = $region32
        $region31: #{tpu_custom_call.1} parent=11 // pred_region
          _
        $region32: #{tpu_custom_call.1} parent=11 // pred_fallthru
          _
      $region12: #{tpu_custom_call.1} parent=5 // pred_fallthru
        _
      %p241 = scmp.lt.s32.totalorder %s17, 2
      // Predicated region
      $region33: #{tpu_custom_call.1} parent=5 // pred_check
        %p242 = pneg %p241
      $region34: #{tpu_custom_call.1} parent=5 // pred_check_branch
        %244 = sbr.rel (%p242) target = $region36
      $region35: #{tpu_custom_call.1} parent=5 // pred_region
        // Predicated region
        $region37: #{tpu_custom_call.1} parent=35 // pred_check
          %p245 = pneg %p37
        $region38: #{tpu_custom_call.1} parent=35 // pred_check_branch
          %247 = sbr.rel (%p245) target = $region40
        $region39: #{tpu_custom_call.1} parent=35 // pred_region
          %p248 = scmp.lt.s32.totalorder %s17, 1
          %s249 = scalar_select %p248, %s17, 1
          %s250 = smul.addr %s249, 4
          %s251 = scalar_lea.vmem %s0, %s250
        $region40: #{tpu_custom_call.1} parent=35 // pred_fallthru
          _
        // Predicated region
        $region41: #{tpu_custom_call.1} parent=35 // pred_check
          %p252 = pneg %p63
        $region42: #{tpu_custom_call.1} parent=35 // pred_check_branch
          %254 = sbr.rel (%p252) target = $region44
        $region43: #{tpu_custom_call.1} parent=35 // pred_region
          %p255 = scmp.lt.s32.totalorder %s17, 1
          %s256 = scalar_select %p255, %s17, 1
          %s257 = smul.addr %s256, 8
          %s258 = smul.addr %s257, 8
          %s259 = scalar_lea.vmem %s1, %s258
        $region44: #{tpu_custom_call.1} parent=35 // pred_fallthru
          _
      $region36: #{tpu_custom_call.1} parent=5 // pred_fallthru
        _
      %p260 = scmp.le.s32.totalorder 1, %s17
      %p261 = scmp.lt.s32.totalorder %s17, 3
      %p262 = pnand %p260, %p261
      %p263 = pneg %p262
      // Predicated region
      $region45: #{tpu_custom_call.1} parent=5 // pred_check
        _
      $region46: #{tpu_custom_call.1} parent=5 // pred_check_branch
        %265 = sbr.rel (%p262) target = $region48
      $region47: #{tpu_custom_call.1} parent=5 // pred_region
        %s266 = ssub.s32 %s17, 1
        // Predicated region
        $region49: #{tpu_custom_call.1} parent=47 // pred_check
          %p267 = pneg %p90
        $region50: #{tpu_custom_call.1} parent=47 // pred_check_branch
          %269 = sbr.rel (%p267) target = $region52
        $region51: #{tpu_custom_call.1} parent=47 // pred_region
          %271 = dma.done [#allocation6], 2048
        $region52: #{tpu_custom_call.1} parent=47 // pred_fallthru
          _
        %p272 = scmp.lt.s32.totalorder %s22, 1
        %s273 = scalar_select %p272, %s22, 1
        %s274 = smul.addr %s273, 4
        %s275 = scalar_lea.vmem %s0, %s274
        %p276 = pneg %p43
        %p277 = pneg %p40
        %p278 = scmp.lt.s32.totalorder %s22, 1
        %s279 = scalar_select %p278, %s22, 1
        %s280 = smul.addr %s279, 8
        %s281 = smul.addr %s280, 8
        %s282 = scalar_lea.vmem %s1, %s281
        %p283 = pneg %p69
        %p284 = pneg %p66
        %p285 = pneg %p90
        %p286 = pneg %p87
        %p287 = pneg %p111
        %p288 = pneg %p108
        %p289 = pneg %p132
        %p290 = pneg %p129
        %p291 = pneg %p153
        %p292 = pneg %p150
        %p293 = pneg %p174
        %p294 = pneg %p171
        %p295 = pneg %p200
        %p296 = pneg %p197
        %s297 = sand.u32 %s187, 1
        %s298 = scalar_lea.sflag [#allocation7], %s297
        %s299 = sand.u32 %s187, 1
        %s300 = smul.addr %s299, 16
        %s301 = scalar_lea.vmem [#allocation8], %s300
        %p302 = scmp.lt.s32.totalorder %s22, 1
        %s303 = scalar_select %p302, %s22, 1
        %s304 = smul.addr %s303, 4
        %s305 = scalar_lea.vmem %s0, %s304
        %p306 = scmp.lt.s32.totalorder %s22, 1
        %s307 = scalar_select %p306, %s22, 1
        %s308 = smul.addr %s307, 8
        %s309 = smul.addr %s308, 8
        %s310 = scalar_lea.vmem %s1, %s309
        %vm311 = vcmask 146432
        %312 = vst.msk [vmem:[#allocation2] sm:$0xff] %vm311, 0.0
        %313 = vst.msk [vmem:[#allocation2 + $0x8] sm:$0xff] %vm311, 0.0
        %vm314 = vcmask 140288
        %315 = vst.msk [vmem:[#allocation2 + $0x10] sm:$0x3] %vm314, 0.0
        %316 = vst.msk [vmem:[#allocation2 + $0x18] sm:$0xff] %vm311, 0.0
        %317 = vst.msk [vmem:[#allocation2 + $0x20] sm:$0xff] %vm311, 0.0
        %318 = vst.msk [vmem:[#allocation2 + $0x28] sm:$0x3] %vm314, 0.0
        %319 = vst.msk [vmem:[#allocation2 + $0x30] sm:$0xff] %vm311, 0.0
        %320 = vst.msk [vmem:[#allocation2 + $0x38] sm:$0xff] %vm311, 0.0
        %321 = vst.msk [vmem:[#allocation2 + $0x40] sm:$0x3] %vm314, 0.0
        %322 = vst.msk [vmem:[#allocation2 + $0x48] sm:$0xff] %vm311, 0.0
        %323 = vst.msk [vmem:[#allocation2 + $0x50] sm:$0xff] %vm311, 0.0
        %324 = vst.msk [vmem:[#allocation2 + $0x58] sm:$0x3] %vm314, 0.0
        %325 = vst.msk [vmem:[#allocation2 + $0x60] sm:$0xff] %vm311, 0.0
        %326 = vst.msk [vmem:[#allocation2 + $0x68] sm:$0xff] %vm311, 0.0
        %327 = vst.msk [vmem:[#allocation2 + $0x70] sm:$0x3] %vm314, 0.0
        %328 = vst.msk [vmem:[#allocation2 + $0x78] sm:$0xff] %vm311, 0.0
        %329 = vst.msk [vmem:[#allocation2 + $0x80] sm:$0xff] %vm311, 0.0
        %330 = vst.msk [vmem:[#allocation2 + $0x88] sm:$0x3] %vm314, 0.0
        %331 = vst.msk [vmem:[#allocation2 + $0x90] sm:$0xff] %vm311, 0.0
        %332 = vst.msk [vmem:[#allocation2 + $0x98] sm:$0xff] %vm311, 0.0
        %333 = vst.msk [vmem:[#allocation2 + $0xa0] sm:$0x3] %vm314, 0.0
        %334 = vst.msk [vmem:[#allocation2 + $0xa8] sm:$0xff] %vm311, 0.0
        %335 = vst.msk [vmem:[#allocation2 + $0xb0] sm:$0xff] %vm311, 0.0
        %336 = vst.msk [vmem:[#allocation2 + $0xb8] sm:$0x3] %vm314, 0.0
        %337 = vst.msk [vmem:[#allocation3] sm:$0xff] %vm311, 0.0
        %338 = vst.msk [vmem:[#allocation3 + $0x8] sm:$0xff] %vm311, 0.0
        %339 = vst.msk [vmem:[#allocation3 + $0x10] sm:$0x3] %vm314, 0.0
        %340 = vst.msk [vmem:[#allocation3 + $0x18] sm:$0xff] %vm311, 0.0
        %341 = vst.msk [vmem:[#allocation3 + $0x20] sm:$0xff] %vm311, 0.0
        %342 = vst.msk [vmem:[#allocation3 + $0x28] sm:$0x3] %vm314, 0.0
        %343 = vst.msk [vmem:[#allocation3 + $0x30] sm:$0xff] %vm311, 0.0
        %344 = vst.msk [vmem:[#allocation3 + $0x38] sm:$0xff] %vm311, 0.0
        %345 = vst.msk [vmem:[#allocation3 + $0x40] sm:$0x3] %vm314, 0.0
        %346 = vst.msk [vmem:[#allocation3 + $0x48] sm:$0xff] %vm311, 0.0
        %347 = vst.msk [vmem:[#allocation3 + $0x50] sm:$0xff] %vm311, 0.0
        %348 = vst.msk [vmem:[#allocation3 + $0x58] sm:$0x3] %vm314, 0.0
        %349 = vst.msk [vmem:[#allocation3 + $0x60] sm:$0xff] %vm311, 0.0
        %350 = vst.msk [vmem:[#allocation3 + $0x68] sm:$0xff] %vm311, 0.0
        %351 = vst.msk [vmem:[#allocation3 + $0x70] sm:$0x3] %vm314, 0.0
        %352 = vst.msk [vmem:[#allocation3 + $0x78] sm:$0xff] %vm311, 0.0
        %353 = vst.msk [vmem:[#allocation3 + $0x80] sm:$0xff] %vm311, 0.0
        %354 = vst.msk [vmem:[#allocation3 + $0x88] sm:$0x3] %vm314, 0.0
        %355 = vst.msk [vmem:[#allocation3 + $0x90] sm:$0xff] %vm311, 0.0
        %356 = vst.msk [vmem:[#allocation3 + $0x98] sm:$0xff] %vm311, 0.0
        %357 = vst.msk [vmem:[#allocation3 + $0xa0] sm:$0x3] %vm314, 0.0
        %358 = vst.msk [vmem:[#allocation3 + $0xa8] sm:$0xff] %vm311, 0.0
        %359 = vst.msk [vmem:[#allocation3 + $0xb0] sm:$0xff] %vm311, 0.0
        %360 = vst.msk [vmem:[#allocation3 + $0xb8] sm:$0x3] %vm314, 0.0
        %v361 = vld [vmem:[%s305] sm:$0xf]
        %v362 = vld [vmem:[#allocation5] sm:$0xff]
        %v363 = vld [vmem:[#allocation5 + $0x8] sm:$0xff]
        %v364 = vld [vmem:[#allocation5 + $0x10] sm:$0xff]
        %v365 = vld [vmem:[#allocation5 + $0x18] sm:$0xff]
        %v366 = vld [vmem:[#allocation5 + $0x20] sm:$0xff]
        %v367 = vld [vmem:[#allocation5 + $0x28] sm:$0xff]
        %v368 = vld [vmem:[#allocation5 + $0x30] sm:$0xff]
        %v369 = vld [vmem:[#allocation5 + $0x38] sm:$0xff]
        %v370 = vld [vmem:[#allocation5 + $0x40] sm:$0xff]
        %v371 = vld [vmem:[#allocation5 + $0x48] sm:$0xff]
        %v372 = vld [vmem:[#allocation5 + $0x50] sm:$0xff]
        %v373 = vld [vmem:[#allocation5 + $0x58] sm:$0xff]
        %v374 = vld [vmem:[#allocation5 + $0x60] sm:$0xff]
        %v375 = vld [vmem:[#allocation5 + $0x68] sm:$0xff]
        %v376 = vld [vmem:[#allocation5 + $0x70] sm:$0xff]
        %v377 = vld [vmem:[#allocation5 + $0x78] sm:$0xff]
        %vm378 = vcmask 523264
        %v380 = vsel %vm378, %v361, 0
        %382 = vmatpush.msra.mxu0 0.0
        %383 = vmatpush.msra.mxu0 0.0
        %384 = vmatpush.msra.mxu0 0.0
        %385 = vmatpush.msra.mxu0 0.0
        %386 = vmatpush.msra.mxu0 0.0
        %387 = vmatpush.msra.mxu0 0.0
        %388 = vmatpush.msra.mxu0 0.0
        %389 = vmatpush.msra.mxu0 0.0
        %390 = vmatpush.msra.mxu0 %v376
        %391 = vmatpush.msra.mxu0 %v374
        %392 = vmatpush.msra.mxu0 %v372
        %393 = vmatpush.msra.mxu0 %v370
        %394 = vmatpush.msra.mxu0 %v368
        %395 = vmatpush.msra.mxu0 %v366
        %396 = vmatpush.msra.mxu0 %v364
        %397 = vmatpush.msra.mxu0 %v362
        %398 = vmatmul.f32.gmra.mxu0 %v380
        %v399 = vpop.f32.mrf.mxu0
        %v400 = vadd.f32 0.0, %v399
        %401 = vdwg.mxu0
        %402 = vmatpush.msra.mxu0 0.0
        %403 = vmatpush.msra.mxu0 0.0
        %404 = vmatpush.msra.mxu0 0.0
        %405 = vmatpush.msra.mxu0 0.0
        %406 = vmatpush.msra.mxu0 0.0
        %407 = vmatpush.msra.mxu0 0.0
        %408 = vmatpush.msra.mxu0 0.0
        %409 = vmatpush.msra.mxu0 0.0
        %410 = vmatpush.msra.mxu0 %v377
        %411 = vmatpush.msra.mxu0 %v375
        %412 = vmatpush.msra.mxu0 %v373
        %413 = vmatpush.msra.mxu0 %v371
        %414 = vmatpush.msra.mxu0 %v369
        %415 = vmatpush.msra.mxu0 %v367
        %416 = vmatpush.msra.mxu0 %v365
        %417 = vmatpush.msra.mxu0 %v363
        %418 = vmatmul.f32.gmra.mxu0 %v380
        %v419 = vpop.f32.mrf.mxu0
        %v420 = vadd.f32 0.0, %v419
        %421 = vdwg.mxu0
        %423 = vrot.lane.b32.xlu0 %v400, 112
        %v424 = vpop.permute.xlu0 %423
        %426 = vrot.lane.b32.xlu0 %v400, 96
        %v427 = vpop.permute.xlu0 %426
        %429 = vrot.lane.b32.xlu0 %v400, 80
        %v430 = vpop.permute.xlu0 %429
        %432 = vrot.lane.b32.xlu0 %v400, 64
        %v433 = vpop.permute.xlu0 %432
        %435 = vrot.lane.b32.xlu0 %v400, 48
        %v436 = vpop.permute.xlu0 %435
        %438 = vrot.lane.b32.xlu0 %v400, 32
        %v439 = vpop.permute.xlu0 %438
        %441 = vrot.lane.b32.xlu0 %v400, 16
        %v442 = vpop.permute.xlu0 %441
        %445 = vrot.lane.b32.xlu0 %v420, 112
        %v446 = vpop.permute.xlu0 %445
        %448 = vrot.lane.b32.xlu0 %v420, 96
        %v449 = vpop.permute.xlu0 %448
        %451 = vrot.lane.b32.xlu0 %v420, 80
        %v452 = vpop.permute.xlu0 %451
        %454 = vrot.lane.b32.xlu0 %v420, 64
        %v455 = vpop.permute.xlu0 %454
        %457 = vrot.lane.b32.xlu0 %v420, 48
        %v458 = vpop.permute.xlu0 %457
        %460 = vrot.lane.b32.xlu0 %v420, 32
        %v461 = vpop.permute.xlu0 %460
        %463 = vrot.lane.b32.xlu0 %v420, 16
        %v464 = vpop.permute.xlu0 %463
        %v466 = vrot.slane %v427, 4
        %vm467 = vcmask 1047556
        %v468 = vsel %vm467, %v466, %v400
        %v470 = vunpack.c.l.s4 1983009808
        %v471 = vunpack.c.0.s8 %v470
        %v472 = vperm.slane %v468, %v471
        %v473 = vrot.slane %v430, 4
        %v474 = vsel %vm467, %v473, %v424
        %v476 = vunpack.c.l.s4 1983009808
        %v477 = vunpack.c.0.s8 %v476
        %v478 = vperm.slane %v474, %v477
        %v479 = vrot.slane %v439, 4
        %v480 = vsel %vm467, %v479, %v433
        %v482 = vunpack.c.l.s4 1983009808
        %v483 = vunpack.c.0.s8 %v482
        %v484 = vperm.slane %v480, %v483
        %v485 = vrot.slane %v442, 4
        %v486 = vsel %vm467, %v485, %v436
        %v488 = vunpack.c.l.s4 1983009808
        %v489 = vunpack.c.0.s8 %v488
        %v490 = vperm.slane %v486, %v489
        %v491 = vrot.slane %v478, 4
        %v492 = vsel %vm467, %v491, %v472
        %v493 = vrot.slane %v472, 4
        %v494 = vsel %vm467, %v478, %v493
        %v496 = vunpack.c.l.s4 1934713408
        %v497 = vunpack.c.0.s8 %v496
        %v498 = vperm.slane %v492, %v497
        %v500 = vunpack.c.l.s4 1934713408
        %v501 = vunpack.c.0.s8 %v500
        %v502 = vperm.slane %v494, %v501
        %v503 = vrot.slane %v490, 4
        %v504 = vsel %vm467, %v503, %v484
        %v505 = vrot.slane %v484, 4
        %v506 = vsel %vm467, %v490, %v505
        %v508 = vunpack.c.l.s4 1934713408
        %v509 = vunpack.c.0.s8 %v508
        %v510 = vperm.slane %v504, %v509
        %v512 = vunpack.c.l.s4 1934713408
        %v513 = vunpack.c.0.s8 %v512
        %v514 = vperm.slane %v506, %v513
        %v515 = vrot.slane %v510, 4
        %v516 = vsel %vm467, %v515, %v498
        %v517 = vrot.slane %v498, 4
        %v518 = vsel %vm467, %v510, %v517
        %v519 = vrot.slane %v514, 4
        %v520 = vsel %vm467, %v519, %v502
        %v521 = vrot.slane %v502, 4
        %v522 = vsel %vm467, %v514, %v521
        %v523 = vrot.slane %v449, 4
        %v524 = vsel %vm467, %v523, %v420
        %v526 = vunpack.c.l.s4 1983009808
        %v527 = vunpack.c.0.s8 %v526
        %v528 = vperm.slane %v524, %v527
        %v529 = vrot.slane %v452, 4
        %v530 = vsel %vm467, %v529, %v446
        %v532 = vunpack.c.l.s4 1983009808
        %v533 = vunpack.c.0.s8 %v532
        %v534 = vperm.slane %v530, %v533
        %v535 = vrot.slane %v461, 4
        %v536 = vsel %vm467, %v535, %v455
        %v538 = vunpack.c.l.s4 1983009808
        %v539 = vunpack.c.0.s8 %v538
        %v540 = vperm.slane %v536, %v539
        %v541 = vrot.slane %v464, 4
        %v542 = vsel %vm467, %v541, %v458
        %v544 = vunpack.c.l.s4 1983009808
        %v545 = vunpack.c.0.s8 %v544
        %v546 = vperm.slane %v542, %v545
        %v547 = vrot.slane %v534, 4
        %v548 = vsel %vm467, %v547, %v528
        %v549 = vrot.slane %v528, 4
        %v550 = vsel %vm467, %v534, %v549
        %v552 = vunpack.c.l.s4 1934713408
        %v553 = vunpack.c.0.s8 %v552
        %v554 = vperm.slane %v548, %v553
        %v556 = vunpack.c.l.s4 1934713408
        %v557 = vunpack.c.0.s8 %v556
        %v558 = vperm.slane %v550, %v557
        %v559 = vrot.slane %v546, 4
        %v560 = vsel %vm467, %v559, %v540
        %v561 = vrot.slane %v540, 4
        %v562 = vsel %vm467, %v546, %v561
        %v564 = vunpack.c.l.s4 1934713408
        %v565 = vunpack.c.0.s8 %v564
        %v566 = vperm.slane %v560, %v565
        %v568 = vunpack.c.l.s4 1934713408
        %v569 = vunpack.c.0.s8 %v568
        %v570 = vperm.slane %v562, %v569
        %v571 = vrot.slane %v566, 4
        %v572 = vsel %vm467, %v571, %v554
        %v573 = vrot.slane %v554, 4
        %v574 = vsel %vm467, %v566, %v573
        %v575 = vrot.slane %v570, 4
        %v576 = vsel %vm467, %v575, %v558
        %v577 = vrot.slane %v558, 4
        %v578 = vsel %vm467, %v570, %v577
        %587 = vrot.lane.b32.xlu0 %v516, 1
        %v588 = vpop.permute.xlu0 %587
        %589 = vrot.lane.b32.xlu0 %v572, 1
        %v590 = vpop.permute.xlu0 %589
        %591 = vrot.lane.b32.xlu0 %v518, 1
        %v592 = vpop.permute.xlu0 %591
        %593 = vrot.lane.b32.xlu0 %v574, 1
        %v594 = vpop.permute.xlu0 %593
        %595 = vrot.lane.b32.xlu0 %v520, 1
        %v596 = vpop.permute.xlu0 %595
        %597 = vrot.lane.b32.xlu0 %v576, 1
        %v598 = vpop.permute.xlu0 %597
        %599 = vrot.lane.b32.xlu0 %v522, 1
        %v600 = vpop.permute.xlu0 %599
        %601 = vrot.lane.b32.xlu0 %v578, 1
        %v602 = vpop.permute.xlu0 %601
        %vm611 = vcmask 138248
        %612 = vst.msk [vmem:[#allocation2 + $0x1] sm:$0xff] %vm611, %v588
        %613 = vst.msk [vmem:[#allocation2 + $0x9] sm:$0xff] %vm611, %v590
        %614 = vst.msk [vmem:[#allocation2 + $0x19] sm:$0xff] %vm611, %v592
        %615 = vst.msk [vmem:[#allocation2 + $0x21] sm:$0xff] %vm611, %v594
        %616 = vst.msk [vmem:[#allocation2 + $0x31] sm:$0xff] %vm611, %v596
        %617 = vst.msk [vmem:[#allocation2 + $0x39] sm:$0xff] %vm611, %v598
        %618 = vst.msk [vmem:[#allocation2 + $0x49] sm:$0xff] %vm611, %v600
        %619 = vst.msk [vmem:[#allocation2 + $0x51] sm:$0xff] %vm611, %v602
        %v620 = vld [vmem:[%s310] sm:$0xff]
        %v621 = vld [vmem:[%s310 + $0x8] sm:$0xff]
        %v622 = vld [vmem:[%s310 + $0x10] sm:$0xff]
        %v623 = vld [vmem:[%s310 + $0x18] sm:$0xff]
        %v624 = vld [vmem:[%s310 + $0x20] sm:$0xff]
        %v625 = vld [vmem:[%s310 + $0x28] sm:$0xff]
        %v626 = vld [vmem:[%s310 + $0x30] sm:$0xff]
        %v627 = vld [vmem:[%s310 + $0x38] sm:$0xff]
        %636 = vrot.lane.b32.xlu0 %v620, 1
        %v637 = vpop.permute.xlu0 %636
        %638 = vrot.lane.b32.xlu0 %v621, 1
        %v639 = vpop.permute.xlu0 %638
        %640 = vrot.lane.b32.xlu0 %v622, 1
        %v641 = vpop.permute.xlu0 %640
        %642 = vrot.lane.b32.xlu0 %v623, 1
        %v643 = vpop.permute.xlu0 %642
        %644 = vrot.lane.b32.xlu0 %v624, 1
        %v645 = vpop.permute.xlu0 %644
        %646 = vrot.lane.b32.xlu0 %v625, 1
        %v647 = vpop.permute.xlu0 %646
        %648 = vrot.lane.b32.xlu0 %v626, 1
        %v649 = vpop.permute.xlu0 %648
        %650 = vrot.lane.b32.xlu0 %v627, 1
        %v651 = vpop.permute.xlu0 %650
        %s660 = scalar_lea.vmem [#allocation2], 96
        %661 = vst.msk [vmem:[%s660 + $0x1] sm:$0xff] %vm611, %v637
        %662 = vst.msk [vmem:[%s660 + $0x9] sm:$0xff] %vm611, %v639
        %663 = vst.msk [vmem:[%s660 + $0x19] sm:$0xff] %vm611, %v641
        %664 = vst.msk [vmem:[%s660 + $0x21] sm:$0xff] %vm611, %v643
        %665 = vst.msk [vmem:[%s660 + $0x31] sm:$0xff] %vm611, %v645
        %666 = vst.msk [vmem:[%s660 + $0x39] sm:$0xff] %vm611, %v647
        %667 = vst.msk [vmem:[%s660 + $0x49] sm:$0xff] %vm611, %v649
        %668 = vst.msk [vmem:[%s660 + $0x51] sm:$0xff] %vm611, %v651
        %669 = vst [vmem:[#allocation4] sm:$0xff] 0.0
        %670 = vst [vmem:[#allocation4 + $0x8] sm:$0xff] 0.0
        %v671 = vld [vmem:[#allocation2] sm:$0xff]
        %v672 = vld [vmem:[#allocation2 + $0x8] sm:$0xff]
        %v673 = vld [vmem:[#allocation2 + $0x18] sm:$0xff]
        %v674 = vld [vmem:[#allocation2 + $0x20] sm:$0xff]
        %v675 = vld [vmem:[#allocation2 + $0x30] sm:$0xff]
        %v676 = vld [vmem:[#allocation2 + $0x38] sm:$0xff]
        %v677 = vld [vmem:[#allocation2 + $0x48] sm:$0xff]
        %v678 = vld [vmem:[#allocation2 + $0x50] sm:$0xff]
        %v679 = vld [vmem:[#allocation2 + $0x60] sm:$0xff]
        %v680 = vld [vmem:[#allocation2 + $0x68] sm:$0xff]
        %v681 = vld [vmem:[#allocation2 + $0x78] sm:$0xff]
        %v682 = vld [vmem:[#allocation2 + $0x80] sm:$0xff]
        %v683 = vld [vmem:[#allocation2 + $0x90] sm:$0xff]
        %v684 = vld [vmem:[#allocation2 + $0x98] sm:$0xff]
        %v685 = vld [vmem:[#allocation2 + $0xa8] sm:$0xff]
        %v686 = vld [vmem:[#allocation2 + $0xb0] sm:$0xff]
        %v687 = vrot.slane %v675, 4
        %v688 = vsel %vm467, %v687, %v671
        %v689 = vrot.slane %v671, 4
        %v690 = vsel %vm467, %v675, %v689
        %v692 = vunpack.c.l.s4 1983009808
        %v693 = vunpack.c.0.s8 %v692
        %v694 = vperm.slane %v688, %v693
        %v696 = vunpack.c.l.s4 1983009808
        %v697 = vunpack.c.0.s8 %v696
        %v698 = vperm.slane %v690, %v697
        %v699 = vrot.slane %v677, 4
        %v700 = vsel %vm467, %v699, %v673
        %v701 = vrot.slane %v673, 4
        %v702 = vsel %vm467, %v677, %v701
        %v704 = vunpack.c.l.s4 1983009808
        %v705 = vunpack.c.0.s8 %v704
        %v706 = vperm.slane %v700, %v705
        %v708 = vunpack.c.l.s4 1983009808
        %v709 = vunpack.c.0.s8 %v708
        %v710 = vperm.slane %v702, %v709
        %v711 = vrot.slane %v683, 4
        %v712 = vsel %vm467, %v711, %v679
        %v713 = vrot.slane %v679, 4
        %v714 = vsel %vm467, %v683, %v713
        %v716 = vunpack.c.l.s4 1983009808
        %v717 = vunpack.c.0.s8 %v716
        %v718 = vperm.slane %v712, %v717
        %v720 = vunpack.c.l.s4 1983009808
        %v721 = vunpack.c.0.s8 %v720
        %v722 = vperm.slane %v714, %v721
        %v723 = vrot.slane %v685, 4
        %v724 = vsel %vm467, %v723, %v681
        %v725 = vrot.slane %v681, 4
        %v726 = vsel %vm467, %v685, %v725
        %v728 = vunpack.c.l.s4 1983009808
        %v729 = vunpack.c.0.s8 %v728
        %v730 = vperm.slane %v724, %v729
        %v732 = vunpack.c.l.s4 1983009808
        %v733 = vunpack.c.0.s8 %v732
        %v734 = vperm.slane %v726, %v733
        %v735 = vrot.slane %v706, 4
        %v736 = vsel %vm467, %v735, %v694
        %v737 = vrot.slane %v694, 4
        %v738 = vsel %vm467, %v706, %v737
        %v740 = vunpack.c.l.s4 1934713408
        %v741 = vunpack.c.0.s8 %v740
        %v742 = vperm.slane %v736, %v741
        %v744 = vunpack.c.l.s4 1934713408
        %v745 = vunpack.c.0.s8 %v744
        %v746 = vperm.slane %v738, %v745
        %v747 = vrot.slane %v710, 4
        %v748 = vsel %vm467, %v747, %v698
        %v749 = vrot.slane %v698, 4
        %v750 = vsel %vm467, %v710, %v749
        %v752 = vunpack.c.l.s4 1934713408
        %v753 = vunpack.c.0.s8 %v752
        %v754 = vperm.slane %v748, %v753
        %v756 = vunpack.c.l.s4 1934713408
        %v757 = vunpack.c.0.s8 %v756
        %v758 = vperm.slane %v750, %v757
        %v759 = vrot.slane %v730, 4
        %v760 = vsel %vm467, %v759, %v718
        %v761 = vrot.slane %v718, 4
        %v762 = vsel %vm467, %v730, %v761
        %v764 = vunpack.c.l.s4 1934713408
        %v765 = vunpack.c.0.s8 %v764
        %v766 = vperm.slane %v760, %v765
        %v768 = vunpack.c.l.s4 1934713408
        %v769 = vunpack.c.0.s8 %v768
        %v770 = vperm.slane %v762, %v769
        %v771 = vrot.slane %v734, 4
        %v772 = vsel %vm467, %v771, %v722
        %v773 = vrot.slane %v722, 4
        %v774 = vsel %vm467, %v734, %v773
        %v776 = vunpack.c.l.s4 1934713408
        %v777 = vunpack.c.0.s8 %v776
        %v778 = vperm.slane %v772, %v777
        %v780 = vunpack.c.l.s4 1934713408
        %v781 = vunpack.c.0.s8 %v780
        %v782 = vperm.slane %v774, %v781
        %v783 = vrot.slane %v766, 4
        %v784 = vsel %vm467, %v783, %v742
        %v785 = vrot.slane %v742, 4
        %v786 = vsel %vm467, %v766, %v785
        %v787 = vrot.slane %v770, 4
        %v788 = vsel %vm467, %v787, %v746
        %v789 = vrot.slane %v746, 4
        %v790 = vsel %vm467, %v770, %v789
        %v791 = vrot.slane %v778, 4
        %v792 = vsel %vm467, %v791, %v754
        %v793 = vrot.slane %v754, 4
        %v794 = vsel %vm467, %v778, %v793
        %v795 = vrot.slane %v782, 4
        %v796 = vsel %vm467, %v795, %v758
        %v797 = vrot.slane %v758, 4
        %v798 = vsel %vm467, %v782, %v797
        %v799 = vrot.slane %v676, 4
        %v800 = vsel %vm467, %v799, %v672
        %v801 = vrot.slane %v672, 4
        %v802 = vsel %vm467, %v676, %v801
        %v804 = vunpack.c.l.s4 1983009808
        %v805 = vunpack.c.0.s8 %v804
        %v806 = vperm.slane %v800, %v805
        %v808 = vunpack.c.l.s4 1983009808
        %v809 = vunpack.c.0.s8 %v808
        %v810 = vperm.slane %v802, %v809
        %v811 = vrot.slane %v678, 4
        %v812 = vsel %vm467, %v811, %v674
        %v813 = vrot.slane %v674, 4
        %v814 = vsel %vm467, %v678, %v813
        %v816 = vunpack.c.l.s4 1983009808
        %v817 = vunpack.c.0.s8 %v816
        %v818 = vperm.slane %v812, %v817
        %v820 = vunpack.c.l.s4 1983009808
        %v821 = vunpack.c.0.s8 %v820
        %v822 = vperm.slane %v814, %v821
        %v823 = vrot.slane %v684, 4
        %v824 = vsel %vm467, %v823, %v680
        %v825 = vrot.slane %v680, 4
        %v826 = vsel %vm467, %v684, %v825
        %v828 = vunpack.c.l.s4 1983009808
        %v829 = vunpack.c.0.s8 %v828
        %v830 = vperm.slane %v824, %v829
        %v832 = vunpack.c.l.s4 1983009808
        %v833 = vunpack.c.0.s8 %v832
        %v834 = vperm.slane %v826, %v833
        %v835 = vrot.slane %v686, 4
        %v836 = vsel %vm467, %v835, %v682
        %v837 = vrot.slane %v682, 4
        %v838 = vsel %vm467, %v686, %v837
        %v840 = vunpack.c.l.s4 1983009808
        %v841 = vunpack.c.0.s8 %v840
        %v842 = vperm.slane %v836, %v841
        %v844 = vunpack.c.l.s4 1983009808
        %v845 = vunpack.c.0.s8 %v844
        %v846 = vperm.slane %v838, %v845
        %v847 = vrot.slane %v818, 4
        %v848 = vsel %vm467, %v847, %v806
        %v849 = vrot.slane %v806, 4
        %v850 = vsel %vm467, %v818, %v849
        %v852 = vunpack.c.l.s4 1934713408
        %v853 = vunpack.c.0.s8 %v852
        %v854 = vperm.slane %v848, %v853
        %v856 = vunpack.c.l.s4 1934713408
        %v857 = vunpack.c.0.s8 %v856
        %v858 = vperm.slane %v850, %v857
        %v859 = vrot.slane %v822, 4
        %v860 = vsel %vm467, %v859, %v810
        %v861 = vrot.slane %v810, 4
        %v862 = vsel %vm467, %v822, %v861
        %v864 = vunpack.c.l.s4 1934713408
        %v865 = vunpack.c.0.s8 %v864
        %v866 = vperm.slane %v860, %v865
        %v868 = vunpack.c.l.s4 1934713408
        %v869 = vunpack.c.0.s8 %v868
        %v870 = vperm.slane %v862, %v869
        %v871 = vrot.slane %v842, 4
        %v872 = vsel %vm467, %v871, %v830
        %v873 = vrot.slane %v830, 4
        %v874 = vsel %vm467, %v842, %v873
        %v876 = vunpack.c.l.s4 1934713408
        %v877 = vunpack.c.0.s8 %v876
        %v878 = vperm.slane %v872, %v877
        %v880 = vunpack.c.l.s4 1934713408
        %v881 = vunpack.c.0.s8 %v880
        %v882 = vperm.slane %v874, %v881
        %v883 = vrot.slane %v846, 4
        %v884 = vsel %vm467, %v883, %v834
        %v885 = vrot.slane %v834, 4
        %v886 = vsel %vm467, %v846, %v885
        %v888 = vunpack.c.l.s4 1934713408
        %v889 = vunpack.c.0.s8 %v888
        %v890 = vperm.slane %v884, %v889
        %v892 = vunpack.c.l.s4 1934713408
        %v893 = vunpack.c.0.s8 %v892
        %v894 = vperm.slane %v886, %v893
        %v895 = vrot.slane %v878, 4
        %v896 = vsel %vm467, %v895, %v854
        %v897 = vrot.slane %v854, 4
        %v898 = vsel %vm467, %v878, %v897
        %v899 = vrot.slane %v882, 4
        %v900 = vsel %vm467, %v899, %v858
        %v901 = vrot.slane %v858, 4
        %v902 = vsel %vm467, %v882, %v901
        %v903 = vrot.slane %v890, 4
        %v904 = vsel %vm467, %v903, %v866
        %v905 = vrot.slane %v866, 4
        %v906 = vsel %vm467, %v890, %v905
        %v907 = vrot.slane %v894, 4
        %v908 = vsel %vm467, %v907, %v870
        %v909 = vrot.slane %v870, 4
        %v910 = vsel %vm467, %v894, %v909
        %912 = vrot.lane.b32.xlu0 %v786, 16
        %v913 = vpop.permute.xlu0 %912
        %916 = vrot.lane.b32.xlu0 %v788, 32
        %v917 = vpop.permute.xlu0 %916
        %920 = vrot.lane.b32.xlu0 %v790, 48
        %v921 = vpop.permute.xlu0 %920
        %924 = vrot.lane.b32.xlu0 %v792, 64
        %v925 = vpop.permute.xlu0 %924
        %928 = vrot.lane.b32.xlu0 %v794, 80
        %v929 = vpop.permute.xlu0 %928
        %932 = vrot.lane.b32.xlu0 %v796, 96
        %v933 = vpop.permute.xlu0 %932
        %936 = vrot.lane.b32.xlu0 %v798, 112
        %v937 = vpop.permute.xlu0 %936
        %940 = vrot.lane.b32.xlu0 %v898, 16
        %v941 = vpop.permute.xlu0 %940
        %944 = vrot.lane.b32.xlu0 %v900, 32
        %v945 = vpop.permute.xlu0 %944
        %948 = vrot.lane.b32.xlu0 %v902, 48
        %v949 = vpop.permute.xlu0 %948
        %952 = vrot.lane.b32.xlu0 %v904, 64
        %v953 = vpop.permute.xlu0 %952
        %956 = vrot.lane.b32.xlu0 %v906, 80
        %v957 = vpop.permute.xlu0 %956
        %960 = vrot.lane.b32.xlu0 %v908, 96
        %v961 = vpop.permute.xlu0 %960
        %964 = vrot.lane.b32.xlu0 %v910, 112
        %v965 = vpop.permute.xlu0 %964
        %vm967 = vcmask 130048
        %v968 = vsel %vm967, %v784, %v913
        %vm969 = vcmask 261120
        %v970 = vsel %vm969, %v968, %v917
        %vm971 = vcmask 392192
        %v972 = vsel %vm971, %v970, %v921
        %v973 = vsel %vm378, %v972, %v925
        %vm974 = vcmask 654336
        %v975 = vsel %vm974, %v973, %v929
        %vm976 = vcmask 785408
        %v977 = vsel %vm976, %v975, %v933
        %vm978 = vcmask 916480
        %v979 = vsel %vm978, %v977, %v937
        %v980 = vsel %vm967, %v896, %v941
        %v981 = vsel %vm969, %v980, %v945
        %v982 = vsel %vm971, %v981, %v949
        %v983 = vsel %vm378, %v982, %v953
        %v984 = vsel %vm974, %v983, %v957
        %v985 = vsel %vm976, %v984, %v961
        %v986 = vsel %vm978, %v985, %v965
        %v987 = vld [vmem:[#allocation4] sm:$0xff]
        %v988 = vld [vmem:[#allocation4 + $0x8] sm:$0xff]
        %v989 = vld [vmem:[%s3] sm:$0xff]
        %vm990 = vcmask 64512
        %v992 = vsel %vm990, %v989, 0
        %994 = vmatpush.msra.mxu0 0.0
        %995 = vmatpush.msra.mxu0 0.0
        %996 = vmatpush.msra.mxu0 0.0
        %997 = vmatpush.msra.mxu0 0.0
        %998 = vmatpush.msra.mxu0 0.0
        %999 = vmatpush.msra.mxu0 0.0
        %1000 = vmatpush.msra.mxu0 0.0
        %1001 = vmatpush.msra.mxu0 0.0
        %1002 = vmatpush.msra.mxu0 0.0
        %1003 = vmatpush.msra.mxu0 0.0
        %1004 = vmatpush.msra.mxu0 0.0
        %1005 = vmatpush.msra.mxu0 0.0
        %1006 = vmatpush.msra.mxu0 0.0
        %1007 = vmatpush.msra.mxu0 0.0
        %1008 = vmatpush.msra.mxu0 0.0
        %1009 = vmatpush.msra.mxu0 %v979
        %1010 = vmatmul.f32.gmra.mxu0 %v992
        %v1011 = vpop.f32.mrf.mxu0
        %v1012 = vadd.f32 0.0, %v1011
        %1013 = vdwg.mxu0
        %1014 = vmatpush.msra.mxu0 0.0
        %1015 = vmatpush.msra.mxu0 0.0
        %1016 = vmatpush.msra.mxu0 0.0
        %1017 = vmatpush.msra.mxu0 0.0
        %1018 = vmatpush.msra.mxu0 0.0
        %1019 = vmatpush.msra.mxu0 0.0
        %1020 = vmatpush.msra.mxu0 0.0
        %1021 = vmatpush.msra.mxu0 0.0
        %1022 = vmatpush.msra.mxu0 0.0
        %1023 = vmatpush.msra.mxu0 0.0
        %1024 = vmatpush.msra.mxu0 0.0
        %1025 = vmatpush.msra.mxu0 0.0
        %1026 = vmatpush.msra.mxu0 0.0
        %1027 = vmatpush.msra.mxu0 0.0
        %1028 = vmatpush.msra.mxu0 0.0
        %1029 = vmatpush.msra.mxu0 %v986
        %1030 = vmatmul.f32.gmra.mxu0 %v992
        %v1031 = vpop.f32.mrf.mxu0
        %v1032 = vadd.f32 0.0, %v1031
        %1033 = vdwg.mxu0
        %v1034 = vadd.f32 %v987, %v1012
        %v1035 = vadd.f32 %v988, %v1032
        %1036 = vst [vmem:[#allocation4] sm:$0xff] %v1034
        %1037 = vst [vmem:[#allocation4 + $0x8] sm:$0xff] %v1035
        %v1038 = vld [vmem:[#allocation2] sm:$0xff]
        %v1039 = vld [vmem:[#allocation2 + $0x8] sm:$0xff]
        %v1040 = vld [vmem:[#allocation2 + $0x18] sm:$0xff]
        %v1041 = vld [vmem:[#allocation2 + $0x20] sm:$0xff]
        %v1042 = vld [vmem:[#allocation2 + $0x30] sm:$0xff]
        %v1043 = vld [vmem:[#allocation2 + $0x38] sm:$0xff]
        %v1044 = vld [vmem:[#allocation2 + $0x48] sm:$0xff]
        %v1045 = vld [vmem:[#allocation2 + $0x50] sm:$0xff]
        %v1046 = vld [vmem:[#allocation2 + $0x60] sm:$0xff]
        %v1047 = vld [vmem:[#allocation2 + $0x68] sm:$0xff]
        %v1048 = vld [vmem:[#allocation2 + $0x78] sm:$0xff]
        %v1049 = vld [vmem:[#allocation2 + $0x80] sm:$0xff]
        %v1050 = vld [vmem:[#allocation2 + $0x90] sm:$0xff]
        %v1051 = vld [vmem:[#allocation2 + $0x98] sm:$0xff]
        %v1052 = vld [vmem:[#allocation2 + $0xa8] sm:$0xff]
        %v1053 = vld [vmem:[#allocation2 + $0xb0] sm:$0xff]
        %1070 = vrot.lane.b32.xlu0 %v1038, 127
        %v1071 = vpop.permute.xlu0 %1070
        %1072 = vrot.lane.b32.xlu0 %v1039, 127
        %v1073 = vpop.permute.xlu0 %1072
        %1074 = vrot.lane.b32.xlu0 %v1040, 127
        %v1075 = vpop.permute.xlu0 %1074
        %1076 = vrot.lane.b32.xlu0 %v1041, 127
        %v1077 = vpop.permute.xlu0 %1076
        %1078 = vrot.lane.b32.xlu0 %v1042, 127
        %v1079 = vpop.permute.xlu0 %1078
        %1080 = vrot.lane.b32.xlu0 %v1043, 127
        %v1081 = vpop.permute.xlu0 %1080
        %1082 = vrot.lane.b32.xlu0 %v1044, 127
        %v1083 = vpop.permute.xlu0 %1082
        %1084 = vrot.lane.b32.xlu0 %v1045, 127
        %v1085 = vpop.permute.xlu0 %1084
        %1086 = vrot.lane.b32.xlu0 %v1046, 127
        %v1087 = vpop.permute.xlu0 %1086
        %1088 = vrot.lane.b32.xlu0 %v1047, 127
        %v1089 = vpop.permute.xlu0 %1088
        %1090 = vrot.lane.b32.xlu0 %v1048, 127
        %v1091 = vpop.permute.xlu0 %1090
        %1092 = vrot.lane.b32.xlu0 %v1049, 127
        %v1093 = vpop.permute.xlu0 %1092
        %1094 = vrot.lane.b32.xlu0 %v1050, 127
        %v1095 = vpop.permute.xlu0 %1094
        %1096 = vrot.lane.b32.xlu0 %v1051, 127
        %v1097 = vpop.permute.xlu0 %1096
        %1098 = vrot.lane.b32.xlu0 %v1052, 127
        %v1099 = vpop.permute.xlu0 %1098
        %1100 = vrot.lane.b32.xlu0 %v1053, 127
        %v1101 = vpop.permute.xlu0 %1100
        %v1118 = vrot.slane %v1079, 4
        %v1119 = vsel %vm467, %v1118, %v1071
        %v1120 = vrot.slane %v1071, 4
        %v1121 = vsel %vm467, %v1079, %v1120
        %v1123 = vunpack.c.l.s4 1983009808
        %v1124 = vunpack.c.0.s8 %v1123
        %v1125 = vperm.slane %v1119, %v1124
        %v1127 = vunpack.c.l.s4 1983009808
        %v1128 = vunpack.c.0.s8 %v1127
        %v1129 = vperm.slane %v1121, %v1128
        %v1130 = vrot.slane %v1083, 4
        %v1131 = vsel %vm467, %v1130, %v1075
        %v1132 = vrot.slane %v1075, 4
        %v1133 = vsel %vm467, %v1083, %v1132
        %v1135 = vunpack.c.l.s4 1983009808
        %v1136 = vunpack.c.0.s8 %v1135
        %v1137 = vperm.slane %v1131, %v1136
        %v1139 = vunpack.c.l.s4 1983009808
        %v1140 = vunpack.c.0.s8 %v1139
        %v1141 = vperm.slane %v1133, %v1140
        %v1142 = vrot.slane %v1095, 4
        %v1143 = vsel %vm467, %v1142, %v1087
        %v1144 = vrot.slane %v1087, 4
        %v1145 = vsel %vm467, %v1095, %v1144
        %v1147 = vunpack.c.l.s4 1983009808
        %v1148 = vunpack.c.0.s8 %v1147
        %v1149 = vperm.slane %v1143, %v1148
        %v1151 = vunpack.c.l.s4 1983009808
        %v1152 = vunpack.c.0.s8 %v1151
        %v1153 = vperm.slane %v1145, %v1152
        %v1154 = vrot.slane %v1099, 4
        %v1155 = vsel %vm467, %v1154, %v1091
        %v1156 = vrot.slane %v1091, 4
        %v1157 = vsel %vm467, %v1099, %v1156
        %v1159 = vunpack.c.l.s4 1983009808
        %v1160 = vunpack.c.0.s8 %v1159
        %v1161 = vperm.slane %v1155, %v1160
        %v1163 = vunpack.c.l.s4 1983009808
        %v1164 = vunpack.c.0.s8 %v1163
        %v1165 = vperm.slane %v1157, %v1164
        %v1166 = vrot.slane %v1137, 4
        %v1167 = vsel %vm467, %v1166, %v1125
        %v1168 = vrot.slane %v1125, 4
        %v1169 = vsel %vm467, %v1137, %v1168
        %v1171 = vunpack.c.l.s4 1934713408
        %v1172 = vunpack.c.0.s8 %v1171
        %v1173 = vperm.slane %v1167, %v1172
        %v1175 = vunpack.c.l.s4 1934713408
        %v1176 = vunpack.c.0.s8 %v1175
        %v1177 = vperm.slane %v1169, %v1176
        %v1178 = vrot.slane %v1141, 4
        %v1179 = vsel %vm467, %v1178, %v1129
        %v1180 = vrot.slane %v1129, 4
        %v1181 = vsel %vm467, %v1141, %v1180
        %v1183 = vunpack.c.l.s4 1934713408
        %v1184 = vunpack.c.0.s8 %v1183
        %v1185 = vperm.slane %v1179, %v1184
        %v1187 = vunpack.c.l.s4 1934713408
        %v1188 = vunpack.c.0.s8 %v1187
        %v1189 = vperm.slane %v1181, %v1188
        %v1190 = vrot.slane %v1161, 4
        %v1191 = vsel %vm467, %v1190, %v1149
        %v1192 = vrot.slane %v1149, 4
        %v1193 = vsel %vm467, %v1161, %v1192
        %v1195 = vunpack.c.l.s4 1934713408
        %v1196 = vunpack.c.0.s8 %v1195
        %v1197 = vperm.slane %v1191, %v1196
        %v1199 = vunpack.c.l.s4 1934713408
        %v1200 = vunpack.c.0.s8 %v1199
        %v1201 = vperm.slane %v1193, %v1200
        %v1202 = vrot.slane %v1165, 4
        %v1203 = vsel %vm467, %v1202, %v1153
        %v1204 = vrot.slane %v1153, 4
        %v1205 = vsel %vm467, %v1165, %v1204
        %v1207 = vunpack.c.l.s4 1934713408
        %v1208 = vunpack.c.0.s8 %v1207
        %v1209 = vperm.slane %v1203, %v1208
        %v1211 = vunpack.c.l.s4 1934713408
        %v1212 = vunpack.c.0.s8 %v1211
        %v1213 = vperm.slane %v1205, %v1212
        %v1214 = vrot.slane %v1197, 4
        %v1215 = vsel %vm467, %v1214, %v1173
        %v1216 = vrot.slane %v1173, 4
        %v1217 = vsel %vm467, %v1197, %v1216
        %v1218 = vrot.slane %v1201, 4
        %v1219 = vsel %vm467, %v1218, %v1177
        %v1220 = vrot.slane %v1177, 4
        %v1221 = vsel %vm467, %v1201, %v1220
        %v1222 = vrot.slane %v1209, 4
        %v1223 = vsel %vm467, %v1222, %v1185
        %v1224 = vrot.slane %v1185, 4
        %v1225 = vsel %vm467, %v1209, %v1224
        %v1226 = vrot.slane %v1213, 4
        %v1227 = vsel %vm467, %v1226, %v1189
        %v1228 = vrot.slane %v1189, 4
        %v1229 = vsel %vm467, %v1213, %v1228
        %v1230 = vrot.slane %v1081, 4
        %v1231 = vsel %vm467, %v1230, %v1073
        %v1232 = vrot.slane %v1073, 4
        %v1233 = vsel %vm467, %v1081, %v1232
        %v1235 = vunpack.c.l.s4 1983009808
        %v1236 = vunpack.c.0.s8 %v1235
        %v1237 = vperm.slane %v1231, %v1236
        %v1239 = vunpack.c.l.s4 1983009808
        %v1240 = vunpack.c.0.s8 %v1239
        %v1241 = vperm.slane %v1233, %v1240
        %v1242 = vrot.slane %v1085, 4
        %v1243 = vsel %vm467, %v1242, %v1077
        %v1244 = vrot.slane %v1077, 4
        %v1245 = vsel %vm467, %v1085, %v1244
        %v1247 = vunpack.c.l.s4 1983009808
        %v1248 = vunpack.c.0.s8 %v1247
        %v1249 = vperm.slane %v1243, %v1248
        %v1251 = vunpack.c.l.s4 1983009808
        %v1252 = vunpack.c.0.s8 %v1251
        %v1253 = vperm.slane %v1245, %v1252
        %v1254 = vrot.slane %v1097, 4
        %v1255 = vsel %vm467, %v1254, %v1089
        %v1256 = vrot.slane %v1089, 4
        %v1257 = vsel %vm467, %v1097, %v1256
        %v1259 = vunpack.c.l.s4 1983009808
        %v1260 = vunpack.c.0.s8 %v1259
        %v1261 = vperm.slane %v1255, %v1260
        %v1263 = vunpack.c.l.s4 1983009808
        %v1264 = vunpack.c.0.s8 %v1263
        %v1265 = vperm.slane %v1257, %v1264
        %v1266 = vrot.slane %v1101, 4
        %v1267 = vsel %vm467, %v1266, %v1093
        %v1268 = vrot.slane %v1093, 4
        %v1269 = vsel %vm467, %v1101, %v1268
        %v1271 = vunpack.c.l.s4 1983009808
        %v1272 = vunpack.c.0.s8 %v1271
        %v1273 = vperm.slane %v1267, %v1272
        %v1275 = vunpack.c.l.s4 1983009808
        %v1276 = vunpack.c.0.s8 %v1275
        %v1277 = vperm.slane %v1269, %v1276
        %v1278 = vrot.slane %v1249, 4
        %v1279 = vsel %vm467, %v1278, %v1237
        %v1280 = vrot.slane %v1237, 4
        %v1281 = vsel %vm467, %v1249, %v1280
        %v1283 = vunpack.c.l.s4 1934713408
        %v1284 = vunpack.c.0.s8 %v1283
        %v1285 = vperm.slane %v1279, %v1284
        %v1287 = vunpack.c.l.s4 1934713408
        %v1288 = vunpack.c.0.s8 %v1287
        %v1289 = vperm.slane %v1281, %v1288
        %v1290 = vrot.slane %v1253, 4
        %v1291 = vsel %vm467, %v1290, %v1241
        %v1292 = vrot.slane %v1241, 4
        %v1293 = vsel %vm467, %v1253, %v1292
        %v1295 = vunpack.c.l.s4 1934713408
        %v1296 = vunpack.c.0.s8 %v1295
        %v1297 = vperm.slane %v1291, %v1296
        %v1299 = vunpack.c.l.s4 1934713408
        %v1300 = vunpack.c.0.s8 %v1299
        %v1301 = vperm.slane %v1293, %v1300
        %v1302 = vrot.slane %v1273, 4
        %v1303 = vsel %vm467, %v1302, %v1261
        %v1304 = vrot.slane %v1261, 4
        %v1305 = vsel %vm467, %v1273, %v1304
        %v1307 = vunpack.c.l.s4 1934713408
        %v1308 = vunpack.c.0.s8 %v1307
        %v1309 = vperm.slane %v1303, %v1308
        %v1311 = vunpack.c.l.s4 1934713408
        %v1312 = vunpack.c.0.s8 %v1311
        %v1313 = vperm.slane %v1305, %v1312
        %v1314 = vrot.slane %v1277, 4
        %v1315 = vsel %vm467, %v1314, %v1265
        %v1316 = vrot.slane %v1265, 4
        %v1317 = vsel %vm467, %v1277, %v1316
        %v1319 = vunpack.c.l.s4 1934713408
        %v1320 = vunpack.c.0.s8 %v1319
        %v1321 = vperm.slane %v1315, %v1320
        %v1323 = vunpack.c.l.s4 1934713408
        %v1324 = vunpack.c.0.s8 %v1323
        %v1325 = vperm.slane %v1317, %v1324
        %v1326 = vrot.slane %v1309, 4
        %v1327 = vsel %vm467, %v1326, %v1285
        %v1328 = vrot.slane %v1285, 4
        %v1329 = vsel %vm467, %v1309, %v1328
        %v1330 = vrot.slane %v1313, 4
        %v1331 = vsel %vm467, %v1330, %v1289
        %v1332 = vrot.slane %v1289, 4
        %v1333 = vsel %vm467, %v1313, %v1332
        %v1334 = vrot.slane %v1321, 4
        %v1335 = vsel %vm467, %v1334, %v1297
        %v1336 = vrot.slane %v1297, 4
        %v1337 = vsel %vm467, %v1321, %v1336
        %v1338 = vrot.slane %v1325, 4
        %v1339 = vsel %vm467, %v1338, %v1301
        %v1340 = vrot.slane %v1301, 4
        %v1341 = vsel %vm467, %v1325, %v1340
        %1343 = vrot.lane.b32.xlu0 %v1217, 16
        %v1344 = vpop.permute.xlu0 %1343
        %1347 = vrot.lane.b32.xlu0 %v1219, 32
        %v1348 = vpop.permute.xlu0 %1347
        %1351 = vrot.lane.b32.xlu0 %v1221, 48
        %v1352 = vpop.permute.xlu0 %1351
        %1355 = vrot.lane.b32.xlu0 %v1223, 64
        %v1356 = vpop.permute.xlu0 %1355
        %1359 = vrot.lane.b32.xlu0 %v1225, 80
        %v1360 = vpop.permute.xlu0 %1359
        %1363 = vrot.lane.b32.xlu0 %v1227, 96
        %v1364 = vpop.permute.xlu0 %1363
        %1367 = vrot.lane.b32.xlu0 %v1229, 112
        %v1368 = vpop.permute.xlu0 %1367
        %1371 = vrot.lane.b32.xlu0 %v1329, 16
        %v1372 = vpop.permute.xlu0 %1371
        %1375 = vrot.lane.b32.xlu0 %v1331, 32
        %v1376 = vpop.permute.xlu0 %1375
        %1379 = vrot.lane.b32.xlu0 %v1333, 48
        %v1380 = vpop.permute.xlu0 %1379
        %1383 = vrot.lane.b32.xlu0 %v1335, 64
        %v1384 = vpop.permute.xlu0 %1383
        %1387 = vrot.lane.b32.xlu0 %v1337, 80
        %v1388 = vpop.permute.xlu0 %1387
        %1391 = vrot.lane.b32.xlu0 %v1339, 96
        %v1392 = vpop.permute.xlu0 %1391
        %1395 = vrot.lane.b32.xlu0 %v1341, 112
        %v1396 = vpop.permute.xlu0 %1395
        %v1398 = vsel %vm967, %v1215, %v1344
        %v1399 = vsel %vm969, %v1398, %v1348
        %v1400 = vsel %vm971, %v1399, %v1352
        %v1401 = vsel %vm378, %v1400, %v1356
        %v1402 = vsel %vm974, %v1401, %v1360
        %v1403 = vsel %vm976, %v1402, %v1364
        %v1404 = vsel %vm978, %v1403, %v1368
        %v1405 = vsel %vm967, %v1327, %v1372
        %v1406 = vsel %vm969, %v1405, %v1376
        %v1407 = vsel %vm971, %v1406, %v1380
        %v1408 = vsel %vm378, %v1407, %v1384
        %v1409 = vsel %vm974, %v1408, %v1388
        %v1410 = vsel %vm976, %v1409, %v1392
        %v1411 = vsel %vm978, %v1410, %v1396
        %v1412 = vld [vmem:[#allocation4] sm:$0xff]
        %v1413 = vld [vmem:[#allocation4 + $0x8] sm:$0xff]
        %s1414 = scalar_lea.vmem %s3, 8
        %v1415 = vld [vmem:[%s1414] sm:$0xff]
        %v1417 = vsel %vm990, %v1415, 0
        %1419 = vmatpush.msra.mxu0 0.0
        %1420 = vmatpush.msra.mxu0 0.0
        %1421 = vmatpush.msra.mxu0 0.0
        %1422 = vmatpush.msra.mxu0 0.0
        %1423 = vmatpush.msra.mxu0 0.0
        %1424 = vmatpush.msra.mxu0 0.0
        %1425 = vmatpush.msra.mxu0 0.0
        %1426 = vmatpush.msra.mxu0 0.0
        %1427 = vmatpush.msra.mxu0 0.0
        %1428 = vmatpush.msra.mxu0 0.0
        %1429 = vmatpush.msra.mxu0 0.0
        %1430 = vmatpush.msra.mxu0 0.0
        %1431 = vmatpush.msra.mxu0 0.0
        %1432 = vmatpush.msra.mxu0 0.0
        %1433 = vmatpush.msra.mxu0 0.0
        %1434 = vmatpush.msra.mxu0 %v1404
        %1435 = vmatmul.f32.gmra.mxu0 %v1417
        %v1436 = vpop.f32.mrf.mxu0
        %v1437 = vadd.f32 0.0, %v1436
        %1438 = vdwg.mxu0
        %1439 = vmatpush.msra.mxu0 0.0
        %1440 = vmatpush.msra.mxu0 0.0
        %1441 = vmatpush.msra.mxu0 0.0
        %1442 = vmatpush.msra.mxu0 0.0
        %1443 = vmatpush.msra.mxu0 0.0
        %1444 = vmatpush.msra.mxu0 0.0
        %1445 = vmatpush.msra.mxu0 0.0
        %1446 = vmatpush.msra.mxu0 0.0
        %1447 = vmatpush.msra.mxu0 0.0
        %1448 = vmatpush.msra.mxu0 0.0
        %1449 = vmatpush.msra.mxu0 0.0
        %1450 = vmatpush.msra.mxu0 0.0
        %1451 = vmatpush.msra.mxu0 0.0
        %1452 = vmatpush.msra.mxu0 0.0
        %1453 = vmatpush.msra.mxu0 0.0
        %1454 = vmatpush.msra.mxu0 %v1411
        %1455 = vmatmul.f32.gmra.mxu0 %v1417
        %v1456 = vpop.f32.mrf.mxu0
        %v1457 = vadd.f32 0.0, %v1456
        %1458 = vdwg.mxu0
        %v1459 = vadd.f32 %v1412, %v1437
        %v1460 = vadd.f32 %v1413, %v1457
        %1461 = vst [vmem:[#allocation4] sm:$0xff] %v1459
        %1462 = vst [vmem:[#allocation4 + $0x8] sm:$0xff] %v1460
        %v1463 = vld [vmem:[#allocation2] sm:$0xff]
        %v1464 = vld [vmem:[#allocation2 + $0x8] sm:$0xff]
        %v1465 = vld [vmem:[#allocation2 + $0x18] sm:$0xff]
        %v1466 = vld [vmem:[#allocation2 + $0x20] sm:$0xff]
        %v1467 = vld [vmem:[#allocation2 + $0x30] sm:$0xff]
        %v1468 = vld [vmem:[#allocation2 + $0x38] sm:$0xff]
        %v1469 = vld [vmem:[#allocation2 + $0x48] sm:$0xff]
        %v1470 = vld [vmem:[#allocation2 + $0x50] sm:$0xff]
        %v1471 = vld [vmem:[#allocation2 + $0x60] sm:$0xff]
        %v1472 = vld [vmem:[#allocation2 + $0x68] sm:$0xff]
        %v1473 = vld [vmem:[#allocation2 + $0x78] sm:$0xff]
        %v1474 = vld [vmem:[#allocation2 + $0x80] sm:$0xff]
        %v1475 = vld [vmem:[#allocation2 + $0x90] sm:$0xff]
        %v1476 = vld [vmem:[#allocation2 + $0x98] sm:$0xff]
        %v1477 = vld [vmem:[#allocation2 + $0xa8] sm:$0xff]
        %v1478 = vld [vmem:[#allocation2 + $0xb0] sm:$0xff]
        %1495 = vrot.lane.b32.xlu0 %v1463, 126
        %v1496 = vpop.permute.xlu0 %1495
        %1497 = vrot.lane.b32.xlu0 %v1464, 126
        %v1498 = vpop.permute.xlu0 %1497
        %1499 = vrot.lane.b32.xlu0 %v1465, 126
        %v1500 = vpop.permute.xlu0 %1499
        %1501 = vrot.lane.b32.xlu0 %v1466, 126
        %v1502 = vpop.permute.xlu0 %1501
        %1503 = vrot.lane.b32.xlu0 %v1467, 126
        %v1504 = vpop.permute.xlu0 %1503
        %1505 = vrot.lane.b32.xlu0 %v1468, 126
        %v1506 = vpop.permute.xlu0 %1505
        %1507 = vrot.lane.b32.xlu0 %v1469, 126
        %v1508 = vpop.permute.xlu0 %1507
        %1509 = vrot.lane.b32.xlu0 %v1470, 126
        %v1510 = vpop.permute.xlu0 %1509
        %1511 = vrot.lane.b32.xlu0 %v1471, 126
        %v1512 = vpop.permute.xlu0 %1511
        %1513 = vrot.lane.b32.xlu0 %v1472, 126
        %v1514 = vpop.permute.xlu0 %1513
        %1515 = vrot.lane.b32.xlu0 %v1473, 126
        %v1516 = vpop.permute.xlu0 %1515
        %1517 = vrot.lane.b32.xlu0 %v1474, 126
        %v1518 = vpop.permute.xlu0 %1517
        %1519 = vrot.lane.b32.xlu0 %v1475, 126
        %v1520 = vpop.permute.xlu0 %1519
        %1521 = vrot.lane.b32.xlu0 %v1476, 126
        %v1522 = vpop.permute.xlu0 %1521
        %1523 = vrot.lane.b32.xlu0 %v1477, 126
        %v1524 = vpop.permute.xlu0 %1523
        %1525 = vrot.lane.b32.xlu0 %v1478, 126
        %v1526 = vpop.permute.xlu0 %1525
        %v1543 = vrot.slane %v1504, 4
        %v1544 = vsel %vm467, %v1543, %v1496
        %v1545 = vrot.slane %v1496, 4
        %v1546 = vsel %vm467, %v1504, %v1545
        %v1548 = vunpack.c.l.s4 1983009808
        %v1549 = vunpack.c.0.s8 %v1548
        %v1550 = vperm.slane %v1544, %v1549
        %v1552 = vunpack.c.l.s4 1983009808
        %v1553 = vunpack.c.0.s8 %v1552
        %v1554 = vperm.slane %v1546, %v1553
        %v1555 = vrot.slane %v1508, 4
        %v1556 = vsel %vm467, %v1555, %v1500
        %v1557 = vrot.slane %v1500, 4
        %v1558 = vsel %vm467, %v1508, %v1557
        %v1560 = vunpack.c.l.s4 1983009808
        %v1561 = vunpack.c.0.s8 %v1560
        %v1562 = vperm.slane %v1556, %v1561
        %v1564 = vunpack.c.l.s4 1983009808
        %v1565 = vunpack.c.0.s8 %v1564
        %v1566 = vperm.slane %v1558, %v1565
        %v1567 = vrot.slane %v1520, 4
        %v1568 = vsel %vm467, %v1567, %v1512
        %v1569 = vrot.slane %v1512, 4
        %v1570 = vsel %vm467, %v1520, %v1569
        %v1572 = vunpack.c.l.s4 1983009808
        %v1573 = vunpack.c.0.s8 %v1572
        %v1574 = vperm.slane %v1568, %v1573
        %v1576 = vunpack.c.l.s4 1983009808
        %v1577 = vunpack.c.0.s8 %v1576
        %v1578 = vperm.slane %v1570, %v1577
        %v1579 = vrot.slane %v1524, 4
        %v1580 = vsel %vm467, %v1579, %v1516
        %v1581 = vrot.slane %v1516, 4
        %v1582 = vsel %vm467, %v1524, %v1581
        %v1584 = vunpack.c.l.s4 1983009808
        %v1585 = vunpack.c.0.s8 %v1584
        %v1586 = vperm.slane %v1580, %v1585
        %v1588 = vunpack.c.l.s4 1983009808
        %v1589 = vunpack.c.0.s8 %v1588
        %v1590 = vperm.slane %v1582, %v1589
        %v1591 = vrot.slane %v1562, 4
        %v1592 = vsel %vm467, %v1591, %v1550
        %v1593 = vrot.slane %v1550, 4
        %v1594 = vsel %vm467, %v1562, %v1593
        %v1596 = vunpack.c.l.s4 1934713408
        %v1597 = vunpack.c.0.s8 %v1596
        %v1598 = vperm.slane %v1592, %v1597
        %v1600 = vunpack.c.l.s4 1934713408
        %v1601 = vunpack.c.0.s8 %v1600
        %v1602 = vperm.slane %v1594, %v1601
        %v1603 = vrot.slane %v1566, 4
        %v1604 = vsel %vm467, %v1603, %v1554
        %v1605 = vrot.slane %v1554, 4
        %v1606 = vsel %vm467, %v1566, %v1605
        %v1608 = vunpack.c.l.s4 1934713408
        %v1609 = vunpack.c.0.s8 %v1608
        %v1610 = vperm.slane %v1604, %v1609
        %v1612 = vunpack.c.l.s4 1934713408
        %v1613 = vunpack.c.0.s8 %v1612
        %v1614 = vperm.slane %v1606, %v1613
        %v1615 = vrot.slane %v1586, 4
        %v1616 = vsel %vm467, %v1615, %v1574
        %v1617 = vrot.slane %v1574, 4
        %v1618 = vsel %vm467, %v1586, %v1617
        %v1620 = vunpack.c.l.s4 1934713408
        %v1621 = vunpack.c.0.s8 %v1620
        %v1622 = vperm.slane %v1616, %v1621
        %v1624 = vunpack.c.l.s4 1934713408
        %v1625 = vunpack.c.0.s8 %v1624
        %v1626 = vperm.slane %v1618, %v1625
        %v1627 = vrot.slane %v1590, 4
        %v1628 = vsel %vm467, %v1627, %v1578
        %v1629 = vrot.slane %v1578, 4
        %v1630 = vsel %vm467, %v1590, %v1629
        %v1632 = vunpack.c.l.s4 1934713408
        %v1633 = vunpack.c.0.s8 %v1632
        %v1634 = vperm.slane %v1628, %v1633
        %v1636 = vunpack.c.l.s4 1934713408
        %v1637 = vunpack.c.0.s8 %v1636
        %v1638 = vperm.slane %v1630, %v1637
        %v1639 = vrot.slane %v1622, 4
        %v1640 = vsel %vm467, %v1639, %v1598
        %v1641 = vrot.slane %v1598, 4
        %v1642 = vsel %vm467, %v1622, %v1641
        %v1643 = vrot.slane %v1626, 4
        %v1644 = vsel %vm467, %v1643, %v1602
        %v1645 = vrot.slane %v1602, 4
        %v1646 = vsel %vm467, %v1626, %v1645
        %v1647 = vrot.slane %v1634, 4
        %v1648 = vsel %vm467, %v1647, %v1610
        %v1649 = vrot.slane %v1610, 4
        %v1650 = vsel %vm467, %v1634, %v1649
        %v1651 = vrot.slane %v1638, 4
        %v1652 = vsel %vm467, %v1651, %v1614
        %v1653 = vrot.slane %v1614, 4
        %v1654 = vsel %vm467, %v1638, %v1653
        %v1655 = vrot.slane %v1506, 4
        %v1656 = vsel %vm467, %v1655, %v1498
        %v1657 = vrot.slane %v1498, 4
        %v1658 = vsel %vm467, %v1506, %v1657
        %v1660 = vunpack.c.l.s4 1983009808
        %v1661 = vunpack.c.0.s8 %v1660
        %v1662 = vperm.slane %v1656, %v1661
        %v1664 = vunpack.c.l.s4 1983009808
        %v1665 = vunpack.c.0.s8 %v1664
        %v1666 = vperm.slane %v1658, %v1665
        %v1667 = vrot.slane %v1510, 4
        %v1668 = vsel %vm467, %v1667, %v1502
        %v1669 = vrot.slane %v1502, 4
        %v1670 = vsel %vm467, %v1510, %v1669
        %v1672 = vunpack.c.l.s4 1983009808
        %v1673 = vunpack.c.0.s8 %v1672
        %v1674 = vperm.slane %v1668, %v1673
        %v1676 = vunpack.c.l.s4 1983009808
        %v1677 = vunpack.c.0.s8 %v1676
        %v1678 = vperm.slane %v1670, %v1677
        %v1679 = vrot.slane %v1522, 4
        %v1680 = vsel %vm467, %v1679, %v1514
        %v1681 = vrot.slane %v1514, 4
        %v1682 = vsel %vm467, %v1522, %v1681
        %v1684 = vunpack.c.l.s4 1983009808
        %v1685 = vunpack.c.0.s8 %v1684
        %v1686 = vperm.slane %v1680, %v1685
        %v1688 = vunpack.c.l.s4 1983009808
        %v1689 = vunpack.c.0.s8 %v1688
        %v1690 = vperm.slane %v1682, %v1689
        %v1691 = vrot.slane %v1526, 4
        %v1692 = vsel %vm467, %v1691, %v1518
        %v1693 = vrot.slane %v1518, 4
        %v1694 = vsel %vm467, %v1526, %v1693
        %v1696 = vunpack.c.l.s4 1983009808
        %v1697 = vunpack.c.0.s8 %v1696
        %v1698 = vperm.slane %v1692, %v1697
        %v1700 = vunpack.c.l.s4 1983009808
        %v1701 = vunpack.c.0.s8 %v1700
        %v1702 = vperm.slane %v1694, %v1701
        %v1703 = vrot.slane %v1674, 4
        %v1704 = vsel %vm467, %v1703, %v1662
        %v1705 = vrot.slane %v1662, 4
        %v1706 = vsel %vm467, %v1674, %v1705
        %v1708 = vunpack.c.l.s4 1934713408
        %v1709 = vunpack.c.0.s8 %v1708
        %v1710 = vperm.slane %v1704, %v1709
        %v1712 = vunpack.c.l.s4 1934713408
        %v1713 = vunpack.c.0.s8 %v1712
        %v1714 = vperm.slane %v1706, %v1713
        %v1715 = vrot.slane %v1678, 4
        %v1716 = vsel %vm467, %v1715, %v1666
        %v1717 = vrot.slane %v1666, 4
        %v1718 = vsel %vm467, %v1678, %v1717
        %v1720 = vunpack.c.l.s4 1934713408
        %v1721 = vunpack.c.0.s8 %v1720
        %v1722 = vperm.slane %v1716, %v1721
        %v1724 = vunpack.c.l.s4 1934713408
        %v1725 = vunpack.c.0.s8 %v1724
        %v1726 = vperm.slane %v1718, %v1725
        %v1727 = vrot.slane %v1698, 4
        %v1728 = vsel %vm467, %v1727, %v1686
        %v1729 = vrot.slane %v1686, 4
        %v1730 = vsel %vm467, %v1698, %v1729
        %v1732 = vunpack.c.l.s4 1934713408
        %v1733 = vunpack.c.0.s8 %v1732
        %v1734 = vperm.slane %v1728, %v1733
        %v1736 = vunpack.c.l.s4 1934713408
        %v1737 = vunpack.c.0.s8 %v1736
        %v1738 = vperm.slane %v1730, %v1737
        %v1739 = vrot.slane %v1702, 4
        %v1740 = vsel %vm467, %v1739, %v1690
        %v1741 = vrot.slane %v1690, 4
        %v1742 = vsel %vm467, %v1702, %v1741
        %v1744 = vunpack.c.l.s4 1934713408
        %v1745 = vunpack.c.0.s8 %v1744
        %v1746 = vperm.slane %v1740, %v1745
        %v1748 = vunpack.c.l.s4 1934713408
        %v1749 = vunpack.c.0.s8 %v1748
        %v1750 = vperm.slane %v1742, %v1749
        %v1751 = vrot.slane %v1734, 4
        %v1752 = vsel %vm467, %v1751, %v1710
        %v1753 = vrot.slane %v1710, 4
        %v1754 = vsel %vm467, %v1734, %v1753
        %v1755 = vrot.slane %v1738, 4
        %v1756 = vsel %vm467, %v1755, %v1714
        %v1757 = vrot.slane %v1714, 4
        %v1758 = vsel %vm467, %v1738, %v1757
        %v1759 = vrot.slane %v1746, 4
        %v1760 = vsel %vm467, %v1759, %v1722
        %v1761 = vrot.slane %v1722, 4
        %v1762 = vsel %vm467, %v1746, %v1761
        %v1763 = vrot.slane %v1750, 4
        %v1764 = vsel %vm467, %v1763, %v1726
        %v1765 = vrot.slane %v1726, 4
        %v1766 = vsel %vm467, %v1750, %v1765
        %1768 = vrot.lane.b32.xlu0 %v1642, 16
        %v1769 = vpop.permute.xlu0 %1768
        %1772 = vrot.lane.b32.xlu0 %v1644, 32
        %v1773 = vpop.permute.xlu0 %1772
        %1776 = vrot.lane.b32.xlu0 %v1646, 48
        %v1777 = vpop.permute.xlu0 %1776
        %1780 = vrot.lane.b32.xlu0 %v1648, 64
        %v1781 = vpop.permute.xlu0 %1780
        %1784 = vrot.lane.b32.xlu0 %v1650, 80
        %v1785 = vpop.permute.xlu0 %1784
        %1788 = vrot.lane.b32.xlu0 %v1652, 96
        %v1789 = vpop.permute.xlu0 %1788
        %1792 = vrot.lane.b32.xlu0 %v1654, 112
        %v1793 = vpop.permute.xlu0 %1792
        %1796 = vrot.lane.b32.xlu0 %v1754, 16
        %v1797 = vpop.permute.xlu0 %1796
        %1800 = vrot.lane.b32.xlu0 %v1756, 32
        %v1801 = vpop.permute.xlu0 %1800
        %1804 = vrot.lane.b32.xlu0 %v1758, 48
        %v1805 = vpop.permute.xlu0 %1804
        %1808 = vrot.lane.b32.xlu0 %v1760, 64
        %v1809 = vpop.permute.xlu0 %1808
        %1812 = vrot.lane.b32.xlu0 %v1762, 80
        %v1813 = vpop.permute.xlu0 %1812
        %1816 = vrot.lane.b32.xlu0 %v1764, 96
        %v1817 = vpop.permute.xlu0 %1816
        %1820 = vrot.lane.b32.xlu0 %v1766, 112
        %v1821 = vpop.permute.xlu0 %1820
        %v1823 = vsel %vm967, %v1640, %v1769
        %v1824 = vsel %vm969, %v1823, %v1773
        %v1825 = vsel %vm971, %v1824, %v1777
        %v1826 = vsel %vm378, %v1825, %v1781
        %v1827 = vsel %vm974, %v1826, %v1785
        %v1828 = vsel %vm976, %v1827, %v1789
        %v1829 = vsel %vm978, %v1828, %v1793
        %v1830 = vsel %vm967, %v1752, %v1797
        %v1831 = vsel %vm969, %v1830, %v1801
        %v1832 = vsel %vm971, %v1831, %v1805
        %v1833 = vsel %vm378, %v1832, %v1809
        %v1834 = vsel %vm974, %v1833, %v1813
        %v1835 = vsel %vm976, %v1834, %v1817
        %v1836 = vsel %vm978, %v1835, %v1821
        %v1837 = vld [vmem:[#allocation4] sm:$0xff]
        %v1838 = vld [vmem:[#allocation4 + $0x8] sm:$0xff]
        %s1839 = scalar_lea.vmem %s3, 16
        %v1840 = vld [vmem:[%s1839] sm:$0xff]
        %v1842 = vsel %vm990, %v1840, 0
        %1844 = vmatpush.msra.mxu0 0.0
        %1845 = vmatpush.msra.mxu0 0.0
        %1846 = vmatpush.msra.mxu0 0.0
        %1847 = vmatpush.msra.mxu0 0.0
        %1848 = vmatpush.msra.mxu0 0.0
        %1849 = vmatpush.msra.mxu0 0.0
        %1850 = vmatpush.msra.mxu0 0.0
        %1851 = vmatpush.msra.mxu0 0.0
        %1852 = vmatpush.msra.mxu0 0.0
        %1853 = vmatpush.msra.mxu0 0.0
        %1854 = vmatpush.msra.mxu0 0.0
        %1855 = vmatpush.msra.mxu0 0.0
        %1856 = vmatpush.msra.mxu0 0.0
        %1857 = vmatpush.msra.mxu0 0.0
        %1858 = vmatpush.msra.mxu0 0.0
        %1859 = vmatpush.msra.mxu0 %v1829
        %1860 = vmatmul.f32.gmra.mxu0 %v1842
        %v1861 = vpop.f32.mrf.mxu0
        %v1862 = vadd.f32 0.0, %v1861
        %1863 = vdwg.mxu0
        %1864 = vmatpush.msra.mxu0 0.0
        %1865 = vmatpush.msra.mxu0 0.0
        %1866 = vmatpush.msra.mxu0 0.0
        %1867 = vmatpush.msra.mxu0 0.0
        %1868 = vmatpush.msra.mxu0 0.0
        %1869 = vmatpush.msra.mxu0 0.0
        %1870 = vmatpush.msra.mxu0 0.0
        %1871 = vmatpush.msra.mxu0 0.0
        %1872 = vmatpush.msra.mxu0 0.0
        %1873 = vmatpush.msra.mxu0 0.0
        %1874 = vmatpush.msra.mxu0 0.0
        %1875 = vmatpush.msra.mxu0 0.0
        %1876 = vmatpush.msra.mxu0 0.0
        %1877 = vmatpush.msra.mxu0 0.0
        %1878 = vmatpush.msra.mxu0 0.0
        %1879 = vmatpush.msra.mxu0 %v1836
        %1880 = vmatmul.f32.gmra.mxu0 %v1842
        %v1881 = vpop.f32.mrf.mxu0
        %v1882 = vadd.f32 0.0, %v1881
        %1883 = vdwg.mxu0
        %v1884 = vadd.f32 %v1837, %v1862
        %v1885 = vadd.f32 %v1838, %v1882
        %1886 = vst [vmem:[#allocation4] sm:$0xff] %v1884
        %1887 = vst [vmem:[#allocation4 + $0x8] sm:$0xff] %v1885
        %v1888 = vld [vmem:[#allocation2 + $0x1] sm:$0xff]
        %v1889 = vld [vmem:[#allocation2 + $0x9] sm:$0xff]
        %v1890 = vld [vmem:[#allocation2 + $0x19] sm:$0xff]
        %v1891 = vld [vmem:[#allocation2 + $0x21] sm:$0xff]
        %v1892 = vld [vmem:[#allocation2 + $0x31] sm:$0xff]
        %v1893 = vld [vmem:[#allocation2 + $0x39] sm:$0xff]
        %v1894 = vld [vmem:[#allocation2 + $0x49] sm:$0xff]
        %v1895 = vld [vmem:[#allocation2 + $0x51] sm:$0xff]
        %v1896 = vld [vmem:[#allocation2 + $0x61] sm:$0xff]
        %v1897 = vld [vmem:[#allocation2 + $0x69] sm:$0xff]
        %v1898 = vld [vmem:[#allocation2 + $0x79] sm:$0xff]
        %v1899 = vld [vmem:[#allocation2 + $0x81] sm:$0xff]
        %v1900 = vld [vmem:[#allocation2 + $0x91] sm:$0xff]
        %v1901 = vld [vmem:[#allocation2 + $0x99] sm:$0xff]
        %v1902 = vld [vmem:[#allocation2 + $0xa9] sm:$0xff]
        %v1903 = vld [vmem:[#allocation2 + $0xb1] sm:$0xff]
        %v1904 = vrot.slane %v1892, 4
        %v1905 = vsel %vm467, %v1904, %v1888
        %v1906 = vrot.slane %v1888, 4
        %v1907 = vsel %vm467, %v1892, %v1906
        %v1909 = vunpack.c.l.s4 1983009808
        %v1910 = vunpack.c.0.s8 %v1909
        %v1911 = vperm.slane %v1905, %v1910
        %v1913 = vunpack.c.l.s4 1983009808
        %v1914 = vunpack.c.0.s8 %v1913
        %v1915 = vperm.slane %v1907, %v1914
        %v1916 = vrot.slane %v1894, 4
        %v1917 = vsel %vm467, %v1916, %v1890
        %v1918 = vrot.slane %v1890, 4
        %v1919 = vsel %vm467, %v1894, %v1918
        %v1921 = vunpack.c.l.s4 1983009808
        %v1922 = vunpack.c.0.s8 %v1921
        %v1923 = vperm.slane %v1917, %v1922
        %v1925 = vunpack.c.l.s4 1983009808
        %v1926 = vunpack.c.0.s8 %v1925
        %v1927 = vperm.slane %v1919, %v1926
        %v1928 = vrot.slane %v1900, 4
        %v1929 = vsel %vm467, %v1928, %v1896
        %v1930 = vrot.slane %v1896, 4
        %v1931 = vsel %vm467, %v1900, %v1930
        %v1933 = vunpack.c.l.s4 1983009808
        %v1934 = vunpack.c.0.s8 %v1933
        %v1935 = vperm.slane %v1929, %v1934
        %v1937 = vunpack.c.l.s4 1983009808
        %v1938 = vunpack.c.0.s8 %v1937
        %v1939 = vperm.slane %v1931, %v1938
        %v1940 = vrot.slane %v1902, 4
        %v1941 = vsel %vm467, %v1940, %v1898
        %v1942 = vrot.slane %v1898, 4
        %v1943 = vsel %vm467, %v1902, %v1942
        %v1945 = vunpack.c.l.s4 1983009808
        %v1946 = vunpack.c.0.s8 %v1945
        %v1947 = vperm.slane %v1941, %v1946
        %v1949 = vunpack.c.l.s4 1983009808
        %v1950 = vunpack.c.0.s8 %v1949
        %v1951 = vperm.slane %v1943, %v1950
        %v1952 = vrot.slane %v1923, 4
        %v1953 = vsel %vm467, %v1952, %v1911
        %v1954 = vrot.slane %v1911, 4
        %v1955 = vsel %vm467, %v1923, %v1954
        %v1957 = vunpack.c.l.s4 1934713408
        %v1958 = vunpack.c.0.s8 %v1957
        %v1959 = vperm.slane %v1953, %v1958
        %v1961 = vunpack.c.l.s4 1934713408
        %v1962 = vunpack.c.0.s8 %v1961
        %v1963 = vperm.slane %v1955, %v1962
        %v1964 = vrot.slane %v1927, 4
        %v1965 = vsel %vm467, %v1964, %v1915
        %v1966 = vrot.slane %v1915, 4
        %v1967 = vsel %vm467, %v1927, %v1966
        %v1969 = vunpack.c.l.s4 1934713408
        %v1970 = vunpack.c.0.s8 %v1969
        %v1971 = vperm.slane %v1965, %v1970
        %v1973 = vunpack.c.l.s4 1934713408
        %v1974 = vunpack.c.0.s8 %v1973
        %v1975 = vperm.slane %v1967, %v1974
        %v1976 = vrot.slane %v1947, 4
        %v1977 = vsel %vm467, %v1976, %v1935
        %v1978 = vrot.slane %v1935, 4
        %v1979 = vsel %vm467, %v1947, %v1978
        %v1981 = vunpack.c.l.s4 1934713408
        %v1982 = vunpack.c.0.s8 %v1981
        %v1983 = vperm.slane %v1977, %v1982
        %v1985 = vunpack.c.l.s4 1934713408
        %v1986 = vunpack.c.0.s8 %v1985
        %v1987 = vperm.slane %v1979, %v1986
        %v1988 = vrot.slane %v1951, 4
        %v1989 = vsel %vm467, %v1988, %v1939
        %v1990 = vrot.slane %v1939, 4
        %v1991 = vsel %vm467, %v1951, %v1990
        %v1993 = vunpack.c.l.s4 1934713408
        %v1994 = vunpack.c.0.s8 %v1993
        %v1995 = vperm.slane %v1989, %v1994
        %v1997 = vunpack.c.l.s4 1934713408
        %v1998 = vunpack.c.0.s8 %v1997
        %v1999 = vperm.slane %v1991, %v1998
        %v2000 = vrot.slane %v1983, 4
        %v2001 = vsel %vm467, %v2000, %v1959
        %v2002 = vrot.slane %v1959, 4
        %v2003 = vsel %vm467, %v1983, %v2002
        %v2004 = vrot.slane %v1987, 4
        %v2005 = vsel %vm467, %v2004, %v1963
        %v2006 = vrot.slane %v1963, 4
        %v2007 = vsel %vm467, %v1987, %v2006
        %v2008 = vrot.slane %v1995, 4
        %v2009 = vsel %vm467, %v2008, %v1971
        %v2010 = vrot.slane %v1971, 4
        %v2011 = vsel %vm467, %v1995, %v2010
        %v2012 = vrot.slane %v1999, 4
        %v2013 = vsel %vm467, %v2012, %v1975
        %v2014 = vrot.slane %v1975, 4
        %v2015 = vsel %vm467, %v1999, %v2014
        %v2016 = vrot.slane %v1893, 4
        %v2017 = vsel %vm467, %v2016, %v1889
        %v2018 = vrot.slane %v1889, 4
        %v2019 = vsel %vm467, %v1893, %v2018
        %v2021 = vunpack.c.l.s4 1983009808
        %v2022 = vunpack.c.0.s8 %v2021
        %v2023 = vperm.slane %v2017, %v2022
        %v2025 = vunpack.c.l.s4 1983009808
        %v2026 = vunpack.c.0.s8 %v2025
        %v2027 = vperm.slane %v2019, %v2026
        %v2028 = vrot.slane %v1895, 4
        %v2029 = vsel %vm467, %v2028, %v1891
        %v2030 = vrot.slane %v1891, 4
        %v2031 = vsel %vm467, %v1895, %v2030
        %v2033 = vunpack.c.l.s4 1983009808
        %v2034 = vunpack.c.0.s8 %v2033
        %v2035 = vperm.slane %v2029, %v2034
        %v2037 = vunpack.c.l.s4 1983009808
        %v2038 = vunpack.c.0.s8 %v2037
        %v2039 = vperm.slane %v2031, %v2038
        %v2040 = vrot.slane %v1901, 4
        %v2041 = vsel %vm467, %v2040, %v1897
        %v2042 = vrot.slane %v1897, 4
        %v2043 = vsel %vm467, %v1901, %v2042
        %v2045 = vunpack.c.l.s4 1983009808
        %v2046 = vunpack.c.0.s8 %v2045
        %v2047 = vperm.slane %v2041, %v2046
        %v2049 = vunpack.c.l.s4 1983009808
        %v2050 = vunpack.c.0.s8 %v2049
        %v2051 = vperm.slane %v2043, %v2050
        %v2052 = vrot.slane %v1903, 4
        %v2053 = vsel %vm467, %v2052, %v1899
        %v2054 = vrot.slane %v1899, 4
        %v2055 = vsel %vm467, %v1903, %v2054
        %v2057 = vunpack.c.l.s4 1983009808
        %v2058 = vunpack.c.0.s8 %v2057
        %v2059 = vperm.slane %v2053, %v2058
        %v2061 = vunpack.c.l.s4 1983009808
        %v2062 = vunpack.c.0.s8 %v2061
        %v2063 = vperm.slane %v2055, %v2062
        %v2064 = vrot.slane %v2035, 4
        %v2065 = vsel %vm467, %v2064, %v2023
        %v2066 = vrot.slane %v2023, 4
        %v2067 = vsel %vm467, %v2035, %v2066
        %v2069 = vunpack.c.l.s4 1934713408
        %v2070 = vunpack.c.0.s8 %v2069
        %v2071 = vperm.slane %v2065, %v2070
        %v2073 = vunpack.c.l.s4 1934713408
        %v2074 = vunpack.c.0.s8 %v2073
        %v2075 = vperm.slane %v2067, %v2074
        %v2076 = vrot.slane %v2039, 4
        %v2077 = vsel %vm467, %v2076, %v2027
        %v2078 = vrot.slane %v2027, 4
        %v2079 = vsel %vm467, %v2039, %v2078
        %v2081 = vunpack.c.l.s4 1934713408
        %v2082 = vunpack.c.0.s8 %v2081
        %v2083 = vperm.slane %v2077, %v2082
        %v2085 = vunpack.c.l.s4 1934713408
        %v2086 = vunpack.c.0.s8 %v2085
        %v2087 = vperm.slane %v2079, %v2086
        %v2088 = vrot.slane %v2059, 4
        %v2089 = vsel %vm467, %v2088, %v2047
        %v2090 = vrot.slane %v2047, 4
        %v2091 = vsel %vm467, %v2059, %v2090
        %v2093 = vunpack.c.l.s4 1934713408
        %v2094 = vunpack.c.0.s8 %v2093
        %v2095 = vperm.slane %v2089, %v2094
        %v2097 = vunpack.c.l.s4 1934713408
        %v2098 = vunpack.c.0.s8 %v2097
        %v2099 = vperm.slane %v2091, %v2098
        %v2100 = vrot.slane %v2063, 4
        %v2101 = vsel %vm467, %v2100, %v2051
        %v2102 = vrot.slane %v2051, 4
        %v2103 = vsel %vm467, %v2063, %v2102
        %v2105 = vunpack.c.l.s4 1934713408
        %v2106 = vunpack.c.0.s8 %v2105
        %v2107 = vperm.slane %v2101, %v2106
        %v2109 = vunpack.c.l.s4 1934713408
        %v2110 = vunpack.c.0.s8 %v2109
        %v2111 = vperm.slane %v2103, %v2110
        %v2112 = vrot.slane %v2095, 4
        %v2113 = vsel %vm467, %v2112, %v2071
        %v2114 = vrot.slane %v2071, 4
        %v2115 = vsel %vm467, %v2095, %v2114
        %v2116 = vrot.slane %v2099, 4
        %v2117 = vsel %vm467, %v2116, %v2075
        %v2118 = vrot.slane %v2075, 4
        %v2119 = vsel %vm467, %v2099, %v2118
        %v2120 = vrot.slane %v2107, 4
        %v2121 = vsel %vm467, %v2120, %v2083
        %v2122 = vrot.slane %v2083, 4
        %v2123 = vsel %vm467, %v2107, %v2122
        %v2124 = vrot.slane %v2111, 4
        %v2125 = vsel %vm467, %v2124, %v2087
        %v2126 = vrot.slane %v2087, 4
        %v2127 = vsel %vm467, %v2111, %v2126
        %2129 = vrot.lane.b32.xlu0 %v2003, 16
        %v2130 = vpop.permute.xlu0 %2129
        %2133 = vrot.lane.b32.xlu0 %v2005, 32
        %v2134 = vpop.permute.xlu0 %2133
        %2137 = vrot.lane.b32.xlu0 %v2007, 48
        %v2138 = vpop.permute.xlu0 %2137
        %2141 = vrot.lane.b32.xlu0 %v2009, 64
        %v2142 = vpop.permute.xlu0 %2141
        %2145 = vrot.lane.b32.xlu0 %v2011, 80
        %v2146 = vpop.permute.xlu0 %2145
        %2149 = vrot.lane.b32.xlu0 %v2013, 96
        %v2150 = vpop.permute.xlu0 %2149
        %2153 = vrot.lane.b32.xlu0 %v2015, 112
        %v2154 = vpop.permute.xlu0 %2153
        %2157 = vrot.lane.b32.xlu0 %v2115, 16
        %v2158 = vpop.permute.xlu0 %2157
        %2161 = vrot.lane.b32.xlu0 %v2117, 32
        %v2162 = vpop.permute.xlu0 %2161
        %2165 = vrot.lane.b32.xlu0 %v2119, 48
        %v2166 = vpop.permute.xlu0 %2165
        %2169 = vrot.lane.b32.xlu0 %v2121, 64
        %v2170 = vpop.permute.xlu0 %2169
        %2173 = vrot.lane.b32.xlu0 %v2123, 80
        %v2174 = vpop.permute.xlu0 %2173
        %2177 = vrot.lane.b32.xlu0 %v2125, 96
        %v2178 = vpop.permute.xlu0 %2177
        %2181 = vrot.lane.b32.xlu0 %v2127, 112
        %v2182 = vpop.permute.xlu0 %2181
        %v2184 = vsel %vm967, %v2001, %v2130
        %v2185 = vsel %vm969, %v2184, %v2134
        %v2186 = vsel %vm971, %v2185, %v2138
        %v2187 = vsel %vm378, %v2186, %v2142
        %v2188 = vsel %vm974, %v2187, %v2146
        %v2189 = vsel %vm976, %v2188, %v2150
        %v2190 = vsel %vm978, %v2189, %v2154
        %v2191 = vsel %vm967, %v2113, %v2158
        %v2192 = vsel %vm969, %v2191, %v2162
        %v2193 = vsel %vm971, %v2192, %v2166
        %v2194 = vsel %vm378, %v2193, %v2170
        %v2195 = vsel %vm974, %v2194, %v2174
        %v2196 = vsel %vm976, %v2195, %v2178
        %v2197 = vsel %vm978, %v2196, %v2182
        %v2198 = vld [vmem:[#allocation4] sm:$0xff]
        %v2199 = vld [vmem:[#allocation4 + $0x8] sm:$0xff]
        %s2200 = scalar_lea.vmem %s3, 24
        %v2201 = vld [vmem:[%s2200] sm:$0xff]
        %v2203 = vsel %vm990, %v2201, 0
        %2205 = vmatpush.msra.mxu0 0.0
        %2206 = vmatpush.msra.mxu0 0.0
        %2207 = vmatpush.msra.mxu0 0.0
        %2208 = vmatpush.msra.mxu0 0.0
        %2209 = vmatpush.msra.mxu0 0.0
        %2210 = vmatpush.msra.mxu0 0.0
        %2211 = vmatpush.msra.mxu0 0.0
        %2212 = vmatpush.msra.mxu0 0.0
        %2213 = vmatpush.msra.mxu0 0.0
        %2214 = vmatpush.msra.mxu0 0.0
        %2215 = vmatpush.msra.mxu0 0.0
        %2216 = vmatpush.msra.mxu0 0.0
        %2217 = vmatpush.msra.mxu0 0.0
        %2218 = vmatpush.msra.mxu0 0.0
        %2219 = vmatpush.msra.mxu0 0.0
        %2220 = vmatpush.msra.mxu0 %v2190
        %2221 = vmatmul.f32.gmra.mxu0 %v2203
        %v2222 = vpop.f32.mrf.mxu0
        %v2223 = vadd.f32 0.0, %v2222
        %2224 = vdwg.mxu0
        %2225 = vmatpush.msra.mxu0 0.0
        %2226 = vmatpush.msra.mxu0 0.0
        %2227 = vmatpush.msra.mxu0 0.0
        %2228 = vmatpush.msra.mxu0 0.0
        %2229 = vmatpush.msra.mxu0 0.0
        %2230 = vmatpush.msra.mxu0 0.0
        %2231 = vmatpush.msra.mxu0 0.0
        %2232 = vmatpush.msra.mxu0 0.0
        %2233 = vmatpush.msra.mxu0 0.0
        %2234 = vmatpush.msra.mxu0 0.0
        %2235 = vmatpush.msra.mxu0 0.0
        %2236 = vmatpush.msra.mxu0 0.0
        %2237 = vmatpush.msra.mxu0 0.0
        %2238 = vmatpush.msra.mxu0 0.0
        %2239 = vmatpush.msra.mxu0 0.0
        %2240 = vmatpush.msra.mxu0 %v2197
        %2241 = vmatmul.f32.gmra.mxu0 %v2203
        %v2242 = vpop.f32.mrf.mxu0
        %v2243 = vadd.f32 0.0, %v2242
        %2244 = vdwg.mxu0
        %v2245 = vadd.f32 %v2198, %v2223
        %v2246 = vadd.f32 %v2199, %v2243
        %2247 = vst [vmem:[#allocation4] sm:$0xff] %v2245
        %2248 = vst [vmem:[#allocation4 + $0x8] sm:$0xff] %v2246
        %v2249 = vld [vmem:[#allocation2 + $0x1] sm:$0xff]
        %v2250 = vld [vmem:[#allocation2 + $0x9] sm:$0xff]
        %v2251 = vld [vmem:[#allocation2 + $0x19] sm:$0xff]
        %v2252 = vld [vmem:[#allocation2 + $0x21] sm:$0xff]
        %v2253 = vld [vmem:[#allocation2 + $0x31] sm:$0xff]
        %v2254 = vld [vmem:[#allocation2 + $0x39] sm:$0xff]
        %v2255 = vld [vmem:[#allocation2 + $0x49] sm:$0xff]
        %v2256 = vld [vmem:[#allocation2 + $0x51] sm:$0xff]
        %v2257 = vld [vmem:[#allocation2 + $0x61] sm:$0xff]
        %v2258 = vld [vmem:[#allocation2 + $0x69] sm:$0xff]
        %v2259 = vld [vmem:[#allocation2 + $0x79] sm:$0xff]
        %v2260 = vld [vmem:[#allocation2 + $0x81] sm:$0xff]
        %v2261 = vld [vmem:[#allocation2 + $0x91] sm:$0xff]
        %v2262 = vld [vmem:[#allocation2 + $0x99] sm:$0xff]
        %v2263 = vld [vmem:[#allocation2 + $0xa9] sm:$0xff]
        %v2264 = vld [vmem:[#allocation2 + $0xb1] sm:$0xff]
        %2281 = vrot.lane.b32.xlu0 %v2249, 127
        %v2282 = vpop.permute.xlu0 %2281
        %2283 = vrot.lane.b32.xlu0 %v2250, 127
        %v2284 = vpop.permute.xlu0 %2283
        %2285 = vrot.lane.b32.xlu0 %v2251, 127
        %v2286 = vpop.permute.xlu0 %2285
        %2287 = vrot.lane.b32.xlu0 %v2252, 127
        %v2288 = vpop.permute.xlu0 %2287
        %2289 = vrot.lane.b32.xlu0 %v2253, 127
        %v2290 = vpop.permute.xlu0 %2289
        %2291 = vrot.lane.b32.xlu0 %v2254, 127
        %v2292 = vpop.permute.xlu0 %2291
        %2293 = vrot.lane.b32.xlu0 %v2255, 127
        %v2294 = vpop.permute.xlu0 %2293
        %2295 = vrot.lane.b32.xlu0 %v2256, 127
        %v2296 = vpop.permute.xlu0 %2295
        %2297 = vrot.lane.b32.xlu0 %v2257, 127
        %v2298 = vpop.permute.xlu0 %2297
        %2299 = vrot.lane.b32.xlu0 %v2258, 127
        %v2300 = vpop.permute.xlu0 %2299
        %2301 = vrot.lane.b32.xlu0 %v2259, 127
        %v2302 = vpop.permute.xlu0 %2301
        %2303 = vrot.lane.b32.xlu0 %v2260, 127
        %v2304 = vpop.permute.xlu0 %2303
        %2305 = vrot.lane.b32.xlu0 %v2261, 127
        %v2306 = vpop.permute.xlu0 %2305
        %2307 = vrot.lane.b32.xlu0 %v2262, 127
        %v2308 = vpop.permute.xlu0 %2307
        %2309 = vrot.lane.b32.xlu0 %v2263, 127
        %v2310 = vpop.permute.xlu0 %2309
        %2311 = vrot.lane.b32.xlu0 %v2264, 127
        %v2312 = vpop.permute.xlu0 %2311
        %v2329 = vrot.slane %v2290, 4
        %v2330 = vsel %vm467, %v2329, %v2282
        %v2331 = vrot.slane %v2282, 4
        %v2332 = vsel %vm467, %v2290, %v2331
        %v2334 = vunpack.c.l.s4 1983009808
        %v2335 = vunpack.c.0.s8 %v2334
        %v2336 = vperm.slane %v2330, %v2335
        %v2338 = vunpack.c.l.s4 1983009808
        %v2339 = vunpack.c.0.s8 %v2338
        %v2340 = vperm.slane %v2332, %v2339
        %v2341 = vrot.slane %v2294, 4
        %v2342 = vsel %vm467, %v2341, %v2286
        %v2343 = vrot.slane %v2286, 4
        %v2344 = vsel %vm467, %v2294, %v2343
        %v2346 = vunpack.c.l.s4 1983009808
        %v2347 = vunpack.c.0.s8 %v2346
        %v2348 = vperm.slane %v2342, %v2347
        %v2350 = vunpack.c.l.s4 1983009808
        %v2351 = vunpack.c.0.s8 %v2350
        %v2352 = vperm.slane %v2344, %v2351
        %v2353 = vrot.slane %v2306, 4
        %v2354 = vsel %vm467, %v2353, %v2298
        %v2355 = vrot.slane %v2298, 4
        %v2356 = vsel %vm467, %v2306, %v2355
        %v2358 = vunpack.c.l.s4 1983009808
        %v2359 = vunpack.c.0.s8 %v2358
        %v2360 = vperm.slane %v2354, %v2359
        %v2362 = vunpack.c.l.s4 1983009808
        %v2363 = vunpack.c.0.s8 %v2362
        %v2364 = vperm.slane %v2356, %v2363
        %v2365 = vrot.slane %v2310, 4
        %v2366 = vsel %vm467, %v2365, %v2302
        %v2367 = vrot.slane %v2302, 4
        %v2368 = vsel %vm467, %v2310, %v2367
        %v2370 = vunpack.c.l.s4 1983009808
        %v2371 = vunpack.c.0.s8 %v2370
        %v2372 = vperm.slane %v2366, %v2371
        %v2374 = vunpack.c.l.s4 1983009808
        %v2375 = vunpack.c.0.s8 %v2374
        %v2376 = vperm.slane %v2368, %v2375
        %v2377 = vrot.slane %v2348, 4
        %v2378 = vsel %vm467, %v2377, %v2336
        %v2379 = vrot.slane %v2336, 4
        %v2380 = vsel %vm467, %v2348, %v2379
        %v2382 = vunpack.c.l.s4 1934713408
        %v2383 = vunpack.c.0.s8 %v2382
        %v2384 = vperm.slane %v2378, %v2383
        %v2386 = vunpack.c.l.s4 1934713408
        %v2387 = vunpack.c.0.s8 %v2386
        %v2388 = vperm.slane %v2380, %v2387
        %v2389 = vrot.slane %v2352, 4
        %v2390 = vsel %vm467, %v2389, %v2340
        %v2391 = vrot.slane %v2340, 4
        %v2392 = vsel %vm467, %v2352, %v2391
        %v2394 = vunpack.c.l.s4 1934713408
        %v2395 = vunpack.c.0.s8 %v2394
        %v2396 = vperm.slane %v2390, %v2395
        %v2398 = vunpack.c.l.s4 1934713408
        %v2399 = vunpack.c.0.s8 %v2398
        %v2400 = vperm.slane %v2392, %v2399
        %v2401 = vrot.slane %v2372, 4
        %v2402 = vsel %vm467, %v2401, %v2360
        %v2403 = vrot.slane %v2360, 4
        %v2404 = vsel %vm467, %v2372, %v2403
        %v2406 = vunpack.c.l.s4 1934713408
        %v2407 = vunpack.c.0.s8 %v2406
        %v2408 = vperm.slane %v2402, %v2407
        %v2410 = vunpack.c.l.s4 1934713408
        %v2411 = vunpack.c.0.s8 %v2410
        %v2412 = vperm.slane %v2404, %v2411
        %v2413 = vrot.slane %v2376, 4
        %v2414 = vsel %vm467, %v2413, %v2364
        %v2415 = vrot.slane %v2364, 4
        %v2416 = vsel %vm467, %v2376, %v2415
        %v2418 = vunpack.c.l.s4 1934713408
        %v2419 = vunpack.c.0.s8 %v2418
        %v2420 = vperm.slane %v2414, %v2419
        %v2422 = vunpack.c.l.s4 1934713408
        %v2423 = vunpack.c.0.s8 %v2422
        %v2424 = vperm.slane %v2416, %v2423
        %v2425 = vrot.slane %v2408, 4
        %v2426 = vsel %vm467, %v2425, %v2384
        %v2427 = vrot.slane %v2384, 4
        %v2428 = vsel %vm467, %v2408, %v2427
        %v2429 = vrot.slane %v2412, 4
        %v2430 = vsel %vm467, %v2429, %v2388
        %v2431 = vrot.slane %v2388, 4
        %v2432 = vsel %vm467, %v2412, %v2431
        %v2433 = vrot.slane %v2420, 4
        %v2434 = vsel %vm467, %v2433, %v2396
        %v2435 = vrot.slane %v2396, 4
        %v2436 = vsel %vm467, %v2420, %v2435
        %v2437 = vrot.slane %v2424, 4
        %v2438 = vsel %vm467, %v2437, %v2400
        %v2439 = vrot.slane %v2400, 4
        %v2440 = vsel %vm467, %v2424, %v2439
        %v2441 = vrot.slane %v2292, 4
        %v2442 = vsel %vm467, %v2441, %v2284
        %v2443 = vrot.slane %v2284, 4
        %v2444 = vsel %vm467, %v2292, %v2443
        %v2446 = vunpack.c.l.s4 1983009808
        %v2447 = vunpack.c.0.s8 %v2446
        %v2448 = vperm.slane %v2442, %v2447
        %v2450 = vunpack.c.l.s4 1983009808
        %v2451 = vunpack.c.0.s8 %v2450
        %v2452 = vperm.slane %v2444, %v2451
        %v2453 = vrot.slane %v2296, 4
        %v2454 = vsel %vm467, %v2453, %v2288
        %v2455 = vrot.slane %v2288, 4
        %v2456 = vsel %vm467, %v2296, %v2455
        %v2458 = vunpack.c.l.s4 1983009808
        %v2459 = vunpack.c.0.s8 %v2458
        %v2460 = vperm.slane %v2454, %v2459
        %v2462 = vunpack.c.l.s4 1983009808
        %v2463 = vunpack.c.0.s8 %v2462
        %v2464 = vperm.slane %v2456, %v2463
        %v2465 = vrot.slane %v2308, 4
        %v2466 = vsel %vm467, %v2465, %v2300
        %v2467 = vrot.slane %v2300, 4
        %v2468 = vsel %vm467, %v2308, %v2467
        %v2470 = vunpack.c.l.s4 1983009808
        %v2471 = vunpack.c.0.s8 %v2470
        %v2472 = vperm.slane %v2466, %v2471
        %v2474 = vunpack.c.l.s4 1983009808
        %v2475 = vunpack.c.0.s8 %v2474
        %v2476 = vperm.slane %v2468, %v2475
        %v2477 = vrot.slane %v2312, 4
        %v2478 = vsel %vm467, %v2477, %v2304
        %v2479 = vrot.slane %v2304, 4
        %v2480 = vsel %vm467, %v2312, %v2479
        %v2482 = vunpack.c.l.s4 1983009808
        %v2483 = vunpack.c.0.s8 %v2482
        %v2484 = vperm.slane %v2478, %v2483
        %v2486 = vunpack.c.l.s4 1983009808
        %v2487 = vunpack.c.0.s8 %v2486
        %v2488 = vperm.slane %v2480, %v2487
        %v2489 = vrot.slane %v2460, 4
        %v2490 = vsel %vm467, %v2489, %v2448
        %v2491 = vrot.slane %v2448, 4
        %v2492 = vsel %vm467, %v2460, %v2491
        %v2494 = vunpack.c.l.s4 1934713408
        %v2495 = vunpack.c.0.s8 %v2494
        %v2496 = vperm.slane %v2490, %v2495
        %v2498 = vunpack.c.l.s4 1934713408
        %v2499 = vunpack.c.0.s8 %v2498
        %v2500 = vperm.slane %v2492, %v2499
        %v2501 = vrot.slane %v2464, 4
        %v2502 = vsel %vm467, %v2501, %v2452
        %v2503 = vrot.slane %v2452, 4
        %v2504 = vsel %vm467, %v2464, %v2503
        %v2506 = vunpack.c.l.s4 1934713408
        %v2507 = vunpack.c.0.s8 %v2506
        %v2508 = vperm.slane %v2502, %v2507
        %v2510 = vunpack.c.l.s4 1934713408
        %v2511 = vunpack.c.0.s8 %v2510
        %v2512 = vperm.slane %v2504, %v2511
        %v2513 = vrot.slane %v2484, 4
        %v2514 = vsel %vm467, %v2513, %v2472
        %v2515 = vrot.slane %v2472, 4
        %v2516 = vsel %vm467, %v2484, %v2515
        %v2518 = vunpack.c.l.s4 1934713408
        %v2519 = vunpack.c.0.s8 %v2518
        %v2520 = vperm.slane %v2514, %v2519
        %v2522 = vunpack.c.l.s4 1934713408
        %v2523 = vunpack.c.0.s8 %v2522
        %v2524 = vperm.slane %v2516, %v2523
        %v2525 = vrot.slane %v2488, 4
        %v2526 = vsel %vm467, %v2525, %v2476
        %v2527 = vrot.slane %v2476, 4
        %v2528 = vsel %vm467, %v2488, %v2527
        %v2530 = vunpack.c.l.s4 1934713408
        %v2531 = vunpack.c.0.s8 %v2530
        %v2532 = vperm.slane %v2526, %v2531
        %v2534 = vunpack.c.l.s4 1934713408
        %v2535 = vunpack.c.0.s8 %v2534
        %v2536 = vperm.slane %v2528, %v2535
        %v2537 = vrot.slane %v2520, 4
        %v2538 = vsel %vm467, %v2537, %v2496
        %v2539 = vrot.slane %v2496, 4
        %v2540 = vsel %vm467, %v2520, %v2539
        %v2541 = vrot.slane %v2524, 4
        %v2542 = vsel %vm467, %v2541, %v2500
        %v2543 = vrot.slane %v2500, 4
        %v2544 = vsel %vm467, %v2524, %v2543
        %v2545 = vrot.slane %v2532, 4
        %v2546 = vsel %vm467, %v2545, %v2508
        %v2547 = vrot.slane %v2508, 4
        %v2548 = vsel %vm467, %v2532, %v2547
        %v2549 = vrot.slane %v2536, 4
        %v2550 = vsel %vm467, %v2549, %v2512
        %v2551 = vrot.slane %v2512, 4
        %v2552 = vsel %vm467, %v2536, %v2551
        %2554 = vrot.lane.b32.xlu0 %v2428, 16
        %v2555 = vpop.permute.xlu0 %2554
        %2558 = vrot.lane.b32.xlu0 %v2430, 32
        %v2559 = vpop.permute.xlu0 %2558
        %2562 = vrot.lane.b32.xlu0 %v2432, 48
        %v2563 = vpop.permute.xlu0 %2562
        %2566 = vrot.lane.b32.xlu0 %v2434, 64
        %v2567 = vpop.permute.xlu0 %2566
        %2570 = vrot.lane.b32.xlu0 %v2436, 80
        %v2571 = vpop.permute.xlu0 %2570
        %2574 = vrot.lane.b32.xlu0 %v2438, 96
        %v2575 = vpop.permute.xlu0 %2574
        %2578 = vrot.lane.b32.xlu0 %v2440, 112
        %v2579 = vpop.permute.xlu0 %2578
        %2582 = vrot.lane.b32.xlu0 %v2540, 16
        %v2583 = vpop.permute.xlu0 %2582
        %2586 = vrot.lane.b32.xlu0 %v2542, 32
        %v2587 = vpop.permute.xlu0 %2586
        %2590 = vrot.lane.b32.xlu0 %v2544, 48
        %v2591 = vpop.permute.xlu0 %2590
        %2594 = vrot.lane.b32.xlu0 %v2546, 64
        %v2595 = vpop.permute.xlu0 %2594
        %2598 = vrot.lane.b32.xlu0 %v2548, 80
        %v2599 = vpop.permute.xlu0 %2598
        %2602 = vrot.lane.b32.xlu0 %v2550, 96
        %v2603 = vpop.permute.xlu0 %2602
        %2606 = vrot.lane.b32.xlu0 %v2552, 112
        %v2607 = vpop.permute.xlu0 %2606
        %v2609 = vsel %vm967, %v2426, %v2555
        %v2610 = vsel %vm969, %v2609, %v2559
        %v2611 = vsel %vm971, %v2610, %v2563
        %v2612 = vsel %vm378, %v2611, %v2567
        %v2613 = vsel %vm974, %v2612, %v2571
        %v2614 = vsel %vm976, %v2613, %v2575
        %v2615 = vsel %vm978, %v2614, %v2579
        %v2616 = vsel %vm967, %v2538, %v2583
        %v2617 = vsel %vm969, %v2616, %v2587
        %v2618 = vsel %vm971, %v2617, %v2591
        %v2619 = vsel %vm378, %v2618, %v2595
        %v2620 = vsel %vm974, %v2619, %v2599
        %v2621 = vsel %vm976, %v2620, %v2603
        %v2622 = vsel %vm978, %v2621, %v2607
        %v2623 = vld [vmem:[#allocation4] sm:$0xff]
        %v2624 = vld [vmem:[#allocation4 + $0x8] sm:$0xff]
        %s2625 = scalar_lea.vmem %s3, 32
        %v2626 = vld [vmem:[%s2625] sm:$0xff]
        %v2628 = vsel %vm990, %v2626, 0
        %2630 = vmatpush.msra.mxu0 0.0
        %2631 = vmatpush.msra.mxu0 0.0
        %2632 = vmatpush.msra.mxu0 0.0
        %2633 = vmatpush.msra.mxu0 0.0
        %2634 = vmatpush.msra.mxu0 0.0
        %2635 = vmatpush.msra.mxu0 0.0
        %2636 = vmatpush.msra.mxu0 0.0
        %2637 = vmatpush.msra.mxu0 0.0
        %2638 = vmatpush.msra.mxu0 0.0
        %2639 = vmatpush.msra.mxu0 0.0
        %2640 = vmatpush.msra.mxu0 0.0
        %2641 = vmatpush.msra.mxu0 0.0
        %2642 = vmatpush.msra.mxu0 0.0
        %2643 = vmatpush.msra.mxu0 0.0
        %2644 = vmatpush.msra.mxu0 0.0
        %2645 = vmatpush.msra.mxu0 %v2615
        %2646 = vmatmul.f32.gmra.mxu0 %v2628
        %v2647 = vpop.f32.mrf.mxu0
        %v2648 = vadd.f32 0.0, %v2647
        %2649 = vdwg.mxu0
        %2650 = vmatpush.msra.mxu0 0.0
        %2651 = vmatpush.msra.mxu0 0.0
        %2652 = vmatpush.msra.mxu0 0.0
        %2653 = vmatpush.msra.mxu0 0.0
        %2654 = vmatpush.msra.mxu0 0.0
        %2655 = vmatpush.msra.mxu0 0.0
        %2656 = vmatpush.msra.mxu0 0.0
        %2657 = vmatpush.msra.mxu0 0.0
        %2658 = vmatpush.msra.mxu0 0.0
        %2659 = vmatpush.msra.mxu0 0.0
        %2660 = vmatpush.msra.mxu0 0.0
        %2661 = vmatpush.msra.mxu0 0.0
        %2662 = vmatpush.msra.mxu0 0.0
        %2663 = vmatpush.msra.mxu0 0.0
        %2664 = vmatpush.msra.mxu0 0.0
        %2665 = vmatpush.msra.mxu0 %v2622
        %2666 = vmatmul.f32.gmra.mxu0 %v2628
        %v2667 = vpop.f32.mrf.mxu0
        %v2668 = vadd.f32 0.0, %v2667
        %2669 = vdwg.mxu0
        %v2670 = vadd.f32 %v2623, %v2648
        %v2671 = vadd.f32 %v2624, %v2668
        %2672 = vst [vmem:[#allocation4] sm:$0xff] %v2670
        %2673 = vst [vmem:[#allocation4 + $0x8] sm:$0xff] %v2671
        %v2674 = vld [vmem:[#allocation2 + $0x1] sm:$0xff]
        %v2675 = vld [vmem:[#allocation2 + $0x9] sm:$0xff]
        %v2676 = vld [vmem:[#allocation2 + $0x19] sm:$0xff]
        %v2677 = vld [vmem:[#allocation2 + $0x21] sm:$0xff]
        %v2678 = vld [vmem:[#allocation2 + $0x31] sm:$0xff]
        %v2679 = vld [vmem:[#allocation2 + $0x39] sm:$0xff]
        %v2680 = vld [vmem:[#allocation2 + $0x49] sm:$0xff]
        %v2681 = vld [vmem:[#allocation2 + $0x51] sm:$0xff]
        %v2682 = vld [vmem:[#allocation2 + $0x61] sm:$0xff]
        %v2683 = vld [vmem:[#allocation2 + $0x69] sm:$0xff]
        %v2684 = vld [vmem:[#allocation2 + $0x79] sm:$0xff]
        %v2685 = vld [vmem:[#allocation2 + $0x81] sm:$0xff]
        %v2686 = vld [vmem:[#allocation2 + $0x91] sm:$0xff]
        %v2687 = vld [vmem:[#allocation2 + $0x99] sm:$0xff]
        %v2688 = vld [vmem:[#allocation2 + $0xa9] sm:$0xff]
        %v2689 = vld [vmem:[#allocation2 + $0xb1] sm:$0xff]
        %2706 = vrot.lane.b32.xlu0 %v2674, 126
        %v2707 = vpop.permute.xlu0 %2706
        %2708 = vrot.lane.b32.xlu0 %v2675, 126
        %v2709 = vpop.permute.xlu0 %2708
        %2710 = vrot.lane.b32.xlu0 %v2676, 126
        %v2711 = vpop.permute.xlu0 %2710
        %2712 = vrot.lane.b32.xlu0 %v2677, 126
        %v2713 = vpop.permute.xlu0 %2712
        %2714 = vrot.lane.b32.xlu0 %v2678, 126
        %v2715 = vpop.permute.xlu0 %2714
        %2716 = vrot.lane.b32.xlu0 %v2679, 126
        %v2717 = vpop.permute.xlu0 %2716
        %2718 = vrot.lane.b32.xlu0 %v2680, 126
        %v2719 = vpop.permute.xlu0 %2718
        %2720 = vrot.lane.b32.xlu0 %v2681, 126
        %v2721 = vpop.permute.xlu0 %2720
        %2722 = vrot.lane.b32.xlu0 %v2682, 126
        %v2723 = vpop.permute.xlu0 %2722
        %2724 = vrot.lane.b32.xlu0 %v2683, 126
        %v2725 = vpop.permute.xlu0 %2724
        %2726 = vrot.lane.b32.xlu0 %v2684, 126
        %v2727 = vpop.permute.xlu0 %2726
        %2728 = vrot.lane.b32.xlu0 %v2685, 126
        %v2729 = vpop.permute.xlu0 %2728
        %2730 = vrot.lane.b32.xlu0 %v2686, 126
        %v2731 = vpop.permute.xlu0 %2730
        %2732 = vrot.lane.b32.xlu0 %v2687, 126
        %v2733 = vpop.permute.xlu0 %2732
        %2734 = vrot.lane.b32.xlu0 %v2688, 126
        %v2735 = vpop.permute.xlu0 %2734
        %2736 = vrot.lane.b32.xlu0 %v2689, 126
        %v2737 = vpop.permute.xlu0 %2736
        %v2754 = vrot.slane %v2715, 4
        %v2755 = vsel %vm467, %v2754, %v2707
        %v2756 = vrot.slane %v2707, 4
        %v2757 = vsel %vm467, %v2715, %v2756
        %v2759 = vunpack.c.l.s4 1983009808
        %v2760 = vunpack.c.0.s8 %v2759
        %v2761 = vperm.slane %v2755, %v2760
        %v2763 = vunpack.c.l.s4 1983009808
        %v2764 = vunpack.c.0.s8 %v2763
        %v2765 = vperm.slane %v2757, %v2764
        %v2766 = vrot.slane %v2719, 4
        %v2767 = vsel %vm467, %v2766, %v2711
        %v2768 = vrot.slane %v2711, 4
        %v2769 = vsel %vm467, %v2719, %v2768
        %v2771 = vunpack.c.l.s4 1983009808
        %v2772 = vunpack.c.0.s8 %v2771
        %v2773 = vperm.slane %v2767, %v2772
        %v2775 = vunpack.c.l.s4 1983009808
        %v2776 = vunpack.c.0.s8 %v2775
        %v2777 = vperm.slane %v2769, %v2776
        %v2778 = vrot.slane %v2731, 4
        %v2779 = vsel %vm467, %v2778, %v2723
        %v2780 = vrot.slane %v2723, 4
        %v2781 = vsel %vm467, %v2731, %v2780
        %v2783 = vunpack.c.l.s4 1983009808
        %v2784 = vunpack.c.0.s8 %v2783
        %v2785 = vperm.slane %v2779, %v2784
        %v2787 = vunpack.c.l.s4 1983009808
        %v2788 = vunpack.c.0.s8 %v2787
        %v2789 = vperm.slane %v2781, %v2788
        %v2790 = vrot.slane %v2735, 4
        %v2791 = vsel %vm467, %v2790, %v2727
        %v2792 = vrot.slane %v2727, 4
        %v2793 = vsel %vm467, %v2735, %v2792
        %v2795 = vunpack.c.l.s4 1983009808
        %v2796 = vunpack.c.0.s8 %v2795
        %v2797 = vperm.slane %v2791, %v2796
        %v2799 = vunpack.c.l.s4 1983009808
        %v2800 = vunpack.c.0.s8 %v2799
        %v2801 = vperm.slane %v2793, %v2800
        %v2802 = vrot.slane %v2773, 4
        %v2803 = vsel %vm467, %v2802, %v2761
        %v2804 = vrot.slane %v2761, 4
        %v2805 = vsel %vm467, %v2773, %v2804
        %v2807 = vunpack.c.l.s4 1934713408
        %v2808 = vunpack.c.0.s8 %v2807
        %v2809 = vperm.slane %v2803, %v2808
        %v2811 = vunpack.c.l.s4 1934713408
        %v2812 = vunpack.c.0.s8 %v2811
        %v2813 = vperm.slane %v2805, %v2812
        %v2814 = vrot.slane %v2777, 4
        %v2815 = vsel %vm467, %v2814, %v2765
        %v2816 = vrot.slane %v2765, 4
        %v2817 = vsel %vm467, %v2777, %v2816
        %v2819 = vunpack.c.l.s4 1934713408
        %v2820 = vunpack.c.0.s8 %v2819
        %v2821 = vperm.slane %v2815, %v2820
        %v2823 = vunpack.c.l.s4 1934713408
        %v2824 = vunpack.c.0.s8 %v2823
        %v2825 = vperm.slane %v2817, %v2824
        %v2826 = vrot.slane %v2797, 4
        %v2827 = vsel %vm467, %v2826, %v2785
        %v2828 = vrot.slane %v2785, 4
        %v2829 = vsel %vm467, %v2797, %v2828
        %v2831 = vunpack.c.l.s4 1934713408
        %v2832 = vunpack.c.0.s8 %v2831
        %v2833 = vperm.slane %v2827, %v2832
        %v2835 = vunpack.c.l.s4 1934713408
        %v2836 = vunpack.c.0.s8 %v2835
        %v2837 = vperm.slane %v2829, %v2836
        %v2838 = vrot.slane %v2801, 4
        %v2839 = vsel %vm467, %v2838, %v2789
        %v2840 = vrot.slane %v2789, 4
        %v2841 = vsel %vm467, %v2801, %v2840
        %v2843 = vunpack.c.l.s4 1934713408
        %v2844 = vunpack.c.0.s8 %v2843
        %v2845 = vperm.slane %v2839, %v2844
        %v2847 = vunpack.c.l.s4 1934713408
        %v2848 = vunpack.c.0.s8 %v2847
        %v2849 = vperm.slane %v2841, %v2848
        %v2850 = vrot.slane %v2833, 4
        %v2851 = vsel %vm467, %v2850, %v2809
        %v2852 = vrot.slane %v2809, 4
        %v2853 = vsel %vm467, %v2833, %v2852
        %v2854 = vrot.slane %v2837, 4
        %v2855 = vsel %vm467, %v2854, %v2813
        %v2856 = vrot.slane %v2813, 4
        %v2857 = vsel %vm467, %v2837, %v2856
        %v2858 = vrot.slane %v2845, 4
        %v2859 = vsel %vm467, %v2858, %v2821
        %v2860 = vrot.slane %v2821, 4
        %v2861 = vsel %vm467, %v2845, %v2860
        %v2862 = vrot.slane %v2849, 4
        %v2863 = vsel %vm467, %v2862, %v2825
        %v2864 = vrot.slane %v2825, 4
        %v2865 = vsel %vm467, %v2849, %v2864
        %v2866 = vrot.slane %v2717, 4
        %v2867 = vsel %vm467, %v2866, %v2709
        %v2868 = vrot.slane %v2709, 4
        %v2869 = vsel %vm467, %v2717, %v2868
        %v2871 = vunpack.c.l.s4 1983009808
        %v2872 = vunpack.c.0.s8 %v2871
        %v2873 = vperm.slane %v2867, %v2872
        %v2875 = vunpack.c.l.s4 1983009808
        %v2876 = vunpack.c.0.s8 %v2875
        %v2877 = vperm.slane %v2869, %v2876
        %v2878 = vrot.slane %v2721, 4
        %v2879 = vsel %vm467, %v2878, %v2713
        %v2880 = vrot.slane %v2713, 4
        %v2881 = vsel %vm467, %v2721, %v2880
        %v2883 = vunpack.c.l.s4 1983009808
        %v2884 = vunpack.c.0.s8 %v2883
        %v2885 = vperm.slane %v2879, %v2884
        %v2887 = vunpack.c.l.s4 1983009808
        %v2888 = vunpack.c.0.s8 %v2887
        %v2889 = vperm.slane %v2881, %v2888
        %v2890 = vrot.slane %v2733, 4
        %v2891 = vsel %vm467, %v2890, %v2725
        %v2892 = vrot.slane %v2725, 4
        %v2893 = vsel %vm467, %v2733, %v2892
        %v2895 = vunpack.c.l.s4 1983009808
        %v2896 = vunpack.c.0.s8 %v2895
        %v2897 = vperm.slane %v2891, %v2896
        %v2899 = vunpack.c.l.s4 1983009808
        %v2900 = vunpack.c.0.s8 %v2899
        %v2901 = vperm.slane %v2893, %v2900
        %v2902 = vrot.slane %v2737, 4
        %v2903 = vsel %vm467, %v2902, %v2729
        %v2904 = vrot.slane %v2729, 4
        %v2905 = vsel %vm467, %v2737, %v2904
        %v2907 = vunpack.c.l.s4 1983009808
        %v2908 = vunpack.c.0.s8 %v2907
        %v2909 = vperm.slane %v2903, %v2908
        %v2911 = vunpack.c.l.s4 1983009808
        %v2912 = vunpack.c.0.s8 %v2911
        %v2913 = vperm.slane %v2905, %v2912
        %v2914 = vrot.slane %v2885, 4
        %v2915 = vsel %vm467, %v2914, %v2873
        %v2916 = vrot.slane %v2873, 4
        %v2917 = vsel %vm467, %v2885, %v2916
        %v2919 = vunpack.c.l.s4 1934713408
        %v2920 = vunpack.c.0.s8 %v2919
        %v2921 = vperm.slane %v2915, %v2920
        %v2923 = vunpack.c.l.s4 1934713408
        %v2924 = vunpack.c.0.s8 %v2923
        %v2925 = vperm.slane %v2917, %v2924
        %v2926 = vrot.slane %v2889, 4
        %v2927 = vsel %vm467, %v2926, %v2877
        %v2928 = vrot.slane %v2877, 4
        %v2929 = vsel %vm467, %v2889, %v2928
        %v2931 = vunpack.c.l.s4 1934713408
        %v2932 = vunpack.c.0.s8 %v2931
        %v2933 = vperm.slane %v2927, %v2932
        %v2935 = vunpack.c.l.s4 1934713408
        %v2936 = vunpack.c.0.s8 %v2935
        %v2937 = vperm.slane %v2929, %v2936
        %v2938 = vrot.slane %v2909, 4
        %v2939 = vsel %vm467, %v2938, %v2897
        %v2940 = vrot.slane %v2897, 4
        %v2941 = vsel %vm467, %v2909, %v2940
        %v2943 = vunpack.c.l.s4 1934713408
        %v2944 = vunpack.c.0.s8 %v2943
        %v2945 = vperm.slane %v2939, %v2944
        %v2947 = vunpack.c.l.s4 1934713408
        %v2948 = vunpack.c.0.s8 %v2947
        %v2949 = vperm.slane %v2941, %v2948
        %v2950 = vrot.slane %v2913, 4
        %v2951 = vsel %vm467, %v2950, %v2901
        %v2952 = vrot.slane %v2901, 4
        %v2953 = vsel %vm467, %v2913, %v2952
        %v2955 = vunpack.c.l.s4 1934713408
        %v2956 = vunpack.c.0.s8 %v2955
        %v2957 = vperm.slane %v2951, %v2956
        %v2959 = vunpack.c.l.s4 1934713408
        %v2960 = vunpack.c.0.s8 %v2959
        %v2961 = vperm.slane %v2953, %v2960
        %v2962 = vrot.slane %v2945, 4
        %v2963 = vsel %vm467, %v2962, %v2921
        %v2964 = vrot.slane %v2921, 4
        %v2965 = vsel %vm467, %v2945, %v2964
        %v2966 = vrot.slane %v2949, 4
        %v2967 = vsel %vm467, %v2966, %v2925
        %v2968 = vrot.slane %v2925, 4
        %v2969 = vsel %vm467, %v2949, %v2968
        %v2970 = vrot.slane %v2957, 4
        %v2971 = vsel %vm467, %v2970, %v2933
        %v2972 = vrot.slane %v2933, 4
        %v2973 = vsel %vm467, %v2957, %v2972
        %v2974 = vrot.slane %v2961, 4
        %v2975 = vsel %vm467, %v2974, %v2937
        %v2976 = vrot.slane %v2937, 4
        %v2977 = vsel %vm467, %v2961, %v2976
        %2979 = vrot.lane.b32.xlu0 %v2853, 16
        %v2980 = vpop.permute.xlu0 %2979
        %2983 = vrot.lane.b32.xlu0 %v2855, 32
        %v2984 = vpop.permute.xlu0 %2983
        %2987 = vrot.lane.b32.xlu0 %v2857, 48
        %v2988 = vpop.permute.xlu0 %2987
        %2991 = vrot.lane.b32.xlu0 %v2859, 64
        %v2992 = vpop.permute.xlu0 %2991
        %2995 = vrot.lane.b32.xlu0 %v2861, 80
        %v2996 = vpop.permute.xlu0 %2995
        %2999 = vrot.lane.b32.xlu0 %v2863, 96
        %v3000 = vpop.permute.xlu0 %2999
        %3003 = vrot.lane.b32.xlu0 %v2865, 112
        %v3004 = vpop.permute.xlu0 %3003
        %3007 = vrot.lane.b32.xlu0 %v2965, 16
        %v3008 = vpop.permute.xlu0 %3007
        %3011 = vrot.lane.b32.xlu0 %v2967, 32
        %v3012 = vpop.permute.xlu0 %3011
        %3015 = vrot.lane.b32.xlu0 %v2969, 48
        %v3016 = vpop.permute.xlu0 %3015
        %3019 = vrot.lane.b32.xlu0 %v2971, 64
        %v3020 = vpop.permute.xlu0 %3019
        %3023 = vrot.lane.b32.xlu0 %v2973, 80
        %v3024 = vpop.permute.xlu0 %3023
        %3027 = vrot.lane.b32.xlu0 %v2975, 96
        %v3028 = vpop.permute.xlu0 %3027
        %3031 = vrot.lane.b32.xlu0 %v2977, 112
        %v3032 = vpop.permute.xlu0 %3031
        %v3034 = vsel %vm967, %v2851, %v2980
        %v3035 = vsel %vm969, %v3034, %v2984
        %v3036 = vsel %vm971, %v3035, %v2988
        %v3037 = vsel %vm378, %v3036, %v2992
        %v3038 = vsel %vm974, %v3037, %v2996
        %v3039 = vsel %vm976, %v3038, %v3000
        %v3040 = vsel %vm978, %v3039, %v3004
        %v3041 = vsel %vm967, %v2963, %v3008
        %v3042 = vsel %vm969, %v3041, %v3012
        %v3043 = vsel %vm971, %v3042, %v3016
        %v3044 = vsel %vm378, %v3043, %v3020
        %v3045 = vsel %vm974, %v3044, %v3024
        %v3046 = vsel %vm976, %v3045, %v3028
        %v3047 = vsel %vm978, %v3046, %v3032
        %v3048 = vld [vmem:[#allocation4] sm:$0xff]
        %v3049 = vld [vmem:[#allocation4 + $0x8] sm:$0xff]
        %s3050 = scalar_lea.vmem %s3, 40
        %v3051 = vld [vmem:[%s3050] sm:$0xff]
        %v3053 = vsel %vm990, %v3051, 0
        %3055 = vmatpush.msra.mxu0 0.0
        %3056 = vmatpush.msra.mxu0 0.0
        %3057 = vmatpush.msra.mxu0 0.0
        %3058 = vmatpush.msra.mxu0 0.0
        %3059 = vmatpush.msra.mxu0 0.0
        %3060 = vmatpush.msra.mxu0 0.0
        %3061 = vmatpush.msra.mxu0 0.0
        %3062 = vmatpush.msra.mxu0 0.0
        %3063 = vmatpush.msra.mxu0 0.0
        %3064 = vmatpush.msra.mxu0 0.0
        %3065 = vmatpush.msra.mxu0 0.0
        %3066 = vmatpush.msra.mxu0 0.0
        %3067 = vmatpush.msra.mxu0 0.0
        %3068 = vmatpush.msra.mxu0 0.0
        %3069 = vmatpush.msra.mxu0 0.0
        %3070 = vmatpush.msra.mxu0 %v3040
        %3071 = vmatmul.f32.gmra.mxu0 %v3053
        %v3072 = vpop.f32.mrf.mxu0
        %v3073 = vadd.f32 0.0, %v3072
        %3074 = vdwg.mxu0
        %3075 = vmatpush.msra.mxu0 0.0
        %3076 = vmatpush.msra.mxu0 0.0
        %3077 = vmatpush.msra.mxu0 0.0
        %3078 = vmatpush.msra.mxu0 0.0
        %3079 = vmatpush.msra.mxu0 0.0
        %3080 = vmatpush.msra.mxu0 0.0
        %3081 = vmatpush.msra.mxu0 0.0
        %3082 = vmatpush.msra.mxu0 0.0
        %3083 = vmatpush.msra.mxu0 0.0
        %3084 = vmatpush.msra.mxu0 0.0
        %3085 = vmatpush.msra.mxu0 0.0
        %3086 = vmatpush.msra.mxu0 0.0
        %3087 = vmatpush.msra.mxu0 0.0
        %3088 = vmatpush.msra.mxu0 0.0
        %3089 = vmatpush.msra.mxu0 0.0
        %3090 = vmatpush.msra.mxu0 %v3047
        %3091 = vmatmul.f32.gmra.mxu0 %v3053
        %v3092 = vpop.f32.mrf.mxu0
        %v3093 = vadd.f32 0.0, %v3092
        %3094 = vdwg.mxu0
        %v3095 = vadd.f32 %v3048, %v3073
        %v3096 = vadd.f32 %v3049, %v3093
        %3097 = vst [vmem:[#allocation4] sm:$0xff] %v3095
        %3098 = vst [vmem:[#allocation4 + $0x8] sm:$0xff] %v3096
        %v3099 = vld [vmem:[#allocation2 + $0x2] sm:$0xff]
        %v3100 = vld [vmem:[#allocation2 + $0xa] sm:$0xff]
        %v3101 = vld [vmem:[#allocation2 + $0x1a] sm:$0xff]
        %v3102 = vld [vmem:[#allocation2 + $0x22] sm:$0xff]
        %v3103 = vld [vmem:[#allocation2 + $0x32] sm:$0xff]
        %v3104 = vld [vmem:[#allocation2 + $0x3a] sm:$0xff]
        %v3105 = vld [vmem:[#allocation2 + $0x4a] sm:$0xff]
        %v3106 = vld [vmem:[#allocation2 + $0x52] sm:$0xff]
        %v3107 = vld [vmem:[#allocation2 + $0x62] sm:$0xff]
        %v3108 = vld [vmem:[#allocation2 + $0x6a] sm:$0xff]
        %v3109 = vld [vmem:[#allocation2 + $0x7a] sm:$0xff]
        %v3110 = vld [vmem:[#allocation2 + $0x82] sm:$0xff]
        %v3111 = vld [vmem:[#allocation2 + $0x92] sm:$0xff]
        %v3112 = vld [vmem:[#allocation2 + $0x9a] sm:$0xff]
        %v3113 = vld [vmem:[#allocation2 + $0xaa] sm:$0xff]
        %v3114 = vld [vmem:[#allocation2 + $0xb2] sm:$0xff]
        %v3115 = vrot.slane %v3103, 4
        %v3116 = vsel %vm467, %v3115, %v3099
        %v3117 = vrot.slane %v3099, 4
        %v3118 = vsel %vm467, %v3103, %v3117
        %v3120 = vunpack.c.l.s4 1983009808
        %v3121 = vunpack.c.0.s8 %v3120
        %v3122 = vperm.slane %v3116, %v3121
        %v3124 = vunpack.c.l.s4 1983009808
        %v3125 = vunpack.c.0.s8 %v3124
        %v3126 = vperm.slane %v3118, %v3125
        %v3127 = vrot.slane %v3105, 4
        %v3128 = vsel %vm467, %v3127, %v3101
        %v3129 = vrot.slane %v3101, 4
        %v3130 = vsel %vm467, %v3105, %v3129
        %v3132 = vunpack.c.l.s4 1983009808
        %v3133 = vunpack.c.0.s8 %v3132
        %v3134 = vperm.slane %v3128, %v3133
        %v3136 = vunpack.c.l.s4 1983009808
        %v3137 = vunpack.c.0.s8 %v3136
        %v3138 = vperm.slane %v3130, %v3137
        %v3139 = vrot.slane %v3111, 4
        %v3140 = vsel %vm467, %v3139, %v3107
        %v3141 = vrot.slane %v3107, 4
        %v3142 = vsel %vm467, %v3111, %v3141
        %v3144 = vunpack.c.l.s4 1983009808
        %v3145 = vunpack.c.0.s8 %v3144
        %v3146 = vperm.slane %v3140, %v3145
        %v3148 = vunpack.c.l.s4 1983009808
        %v3149 = vunpack.c.0.s8 %v3148
        %v3150 = vperm.slane %v3142, %v3149
        %v3151 = vrot.slane %v3113, 4
        %v3152 = vsel %vm467, %v3151, %v3109
        %v3153 = vrot.slane %v3109, 4
        %v3154 = vsel %vm467, %v3113, %v3153
        %v3156 = vunpack.c.l.s4 1983009808
        %v3157 = vunpack.c.0.s8 %v3156
        %v3158 = vperm.slane %v3152, %v3157
        %v3160 = vunpack.c.l.s4 1983009808
        %v3161 = vunpack.c.0.s8 %v3160
        %v3162 = vperm.slane %v3154, %v3161
        %v3163 = vrot.slane %v3134, 4
        %v3164 = vsel %vm467, %v3163, %v3122
        %v3165 = vrot.slane %v3122, 4
        %v3166 = vsel %vm467, %v3134, %v3165
        %v3168 = vunpack.c.l.s4 1934713408
        %v3169 = vunpack.c.0.s8 %v3168
        %v3170 = vperm.slane %v3164, %v3169
        %v3172 = vunpack.c.l.s4 1934713408
        %v3173 = vunpack.c.0.s8 %v3172
        %v3174 = vperm.slane %v3166, %v3173
        %v3175 = vrot.slane %v3138, 4
        %v3176 = vsel %vm467, %v3175, %v3126
        %v3177 = vrot.slane %v3126, 4
        %v3178 = vsel %vm467, %v3138, %v3177
        %v3180 = vunpack.c.l.s4 1934713408
        %v3181 = vunpack.c.0.s8 %v3180
        %v3182 = vperm.slane %v3176, %v3181
        %v3184 = vunpack.c.l.s4 1934713408
        %v3185 = vunpack.c.0.s8 %v3184
        %v3186 = vperm.slane %v3178, %v3185
        %v3187 = vrot.slane %v3158, 4
        %v3188 = vsel %vm467, %v3187, %v3146
        %v3189 = vrot.slane %v3146, 4
        %v3190 = vsel %vm467, %v3158, %v3189
        %v3192 = vunpack.c.l.s4 1934713408
        %v3193 = vunpack.c.0.s8 %v3192
        %v3194 = vperm.slane %v3188, %v3193
        %v3196 = vunpack.c.l.s4 1934713408
        %v3197 = vunpack.c.0.s8 %v3196
        %v3198 = vperm.slane %v3190, %v3197
        %v3199 = vrot.slane %v3162, 4
        %v3200 = vsel %vm467, %v3199, %v3150
        %v3201 = vrot.slane %v3150, 4
        %v3202 = vsel %vm467, %v3162, %v3201
        %v3204 = vunpack.c.l.s4 1934713408
        %v3205 = vunpack.c.0.s8 %v3204
        %v3206 = vperm.slane %v3200, %v3205
        %v3208 = vunpack.c.l.s4 1934713408
        %v3209 = vunpack.c.0.s8 %v3208
        %v3210 = vperm.slane %v3202, %v3209
        %v3211 = vrot.slane %v3194, 4
        %v3212 = vsel %vm467, %v3211, %v3170
        %v3213 = vrot.slane %v3170, 4
        %v3214 = vsel %vm467, %v3194, %v3213
        %v3215 = vrot.slane %v3198, 4
        %v3216 = vsel %vm467, %v3215, %v3174
        %v3217 = vrot.slane %v3174, 4
        %v3218 = vsel %vm467, %v3198, %v3217
        %v3219 = vrot.slane %v3206, 4
        %v3220 = vsel %vm467, %v3219, %v3182
        %v3221 = vrot.slane %v3182, 4
        %v3222 = vsel %vm467, %v3206, %v3221
        %v3223 = vrot.slane %v3210, 4
        %v3224 = vsel %vm467, %v3223, %v3186
        %v3225 = vrot.slane %v3186, 4
        %v3226 = vsel %vm467, %v3210, %v3225
        %v3227 = vrot.slane %v3104, 4
        %v3228 = vsel %vm467, %v3227, %v3100
        %v3229 = vrot.slane %v3100, 4
        %v3230 = vsel %vm467, %v3104, %v3229
        %v3232 = vunpack.c.l.s4 1983009808
        %v3233 = vunpack.c.0.s8 %v3232
        %v3234 = vperm.slane %v3228, %v3233
        %v3236 = vunpack.c.l.s4 1983009808
        %v3237 = vunpack.c.0.s8 %v3236
        %v3238 = vperm.slane %v3230, %v3237
        %v3239 = vrot.slane %v3106, 4
        %v3240 = vsel %vm467, %v3239, %v3102
        %v3241 = vrot.slane %v3102, 4
        %v3242 = vsel %vm467, %v3106, %v3241
        %v3244 = vunpack.c.l.s4 1983009808
        %v3245 = vunpack.c.0.s8 %v3244
        %v3246 = vperm.slane %v3240, %v3245
        %v3248 = vunpack.c.l.s4 1983009808
        %v3249 = vunpack.c.0.s8 %v3248
        %v3250 = vperm.slane %v3242, %v3249
        %v3251 = vrot.slane %v3112, 4
        %v3252 = vsel %vm467, %v3251, %v3108
        %v3253 = vrot.slane %v3108, 4
        %v3254 = vsel %vm467, %v3112, %v3253
        %v3256 = vunpack.c.l.s4 1983009808
        %v3257 = vunpack.c.0.s8 %v3256
        %v3258 = vperm.slane %v3252, %v3257
        %v3260 = vunpack.c.l.s4 1983009808
        %v3261 = vunpack.c.0.s8 %v3260
        %v3262 = vperm.slane %v3254, %v3261
        %v3263 = vrot.slane %v3114, 4
        %v3264 = vsel %vm467, %v3263, %v3110
        %v3265 = vrot.slane %v3110, 4
        %v3266 = vsel %vm467, %v3114, %v3265
        %v3268 = vunpack.c.l.s4 1983009808
        %v3269 = vunpack.c.0.s8 %v3268
        %v3270 = vperm.slane %v3264, %v3269
        %v3272 = vunpack.c.l.s4 1983009808
        %v3273 = vunpack.c.0.s8 %v3272
        %v3274 = vperm.slane %v3266, %v3273
        %v3275 = vrot.slane %v3246, 4
        %v3276 = vsel %vm467, %v3275, %v3234
        %v3277 = vrot.slane %v3234, 4
        %v3278 = vsel %vm467, %v3246, %v3277
        %v3280 = vunpack.c.l.s4 1934713408
        %v3281 = vunpack.c.0.s8 %v3280
        %v3282 = vperm.slane %v3276, %v3281
        %v3284 = vunpack.c.l.s4 1934713408
        %v3285 = vunpack.c.0.s8 %v3284
        %v3286 = vperm.slane %v3278, %v3285
        %v3287 = vrot.slane %v3250, 4
        %v3288 = vsel %vm467, %v3287, %v3238
        %v3289 = vrot.slane %v3238, 4
        %v3290 = vsel %vm467, %v3250, %v3289
        %v3292 = vunpack.c.l.s4 1934713408
        %v3293 = vunpack.c.0.s8 %v3292
        %v3294 = vperm.slane %v3288, %v3293
        %v3296 = vunpack.c.l.s4 1934713408
        %v3297 = vunpack.c.0.s8 %v3296
        %v3298 = vperm.slane %v3290, %v3297
        %v3299 = vrot.slane %v3270, 4
        %v3300 = vsel %vm467, %v3299, %v3258
        %v3301 = vrot.slane %v3258, 4
        %v3302 = vsel %vm467, %v3270, %v3301
        %v3304 = vunpack.c.l.s4 1934713408
        %v3305 = vunpack.c.0.s8 %v3304
        %v3306 = vperm.slane %v3300, %v3305
        %v3308 = vunpack.c.l.s4 1934713408
        %v3309 = vunpack.c.0.s8 %v3308
        %v3310 = vperm.slane %v3302, %v3309
        %v3311 = vrot.slane %v3274, 4
        %v3312 = vsel %vm467, %v3311, %v3262
        %v3313 = vrot.slane %v3262, 4
        %v3314 = vsel %vm467, %v3274, %v3313
        %v3316 = vunpack.c.l.s4 1934713408
        %v3317 = vunpack.c.0.s8 %v3316
        %v3318 = vperm.slane %v3312, %v3317
        %v3320 = vunpack.c.l.s4 1934713408
        %v3321 = vunpack.c.0.s8 %v3320
        %v3322 = vperm.slane %v3314, %v3321
        %v3323 = vrot.slane %v3306, 4
        %v3324 = vsel %vm467, %v3323, %v3282
        %v3325 = vrot.slane %v3282, 4
        %v3326 = vsel %vm467, %v3306, %v3325
        %v3327 = vrot.slane %v3310, 4
        %v3328 = vsel %vm467, %v3327, %v3286
        %v3329 = vrot.slane %v3286, 4
        %v3330 = vsel %vm467, %v3310, %v3329
        %v3331 = vrot.slane %v3318, 4
        %v3332 = vsel %vm467, %v3331, %v3294
        %v3333 = vrot.slane %v3294, 4
        %v3334 = vsel %vm467, %v3318, %v3333
        %v3335 = vrot.slane %v3322, 4
        %v3336 = vsel %vm467, %v3335, %v3298
        %v3337 = vrot.slane %v3298, 4
        %v3338 = vsel %vm467, %v3322, %v3337
        %3340 = vrot.lane.b32.xlu0 %v3214, 16
        %v3341 = vpop.permute.xlu0 %3340
        %3344 = vrot.lane.b32.xlu0 %v3216, 32
        %v3345 = vpop.permute.xlu0 %3344
        %3348 = vrot.lane.b32.xlu0 %v3218, 48
        %v3349 = vpop.permute.xlu0 %3348
        %3352 = vrot.lane.b32.xlu0 %v3220, 64
        %v3353 = vpop.permute.xlu0 %3352
        %3356 = vrot.lane.b32.xlu0 %v3222, 80
        %v3357 = vpop.permute.xlu0 %3356
        %3360 = vrot.lane.b32.xlu0 %v3224, 96
        %v3361 = vpop.permute.xlu0 %3360
        %3364 = vrot.lane.b32.xlu0 %v3226, 112
        %v3365 = vpop.permute.xlu0 %3364
        %3368 = vrot.lane.b32.xlu0 %v3326, 16
        %v3369 = vpop.permute.xlu0 %3368
        %3372 = vrot.lane.b32.xlu0 %v3328, 32
        %v3373 = vpop.permute.xlu0 %3372
        %3376 = vrot.lane.b32.xlu0 %v3330, 48
        %v3377 = vpop.permute.xlu0 %3376
        %3380 = vrot.lane.b32.xlu0 %v3332, 64
        %v3381 = vpop.permute.xlu0 %3380
        %3384 = vrot.lane.b32.xlu0 %v3334, 80
        %v3385 = vpop.permute.xlu0 %3384
        %3388 = vrot.lane.b32.xlu0 %v3336, 96
        %v3389 = vpop.permute.xlu0 %3388
        %3392 = vrot.lane.b32.xlu0 %v3338, 112
        %v3393 = vpop.permute.xlu0 %3392
        %v3395 = vsel %vm967, %v3212, %v3341
        %v3396 = vsel %vm969, %v3395, %v3345
        %v3397 = vsel %vm971, %v3396, %v3349
        %v3398 = vsel %vm378, %v3397, %v3353
        %v3399 = vsel %vm974, %v3398, %v3357
        %v3400 = vsel %vm976, %v3399, %v3361
        %v3401 = vsel %vm978, %v3400, %v3365
        %v3402 = vsel %vm967, %v3324, %v3369
        %v3403 = vsel %vm969, %v3402, %v3373
        %v3404 = vsel %vm971, %v3403, %v3377
        %v3405 = vsel %vm378, %v3404, %v3381
        %v3406 = vsel %vm974, %v3405, %v3385
        %v3407 = vsel %vm976, %v3406, %v3389
        %v3408 = vsel %vm978, %v3407, %v3393
        %v3409 = vld [vmem:[#allocation4] sm:$0xff]
        %v3410 = vld [vmem:[#allocation4 + $0x8] sm:$0xff]
        %s3411 = scalar_lea.vmem %s3, 48
        %v3412 = vld [vmem:[%s3411] sm:$0xff]
        %v3414 = vsel %vm990, %v3412, 0
        %3416 = vmatpush.msra.mxu0 0.0
        %3417 = vmatpush.msra.mxu0 0.0
        %3418 = vmatpush.msra.mxu0 0.0
        %3419 = vmatpush.msra.mxu0 0.0
        %3420 = vmatpush.msra.mxu0 0.0
        %3421 = vmatpush.msra.mxu0 0.0
        %3422 = vmatpush.msra.mxu0 0.0
        %3423 = vmatpush.msra.mxu0 0.0
        %3424 = vmatpush.msra.mxu0 0.0
        %3425 = vmatpush.msra.mxu0 0.0
        %3426 = vmatpush.msra.mxu0 0.0
        %3427 = vmatpush.msra.mxu0 0.0
        %3428 = vmatpush.msra.mxu0 0.0
        %3429 = vmatpush.msra.mxu0 0.0
        %3430 = vmatpush.msra.mxu0 0.0
        %3431 = vmatpush.msra.mxu0 %v3401
        %3432 = vmatmul.f32.gmra.mxu0 %v3414
        %v3433 = vpop.f32.mrf.mxu0
        %v3434 = vadd.f32 0.0, %v3433
        %3435 = vdwg.mxu0
        %3436 = vmatpush.msra.mxu0 0.0
        %3437 = vmatpush.msra.mxu0 0.0
        %3438 = vmatpush.msra.mxu0 0.0
        %3439 = vmatpush.msra.mxu0 0.0
        %3440 = vmatpush.msra.mxu0 0.0
        %3441 = vmatpush.msra.mxu0 0.0
        %3442 = vmatpush.msra.mxu0 0.0
        %3443 = vmatpush.msra.mxu0 0.0
        %3444 = vmatpush.msra.mxu0 0.0
        %3445 = vmatpush.msra.mxu0 0.0
        %3446 = vmatpush.msra.mxu0 0.0
        %3447 = vmatpush.msra.mxu0 0.0
        %3448 = vmatpush.msra.mxu0 0.0
        %3449 = vmatpush.msra.mxu0 0.0
        %3450 = vmatpush.msra.mxu0 0.0
        %3451 = vmatpush.msra.mxu0 %v3408
        %3452 = vmatmul.f32.gmra.mxu0 %v3414
        %v3453 = vpop.f32.mrf.mxu0
        %v3454 = vadd.f32 0.0, %v3453
        %3455 = vdwg.mxu0
        %v3456 = vadd.f32 %v3409, %v3434
        %v3457 = vadd.f32 %v3410, %v3454
        %3458 = vst [vmem:[#allocation4] sm:$0xff] %v3456
        %3459 = vst [vmem:[#allocation4 + $0x8] sm:$0xff] %v3457
        %v3460 = vld [vmem:[#allocation2 + $0x2] sm:$0xff]
        %v3461 = vld [vmem:[#allocation2 + $0xa] sm:$0xff]
        %v3462 = vld [vmem:[#allocation2 + $0x1a] sm:$0xff]
        %v3463 = vld [vmem:[#allocation2 + $0x22] sm:$0xff]
        %v3464 = vld [vmem:[#allocation2 + $0x32] sm:$0xff]
        %v3465 = vld [vmem:[#allocation2 + $0x3a] sm:$0xff]
        %v3466 = vld [vmem:[#allocation2 + $0x4a] sm:$0xff]
        %v3467 = vld [vmem:[#allocation2 + $0x52] sm:$0xff]
        %v3468 = vld [vmem:[#allocation2 + $0x62] sm:$0xff]
        %v3469 = vld [vmem:[#allocation2 + $0x6a] sm:$0xff]
        %v3470 = vld [vmem:[#allocation2 + $0x7a] sm:$0xff]
        %v3471 = vld [vmem:[#allocation2 + $0x82] sm:$0xff]
        %v3472 = vld [vmem:[#allocation2 + $0x92] sm:$0xff]
        %v3473 = vld [vmem:[#allocation2 + $0x9a] sm:$0xff]
        %v3474 = vld [vmem:[#allocation2 + $0xaa] sm:$0xff]
        %v3475 = vld [vmem:[#allocation2 + $0xb2] sm:$0xff]
        %3492 = vrot.lane.b32.xlu0 %v3460, 127
        %v3493 = vpop.permute.xlu0 %3492
        %3494 = vrot.lane.b32.xlu0 %v3461, 127
        %v3495 = vpop.permute.xlu0 %3494
        %3496 = vrot.lane.b32.xlu0 %v3462, 127
        %v3497 = vpop.permute.xlu0 %3496
        %3498 = vrot.lane.b32.xlu0 %v3463, 127
        %v3499 = vpop.permute.xlu0 %3498
        %3500 = vrot.lane.b32.xlu0 %v3464, 127
        %v3501 = vpop.permute.xlu0 %3500
        %3502 = vrot.lane.b32.xlu0 %v3465, 127
        %v3503 = vpop.permute.xlu0 %3502
        %3504 = vrot.lane.b32.xlu0 %v3466, 127
        %v3505 = vpop.permute.xlu0 %3504
        %3506 = vrot.lane.b32.xlu0 %v3467, 127
        %v3507 = vpop.permute.xlu0 %3506
        %3508 = vrot.lane.b32.xlu0 %v3468, 127
        %v3509 = vpop.permute.xlu0 %3508
        %3510 = vrot.lane.b32.xlu0 %v3469, 127
        %v3511 = vpop.permute.xlu0 %3510
        %3512 = vrot.lane.b32.xlu0 %v3470, 127
        %v3513 = vpop.permute.xlu0 %3512
        %3514 = vrot.lane.b32.xlu0 %v3471, 127
        %v3515 = vpop.permute.xlu0 %3514
        %3516 = vrot.lane.b32.xlu0 %v3472, 127
        %v3517 = vpop.permute.xlu0 %3516
        %3518 = vrot.lane.b32.xlu0 %v3473, 127
        %v3519 = vpop.permute.xlu0 %3518
        %3520 = vrot.lane.b32.xlu0 %v3474, 127
        %v3521 = vpop.permute.xlu0 %3520
        %3522 = vrot.lane.b32.xlu0 %v3475, 127
        %v3523 = vpop.permute.xlu0 %3522
        %v3540 = vrot.slane %v3501, 4
        %v3541 = vsel %vm467, %v3540, %v3493
        %v3542 = vrot.slane %v3493, 4
        %v3543 = vsel %vm467, %v3501, %v3542
        %v3545 = vunpack.c.l.s4 1983009808
        %v3546 = vunpack.c.0.s8 %v3545
        %v3547 = vperm.slane %v3541, %v3546
        %v3549 = vunpack.c.l.s4 1983009808
        %v3550 = vunpack.c.0.s8 %v3549
        %v3551 = vperm.slane %v3543, %v3550
        %v3552 = vrot.slane %v3505, 4
        %v3553 = vsel %vm467, %v3552, %v3497
        %v3554 = vrot.slane %v3497, 4
        %v3555 = vsel %vm467, %v3505, %v3554
        %v3557 = vunpack.c.l.s4 1983009808
        %v3558 = vunpack.c.0.s8 %v3557
        %v3559 = vperm.slane %v3553, %v3558
        %v3561 = vunpack.c.l.s4 1983009808
        %v3562 = vunpack.c.0.s8 %v3561
        %v3563 = vperm.slane %v3555, %v3562
        %v3564 = vrot.slane %v3517, 4
        %v3565 = vsel %vm467, %v3564, %v3509
        %v3566 = vrot.slane %v3509, 4
        %v3567 = vsel %vm467, %v3517, %v3566
        %v3569 = vunpack.c.l.s4 1983009808
        %v3570 = vunpack.c.0.s8 %v3569
        %v3571 = vperm.slane %v3565, %v3570
        %v3573 = vunpack.c.l.s4 1983009808
        %v3574 = vunpack.c.0.s8 %v3573
        %v3575 = vperm.slane %v3567, %v3574
        %v3576 = vrot.slane %v3521, 4
        %v3577 = vsel %vm467, %v3576, %v3513
        %v3578 = vrot.slane %v3513, 4
        %v3579 = vsel %vm467, %v3521, %v3578
        %v3581 = vunpack.c.l.s4 1983009808
        %v3582 = vunpack.c.0.s8 %v3581
        %v3583 = vperm.slane %v3577, %v3582
        %v3585 = vunpack.c.l.s4 1983009808
        %v3586 = vunpack.c.0.s8 %v3585
        %v3587 = vperm.slane %v3579, %v3586
        %v3588 = vrot.slane %v3559, 4
        %v3589 = vsel %vm467, %v3588, %v3547
        %v3590 = vrot.slane %v3547, 4
        %v3591 = vsel %vm467, %v3559, %v3590
        %v3593 = vunpack.c.l.s4 1934713408
        %v3594 = vunpack.c.0.s8 %v3593
        %v3595 = vperm.slane %v3589, %v3594
        %v3597 = vunpack.c.l.s4 1934713408
        %v3598 = vunpack.c.0.s8 %v3597
        %v3599 = vperm.slane %v3591, %v3598
        %v3600 = vrot.slane %v3563, 4
        %v3601 = vsel %vm467, %v3600, %v3551
        %v3602 = vrot.slane %v3551, 4
        %v3603 = vsel %vm467, %v3563, %v3602
        %v3605 = vunpack.c.l.s4 1934713408
        %v3606 = vunpack.c.0.s8 %v3605
        %v3607 = vperm.slane %v3601, %v3606
        %v3609 = vunpack.c.l.s4 1934713408
        %v3610 = vunpack.c.0.s8 %v3609
        %v3611 = vperm.slane %v3603, %v3610
        %v3612 = vrot.slane %v3583, 4
        %v3613 = vsel %vm467, %v3612, %v3571
        %v3614 = vrot.slane %v3571, 4
        %v3615 = vsel %vm467, %v3583, %v3614
        %v3617 = vunpack.c.l.s4 1934713408
        %v3618 = vunpack.c.0.s8 %v3617
        %v3619 = vperm.slane %v3613, %v3618
        %v3621 = vunpack.c.l.s4 1934713408
        %v3622 = vunpack.c.0.s8 %v3621
        %v3623 = vperm.slane %v3615, %v3622
        %v3624 = vrot.slane %v3587, 4
        %v3625 = vsel %vm467, %v3624, %v3575
        %v3626 = vrot.slane %v3575, 4
        %v3627 = vsel %vm467, %v3587, %v3626
        %v3629 = vunpack.c.l.s4 1934713408
        %v3630 = vunpack.c.0.s8 %v3629
        %v3631 = vperm.slane %v3625, %v3630
        %v3633 = vunpack.c.l.s4 1934713408
        %v3634 = vunpack.c.0.s8 %v3633
        %v3635 = vperm.slane %v3627, %v3634
        %v3636 = vrot.slane %v3619, 4
        %v3637 = vsel %vm467, %v3636, %v3595
        %v3638 = vrot.slane %v3595, 4
        %v3639 = vsel %vm467, %v3619, %v3638
        %v3640 = vrot.slane %v3623, 4
        %v3641 = vsel %vm467, %v3640, %v3599
        %v3642 = vrot.slane %v3599, 4
        %v3643 = vsel %vm467, %v3623, %v3642
        %v3644 = vrot.slane %v3631, 4
        %v3645 = vsel %vm467, %v3644, %v3607
        %v3646 = vrot.slane %v3607, 4
        %v3647 = vsel %vm467, %v3631, %v3646
        %v3648 = vrot.slane %v3635, 4
        %v3649 = vsel %vm467, %v3648, %v3611
        %v3650 = vrot.slane %v3611, 4
        %v3651 = vsel %vm467, %v3635, %v3650
        %v3652 = vrot.slane %v3503, 4
        %v3653 = vsel %vm467, %v3652, %v3495
        %v3654 = vrot.slane %v3495, 4
        %v3655 = vsel %vm467, %v3503, %v3654
        %v3657 = vunpack.c.l.s4 1983009808
        %v3658 = vunpack.c.0.s8 %v3657
        %v3659 = vperm.slane %v3653, %v3658
        %v3661 = vunpack.c.l.s4 1983009808
        %v3662 = vunpack.c.0.s8 %v3661
        %v3663 = vperm.slane %v3655, %v3662
        %v3664 = vrot.slane %v3507, 4
        %v3665 = vsel %vm467, %v3664, %v3499
        %v3666 = vrot.slane %v3499, 4
        %v3667 = vsel %vm467, %v3507, %v3666
        %v3669 = vunpack.c.l.s4 1983009808
        %v3670 = vunpack.c.0.s8 %v3669
        %v3671 = vperm.slane %v3665, %v3670
        %v3673 = vunpack.c.l.s4 1983009808
        %v3674 = vunpack.c.0.s8 %v3673
        %v3675 = vperm.slane %v3667, %v3674
        %v3676 = vrot.slane %v3519, 4
        %v3677 = vsel %vm467, %v3676, %v3511
        %v3678 = vrot.slane %v3511, 4
        %v3679 = vsel %vm467, %v3519, %v3678
        %v3681 = vunpack.c.l.s4 1983009808
        %v3682 = vunpack.c.0.s8 %v3681
        %v3683 = vperm.slane %v3677, %v3682
        %v3685 = vunpack.c.l.s4 1983009808
        %v3686 = vunpack.c.0.s8 %v3685
        %v3687 = vperm.slane %v3679, %v3686
        %v3688 = vrot.slane %v3523, 4
        %v3689 = vsel %vm467, %v3688, %v3515
        %v3690 = vrot.slane %v3515, 4
        %v3691 = vsel %vm467, %v3523, %v3690
        %v3693 = vunpack.c.l.s4 1983009808
        %v3694 = vunpack.c.0.s8 %v3693
        %v3695 = vperm.slane %v3689, %v3694
        %v3697 = vunpack.c.l.s4 1983009808
        %v3698 = vunpack.c.0.s8 %v3697
        %v3699 = vperm.slane %v3691, %v3698
        %v3700 = vrot.slane %v3671, 4
        %v3701 = vsel %vm467, %v3700, %v3659
        %v3702 = vrot.slane %v3659, 4
        %v3703 = vsel %vm467, %v3671, %v3702
        %v3705 = vunpack.c.l.s4 1934713408
        %v3706 = vunpack.c.0.s8 %v3705
        %v3707 = vperm.slane %v3701, %v3706
        %v3709 = vunpack.c.l.s4 1934713408
        %v3710 = vunpack.c.0.s8 %v3709
        %v3711 = vperm.slane %v3703, %v3710
        %v3712 = vrot.slane %v3675, 4
        %v3713 = vsel %vm467, %v3712, %v3663
        %v3714 = vrot.slane %v3663, 4
        %v3715 = vsel %vm467, %v3675, %v3714
        %v3717 = vunpack.c.l.s4 1934713408
        %v3718 = vunpack.c.0.s8 %v3717
        %v3719 = vperm.slane %v3713, %v3718
        %v3721 = vunpack.c.l.s4 1934713408
        %v3722 = vunpack.c.0.s8 %v3721
        %v3723 = vperm.slane %v3715, %v3722
        %v3724 = vrot.slane %v3695, 4
        %v3725 = vsel %vm467, %v3724, %v3683
        %v3726 = vrot.slane %v3683, 4
        %v3727 = vsel %vm467, %v3695, %v3726
        %v3729 = vunpack.c.l.s4 1934713408
        %v3730 = vunpack.c.0.s8 %v3729
        %v3731 = vperm.slane %v3725, %v3730
        %v3733 = vunpack.c.l.s4 1934713408
        %v3734 = vunpack.c.0.s8 %v3733
        %v3735 = vperm.slane %v3727, %v3734
        %v3736 = vrot.slane %v3699, 4
        %v3737 = vsel %vm467, %v3736, %v3687
        %v3738 = vrot.slane %v3687, 4
        %v3739 = vsel %vm467, %v3699, %v3738
        %v3741 = vunpack.c.l.s4 1934713408
        %v3742 = vunpack.c.0.s8 %v3741
        %v3743 = vperm.slane %v3737, %v3742
        %v3745 = vunpack.c.l.s4 1934713408
        %v3746 = vunpack.c.0.s8 %v3745
        %v3747 = vperm.slane %v3739, %v3746
        %v3748 = vrot.slane %v3731, 4
        %v3749 = vsel %vm467, %v3748, %v3707
        %v3750 = vrot.slane %v3707, 4
        %v3751 = vsel %vm467, %v3731, %v3750
        %v3752 = vrot.slane %v3735, 4
        %v3753 = vsel %vm467, %v3752, %v3711
        %v3754 = vrot.slane %v3711, 4
        %v3755 = vsel %vm467, %v3735, %v3754
        %v3756 = vrot.slane %v3743, 4
        %v3757 = vsel %vm467, %v3756, %v3719
        %v3758 = vrot.slane %v3719, 4
        %v3759 = vsel %vm467, %v3743, %v3758
        %v3760 = vrot.slane %v3747, 4
        %v3761 = vsel %vm467, %v3760, %v3723
        %v3762 = vrot.slane %v3723, 4
        %v3763 = vsel %vm467, %v3747, %v3762
        %3765 = vrot.lane.b32.xlu0 %v3639, 16
        %v3766 = vpop.permute.xlu0 %3765
        %3769 = vrot.lane.b32.xlu0 %v3641, 32
        %v3770 = vpop.permute.xlu0 %3769
        %3773 = vrot.lane.b32.xlu0 %v3643, 48
        %v3774 = vpop.permute.xlu0 %3773
        %3777 = vrot.lane.b32.xlu0 %v3645, 64
        %v3778 = vpop.permute.xlu0 %3777
        %3781 = vrot.lane.b32.xlu0 %v3647, 80
        %v3782 = vpop.permute.xlu0 %3781
        %3785 = vrot.lane.b32.xlu0 %v3649, 96
        %v3786 = vpop.permute.xlu0 %3785
        %3789 = vrot.lane.b32.xlu0 %v3651, 112
        %v3790 = vpop.permute.xlu0 %3789
        %3793 = vrot.lane.b32.xlu0 %v3751, 16
        %v3794 = vpop.permute.xlu0 %3793
        %3797 = vrot.lane.b32.xlu0 %v3753, 32
        %v3798 = vpop.permute.xlu0 %3797
        %3801 = vrot.lane.b32.xlu0 %v3755, 48
        %v3802 = vpop.permute.xlu0 %3801
        %3805 = vrot.lane.b32.xlu0 %v3757, 64
        %v3806 = vpop.permute.xlu0 %3805
        %3809 = vrot.lane.b32.xlu0 %v3759, 80
        %v3810 = vpop.permute.xlu0 %3809
        %3813 = vrot.lane.b32.xlu0 %v3761, 96
        %v3814 = vpop.permute.xlu0 %3813
        %3817 = vrot.lane.b32.xlu0 %v3763, 112
        %v3818 = vpop.permute.xlu0 %3817
        %v3820 = vsel %vm967, %v3637, %v3766
        %v3821 = vsel %vm969, %v3820, %v3770
        %v3822 = vsel %vm971, %v3821, %v3774
        %v3823 = vsel %vm378, %v3822, %v3778
        %v3824 = vsel %vm974, %v3823, %v3782
        %v3825 = vsel %vm976, %v3824, %v3786
        %v3826 = vsel %vm978, %v3825, %v3790
        %v3827 = vsel %vm967, %v3749, %v3794
        %v3828 = vsel %vm969, %v3827, %v3798
        %v3829 = vsel %vm971, %v3828, %v3802
        %v3830 = vsel %vm378, %v3829, %v3806
        %v3831 = vsel %vm974, %v3830, %v3810
        %v3832 = vsel %vm976, %v3831, %v3814
        %v3833 = vsel %vm978, %v3832, %v3818
        %v3834 = vld [vmem:[#allocation4] sm:$0xff]
        %v3835 = vld [vmem:[#allocation4 + $0x8] sm:$0xff]
        %s3836 = scalar_lea.vmem %s3, 56
        %v3837 = vld [vmem:[%s3836] sm:$0xff]
        %v3839 = vsel %vm990, %v3837, 0
        %3841 = vmatpush.msra.mxu0 0.0
        %3842 = vmatpush.msra.mxu0 0.0
        %3843 = vmatpush.msra.mxu0 0.0
        %3844 = vmatpush.msra.mxu0 0.0
        %3845 = vmatpush.msra.mxu0 0.0
        %3846 = vmatpush.msra.mxu0 0.0
        %3847 = vmatpush.msra.mxu0 0.0
        %3848 = vmatpush.msra.mxu0 0.0
        %3849 = vmatpush.msra.mxu0 0.0
        %3850 = vmatpush.msra.mxu0 0.0
        %3851 = vmatpush.msra.mxu0 0.0
        %3852 = vmatpush.msra.mxu0 0.0
        %3853 = vmatpush.msra.mxu0 0.0
        %3854 = vmatpush.msra.mxu0 0.0
        %3855 = vmatpush.msra.mxu0 0.0
        %3856 = vmatpush.msra.mxu0 %v3826
        %3857 = vmatmul.f32.gmra.mxu0 %v3839
        %v3858 = vpop.f32.mrf.mxu0
        %v3859 = vadd.f32 0.0, %v3858
        %3860 = vdwg.mxu0
        %3861 = vmatpush.msra.mxu0 0.0
        %3862 = vmatpush.msra.mxu0 0.0
        %3863 = vmatpush.msra.mxu0 0.0
        %3864 = vmatpush.msra.mxu0 0.0
        %3865 = vmatpush.msra.mxu0 0.0
        %3866 = vmatpush.msra.mxu0 0.0
        %3867 = vmatpush.msra.mxu0 0.0
        %3868 = vmatpush.msra.mxu0 0.0
        %3869 = vmatpush.msra.mxu0 0.0
        %3870 = vmatpush.msra.mxu0 0.0
        %3871 = vmatpush.msra.mxu0 0.0
        %3872 = vmatpush.msra.mxu0 0.0
        %3873 = vmatpush.msra.mxu0 0.0
        %3874 = vmatpush.msra.mxu0 0.0
        %3875 = vmatpush.msra.mxu0 0.0
        %3876 = vmatpush.msra.mxu0 %v3833
        %3877 = vmatmul.f32.gmra.mxu0 %v3839
        %v3878 = vpop.f32.mrf.mxu0
        %v3879 = vadd.f32 0.0, %v3878
        %3880 = vdwg.mxu0
        %v3881 = vadd.f32 %v3834, %v3859
        %v3882 = vadd.f32 %v3835, %v3879
        %3883 = vst [vmem:[#allocation4] sm:$0xff] %v3881
        %3884 = vst [vmem:[#allocation4 + $0x8] sm:$0xff] %v3882
        %v3885 = vld [vmem:[#allocation2 + $0x2] sm:$0xff]
        %v3886 = vld [vmem:[#allocation2 + $0xa] sm:$0xff]
        %v3887 = vld [vmem:[#allocation2 + $0x1a] sm:$0xff]
        %v3888 = vld [vmem:[#allocation2 + $0x22] sm:$0xff]
        %v3889 = vld [vmem:[#allocation2 + $0x32] sm:$0xff]
        %v3890 = vld [vmem:[#allocation2 + $0x3a] sm:$0xff]
        %v3891 = vld [vmem:[#allocation2 + $0x4a] sm:$0xff]
        %v3892 = vld [vmem:[#allocation2 + $0x52] sm:$0xff]
        %v3893 = vld [vmem:[#allocation2 + $0x62] sm:$0xff]
        %v3894 = vld [vmem:[#allocation2 + $0x6a] sm:$0xff]
        %v3895 = vld [vmem:[#allocation2 + $0x7a] sm:$0xff]
        %v3896 = vld [vmem:[#allocation2 + $0x82] sm:$0xff]
        %v3897 = vld [vmem:[#allocation2 + $0x92] sm:$0xff]
        %v3898 = vld [vmem:[#allocation2 + $0x9a] sm:$0xff]
        %v3899 = vld [vmem:[#allocation2 + $0xaa] sm:$0xff]
        %v3900 = vld [vmem:[#allocation2 + $0xb2] sm:$0xff]
        %3917 = vrot.lane.b32.xlu0 %v3885, 126
        %v3918 = vpop.permute.xlu0 %3917
        %3919 = vrot.lane.b32.xlu0 %v3886, 126
        %v3920 = vpop.permute.xlu0 %3919
        %3921 = vrot.lane.b32.xlu0 %v3887, 126
        %v3922 = vpop.permute.xlu0 %3921
        %3923 = vrot.lane.b32.xlu0 %v3888, 126
        %v3924 = vpop.permute.xlu0 %3923
        %3925 = vrot.lane.b32.xlu0 %v3889, 126
        %v3926 = vpop.permute.xlu0 %3925
        %3927 = vrot.lane.b32.xlu0 %v3890, 126
        %v3928 = vpop.permute.xlu0 %3927
        %3929 = vrot.lane.b32.xlu0 %v3891, 126
        %v3930 = vpop.permute.xlu0 %3929
        %3931 = vrot.lane.b32.xlu0 %v3892, 126
        %v3932 = vpop.permute.xlu0 %3931
        %3933 = vrot.lane.b32.xlu0 %v3893, 126
        %v3934 = vpop.permute.xlu0 %3933
        %3935 = vrot.lane.b32.xlu0 %v3894, 126
        %v3936 = vpop.permute.xlu0 %3935
        %3937 = vrot.lane.b32.xlu0 %v3895, 126
        %v3938 = vpop.permute.xlu0 %3937
        %3939 = vrot.lane.b32.xlu0 %v3896, 126
        %v3940 = vpop.permute.xlu0 %3939
        %3941 = vrot.lane.b32.xlu0 %v3897, 126
        %v3942 = vpop.permute.xlu0 %3941
        %3943 = vrot.lane.b32.xlu0 %v3898, 126
        %v3944 = vpop.permute.xlu0 %3943
        %3945 = vrot.lane.b32.xlu0 %v3899, 126
        %v3946 = vpop.permute.xlu0 %3945
        %3947 = vrot.lane.b32.xlu0 %v3900, 126
        %v3948 = vpop.permute.xlu0 %3947
        %v3965 = vrot.slane %v3926, 4
        %v3966 = vsel %vm467, %v3965, %v3918
        %v3967 = vrot.slane %v3918, 4
        %v3968 = vsel %vm467, %v3926, %v3967
        %v3970 = vunpack.c.l.s4 1983009808
        %v3971 = vunpack.c.0.s8 %v3970
        %v3972 = vperm.slane %v3966, %v3971
        %v3974 = vunpack.c.l.s4 1983009808
        %v3975 = vunpack.c.0.s8 %v3974
        %v3976 = vperm.slane %v3968, %v3975
        %v3977 = vrot.slane %v3930, 4
        %v3978 = vsel %vm467, %v3977, %v3922
        %v3979 = vrot.slane %v3922, 4
        %v3980 = vsel %vm467, %v3930, %v3979
        %v3982 = vunpack.c.l.s4 1983009808
        %v3983 = vunpack.c.0.s8 %v3982
        %v3984 = vperm.slane %v3978, %v3983
        %v3986 = vunpack.c.l.s4 1983009808
        %v3987 = vunpack.c.0.s8 %v3986
        %v3988 = vperm.slane %v3980, %v3987
        %v3989 = vrot.slane %v3942, 4
        %v3990 = vsel %vm467, %v3989, %v3934
        %v3991 = vrot.slane %v3934, 4
        %v3992 = vsel %vm467, %v3942, %v3991
        %v3994 = vunpack.c.l.s4 1983009808
        %v3995 = vunpack.c.0.s8 %v3994
        %v3996 = vperm.slane %v3990, %v3995
        %v3998 = vunpack.c.l.s4 1983009808
        %v3999 = vunpack.c.0.s8 %v3998
        %v4000 = vperm.slane %v3992, %v3999
        %v4001 = vrot.slane %v3946, 4
        %v4002 = vsel %vm467, %v4001, %v3938
        %v4003 = vrot.slane %v3938, 4
        %v4004 = vsel %vm467, %v3946, %v4003
        %v4006 = vunpack.c.l.s4 1983009808
        %v4007 = vunpack.c.0.s8 %v4006
        %v4008 = vperm.slane %v4002, %v4007
        %v4010 = vunpack.c.l.s4 1983009808
        %v4011 = vunpack.c.0.s8 %v4010
        %v4012 = vperm.slane %v4004, %v4011
        %v4013 = vrot.slane %v3984, 4
        %v4014 = vsel %vm467, %v4013, %v3972
        %v4015 = vrot.slane %v3972, 4
        %v4016 = vsel %vm467, %v3984, %v4015
        %v4018 = vunpack.c.l.s4 1934713408
        %v4019 = vunpack.c.0.s8 %v4018
        %v4020 = vperm.slane %v4014, %v4019
        %v4022 = vunpack.c.l.s4 1934713408
        %v4023 = vunpack.c.0.s8 %v4022
        %v4024 = vperm.slane %v4016, %v4023
        %v4025 = vrot.slane %v3988, 4
        %v4026 = vsel %vm467, %v4025, %v3976
        %v4027 = vrot.slane %v3976, 4
        %v4028 = vsel %vm467, %v3988, %v4027
        %v4030 = vunpack.c.l.s4 1934713408
        %v4031 = vunpack.c.0.s8 %v4030
        %v4032 = vperm.slane %v4026, %v4031
        %v4034 = vunpack.c.l.s4 1934713408
        %v4035 = vunpack.c.0.s8 %v4034
        %v4036 = vperm.slane %v4028, %v4035
        %v4037 = vrot.slane %v4008, 4
        %v4038 = vsel %vm467, %v4037, %v3996
        %v4039 = vrot.slane %v3996, 4
        %v4040 = vsel %vm467, %v4008, %v4039
        %v4042 = vunpack.c.l.s4 1934713408
        %v4043 = vunpack.c.0.s8 %v4042
        %v4044 = vperm.slane %v4038, %v4043
        %v4046 = vunpack.c.l.s4 1934713408
        %v4047 = vunpack.c.0.s8 %v4046
        %v4048 = vperm.slane %v4040, %v4047
        %v4049 = vrot.slane %v4012, 4
        %v4050 = vsel %vm467, %v4049, %v4000
        %v4051 = vrot.slane %v4000, 4
        %v4052 = vsel %vm467, %v4012, %v4051
        %v4054 = vunpack.c.l.s4 1934713408
        %v4055 = vunpack.c.0.s8 %v4054
        %v4056 = vperm.slane %v4050, %v4055
        %v4058 = vunpack.c.l.s4 1934713408
        %v4059 = vunpack.c.0.s8 %v4058
        %v4060 = vperm.slane %v4052, %v4059
        %v4061 = vrot.slane %v4044, 4
        %v4062 = vsel %vm467, %v4061, %v4020
        %v4063 = vrot.slane %v4020, 4
        %v4064 = vsel %vm467, %v4044, %v4063
        %v4065 = vrot.slane %v4048, 4
        %v4066 = vsel %vm467, %v4065, %v4024
        %v4067 = vrot.slane %v4024, 4
        %v4068 = vsel %vm467, %v4048, %v4067
        %v4069 = vrot.slane %v4056, 4
        %v4070 = vsel %vm467, %v4069, %v4032
        %v4071 = vrot.slane %v4032, 4
        %v4072 = vsel %vm467, %v4056, %v4071
        %v4073 = vrot.slane %v4060, 4
        %v4074 = vsel %vm467, %v4073, %v4036
        %v4075 = vrot.slane %v4036, 4
        %v4076 = vsel %vm467, %v4060, %v4075
        %v4077 = vrot.slane %v3928, 4
        %v4078 = vsel %vm467, %v4077, %v3920
        %v4079 = vrot.slane %v3920, 4
        %v4080 = vsel %vm467, %v3928, %v4079
        %v4082 = vunpack.c.l.s4 1983009808
        %v4083 = vunpack.c.0.s8 %v4082
        %v4084 = vperm.slane %v4078, %v4083
        %v4086 = vunpack.c.l.s4 1983009808
        %v4087 = vunpack.c.0.s8 %v4086
        %v4088 = vperm.slane %v4080, %v4087
        %v4089 = vrot.slane %v3932, 4
        %v4090 = vsel %vm467, %v4089, %v3924
        %v4091 = vrot.slane %v3924, 4
        %v4092 = vsel %vm467, %v3932, %v4091
        %v4094 = vunpack.c.l.s4 1983009808
        %v4095 = vunpack.c.0.s8 %v4094
        %v4096 = vperm.slane %v4090, %v4095
        %v4098 = vunpack.c.l.s4 1983009808
        %v4099 = vunpack.c.0.s8 %v4098
        %v4100 = vperm.slane %v4092, %v4099
        %v4101 = vrot.slane %v3944, 4
        %v4102 = vsel %vm467, %v4101, %v3936
        %v4103 = vrot.slane %v3936, 4
        %v4104 = vsel %vm467, %v3944, %v4103
        %v4106 = vunpack.c.l.s4 1983009808
        %v4107 = vunpack.c.0.s8 %v4106
        %v4108 = vperm.slane %v4102, %v4107
        %v4110 = vunpack.c.l.s4 1983009808
        %v4111 = vunpack.c.0.s8 %v4110
        %v4112 = vperm.slane %v4104, %v4111
        %v4113 = vrot.slane %v3948, 4
        %v4114 = vsel %vm467, %v4113, %v3940
        %v4115 = vrot.slane %v3940, 4
        %v4116 = vsel %vm467, %v3948, %v4115
        %v4118 = vunpack.c.l.s4 1983009808
        %v4119 = vunpack.c.0.s8 %v4118
        %v4120 = vperm.slane %v4114, %v4119
        %v4122 = vunpack.c.l.s4 1983009808
        %v4123 = vunpack.c.0.s8 %v4122
        %v4124 = vperm.slane %v4116, %v4123
        %v4125 = vrot.slane %v4096, 4
        %v4126 = vsel %vm467, %v4125, %v4084
        %v4127 = vrot.slane %v4084, 4
        %v4128 = vsel %vm467, %v4096, %v4127
        %v4130 = vunpack.c.l.s4 1934713408
        %v4131 = vunpack.c.0.s8 %v4130
        %v4132 = vperm.slane %v4126, %v4131
        %v4134 = vunpack.c.l.s4 1934713408
        %v4135 = vunpack.c.0.s8 %v4134
        %v4136 = vperm.slane %v4128, %v4135
        %v4137 = vrot.slane %v4100, 4
        %v4138 = vsel %vm467, %v4137, %v4088
        %v4139 = vrot.slane %v4088, 4
        %v4140 = vsel %vm467, %v4100, %v4139
        %v4142 = vunpack.c.l.s4 1934713408
        %v4143 = vunpack.c.0.s8 %v4142
        %v4144 = vperm.slane %v4138, %v4143
        %v4146 = vunpack.c.l.s4 1934713408
        %v4147 = vunpack.c.0.s8 %v4146
        %v4148 = vperm.slane %v4140, %v4147
        %v4149 = vrot.slane %v4120, 4
        %v4150 = vsel %vm467, %v4149, %v4108
        %v4151 = vrot.slane %v4108, 4
        %v4152 = vsel %vm467, %v4120, %v4151
        %v4154 = vunpack.c.l.s4 1934713408
        %v4155 = vunpack.c.0.s8 %v4154
        %v4156 = vperm.slane %v4150, %v4155
        %v4158 = vunpack.c.l.s4 1934713408
        %v4159 = vunpack.c.0.s8 %v4158
        %v4160 = vperm.slane %v4152, %v4159
        %v4161 = vrot.slane %v4124, 4
        %v4162 = vsel %vm467, %v4161, %v4112
        %v4163 = vrot.slane %v4112, 4
        %v4164 = vsel %vm467, %v4124, %v4163
        %v4166 = vunpack.c.l.s4 1934713408
        %v4167 = vunpack.c.0.s8 %v4166
        %v4168 = vperm.slane %v4162, %v4167
        %v4170 = vunpack.c.l.s4 1934713408
        %v4171 = vunpack.c.0.s8 %v4170
        %v4172 = vperm.slane %v4164, %v4171
        %v4173 = vrot.slane %v4156, 4
        %v4174 = vsel %vm467, %v4173, %v4132
        %v4175 = vrot.slane %v4132, 4
        %v4176 = vsel %vm467, %v4156, %v4175
        %v4177 = vrot.slane %v4160, 4
        %v4178 = vsel %vm467, %v4177, %v4136
        %v4179 = vrot.slane %v4136, 4
        %v4180 = vsel %vm467, %v4160, %v4179
        %v4181 = vrot.slane %v4168, 4
        %v4182 = vsel %vm467, %v4181, %v4144
        %v4183 = vrot.slane %v4144, 4
        %v4184 = vsel %vm467, %v4168, %v4183
        %v4185 = vrot.slane %v4172, 4
        %v4186 = vsel %vm467, %v4185, %v4148
        %v4187 = vrot.slane %v4148, 4
        %v4188 = vsel %vm467, %v4172, %v4187
        %4190 = vrot.lane.b32.xlu0 %v4064, 16
        %v4191 = vpop.permute.xlu0 %4190
        %4194 = vrot.lane.b32.xlu0 %v4066, 32
        %v4195 = vpop.permute.xlu0 %4194
        %4198 = vrot.lane.b32.xlu0 %v4068, 48
        %v4199 = vpop.permute.xlu0 %4198
        %4202 = vrot.lane.b32.xlu0 %v4070, 64
        %v4203 = vpop.permute.xlu0 %4202
        %4206 = vrot.lane.b32.xlu0 %v4072, 80
        %v4207 = vpop.permute.xlu0 %4206
        %4210 = vrot.lane.b32.xlu0 %v4074, 96
        %v4211 = vpop.permute.xlu0 %4210
        %4214 = vrot.lane.b32.xlu0 %v4076, 112
        %v4215 = vpop.permute.xlu0 %4214
        %4218 = vrot.lane.b32.xlu0 %v4176, 16
        %v4219 = vpop.permute.xlu0 %4218
        %4222 = vrot.lane.b32.xlu0 %v4178, 32
        %v4223 = vpop.permute.xlu0 %4222
        %4226 = vrot.lane.b32.xlu0 %v4180, 48
        %v4227 = vpop.permute.xlu0 %4226
        %4230 = vrot.lane.b32.xlu0 %v4182, 64
        %v4231 = vpop.permute.xlu0 %4230
        %4234 = vrot.lane.b32.xlu0 %v4184, 80
        %v4235 = vpop.permute.xlu0 %4234
        %4238 = vrot.lane.b32.xlu0 %v4186, 96
        %v4239 = vpop.permute.xlu0 %4238
        %4242 = vrot.lane.b32.xlu0 %v4188, 112
        %v4243 = vpop.permute.xlu0 %4242
        %v4245 = vsel %vm967, %v4062, %v4191
        %v4246 = vsel %vm969, %v4245, %v4195
        %v4247 = vsel %vm971, %v4246, %v4199
        %v4248 = vsel %vm378, %v4247, %v4203
        %v4249 = vsel %vm974, %v4248, %v4207
        %v4250 = vsel %vm976, %v4249, %v4211
        %v4251 = vsel %vm978, %v4250, %v4215
        %v4252 = vsel %vm967, %v4174, %v4219
        %v4253 = vsel %vm969, %v4252, %v4223
        %v4254 = vsel %vm971, %v4253, %v4227
        %v4255 = vsel %vm378, %v4254, %v4231
        %v4256 = vsel %vm974, %v4255, %v4235
        %v4257 = vsel %vm976, %v4256, %v4239
        %v4258 = vsel %vm978, %v4257, %v4243
        %v4259 = vld [vmem:[#allocation4] sm:$0xff]
        %v4260 = vld [vmem:[#allocation4 + $0x8] sm:$0xff]
        %s4261 = scalar_lea.vmem %s3, 64
        %v4262 = vld [vmem:[%s4261] sm:$0xff]
        %v4264 = vsel %vm990, %v4262, 0
        %4266 = vmatpush.msra.mxu0 0.0
        %4267 = vmatpush.msra.mxu0 0.0
        %4268 = vmatpush.msra.mxu0 0.0
        %4269 = vmatpush.msra.mxu0 0.0
        %4270 = vmatpush.msra.mxu0 0.0
        %4271 = vmatpush.msra.mxu0 0.0
        %4272 = vmatpush.msra.mxu0 0.0
        %4273 = vmatpush.msra.mxu0 0.0
        %4274 = vmatpush.msra.mxu0 0.0
        %4275 = vmatpush.msra.mxu0 0.0
        %4276 = vmatpush.msra.mxu0 0.0
        %4277 = vmatpush.msra.mxu0 0.0
        %4278 = vmatpush.msra.mxu0 0.0
        %4279 = vmatpush.msra.mxu0 0.0
        %4280 = vmatpush.msra.mxu0 0.0
        %4281 = vmatpush.msra.mxu0 %v4251
        %4282 = vmatmul.f32.gmra.mxu0 %v4264
        %v4283 = vpop.f32.mrf.mxu0
        %v4284 = vadd.f32 0.0, %v4283
        %4285 = vdwg.mxu0
        %4286 = vmatpush.msra.mxu0 0.0
        %4287 = vmatpush.msra.mxu0 0.0
        %4288 = vmatpush.msra.mxu0 0.0
        %4289 = vmatpush.msra.mxu0 0.0
        %4290 = vmatpush.msra.mxu0 0.0
        %4291 = vmatpush.msra.mxu0 0.0
        %4292 = vmatpush.msra.mxu0 0.0
        %4293 = vmatpush.msra.mxu0 0.0
        %4294 = vmatpush.msra.mxu0 0.0
        %4295 = vmatpush.msra.mxu0 0.0
        %4296 = vmatpush.msra.mxu0 0.0
        %4297 = vmatpush.msra.mxu0 0.0
        %4298 = vmatpush.msra.mxu0 0.0
        %4299 = vmatpush.msra.mxu0 0.0
        %4300 = vmatpush.msra.mxu0 0.0
        %4301 = vmatpush.msra.mxu0 %v4258
        %4302 = vmatmul.f32.gmra.mxu0 %v4264
        %v4303 = vpop.f32.mrf.mxu0
        %v4304 = vadd.f32 0.0, %v4303
        %4305 = vdwg.mxu0
        %v4306 = vadd.f32 %v4259, %v4284
        %v4307 = vadd.f32 %v4260, %v4304
        %4308 = vst [vmem:[#allocation4] sm:$0xff] %v4306
        %4309 = vst [vmem:[#allocation4 + $0x8] sm:$0xff] %v4307
        %v4310 = vld [vmem:[#allocation4] sm:$0xff]
        %v4311 = vld [vmem:[#allocation4 + $0x8] sm:$0xff]
        %v4312 = vld [vmem:[%s4] sm:$0xff]
        %4314 = vset.pattern.permute.xlu0 0
        %4315 = vperm.xlu0 %4314, %v4312
        %v4316 = vpop.permute.xlu0 %4315
        %v4318 = vadd.f32 %v4310, %v4316
        %v4319 = vadd.f32 %v4311, %v4316
        %v4320 = vmax.f32 %v4318, 0.0
        %v4321 = vmax.f32 %v4319, 0.0
        %4323 = vrot.lane.b32.xlu0 %v4320, 112
        %v4324 = vpop.permute.xlu0 %4323
        %4326 = vrot.lane.b32.xlu0 %v4320, 96
        %v4327 = vpop.permute.xlu0 %4326
        %4329 = vrot.lane.b32.xlu0 %v4320, 80
        %v4330 = vpop.permute.xlu0 %4329
        %4332 = vrot.lane.b32.xlu0 %v4320, 64
        %v4333 = vpop.permute.xlu0 %4332
        %4335 = vrot.lane.b32.xlu0 %v4320, 48
        %v4336 = vpop.permute.xlu0 %4335
        %4338 = vrot.lane.b32.xlu0 %v4320, 32
        %v4339 = vpop.permute.xlu0 %4338
        %4341 = vrot.lane.b32.xlu0 %v4320, 16
        %v4342 = vpop.permute.xlu0 %4341
        %4345 = vrot.lane.b32.xlu0 %v4321, 112
        %v4346 = vpop.permute.xlu0 %4345
        %4348 = vrot.lane.b32.xlu0 %v4321, 96
        %v4349 = vpop.permute.xlu0 %4348
        %4351 = vrot.lane.b32.xlu0 %v4321, 80
        %v4352 = vpop.permute.xlu0 %4351
        %4354 = vrot.lane.b32.xlu0 %v4321, 64
        %v4355 = vpop.permute.xlu0 %4354
        %4357 = vrot.lane.b32.xlu0 %v4321, 48
        %v4358 = vpop.permute.xlu0 %4357
        %4360 = vrot.lane.b32.xlu0 %v4321, 32
        %v4361 = vpop.permute.xlu0 %4360
        %4363 = vrot.lane.b32.xlu0 %v4321, 16
        %v4364 = vpop.permute.xlu0 %4363
        %v4366 = vrot.slane %v4327, 4
        %v4367 = vsel %vm467, %v4366, %v4320
        %v4368 = vrot.slane %v4320, 4
        %v4369 = vsel %vm467, %v4327, %v4368
        %v4371 = vunpack.c.l.s4 1983009808
        %v4372 = vunpack.c.0.s8 %v4371
        %v4373 = vperm.slane %v4367, %v4372
        %v4375 = vunpack.c.l.s4 1983009808
        %v4376 = vunpack.c.0.s8 %v4375
        %v4377 = vperm.slane %v4369, %v4376
        %v4378 = vrot.slane %v4330, 4
        %v4379 = vsel %vm467, %v4378, %v4324
        %v4380 = vrot.slane %v4324, 4
        %v4381 = vsel %vm467, %v4330, %v4380
        %v4383 = vunpack.c.l.s4 1983009808
        %v4384 = vunpack.c.0.s8 %v4383
        %v4385 = vperm.slane %v4379, %v4384
        %v4387 = vunpack.c.l.s4 1983009808
        %v4388 = vunpack.c.0.s8 %v4387
        %v4389 = vperm.slane %v4381, %v4388
        %v4390 = vrot.slane %v4339, 4
        %v4391 = vsel %vm467, %v4390, %v4333
        %v4392 = vrot.slane %v4333, 4
        %v4393 = vsel %vm467, %v4339, %v4392
        %v4395 = vunpack.c.l.s4 1983009808
        %v4396 = vunpack.c.0.s8 %v4395
        %v4397 = vperm.slane %v4391, %v4396
        %v4399 = vunpack.c.l.s4 1983009808
        %v4400 = vunpack.c.0.s8 %v4399
        %v4401 = vperm.slane %v4393, %v4400
        %v4402 = vrot.slane %v4342, 4
        %v4403 = vsel %vm467, %v4402, %v4336
        %v4404 = vrot.slane %v4336, 4
        %v4405 = vsel %vm467, %v4342, %v4404
        %v4407 = vunpack.c.l.s4 1983009808
        %v4408 = vunpack.c.0.s8 %v4407
        %v4409 = vperm.slane %v4403, %v4408
        %v4411 = vunpack.c.l.s4 1983009808
        %v4412 = vunpack.c.0.s8 %v4411
        %v4413 = vperm.slane %v4405, %v4412
        %v4414 = vrot.slane %v4385, 4
        %v4415 = vsel %vm467, %v4414, %v4373
        %v4416 = vrot.slane %v4373, 4
        %v4417 = vsel %vm467, %v4385, %v4416
        %v4419 = vunpack.c.l.s4 1934713408
        %v4420 = vunpack.c.0.s8 %v4419
        %v4421 = vperm.slane %v4415, %v4420
        %v4423 = vunpack.c.l.s4 1934713408
        %v4424 = vunpack.c.0.s8 %v4423
        %v4425 = vperm.slane %v4417, %v4424
        %v4426 = vrot.slane %v4389, 4
        %v4427 = vsel %vm467, %v4426, %v4377
        %v4428 = vrot.slane %v4377, 4
        %v4429 = vsel %vm467, %v4389, %v4428
        %v4431 = vunpack.c.l.s4 1934713408
        %v4432 = vunpack.c.0.s8 %v4431
        %v4433 = vperm.slane %v4427, %v4432
        %v4435 = vunpack.c.l.s4 1934713408
        %v4436 = vunpack.c.0.s8 %v4435
        %v4437 = vperm.slane %v4429, %v4436
        %v4438 = vrot.slane %v4409, 4
        %v4439 = vsel %vm467, %v4438, %v4397
        %v4440 = vrot.slane %v4397, 4
        %v4441 = vsel %vm467, %v4409, %v4440
        %v4443 = vunpack.c.l.s4 1934713408
        %v4444 = vunpack.c.0.s8 %v4443
        %v4445 = vperm.slane %v4439, %v4444
        %v4447 = vunpack.c.l.s4 1934713408
        %v4448 = vunpack.c.0.s8 %v4447
        %v4449 = vperm.slane %v4441, %v4448
        %v4450 = vrot.slane %v4413, 4
        %v4451 = vsel %vm467, %v4450, %v4401
        %v4452 = vrot.slane %v4401, 4
        %v4453 = vsel %vm467, %v4413, %v4452
        %v4455 = vunpack.c.l.s4 1934713408
        %v4456 = vunpack.c.0.s8 %v4455
        %v4457 = vperm.slane %v4451, %v4456
        %v4459 = vunpack.c.l.s4 1934713408
        %v4460 = vunpack.c.0.s8 %v4459
        %v4461 = vperm.slane %v4453, %v4460
        %v4462 = vrot.slane %v4445, 4
        %v4463 = vsel %vm467, %v4462, %v4421
        %v4464 = vrot.slane %v4421, 4
        %v4465 = vsel %vm467, %v4445, %v4464
        %v4466 = vrot.slane %v4449, 4
        %v4467 = vsel %vm467, %v4466, %v4425
        %v4468 = vrot.slane %v4425, 4
        %v4469 = vsel %vm467, %v4449, %v4468
        %v4470 = vrot.slane %v4457, 4
        %v4471 = vsel %vm467, %v4470, %v4433
        %v4472 = vrot.slane %v4433, 4
        %v4473 = vsel %vm467, %v4457, %v4472
        %v4474 = vrot.slane %v4461, 4
        %v4475 = vsel %vm467, %v4474, %v4437
        %v4476 = vrot.slane %v4437, 4
        %v4477 = vsel %vm467, %v4461, %v4476
        %v4478 = vrot.slane %v4349, 4
        %v4479 = vsel %vm467, %v4478, %v4321
        %v4480 = vrot.slane %v4321, 4
        %v4481 = vsel %vm467, %v4349, %v4480
        %v4483 = vunpack.c.l.s4 1983009808
        %v4484 = vunpack.c.0.s8 %v4483
        %v4485 = vperm.slane %v4479, %v4484
        %v4487 = vunpack.c.l.s4 1983009808
        %v4488 = vunpack.c.0.s8 %v4487
        %v4489 = vperm.slane %v4481, %v4488
        %v4490 = vrot.slane %v4352, 4
        %v4491 = vsel %vm467, %v4490, %v4346
        %v4492 = vrot.slane %v4346, 4
        %v4493 = vsel %vm467, %v4352, %v4492
        %v4495 = vunpack.c.l.s4 1983009808
        %v4496 = vunpack.c.0.s8 %v4495
        %v4497 = vperm.slane %v4491, %v4496
        %v4499 = vunpack.c.l.s4 1983009808
        %v4500 = vunpack.c.0.s8 %v4499
        %v4501 = vperm.slane %v4493, %v4500
        %v4502 = vrot.slane %v4361, 4
        %v4503 = vsel %vm467, %v4502, %v4355
        %v4504 = vrot.slane %v4355, 4
        %v4505 = vsel %vm467, %v4361, %v4504
        %v4507 = vunpack.c.l.s4 1983009808
        %v4508 = vunpack.c.0.s8 %v4507
        %v4509 = vperm.slane %v4503, %v4508
        %v4511 = vunpack.c.l.s4 1983009808
        %v4512 = vunpack.c.0.s8 %v4511
        %v4513 = vperm.slane %v4505, %v4512
        %v4514 = vrot.slane %v4364, 4
        %v4515 = vsel %vm467, %v4514, %v4358
        %v4516 = vrot.slane %v4358, 4
        %v4517 = vsel %vm467, %v4364, %v4516
        %v4519 = vunpack.c.l.s4 1983009808
        %v4520 = vunpack.c.0.s8 %v4519
        %v4521 = vperm.slane %v4515, %v4520
        %v4523 = vunpack.c.l.s4 1983009808
        %v4524 = vunpack.c.0.s8 %v4523
        %v4525 = vperm.slane %v4517, %v4524
        %v4526 = vrot.slane %v4497, 4
        %v4527 = vsel %vm467, %v4526, %v4485
        %v4528 = vrot.slane %v4485, 4
        %v4529 = vsel %vm467, %v4497, %v4528
        %v4531 = vunpack.c.l.s4 1934713408
        %v4532 = vunpack.c.0.s8 %v4531
        %v4533 = vperm.slane %v4527, %v4532
        %v4535 = vunpack.c.l.s4 1934713408
        %v4536 = vunpack.c.0.s8 %v4535
        %v4537 = vperm.slane %v4529, %v4536
        %v4538 = vrot.slane %v4501, 4
        %v4539 = vsel %vm467, %v4538, %v4489
        %v4540 = vrot.slane %v4489, 4
        %v4541 = vsel %vm467, %v4501, %v4540
        %v4543 = vunpack.c.l.s4 1934713408
        %v4544 = vunpack.c.0.s8 %v4543
        %v4545 = vperm.slane %v4539, %v4544
        %v4547 = vunpack.c.l.s4 1934713408
        %v4548 = vunpack.c.0.s8 %v4547
        %v4549 = vperm.slane %v4541, %v4548
        %v4550 = vrot.slane %v4521, 4
        %v4551 = vsel %vm467, %v4550, %v4509
        %v4552 = vrot.slane %v4509, 4
        %v4553 = vsel %vm467, %v4521, %v4552
        %v4555 = vunpack.c.l.s4 1934713408
        %v4556 = vunpack.c.0.s8 %v4555
        %v4557 = vperm.slane %v4551, %v4556
        %v4559 = vunpack.c.l.s4 1934713408
        %v4560 = vunpack.c.0.s8 %v4559
        %v4561 = vperm.slane %v4553, %v4560
        %v4562 = vrot.slane %v4525, 4
        %v4563 = vsel %vm467, %v4562, %v4513
        %v4564 = vrot.slane %v4513, 4
        %v4565 = vsel %vm467, %v4525, %v4564
        %v4567 = vunpack.c.l.s4 1934713408
        %v4568 = vunpack.c.0.s8 %v4567
        %v4569 = vperm.slane %v4563, %v4568
        %v4571 = vunpack.c.l.s4 1934713408
        %v4572 = vunpack.c.0.s8 %v4571
        %v4573 = vperm.slane %v4565, %v4572
        %v4574 = vrot.slane %v4557, 4
        %v4575 = vsel %vm467, %v4574, %v4533
        %v4576 = vrot.slane %v4533, 4
        %v4577 = vsel %vm467, %v4557, %v4576
        %v4578 = vrot.slane %v4561, 4
        %v4579 = vsel %vm467, %v4578, %v4537
        %v4580 = vrot.slane %v4537, 4
        %v4581 = vsel %vm467, %v4561, %v4580
        %v4582 = vrot.slane %v4569, 4
        %v4583 = vsel %vm467, %v4582, %v4545
        %v4584 = vrot.slane %v4545, 4
        %v4585 = vsel %vm467, %v4569, %v4584
        %v4586 = vrot.slane %v4573, 4
        %v4587 = vsel %vm467, %v4586, %v4549
        %v4588 = vrot.slane %v4549, 4
        %v4589 = vsel %vm467, %v4573, %v4588
        %4606 = vrot.lane.b32.xlu0 %v4463, 1
        %v4607 = vpop.permute.xlu0 %4606
        %4608 = vrot.lane.b32.xlu0 %v4575, 1
        %v4609 = vpop.permute.xlu0 %4608
        %4610 = vrot.lane.b32.xlu0 %v4465, 1
        %v4611 = vpop.permute.xlu0 %4610
        %4612 = vrot.lane.b32.xlu0 %v4577, 1
        %v4613 = vpop.permute.xlu0 %4612
        %4614 = vrot.lane.b32.xlu0 %v4467, 1
        %v4615 = vpop.permute.xlu0 %4614
        %4616 = vrot.lane.b32.xlu0 %v4579, 1
        %v4617 = vpop.permute.xlu0 %4616
        %4618 = vrot.lane.b32.xlu0 %v4469, 1
        %v4619 = vpop.permute.xlu0 %4618
        %4620 = vrot.lane.b32.xlu0 %v4581, 1
        %v4621 = vpop.permute.xlu0 %4620
        %4622 = vrot.lane.b32.xlu0 %v4471, 1
        %v4623 = vpop.permute.xlu0 %4622
        %4624 = vrot.lane.b32.xlu0 %v4583, 1
        %v4625 = vpop.permute.xlu0 %4624
        %4626 = vrot.lane.b32.xlu0 %v4473, 1
        %v4627 = vpop.permute.xlu0 %4626
        %4628 = vrot.lane.b32.xlu0 %v4585, 1
        %v4629 = vpop.permute.xlu0 %4628
        %4630 = vrot.lane.b32.xlu0 %v4475, 1
        %v4631 = vpop.permute.xlu0 %4630
        %4632 = vrot.lane.b32.xlu0 %v4587, 1
        %v4633 = vpop.permute.xlu0 %4632
        %4634 = vrot.lane.b32.xlu0 %v4477, 1
        %v4635 = vpop.permute.xlu0 %4634
        %4636 = vrot.lane.b32.xlu0 %v4589, 1
        %v4637 = vpop.permute.xlu0 %4636
        %4654 = vst.msk [vmem:[#allocation3 + $0x1] sm:$0xff] %vm611, %v4607
        %4655 = vst.msk [vmem:[#allocation3 + $0x9] sm:$0xff] %vm611, %v4609
        %4656 = vst.msk [vmem:[#allocation3 + $0x19] sm:$0xff] %vm611, %v4611
        %4657 = vst.msk [vmem:[#allocation3 + $0x21] sm:$0xff] %vm611, %v4613
        %4658 = vst.msk [vmem:[#allocation3 + $0x31] sm:$0xff] %vm611, %v4615
        %4659 = vst.msk [vmem:[#allocation3 + $0x39] sm:$0xff] %vm611, %v4617
        %4660 = vst.msk [vmem:[#allocation3 + $0x49] sm:$0xff] %vm611, %v4619
        %4661 = vst.msk [vmem:[#allocation3 + $0x51] sm:$0xff] %vm611, %v4621
        %4662 = vst.msk [vmem:[#allocation3 + $0x61] sm:$0xff] %vm611, %v4623
        %4663 = vst.msk [vmem:[#allocation3 + $0x69] sm:$0xff] %vm611, %v4625
        %4664 = vst.msk [vmem:[#allocation3 + $0x79] sm:$0xff] %vm611, %v4627
        %4665 = vst.msk [vmem:[#allocation3 + $0x81] sm:$0xff] %vm611, %v4629
        %4666 = vst.msk [vmem:[#allocation3 + $0x91] sm:$0xff] %vm611, %v4631
        %4667 = vst.msk [vmem:[#allocation3 + $0x99] sm:$0xff] %vm611, %v4633
        %4668 = vst.msk [vmem:[#allocation3 + $0xa9] sm:$0xff] %vm611, %v4635
        %4669 = vst.msk [vmem:[#allocation3 + $0xb1] sm:$0xff] %vm611, %v4637
        %4670 = vst [vmem:[#allocation4] sm:$0xff] 0.0
        %4671 = vst [vmem:[#allocation4 + $0x8] sm:$0xff] 0.0
        %v4672 = vld [vmem:[#allocation3] sm:$0xff]
        %v4673 = vld [vmem:[#allocation3 + $0x8] sm:$0xff]
        %v4674 = vld [vmem:[#allocation3 + $0x18] sm:$0xff]
        %v4675 = vld [vmem:[#allocation3 + $0x20] sm:$0xff]
        %v4676 = vld [vmem:[#allocation3 + $0x30] sm:$0xff]
        %v4677 = vld [vmem:[#allocation3 + $0x38] sm:$0xff]
        %v4678 = vld [vmem:[#allocation3 + $0x48] sm:$0xff]
        %v4679 = vld [vmem:[#allocation3 + $0x50] sm:$0xff]
        %v4680 = vld [vmem:[#allocation3 + $0x60] sm:$0xff]
        %v4681 = vld [vmem:[#allocation3 + $0x68] sm:$0xff]
        %v4682 = vld [vmem:[#allocation3 + $0x78] sm:$0xff]
        %v4683 = vld [vmem:[#allocation3 + $0x80] sm:$0xff]
        %v4684 = vld [vmem:[#allocation3 + $0x90] sm:$0xff]
        %v4685 = vld [vmem:[#allocation3 + $0x98] sm:$0xff]
        %v4686 = vld [vmem:[#allocation3 + $0xa8] sm:$0xff]
        %v4687 = vld [vmem:[#allocation3 + $0xb0] sm:$0xff]
        %v4688 = vrot.slane %v4676, 4
        %v4689 = vsel %vm467, %v4688, %v4672
        %v4690 = vrot.slane %v4672, 4
        %v4691 = vsel %vm467, %v4676, %v4690
        %v4693 = vunpack.c.l.s4 1983009808
        %v4694 = vunpack.c.0.s8 %v4693
        %v4695 = vperm.slane %v4689, %v4694
        %v4697 = vunpack.c.l.s4 1983009808
        %v4698 = vunpack.c.0.s8 %v4697
        %v4699 = vperm.slane %v4691, %v4698
        %v4700 = vrot.slane %v4678, 4
        %v4701 = vsel %vm467, %v4700, %v4674
        %v4702 = vrot.slane %v4674, 4
        %v4703 = vsel %vm467, %v4678, %v4702
        %v4705 = vunpack.c.l.s4 1983009808
        %v4706 = vunpack.c.0.s8 %v4705
        %v4707 = vperm.slane %v4701, %v4706
        %v4709 = vunpack.c.l.s4 1983009808
        %v4710 = vunpack.c.0.s8 %v4709
        %v4711 = vperm.slane %v4703, %v4710
        %v4712 = vrot.slane %v4684, 4
        %v4713 = vsel %vm467, %v4712, %v4680
        %v4714 = vrot.slane %v4680, 4
        %v4715 = vsel %vm467, %v4684, %v4714
        %v4717 = vunpack.c.l.s4 1983009808
        %v4718 = vunpack.c.0.s8 %v4717
        %v4719 = vperm.slane %v4713, %v4718
        %v4721 = vunpack.c.l.s4 1983009808
        %v4722 = vunpack.c.0.s8 %v4721
        %v4723 = vperm.slane %v4715, %v4722
        %v4724 = vrot.slane %v4686, 4
        %v4725 = vsel %vm467, %v4724, %v4682
        %v4726 = vrot.slane %v4682, 4
        %v4727 = vsel %vm467, %v4686, %v4726
        %v4729 = vunpack.c.l.s4 1983009808
        %v4730 = vunpack.c.0.s8 %v4729
        %v4731 = vperm.slane %v4725, %v4730
        %v4733 = vunpack.c.l.s4 1983009808
        %v4734 = vunpack.c.0.s8 %v4733
        %v4735 = vperm.slane %v4727, %v4734
        %v4736 = vrot.slane %v4707, 4
        %v4737 = vsel %vm467, %v4736, %v4695
        %v4738 = vrot.slane %v4695, 4
        %v4739 = vsel %vm467, %v4707, %v4738
        %v4741 = vunpack.c.l.s4 1934713408
        %v4742 = vunpack.c.0.s8 %v4741
        %v4743 = vperm.slane %v4737, %v4742
        %v4745 = vunpack.c.l.s4 1934713408
        %v4746 = vunpack.c.0.s8 %v4745
        %v4747 = vperm.slane %v4739, %v4746
        %v4748 = vrot.slane %v4711, 4
        %v4749 = vsel %vm467, %v4748, %v4699
        %v4750 = vrot.slane %v4699, 4
        %v4751 = vsel %vm467, %v4711, %v4750
        %v4753 = vunpack.c.l.s4 1934713408
        %v4754 = vunpack.c.0.s8 %v4753
        %v4755 = vperm.slane %v4749, %v4754
        %v4757 = vunpack.c.l.s4 1934713408
        %v4758 = vunpack.c.0.s8 %v4757
        %v4759 = vperm.slane %v4751, %v4758
        %v4760 = vrot.slane %v4731, 4
        %v4761 = vsel %vm467, %v4760, %v4719
        %v4762 = vrot.slane %v4719, 4
        %v4763 = vsel %vm467, %v4731, %v4762
        %v4765 = vunpack.c.l.s4 1934713408
        %v4766 = vunpack.c.0.s8 %v4765
        %v4767 = vperm.slane %v4761, %v4766
        %v4769 = vunpack.c.l.s4 1934713408
        %v4770 = vunpack.c.0.s8 %v4769
        %v4771 = vperm.slane %v4763, %v4770
        %v4772 = vrot.slane %v4735, 4
        %v4773 = vsel %vm467, %v4772, %v4723
        %v4774 = vrot.slane %v4723, 4
        %v4775 = vsel %vm467, %v4735, %v4774
        %v4777 = vunpack.c.l.s4 1934713408
        %v4778 = vunpack.c.0.s8 %v4777
        %v4779 = vperm.slane %v4773, %v4778
        %v4781 = vunpack.c.l.s4 1934713408
        %v4782 = vunpack.c.0.s8 %v4781
        %v4783 = vperm.slane %v4775, %v4782
        %v4784 = vrot.slane %v4767, 4
        %v4785 = vsel %vm467, %v4784, %v4743
        %v4786 = vrot.slane %v4743, 4
        %v4787 = vsel %vm467, %v4767, %v4786
        %v4788 = vrot.slane %v4771, 4
        %v4789 = vsel %vm467, %v4788, %v4747
        %v4790 = vrot.slane %v4747, 4
        %v4791 = vsel %vm467, %v4771, %v4790
        %v4792 = vrot.slane %v4779, 4
        %v4793 = vsel %vm467, %v4792, %v4755
        %v4794 = vrot.slane %v4755, 4
        %v4795 = vsel %vm467, %v4779, %v4794
        %v4796 = vrot.slane %v4783, 4
        %v4797 = vsel %vm467, %v4796, %v4759
        %v4798 = vrot.slane %v4759, 4
        %v4799 = vsel %vm467, %v4783, %v4798
        %v4800 = vrot.slane %v4677, 4
        %v4801 = vsel %vm467, %v4800, %v4673
        %v4802 = vrot.slane %v4673, 4
        %v4803 = vsel %vm467, %v4677, %v4802
        %v4805 = vunpack.c.l.s4 1983009808
        %v4806 = vunpack.c.0.s8 %v4805
        %v4807 = vperm.slane %v4801, %v4806
        %v4809 = vunpack.c.l.s4 1983009808
        %v4810 = vunpack.c.0.s8 %v4809
        %v4811 = vperm.slane %v4803, %v4810
        %v4812 = vrot.slane %v4679, 4
        %v4813 = vsel %vm467, %v4812, %v4675
        %v4814 = vrot.slane %v4675, 4
        %v4815 = vsel %vm467, %v4679, %v4814
        %v4817 = vunpack.c.l.s4 1983009808
        %v4818 = vunpack.c.0.s8 %v4817
        %v4819 = vperm.slane %v4813, %v4818
        %v4821 = vunpack.c.l.s4 1983009808
        %v4822 = vunpack.c.0.s8 %v4821
        %v4823 = vperm.slane %v4815, %v4822
        %v4824 = vrot.slane %v4685, 4
        %v4825 = vsel %vm467, %v4824, %v4681
        %v4826 = vrot.slane %v4681, 4
        %v4827 = vsel %vm467, %v4685, %v4826
        %v4829 = vunpack.c.l.s4 1983009808
        %v4830 = vunpack.c.0.s8 %v4829
        %v4831 = vperm.slane %v4825, %v4830
        %v4833 = vunpack.c.l.s4 1983009808
        %v4834 = vunpack.c.0.s8 %v4833
        %v4835 = vperm.slane %v4827, %v4834
        %v4836 = vrot.slane %v4687, 4
        %v4837 = vsel %vm467, %v4836, %v4683
        %v4838 = vrot.slane %v4683, 4
        %v4839 = vsel %vm467, %v4687, %v4838
        %v4841 = vunpack.c.l.s4 1983009808
        %v4842 = vunpack.c.0.s8 %v4841
        %v4843 = vperm.slane %v4837, %v4842
        %v4845 = vunpack.c.l.s4 1983009808
        %v4846 = vunpack.c.0.s8 %v4845
        %v4847 = vperm.slane %v4839, %v4846
        %v4848 = vrot.slane %v4819, 4
        %v4849 = vsel %vm467, %v4848, %v4807
        %v4850 = vrot.slane %v4807, 4
        %v4851 = vsel %vm467, %v4819, %v4850
        %v4853 = vunpack.c.l.s4 1934713408
        %v4854 = vunpack.c.0.s8 %v4853
        %v4855 = vperm.slane %v4849, %v4854
        %v4857 = vunpack.c.l.s4 1934713408
        %v4858 = vunpack.c.0.s8 %v4857
        %v4859 = vperm.slane %v4851, %v4858
        %v4860 = vrot.slane %v4823, 4
        %v4861 = vsel %vm467, %v4860, %v4811
        %v4862 = vrot.slane %v4811, 4
        %v4863 = vsel %vm467, %v4823, %v4862
        %v4865 = vunpack.c.l.s4 1934713408
        %v4866 = vunpack.c.0.s8 %v4865
        %v4867 = vperm.slane %v4861, %v4866
        %v4869 = vunpack.c.l.s4 1934713408
        %v4870 = vunpack.c.0.s8 %v4869
        %v4871 = vperm.slane %v4863, %v4870
        %v4872 = vrot.slane %v4843, 4
        %v4873 = vsel %vm467, %v4872, %v4831
        %v4874 = vrot.slane %v4831, 4
        %v4875 = vsel %vm467, %v4843, %v4874
        %v4877 = vunpack.c.l.s4 1934713408
        %v4878 = vunpack.c.0.s8 %v4877
        %v4879 = vperm.slane %v4873, %v4878
        %v4881 = vunpack.c.l.s4 1934713408
        %v4882 = vunpack.c.0.s8 %v4881
        %v4883 = vperm.slane %v4875, %v4882
        %v4884 = vrot.slane %v4847, 4
        %v4885 = vsel %vm467, %v4884, %v4835
        %v4886 = vrot.slane %v4835, 4
        %v4887 = vsel %vm467, %v4847, %v4886
        %v4889 = vunpack.c.l.s4 1934713408
        %v4890 = vunpack.c.0.s8 %v4889
        %v4891 = vperm.slane %v4885, %v4890
        %v4893 = vunpack.c.l.s4 1934713408
        %v4894 = vunpack.c.0.s8 %v4893
        %v4895 = vperm.slane %v4887, %v4894
        %v4896 = vrot.slane %v4879, 4
        %v4897 = vsel %vm467, %v4896, %v4855
        %v4898 = vrot.slane %v4855, 4
        %v4899 = vsel %vm467, %v4879, %v4898
        %v4900 = vrot.slane %v4883, 4
        %v4901 = vsel %vm467, %v4900, %v4859
        %v4902 = vrot.slane %v4859, 4
        %v4903 = vsel %vm467, %v4883, %v4902
        %v4904 = vrot.slane %v4891, 4
        %v4905 = vsel %vm467, %v4904, %v4867
        %v4906 = vrot.slane %v4867, 4
        %v4907 = vsel %vm467, %v4891, %v4906
        %v4908 = vrot.slane %v4895, 4
        %v4909 = vsel %vm467, %v4908, %v4871
        %v4910 = vrot.slane %v4871, 4
        %v4911 = vsel %vm467, %v4895, %v4910
        %4913 = vrot.lane.b32.xlu0 %v4787, 16
        %v4914 = vpop.permute.xlu0 %4913
        %4917 = vrot.lane.b32.xlu0 %v4789, 32
        %v4918 = vpop.permute.xlu0 %4917
        %4921 = vrot.lane.b32.xlu0 %v4791, 48
        %v4922 = vpop.permute.xlu0 %4921
        %4925 = vrot.lane.b32.xlu0 %v4793, 64
        %v4926 = vpop.permute.xlu0 %4925
        %4929 = vrot.lane.b32.xlu0 %v4795, 80
        %v4930 = vpop.permute.xlu0 %4929
        %4933 = vrot.lane.b32.xlu0 %v4797, 96
        %v4934 = vpop.permute.xlu0 %4933
        %4937 = vrot.lane.b32.xlu0 %v4799, 112
        %v4938 = vpop.permute.xlu0 %4937
        %4941 = vrot.lane.b32.xlu0 %v4899, 16
        %v4942 = vpop.permute.xlu0 %4941
        %4945 = vrot.lane.b32.xlu0 %v4901, 32
        %v4946 = vpop.permute.xlu0 %4945
        %4949 = vrot.lane.b32.xlu0 %v4903, 48
        %v4950 = vpop.permute.xlu0 %4949
        %4953 = vrot.lane.b32.xlu0 %v4905, 64
        %v4954 = vpop.permute.xlu0 %4953
        %4957 = vrot.lane.b32.xlu0 %v4907, 80
        %v4958 = vpop.permute.xlu0 %4957
        %4961 = vrot.lane.b32.xlu0 %v4909, 96
        %v4962 = vpop.permute.xlu0 %4961
        %4965 = vrot.lane.b32.xlu0 %v4911, 112
        %v4966 = vpop.permute.xlu0 %4965
        %v4968 = vsel %vm967, %v4785, %v4914
        %v4969 = vsel %vm969, %v4968, %v4918
        %v4970 = vsel %vm971, %v4969, %v4922
        %v4971 = vsel %vm378, %v4970, %v4926
        %v4972 = vsel %vm974, %v4971, %v4930
        %v4973 = vsel %vm976, %v4972, %v4934
        %v4974 = vsel %vm978, %v4973, %v4938
        %v4975 = vsel %vm967, %v4897, %v4942
        %v4976 = vsel %vm969, %v4975, %v4946
        %v4977 = vsel %vm971, %v4976, %v4950
        %v4978 = vsel %vm378, %v4977, %v4954
        %v4979 = vsel %vm974, %v4978, %v4958
        %v4980 = vsel %vm976, %v4979, %v4962
        %v4981 = vsel %vm978, %v4980, %v4966
        %v4982 = vld [vmem:[#allocation4] sm:$0xff]
        %v4983 = vld [vmem:[#allocation4 + $0x8] sm:$0xff]
        %v4984 = vld [vmem:[%s5] sm:$0xff]
        %v4986 = vsel %vm990, %v4984, 0
        %4988 = vmatpush.msra.mxu0 0.0
        %4989 = vmatpush.msra.mxu0 0.0
        %4990 = vmatpush.msra.mxu0 0.0
        %4991 = vmatpush.msra.mxu0 0.0
        %4992 = vmatpush.msra.mxu0 0.0
        %4993 = vmatpush.msra.mxu0 0.0
        %4994 = vmatpush.msra.mxu0 0.0
        %4995 = vmatpush.msra.mxu0 0.0
        %4996 = vmatpush.msra.mxu0 0.0
        %4997 = vmatpush.msra.mxu0 0.0
        %4998 = vmatpush.msra.mxu0 0.0
        %4999 = vmatpush.msra.mxu0 0.0
        %5000 = vmatpush.msra.mxu0 0.0
        %5001 = vmatpush.msra.mxu0 0.0
        %5002 = vmatpush.msra.mxu0 0.0
        %5003 = vmatpush.msra.mxu0 %v4974
        %5004 = vmatmul.f32.gmra.mxu0 %v4986
        %v5005 = vpop.f32.mrf.mxu0
        %v5006 = vadd.f32 0.0, %v5005
        %5007 = vdwg.mxu0
        %5008 = vmatpush.msra.mxu0 0.0
        %5009 = vmatpush.msra.mxu0 0.0
        %5010 = vmatpush.msra.mxu0 0.0
        %5011 = vmatpush.msra.mxu0 0.0
        %5012 = vmatpush.msra.mxu0 0.0
        %5013 = vmatpush.msra.mxu0 0.0
        %5014 = vmatpush.msra.mxu0 0.0
        %5015 = vmatpush.msra.mxu0 0.0
        %5016 = vmatpush.msra.mxu0 0.0
        %5017 = vmatpush.msra.mxu0 0.0
        %5018 = vmatpush.msra.mxu0 0.0
        %5019 = vmatpush.msra.mxu0 0.0
        %5020 = vmatpush.msra.mxu0 0.0
        %5021 = vmatpush.msra.mxu0 0.0
        %5022 = vmatpush.msra.mxu0 0.0
        %5023 = vmatpush.msra.mxu0 %v4981
        %5024 = vmatmul.f32.gmra.mxu0 %v4986
        %v5025 = vpop.f32.mrf.mxu0
        %v5026 = vadd.f32 0.0, %v5025
        %5027 = vdwg.mxu0
        %v5028 = vadd.f32 %v4982, %v5006
        %v5029 = vadd.f32 %v4983, %v5026
        %5030 = vst [vmem:[#allocation4] sm:$0xff] %v5028
        %5031 = vst [vmem:[#allocation4 + $0x8] sm:$0xff] %v5029
        %v5032 = vld [vmem:[#allocation3] sm:$0xff]
        %v5033 = vld [vmem:[#allocation3 + $0x8] sm:$0xff]
        %v5034 = vld [vmem:[#allocation3 + $0x18] sm:$0xff]
        %v5035 = vld [vmem:[#allocation3 + $0x20] sm:$0xff]
        %v5036 = vld [vmem:[#allocation3 + $0x30] sm:$0xff]
        %v5037 = vld [vmem:[#allocation3 + $0x38] sm:$0xff]
        %v5038 = vld [vmem:[#allocation3 + $0x48] sm:$0xff]
        %v5039 = vld [vmem:[#allocation3 + $0x50] sm:$0xff]
        %v5040 = vld [vmem:[#allocation3 + $0x60] sm:$0xff]
        %v5041 = vld [vmem:[#allocation3 + $0x68] sm:$0xff]
        %v5042 = vld [vmem:[#allocation3 + $0x78] sm:$0xff]
        %v5043 = vld [vmem:[#allocation3 + $0x80] sm:$0xff]
        %v5044 = vld [vmem:[#allocation3 + $0x90] sm:$0xff]
        %v5045 = vld [vmem:[#allocation3 + $0x98] sm:$0xff]
        %v5046 = vld [vmem:[#allocation3 + $0xa8] sm:$0xff]
        %v5047 = vld [vmem:[#allocation3 + $0xb0] sm:$0xff]
        %5064 = vrot.lane.b32.xlu0 %v5032, 127
        %v5065 = vpop.permute.xlu0 %5064
        %5066 = vrot.lane.b32.xlu0 %v5033, 127
        %v5067 = vpop.permute.xlu0 %5066
        %5068 = vrot.lane.b32.xlu0 %v5034, 127
        %v5069 = vpop.permute.xlu0 %5068
        %5070 = vrot.lane.b32.xlu0 %v5035, 127
        %v5071 = vpop.permute.xlu0 %5070
        %5072 = vrot.lane.b32.xlu0 %v5036, 127
        %v5073 = vpop.permute.xlu0 %5072
        %5074 = vrot.lane.b32.xlu0 %v5037, 127
        %v5075 = vpop.permute.xlu0 %5074
        %5076 = vrot.lane.b32.xlu0 %v5038, 127
        %v5077 = vpop.permute.xlu0 %5076
        %5078 = vrot.lane.b32.xlu0 %v5039, 127
        %v5079 = vpop.permute.xlu0 %5078
        %5080 = vrot.lane.b32.xlu0 %v5040, 127
        %v5081 = vpop.permute.xlu0 %5080
        %5082 = vrot.lane.b32.xlu0 %v5041, 127
        %v5083 = vpop.permute.xlu0 %5082
        %5084 = vrot.lane.b32.xlu0 %v5042, 127
        %v5085 = vpop.permute.xlu0 %5084
        %5086 = vrot.lane.b32.xlu0 %v5043, 127
        %v5087 = vpop.permute.xlu0 %5086
        %5088 = vrot.lane.b32.xlu0 %v5044, 127
        %v5089 = vpop.permute.xlu0 %5088
        %5090 = vrot.lane.b32.xlu0 %v5045, 127
        %v5091 = vpop.permute.xlu0 %5090
        %5092 = vrot.lane.b32.xlu0 %v5046, 127
        %v5093 = vpop.permute.xlu0 %5092
        %5094 = vrot.lane.b32.xlu0 %v5047, 127
        %v5095 = vpop.permute.xlu0 %5094
        %v5112 = vrot.slane %v5073, 4
        %v5113 = vsel %vm467, %v5112, %v5065
        %v5114 = vrot.slane %v5065, 4
        %v5115 = vsel %vm467, %v5073, %v5114
        %v5117 = vunpack.c.l.s4 1983009808
        %v5118 = vunpack.c.0.s8 %v5117
        %v5119 = vperm.slane %v5113, %v5118
        %v5121 = vunpack.c.l.s4 1983009808
        %v5122 = vunpack.c.0.s8 %v5121
        %v5123 = vperm.slane %v5115, %v5122
        %v5124 = vrot.slane %v5077, 4
        %v5125 = vsel %vm467, %v5124, %v5069
        %v5126 = vrot.slane %v5069, 4
        %v5127 = vsel %vm467, %v5077, %v5126
        %v5129 = vunpack.c.l.s4 1983009808
        %v5130 = vunpack.c.0.s8 %v5129
        %v5131 = vperm.slane %v5125, %v5130
        %v5133 = vunpack.c.l.s4 1983009808
        %v5134 = vunpack.c.0.s8 %v5133
        %v5135 = vperm.slane %v5127, %v5134
        %v5136 = vrot.slane %v5089, 4
        %v5137 = vsel %vm467, %v5136, %v5081
        %v5138 = vrot.slane %v5081, 4
        %v5139 = vsel %vm467, %v5089, %v5138
        %v5141 = vunpack.c.l.s4 1983009808
        %v5142 = vunpack.c.0.s8 %v5141
        %v5143 = vperm.slane %v5137, %v5142
        %v5145 = vunpack.c.l.s4 1983009808
        %v5146 = vunpack.c.0.s8 %v5145
        %v5147 = vperm.slane %v5139, %v5146
        %v5148 = vrot.slane %v5093, 4
        %v5149 = vsel %vm467, %v5148, %v5085
        %v5150 = vrot.slane %v5085, 4
        %v5151 = vsel %vm467, %v5093, %v5150
        %v5153 = vunpack.c.l.s4 1983009808
        %v5154 = vunpack.c.0.s8 %v5153
        %v5155 = vperm.slane %v5149, %v5154
        %v5157 = vunpack.c.l.s4 1983009808
        %v5158 = vunpack.c.0.s8 %v5157
        %v5159 = vperm.slane %v5151, %v5158
        %v5160 = vrot.slane %v5131, 4
        %v5161 = vsel %vm467, %v5160, %v5119
        %v5162 = vrot.slane %v5119, 4
        %v5163 = vsel %vm467, %v5131, %v5162
        %v5165 = vunpack.c.l.s4 1934713408
        %v5166 = vunpack.c.0.s8 %v5165
        %v5167 = vperm.slane %v5161, %v5166
        %v5169 = vunpack.c.l.s4 1934713408
        %v5170 = vunpack.c.0.s8 %v5169
        %v5171 = vperm.slane %v5163, %v5170
        %v5172 = vrot.slane %v5135, 4
        %v5173 = vsel %vm467, %v5172, %v5123
        %v5174 = vrot.slane %v5123, 4
        %v5175 = vsel %vm467, %v5135, %v5174
        %v5177 = vunpack.c.l.s4 1934713408
        %v5178 = vunpack.c.0.s8 %v5177
        %v5179 = vperm.slane %v5173, %v5178
        %v5181 = vunpack.c.l.s4 1934713408
        %v5182 = vunpack.c.0.s8 %v5181
        %v5183 = vperm.slane %v5175, %v5182
        %v5184 = vrot.slane %v5155, 4
        %v5185 = vsel %vm467, %v5184, %v5143
        %v5186 = vrot.slane %v5143, 4
        %v5187 = vsel %vm467, %v5155, %v5186
        %v5189 = vunpack.c.l.s4 1934713408
        %v5190 = vunpack.c.0.s8 %v5189
        %v5191 = vperm.slane %v5185, %v5190
        %v5193 = vunpack.c.l.s4 1934713408
        %v5194 = vunpack.c.0.s8 %v5193
        %v5195 = vperm.slane %v5187, %v5194
        %v5196 = vrot.slane %v5159, 4
        %v5197 = vsel %vm467, %v5196, %v5147
        %v5198 = vrot.slane %v5147, 4
        %v5199 = vsel %vm467, %v5159, %v5198
        %v5201 = vunpack.c.l.s4 1934713408
        %v5202 = vunpack.c.0.s8 %v5201
        %v5203 = vperm.slane %v5197, %v5202
        %v5205 = vunpack.c.l.s4 1934713408
        %v5206 = vunpack.c.0.s8 %v5205
        %v5207 = vperm.slane %v5199, %v5206
        %v5208 = vrot.slane %v5191, 4
        %v5209 = vsel %vm467, %v5208, %v5167
        %v5210 = vrot.slane %v5167, 4
        %v5211 = vsel %vm467, %v5191, %v5210
        %v5212 = vrot.slane %v5195, 4
        %v5213 = vsel %vm467, %v5212, %v5171
        %v5214 = vrot.slane %v5171, 4
        %v5215 = vsel %vm467, %v5195, %v5214
        %v5216 = vrot.slane %v5203, 4
        %v5217 = vsel %vm467, %v5216, %v5179
        %v5218 = vrot.slane %v5179, 4
        %v5219 = vsel %vm467, %v5203, %v5218
        %v5220 = vrot.slane %v5207, 4
        %v5221 = vsel %vm467, %v5220, %v5183
        %v5222 = vrot.slane %v5183, 4
        %v5223 = vsel %vm467, %v5207, %v5222
        %v5224 = vrot.slane %v5075, 4
        %v5225 = vsel %vm467, %v5224, %v5067
        %v5226 = vrot.slane %v5067, 4
        %v5227 = vsel %vm467, %v5075, %v5226
        %v5229 = vunpack.c.l.s4 1983009808
        %v5230 = vunpack.c.0.s8 %v5229
        %v5231 = vperm.slane %v5225, %v5230
        %v5233 = vunpack.c.l.s4 1983009808
        %v5234 = vunpack.c.0.s8 %v5233
        %v5235 = vperm.slane %v5227, %v5234
        %v5236 = vrot.slane %v5079, 4
        %v5237 = vsel %vm467, %v5236, %v5071
        %v5238 = vrot.slane %v5071, 4
        %v5239 = vsel %vm467, %v5079, %v5238
        %v5241 = vunpack.c.l.s4 1983009808
        %v5242 = vunpack.c.0.s8 %v5241
        %v5243 = vperm.slane %v5237, %v5242
        %v5245 = vunpack.c.l.s4 1983009808
        %v5246 = vunpack.c.0.s8 %v5245
        %v5247 = vperm.slane %v5239, %v5246
        %v5248 = vrot.slane %v5091, 4
        %v5249 = vsel %vm467, %v5248, %v5083
        %v5250 = vrot.slane %v5083, 4
        %v5251 = vsel %vm467, %v5091, %v5250
        %v5253 = vunpack.c.l.s4 1983009808
        %v5254 = vunpack.c.0.s8 %v5253
        %v5255 = vperm.slane %v5249, %v5254
        %v5257 = vunpack.c.l.s4 1983009808
        %v5258 = vunpack.c.0.s8 %v5257
        %v5259 = vperm.slane %v5251, %v5258
        %v5260 = vrot.slane %v5095, 4
        %v5261 = vsel %vm467, %v5260, %v5087
        %v5262 = vrot.slane %v5087, 4
        %v5263 = vsel %vm467, %v5095, %v5262
        %v5265 = vunpack.c.l.s4 1983009808
        %v5266 = vunpack.c.0.s8 %v5265
        %v5267 = vperm.slane %v5261, %v5266
        %v5269 = vunpack.c.l.s4 1983009808
        %v5270 = vunpack.c.0.s8 %v5269
        %v5271 = vperm.slane %v5263, %v5270
        %v5272 = vrot.slane %v5243, 4
        %v5273 = vsel %vm467, %v5272, %v5231
        %v5274 = vrot.slane %v5231, 4
        %v5275 = vsel %vm467, %v5243, %v5274
        %v5277 = vunpack.c.l.s4 1934713408
        %v5278 = vunpack.c.0.s8 %v5277
        %v5279 = vperm.slane %v5273, %v5278
        %v5281 = vunpack.c.l.s4 1934713408
        %v5282 = vunpack.c.0.s8 %v5281
        %v5283 = vperm.slane %v5275, %v5282
        %v5284 = vrot.slane %v5247, 4
        %v5285 = vsel %vm467, %v5284, %v5235
        %v5286 = vrot.slane %v5235, 4
        %v5287 = vsel %vm467, %v5247, %v5286
        %v5289 = vunpack.c.l.s4 1934713408
        %v5290 = vunpack.c.0.s8 %v5289
        %v5291 = vperm.slane %v5285, %v5290
        %v5293 = vunpack.c.l.s4 1934713408
        %v5294 = vunpack.c.0.s8 %v5293
        %v5295 = vperm.slane %v5287, %v5294
        %v5296 = vrot.slane %v5267, 4
        %v5297 = vsel %vm467, %v5296, %v5255
        %v5298 = vrot.slane %v5255, 4
        %v5299 = vsel %vm467, %v5267, %v5298
        %v5301 = vunpack.c.l.s4 1934713408
        %v5302 = vunpack.c.0.s8 %v5301
        %v5303 = vperm.slane %v5297, %v5302
        %v5305 = vunpack.c.l.s4 1934713408
        %v5306 = vunpack.c.0.s8 %v5305
        %v5307 = vperm.slane %v5299, %v5306
        %v5308 = vrot.slane %v5271, 4
        %v5309 = vsel %vm467, %v5308, %v5259
        %v5310 = vrot.slane %v5259, 4
        %v5311 = vsel %vm467, %v5271, %v5310
        %v5313 = vunpack.c.l.s4 1934713408
        %v5314 = vunpack.c.0.s8 %v5313
        %v5315 = vperm.slane %v5309, %v5314
        %v5317 = vunpack.c.l.s4 1934713408
        %v5318 = vunpack.c.0.s8 %v5317
        %v5319 = vperm.slane %v5311, %v5318
        %v5320 = vrot.slane %v5303, 4
        %v5321 = vsel %vm467, %v5320, %v5279
        %v5322 = vrot.slane %v5279, 4
        %v5323 = vsel %vm467, %v5303, %v5322
        %v5324 = vrot.slane %v5307, 4
        %v5325 = vsel %vm467, %v5324, %v5283
        %v5326 = vrot.slane %v5283, 4
        %v5327 = vsel %vm467, %v5307, %v5326
        %v5328 = vrot.slane %v5315, 4
        %v5329 = vsel %vm467, %v5328, %v5291
        %v5330 = vrot.slane %v5291, 4
        %v5331 = vsel %vm467, %v5315, %v5330
        %v5332 = vrot.slane %v5319, 4
        %v5333 = vsel %vm467, %v5332, %v5295
        %v5334 = vrot.slane %v5295, 4
        %v5335 = vsel %vm467, %v5319, %v5334
        %5337 = vrot.lane.b32.xlu0 %v5211, 16
        %v5338 = vpop.permute.xlu0 %5337
        %5341 = vrot.lane.b32.xlu0 %v5213, 32
        %v5342 = vpop.permute.xlu0 %5341
        %5345 = vrot.lane.b32.xlu0 %v5215, 48
        %v5346 = vpop.permute.xlu0 %5345
        %5349 = vrot.lane.b32.xlu0 %v5217, 64
        %v5350 = vpop.permute.xlu0 %5349
        %5353 = vrot.lane.b32.xlu0 %v5219, 80
        %v5354 = vpop.permute.xlu0 %5353
        %5357 = vrot.lane.b32.xlu0 %v5221, 96
        %v5358 = vpop.permute.xlu0 %5357
        %5361 = vrot.lane.b32.xlu0 %v5223, 112
        %v5362 = vpop.permute.xlu0 %5361
        %5365 = vrot.lane.b32.xlu0 %v5323, 16
        %v5366 = vpop.permute.xlu0 %5365
        %5369 = vrot.lane.b32.xlu0 %v5325, 32
        %v5370 = vpop.permute.xlu0 %5369
        %5373 = vrot.lane.b32.xlu0 %v5327, 48
        %v5374 = vpop.permute.xlu0 %5373
        %5377 = vrot.lane.b32.xlu0 %v5329, 64
        %v5378 = vpop.permute.xlu0 %5377
        %5381 = vrot.lane.b32.xlu0 %v5331, 80
        %v5382 = vpop.permute.xlu0 %5381
        %5385 = vrot.lane.b32.xlu0 %v5333, 96
        %v5386 = vpop.permute.xlu0 %5385
        %5389 = vrot.lane.b32.xlu0 %v5335, 112
        %v5390 = vpop.permute.xlu0 %5389
        %v5392 = vsel %vm967, %v5209, %v5338
        %v5393 = vsel %vm969, %v5392, %v5342
        %v5394 = vsel %vm971, %v5393, %v5346
        %v5395 = vsel %vm378, %v5394, %v5350
        %v5396 = vsel %vm974, %v5395, %v5354
        %v5397 = vsel %vm976, %v5396, %v5358
        %v5398 = vsel %vm978, %v5397, %v5362
        %v5399 = vsel %vm967, %v5321, %v5366
        %v5400 = vsel %vm969, %v5399, %v5370
        %v5401 = vsel %vm971, %v5400, %v5374
        %v5402 = vsel %vm378, %v5401, %v5378
        %v5403 = vsel %vm974, %v5402, %v5382
        %v5404 = vsel %vm976, %v5403, %v5386
        %v5405 = vsel %vm978, %v5404, %v5390
        %v5406 = vld [vmem:[#allocation4] sm:$0xff]
        %v5407 = vld [vmem:[#allocation4 + $0x8] sm:$0xff]
        %s5408 = scalar_lea.vmem %s5, 8
        %v5409 = vld [vmem:[%s5408] sm:$0xff]
        %v5411 = vsel %vm990, %v5409, 0
        %5413 = vmatpush.msra.mxu0 0.0
        %5414 = vmatpush.msra.mxu0 0.0
        %5415 = vmatpush.msra.mxu0 0.0
        %5416 = vmatpush.msra.mxu0 0.0
        %5417 = vmatpush.msra.mxu0 0.0
        %5418 = vmatpush.msra.mxu0 0.0
        %5419 = vmatpush.msra.mxu0 0.0
        %5420 = vmatpush.msra.mxu0 0.0
        %5421 = vmatpush.msra.mxu0 0.0
        %5422 = vmatpush.msra.mxu0 0.0
        %5423 = vmatpush.msra.mxu0 0.0
        %5424 = vmatpush.msra.mxu0 0.0
        %5425 = vmatpush.msra.mxu0 0.0
        %5426 = vmatpush.msra.mxu0 0.0
        %5427 = vmatpush.msra.mxu0 0.0
        %5428 = vmatpush.msra.mxu0 %v5398
        %5429 = vmatmul.f32.gmra.mxu0 %v5411
        %v5430 = vpop.f32.mrf.mxu0
        %v5431 = vadd.f32 0.0, %v5430
        %5432 = vdwg.mxu0
        %5433 = vmatpush.msra.mxu0 0.0
        %5434 = vmatpush.msra.mxu0 0.0
        %5435 = vmatpush.msra.mxu0 0.0
        %5436 = vmatpush.msra.mxu0 0.0
        %5437 = vmatpush.msra.mxu0 0.0
        %5438 = vmatpush.msra.mxu0 0.0
        %5439 = vmatpush.msra.mxu0 0.0
        %5440 = vmatpush.msra.mxu0 0.0
        %5441 = vmatpush.msra.mxu0 0.0
        %5442 = vmatpush.msra.mxu0 0.0
        %5443 = vmatpush.msra.mxu0 0.0
        %5444 = vmatpush.msra.mxu0 0.0
        %5445 = vmatpush.msra.mxu0 0.0
        %5446 = vmatpush.msra.mxu0 0.0
        %5447 = vmatpush.msra.mxu0 0.0
        %5448 = vmatpush.msra.mxu0 %v5405
        %5449 = vmatmul.f32.gmra.mxu0 %v5411
        %v5450 = vpop.f32.mrf.mxu0
        %v5451 = vadd.f32 0.0, %v5450
        %5452 = vdwg.mxu0
        %v5453 = vadd.f32 %v5406, %v5431
        %v5454 = vadd.f32 %v5407, %v5451
        %5455 = vst [vmem:[#allocation4] sm:$0xff] %v5453
        %5456 = vst [vmem:[#allocation4 + $0x8] sm:$0xff] %v5454
        %v5457 = vld [vmem:[#allocation3] sm:$0xff]
        %v5458 = vld [vmem:[#allocation3 + $0x8] sm:$0xff]
        %v5459 = vld [vmem:[#allocation3 + $0x18] sm:$0xff]
        %v5460 = vld [vmem:[#allocation3 + $0x20] sm:$0xff]
        %v5461 = vld [vmem:[#allocation3 + $0x30] sm:$0xff]
        %v5462 = vld [vmem:[#allocation3 + $0x38] sm:$0xff]
        %v5463 = vld [vmem:[#allocation3 + $0x48] sm:$0xff]
        %v5464 = vld [vmem:[#allocation3 + $0x50] sm:$0xff]
        %v5465 = vld [vmem:[#allocation3 + $0x60] sm:$0xff]
        %v5466 = vld [vmem:[#allocation3 + $0x68] sm:$0xff]
        %v5467 = vld [vmem:[#allocation3 + $0x78] sm:$0xff]
        %v5468 = vld [vmem:[#allocation3 + $0x80] sm:$0xff]
        %v5469 = vld [vmem:[#allocation3 + $0x90] sm:$0xff]
        %v5470 = vld [vmem:[#allocation3 + $0x98] sm:$0xff]
        %v5471 = vld [vmem:[#allocation3 + $0xa8] sm:$0xff]
        %v5472 = vld [vmem:[#allocation3 + $0xb0] sm:$0xff]
        %5489 = vrot.lane.b32.xlu0 %v5457, 126
        %v5490 = vpop.permute.xlu0 %5489
        %5491 = vrot.lane.b32.xlu0 %v5458, 126
        %v5492 = vpop.permute.xlu0 %5491
        %5493 = vrot.lane.b32.xlu0 %v5459, 126
        %v5494 = vpop.permute.xlu0 %5493
        %5495 = vrot.lane.b32.xlu0 %v5460, 126
        %v5496 = vpop.permute.xlu0 %5495
        %5497 = vrot.lane.b32.xlu0 %v5461, 126
        %v5498 = vpop.permute.xlu0 %5497
        %5499 = vrot.lane.b32.xlu0 %v5462, 126
        %v5500 = vpop.permute.xlu0 %5499
        %5501 = vrot.lane.b32.xlu0 %v5463, 126
        %v5502 = vpop.permute.xlu0 %5501
        %5503 = vrot.lane.b32.xlu0 %v5464, 126
        %v5504 = vpop.permute.xlu0 %5503
        %5505 = vrot.lane.b32.xlu0 %v5465, 126
        %v5506 = vpop.permute.xlu0 %5505
        %5507 = vrot.lane.b32.xlu0 %v5466, 126
        %v5508 = vpop.permute.xlu0 %5507
        %5509 = vrot.lane.b32.xlu0 %v5467, 126
        %v5510 = vpop.permute.xlu0 %5509
        %5511 = vrot.lane.b32.xlu0 %v5468, 126
        %v5512 = vpop.permute.xlu0 %5511
        %5513 = vrot.lane.b32.xlu0 %v5469, 126
        %v5514 = vpop.permute.xlu0 %5513
        %5515 = vrot.lane.b32.xlu0 %v5470, 126
        %v5516 = vpop.permute.xlu0 %5515
        %5517 = vrot.lane.b32.xlu0 %v5471, 126
        %v5518 = vpop.permute.xlu0 %5517
        %5519 = vrot.lane.b32.xlu0 %v5472, 126
        %v5520 = vpop.permute.xlu0 %5519
        %v5537 = vrot.slane %v5498, 4
        %v5538 = vsel %vm467, %v5537, %v5490
        %v5539 = vrot.slane %v5490, 4
        %v5540 = vsel %vm467, %v5498, %v5539
        %v5542 = vunpack.c.l.s4 1983009808
        %v5543 = vunpack.c.0.s8 %v5542
        %v5544 = vperm.slane %v5538, %v5543
        %v5546 = vunpack.c.l.s4 1983009808
        %v5547 = vunpack.c.0.s8 %v5546
        %v5548 = vperm.slane %v5540, %v5547
        %v5549 = vrot.slane %v5502, 4
        %v5550 = vsel %vm467, %v5549, %v5494
        %v5551 = vrot.slane %v5494, 4
        %v5552 = vsel %vm467, %v5502, %v5551
        %v5554 = vunpack.c.l.s4 1983009808
        %v5555 = vunpack.c.0.s8 %v5554
        %v5556 = vperm.slane %v5550, %v5555
        %v5558 = vunpack.c.l.s4 1983009808
        %v5559 = vunpack.c.0.s8 %v5558
        %v5560 = vperm.slane %v5552, %v5559
        %v5561 = vrot.slane %v5514, 4
        %v5562 = vsel %vm467, %v5561, %v5506
        %v5563 = vrot.slane %v5506, 4
        %v5564 = vsel %vm467, %v5514, %v5563
        %v5566 = vunpack.c.l.s4 1983009808
        %v5567 = vunpack.c.0.s8 %v5566
        %v5568 = vperm.slane %v5562, %v5567
        %v5570 = vunpack.c.l.s4 1983009808
        %v5571 = vunpack.c.0.s8 %v5570
        %v5572 = vperm.slane %v5564, %v5571
        %v5573 = vrot.slane %v5518, 4
        %v5574 = vsel %vm467, %v5573, %v5510
        %v5575 = vrot.slane %v5510, 4
        %v5576 = vsel %vm467, %v5518, %v5575
        %v5578 = vunpack.c.l.s4 1983009808
        %v5579 = vunpack.c.0.s8 %v5578
        %v5580 = vperm.slane %v5574, %v5579
        %v5582 = vunpack.c.l.s4 1983009808
        %v5583 = vunpack.c.0.s8 %v5582
        %v5584 = vperm.slane %v5576, %v5583
        %v5585 = vrot.slane %v5556, 4
        %v5586 = vsel %vm467, %v5585, %v5544
        %v5587 = vrot.slane %v5544, 4
        %v5588 = vsel %vm467, %v5556, %v5587
        %v5590 = vunpack.c.l.s4 1934713408
        %v5591 = vunpack.c.0.s8 %v5590
        %v5592 = vperm.slane %v5586, %v5591
        %v5594 = vunpack.c.l.s4 1934713408
        %v5595 = vunpack.c.0.s8 %v5594
        %v5596 = vperm.slane %v5588, %v5595
        %v5597 = vrot.slane %v5560, 4
        %v5598 = vsel %vm467, %v5597, %v5548
        %v5599 = vrot.slane %v5548, 4
        %v5600 = vsel %vm467, %v5560, %v5599
        %v5602 = vunpack.c.l.s4 1934713408
        %v5603 = vunpack.c.0.s8 %v5602
        %v5604 = vperm.slane %v5598, %v5603
        %v5606 = vunpack.c.l.s4 1934713408
        %v5607 = vunpack.c.0.s8 %v5606
        %v5608 = vperm.slane %v5600, %v5607
        %v5609 = vrot.slane %v5580, 4
        %v5610 = vsel %vm467, %v5609, %v5568
        %v5611 = vrot.slane %v5568, 4
        %v5612 = vsel %vm467, %v5580, %v5611
        %v5614 = vunpack.c.l.s4 1934713408
        %v5615 = vunpack.c.0.s8 %v5614
        %v5616 = vperm.slane %v5610, %v5615
        %v5618 = vunpack.c.l.s4 1934713408
        %v5619 = vunpack.c.0.s8 %v5618
        %v5620 = vperm.slane %v5612, %v5619
        %v5621 = vrot.slane %v5584, 4
        %v5622 = vsel %vm467, %v5621, %v5572
        %v5623 = vrot.slane %v5572, 4
        %v5624 = vsel %vm467, %v5584, %v5623
        %v5626 = vunpack.c.l.s4 1934713408
        %v5627 = vunpack.c.0.s8 %v5626
        %v5628 = vperm.slane %v5622, %v5627
        %v5630 = vunpack.c.l.s4 1934713408
        %v5631 = vunpack.c.0.s8 %v5630
        %v5632 = vperm.slane %v5624, %v5631
        %v5633 = vrot.slane %v5616, 4
        %v5634 = vsel %vm467, %v5633, %v5592
        %v5635 = vrot.slane %v5592, 4
        %v5636 = vsel %vm467, %v5616, %v5635
        %v5637 = vrot.slane %v5620, 4
        %v5638 = vsel %vm467, %v5637, %v5596
        %v5639 = vrot.slane %v5596, 4
        %v5640 = vsel %vm467, %v5620, %v5639
        %v5641 = vrot.slane %v5628, 4
        %v5642 = vsel %vm467, %v5641, %v5604
        %v5643 = vrot.slane %v5604, 4
        %v5644 = vsel %vm467, %v5628, %v5643
        %v5645 = vrot.slane %v5632, 4
        %v5646 = vsel %vm467, %v5645, %v5608
        %v5647 = vrot.slane %v5608, 4
        %v5648 = vsel %vm467, %v5632, %v5647
        %v5649 = vrot.slane %v5500, 4
        %v5650 = vsel %vm467, %v5649, %v5492
        %v5651 = vrot.slane %v5492, 4
        %v5652 = vsel %vm467, %v5500, %v5651
        %v5654 = vunpack.c.l.s4 1983009808
        %v5655 = vunpack.c.0.s8 %v5654
        %v5656 = vperm.slane %v5650, %v5655
        %v5658 = vunpack.c.l.s4 1983009808
        %v5659 = vunpack.c.0.s8 %v5658
        %v5660 = vperm.slane %v5652, %v5659
        %v5661 = vrot.slane %v5504, 4
        %v5662 = vsel %vm467, %v5661, %v5496
        %v5663 = vrot.slane %v5496, 4
        %v5664 = vsel %vm467, %v5504, %v5663
        %v5666 = vunpack.c.l.s4 1983009808
        %v5667 = vunpack.c.0.s8 %v5666
        %v5668 = vperm.slane %v5662, %v5667
        %v5670 = vunpack.c.l.s4 1983009808
        %v5671 = vunpack.c.0.s8 %v5670
        %v5672 = vperm.slane %v5664, %v5671
        %v5673 = vrot.slane %v5516, 4
        %v5674 = vsel %vm467, %v5673, %v5508
        %v5675 = vrot.slane %v5508, 4
        %v5676 = vsel %vm467, %v5516, %v5675
        %v5678 = vunpack.c.l.s4 1983009808
        %v5679 = vunpack.c.0.s8 %v5678
        %v5680 = vperm.slane %v5674, %v5679
        %v5682 = vunpack.c.l.s4 1983009808
        %v5683 = vunpack.c.0.s8 %v5682
        %v5684 = vperm.slane %v5676, %v5683
        %v5685 = vrot.slane %v5520, 4
        %v5686 = vsel %vm467, %v5685, %v5512
        %v5687 = vrot.slane %v5512, 4
        %v5688 = vsel %vm467, %v5520, %v5687
        %v5690 = vunpack.c.l.s4 1983009808
        %v5691 = vunpack.c.0.s8 %v5690
        %v5692 = vperm.slane %v5686, %v5691
        %v5694 = vunpack.c.l.s4 1983009808
        %v5695 = vunpack.c.0.s8 %v5694
        %v5696 = vperm.slane %v5688, %v5695
        %v5697 = vrot.slane %v5668, 4
        %v5698 = vsel %vm467, %v5697, %v5656
        %v5699 = vrot.slane %v5656, 4
        %v5700 = vsel %vm467, %v5668, %v5699
        %v5702 = vunpack.c.l.s4 1934713408
        %v5703 = vunpack.c.0.s8 %v5702
        %v5704 = vperm.slane %v5698, %v5703
        %v5706 = vunpack.c.l.s4 1934713408
        %v5707 = vunpack.c.0.s8 %v5706
        %v5708 = vperm.slane %v5700, %v5707
        %v5709 = vrot.slane %v5672, 4
        %v5710 = vsel %vm467, %v5709, %v5660
        %v5711 = vrot.slane %v5660, 4
        %v5712 = vsel %vm467, %v5672, %v5711
        %v5714 = vunpack.c.l.s4 1934713408
        %v5715 = vunpack.c.0.s8 %v5714
        %v5716 = vperm.slane %v5710, %v5715
        %v5718 = vunpack.c.l.s4 1934713408
        %v5719 = vunpack.c.0.s8 %v5718
        %v5720 = vperm.slane %v5712, %v5719
        %v5721 = vrot.slane %v5692, 4
        %v5722 = vsel %vm467, %v5721, %v5680
        %v5723 = vrot.slane %v5680, 4
        %v5724 = vsel %vm467, %v5692, %v5723
        %v5726 = vunpack.c.l.s4 1934713408
        %v5727 = vunpack.c.0.s8 %v5726
        %v5728 = vperm.slane %v5722, %v5727
        %v5730 = vunpack.c.l.s4 1934713408
        %v5731 = vunpack.c.0.s8 %v5730
        %v5732 = vperm.slane %v5724, %v5731
        %v5733 = vrot.slane %v5696, 4
        %v5734 = vsel %vm467, %v5733, %v5684
        %v5735 = vrot.slane %v5684, 4
        %v5736 = vsel %vm467, %v5696, %v5735
        %v5738 = vunpack.c.l.s4 1934713408
        %v5739 = vunpack.c.0.s8 %v5738
        %v5740 = vperm.slane %v5734, %v5739
        %v5742 = vunpack.c.l.s4 1934713408
        %v5743 = vunpack.c.0.s8 %v5742
        %v5744 = vperm.slane %v5736, %v5743
        %v5745 = vrot.slane %v5728, 4
        %v5746 = vsel %vm467, %v5745, %v5704
        %v5747 = vrot.slane %v5704, 4
        %v5748 = vsel %vm467, %v5728, %v5747
        %v5749 = vrot.slane %v5732, 4
        %v5750 = vsel %vm467, %v5749, %v5708
        %v5751 = vrot.slane %v5708, 4
        %v5752 = vsel %vm467, %v5732, %v5751
        %v5753 = vrot.slane %v5740, 4
        %v5754 = vsel %vm467, %v5753, %v5716
        %v5755 = vrot.slane %v5716, 4
        %v5756 = vsel %vm467, %v5740, %v5755
        %v5757 = vrot.slane %v5744, 4
        %v5758 = vsel %vm467, %v5757, %v5720
        %v5759 = vrot.slane %v5720, 4
        %v5760 = vsel %vm467, %v5744, %v5759
        %5762 = vrot.lane.b32.xlu0 %v5636, 16
        %v5763 = vpop.permute.xlu0 %5762
        %5766 = vrot.lane.b32.xlu0 %v5638, 32
        %v5767 = vpop.permute.xlu0 %5766
        %5770 = vrot.lane.b32.xlu0 %v5640, 48
        %v5771 = vpop.permute.xlu0 %5770
        %5774 = vrot.lane.b32.xlu0 %v5642, 64
        %v5775 = vpop.permute.xlu0 %5774
        %5778 = vrot.lane.b32.xlu0 %v5644, 80
        %v5779 = vpop.permute.xlu0 %5778
        %5782 = vrot.lane.b32.xlu0 %v5646, 96
        %v5783 = vpop.permute.xlu0 %5782
        %5786 = vrot.lane.b32.xlu0 %v5648, 112
        %v5787 = vpop.permute.xlu0 %5786
        %5790 = vrot.lane.b32.xlu0 %v5748, 16
        %v5791 = vpop.permute.xlu0 %5790
        %5794 = vrot.lane.b32.xlu0 %v5750, 32
        %v5795 = vpop.permute.xlu0 %5794
        %5798 = vrot.lane.b32.xlu0 %v5752, 48
        %v5799 = vpop.permute.xlu0 %5798
        %5802 = vrot.lane.b32.xlu0 %v5754, 64
        %v5803 = vpop.permute.xlu0 %5802
        %5806 = vrot.lane.b32.xlu0 %v5756, 80
        %v5807 = vpop.permute.xlu0 %5806
        %5810 = vrot.lane.b32.xlu0 %v5758, 96
        %v5811 = vpop.permute.xlu0 %5810
        %5814 = vrot.lane.b32.xlu0 %v5760, 112
        %v5815 = vpop.permute.xlu0 %5814
        %v5817 = vsel %vm967, %v5634, %v5763
        %v5818 = vsel %vm969, %v5817, %v5767
        %v5819 = vsel %vm971, %v5818, %v5771
        %v5820 = vsel %vm378, %v5819, %v5775
        %v5821 = vsel %vm974, %v5820, %v5779
        %v5822 = vsel %vm976, %v5821, %v5783
        %v5823 = vsel %vm978, %v5822, %v5787
        %v5824 = vsel %vm967, %v5746, %v5791
        %v5825 = vsel %vm969, %v5824, %v5795
        %v5826 = vsel %vm971, %v5825, %v5799
        %v5827 = vsel %vm378, %v5826, %v5803
        %v5828 = vsel %vm974, %v5827, %v5807
        %v5829 = vsel %vm976, %v5828, %v5811
        %v5830 = vsel %vm978, %v5829, %v5815
        %v5831 = vld [vmem:[#allocation4] sm:$0xff]
        %v5832 = vld [vmem:[#allocation4 + $0x8] sm:$0xff]
        %s5833 = scalar_lea.vmem %s5, 16
        %v5834 = vld [vmem:[%s5833] sm:$0xff]
        %v5836 = vsel %vm990, %v5834, 0
        %5838 = vmatpush.msra.mxu0 0.0
        %5839 = vmatpush.msra.mxu0 0.0
        %5840 = vmatpush.msra.mxu0 0.0
        %5841 = vmatpush.msra.mxu0 0.0
        %5842 = vmatpush.msra.mxu0 0.0
        %5843 = vmatpush.msra.mxu0 0.0
        %5844 = vmatpush.msra.mxu0 0.0
        %5845 = vmatpush.msra.mxu0 0.0
        %5846 = vmatpush.msra.mxu0 0.0
        %5847 = vmatpush.msra.mxu0 0.0
        %5848 = vmatpush.msra.mxu0 0.0
        %5849 = vmatpush.msra.mxu0 0.0
        %5850 = vmatpush.msra.mxu0 0.0
        %5851 = vmatpush.msra.mxu0 0.0
        %5852 = vmatpush.msra.mxu0 0.0
        %5853 = vmatpush.msra.mxu0 %v5823
        %5854 = vmatmul.f32.gmra.mxu0 %v5836
        %v5855 = vpop.f32.mrf.mxu0
        %v5856 = vadd.f32 0.0, %v5855
        %5857 = vdwg.mxu0
        %5858 = vmatpush.msra.mxu0 0.0
        %5859 = vmatpush.msra.mxu0 0.0
        %5860 = vmatpush.msra.mxu0 0.0
        %5861 = vmatpush.msra.mxu0 0.0
        %5862 = vmatpush.msra.mxu0 0.0
        %5863 = vmatpush.msra.mxu0 0.0
        %5864 = vmatpush.msra.mxu0 0.0
        %5865 = vmatpush.msra.mxu0 0.0
        %5866 = vmatpush.msra.mxu0 0.0
        %5867 = vmatpush.msra.mxu0 0.0
        %5868 = vmatpush.msra.mxu0 0.0
        %5869 = vmatpush.msra.mxu0 0.0
        %5870 = vmatpush.msra.mxu0 0.0
        %5871 = vmatpush.msra.mxu0 0.0
        %5872 = vmatpush.msra.mxu0 0.0
        %5873 = vmatpush.msra.mxu0 %v5830
        %5874 = vmatmul.f32.gmra.mxu0 %v5836
        %v5875 = vpop.f32.mrf.mxu0
        %v5876 = vadd.f32 0.0, %v5875
        %5877 = vdwg.mxu0
        %v5878 = vadd.f32 %v5831, %v5856
        %v5879 = vadd.f32 %v5832, %v5876
        %5880 = vst [vmem:[#allocation4] sm:$0xff] %v5878
        %5881 = vst [vmem:[#allocation4 + $0x8] sm:$0xff] %v5879
        %v5882 = vld [vmem:[#allocation3 + $0x1] sm:$0xff]
        %v5883 = vld [vmem:[#allocation3 + $0x9] sm:$0xff]
        %v5884 = vld [vmem:[#allocation3 + $0x19] sm:$0xff]
        %v5885 = vld [vmem:[#allocation3 + $0x21] sm:$0xff]
        %v5886 = vld [vmem:[#allocation3 + $0x31] sm:$0xff]
        %v5887 = vld [vmem:[#allocation3 + $0x39] sm:$0xff]
        %v5888 = vld [vmem:[#allocation3 + $0x49] sm:$0xff]
        %v5889 = vld [vmem:[#allocation3 + $0x51] sm:$0xff]
        %v5890 = vld [vmem:[#allocation3 + $0x61] sm:$0xff]
        %v5891 = vld [vmem:[#allocation3 + $0x69] sm:$0xff]
        %v5892 = vld [vmem:[#allocation3 + $0x79] sm:$0xff]
        %v5893 = vld [vmem:[#allocation3 + $0x81] sm:$0xff]
        %v5894 = vld [vmem:[#allocation3 + $0x91] sm:$0xff]
        %v5895 = vld [vmem:[#allocation3 + $0x99] sm:$0xff]
        %v5896 = vld [vmem:[#allocation3 + $0xa9] sm:$0xff]
        %v5897 = vld [vmem:[#allocation3 + $0xb1] sm:$0xff]
        %v5898 = vrot.slane %v5886, 4
        %v5899 = vsel %vm467, %v5898, %v5882
        %v5900 = vrot.slane %v5882, 4
        %v5901 = vsel %vm467, %v5886, %v5900
        %v5903 = vunpack.c.l.s4 1983009808
        %v5904 = vunpack.c.0.s8 %v5903
        %v5905 = vperm.slane %v5899, %v5904
        %v5907 = vunpack.c.l.s4 1983009808
        %v5908 = vunpack.c.0.s8 %v5907
        %v5909 = vperm.slane %v5901, %v5908
        %v5910 = vrot.slane %v5888, 4
        %v5911 = vsel %vm467, %v5910, %v5884
        %v5912 = vrot.slane %v5884, 4
        %v5913 = vsel %vm467, %v5888, %v5912
        %v5915 = vunpack.c.l.s4 1983009808
        %v5916 = vunpack.c.0.s8 %v5915
        %v5917 = vperm.slane %v5911, %v5916
        %v5919 = vunpack.c.l.s4 1983009808
        %v5920 = vunpack.c.0.s8 %v5919
        %v5921 = vperm.slane %v5913, %v5920
        %v5922 = vrot.slane %v5894, 4
        %v5923 = vsel %vm467, %v5922, %v5890
        %v5924 = vrot.slane %v5890, 4
        %v5925 = vsel %vm467, %v5894, %v5924
        %v5927 = vunpack.c.l.s4 1983009808
        %v5928 = vunpack.c.0.s8 %v5927
        %v5929 = vperm.slane %v5923, %v5928
        %v5931 = vunpack.c.l.s4 1983009808
        %v5932 = vunpack.c.0.s8 %v5931
        %v5933 = vperm.slane %v5925, %v5932
        %v5934 = vrot.slane %v5896, 4
        %v5935 = vsel %vm467, %v5934, %v5892
        %v5936 = vrot.slane %v5892, 4
        %v5937 = vsel %vm467, %v5896, %v5936
        %v5939 = vunpack.c.l.s4 1983009808
        %v5940 = vunpack.c.0.s8 %v5939
        %v5941 = vperm.slane %v5935, %v5940
        %v5943 = vunpack.c.l.s4 1983009808
        %v5944 = vunpack.c.0.s8 %v5943
        %v5945 = vperm.slane %v5937, %v5944
        %v5946 = vrot.slane %v5917, 4
        %v5947 = vsel %vm467, %v5946, %v5905
        %v5948 = vrot.slane %v5905, 4
        %v5949 = vsel %vm467, %v5917, %v5948
        %v5951 = vunpack.c.l.s4 1934713408
        %v5952 = vunpack.c.0.s8 %v5951
        %v5953 = vperm.slane %v5947, %v5952
        %v5955 = vunpack.c.l.s4 1934713408
        %v5956 = vunpack.c.0.s8 %v5955
        %v5957 = vperm.slane %v5949, %v5956
        %v5958 = vrot.slane %v5921, 4
        %v5959 = vsel %vm467, %v5958, %v5909
        %v5960 = vrot.slane %v5909, 4
        %v5961 = vsel %vm467, %v5921, %v5960
        %v5963 = vunpack.c.l.s4 1934713408
        %v5964 = vunpack.c.0.s8 %v5963
        %v5965 = vperm.slane %v5959, %v5964
        %v5967 = vunpack.c.l.s4 1934713408
        %v5968 = vunpack.c.0.s8 %v5967
        %v5969 = vperm.slane %v5961, %v5968
        %v5970 = vrot.slane %v5941, 4
        %v5971 = vsel %vm467, %v5970, %v5929
        %v5972 = vrot.slane %v5929, 4
        %v5973 = vsel %vm467, %v5941, %v5972
        %v5975 = vunpack.c.l.s4 1934713408
        %v5976 = vunpack.c.0.s8 %v5975
        %v5977 = vperm.slane %v5971, %v5976
        %v5979 = vunpack.c.l.s4 1934713408
        %v5980 = vunpack.c.0.s8 %v5979
        %v5981 = vperm.slane %v5973, %v5980
        %v5982 = vrot.slane %v5945, 4
        %v5983 = vsel %vm467, %v5982, %v5933
        %v5984 = vrot.slane %v5933, 4
        %v5985 = vsel %vm467, %v5945, %v5984
        %v5987 = vunpack.c.l.s4 1934713408
        %v5988 = vunpack.c.0.s8 %v5987
        %v5989 = vperm.slane %v5983, %v5988
        %v5991 = vunpack.c.l.s4 1934713408
        %v5992 = vunpack.c.0.s8 %v5991
        %v5993 = vperm.slane %v5985, %v5992
        %v5994 = vrot.slane %v5977, 4
        %v5995 = vsel %vm467, %v5994, %v5953
        %v5996 = vrot.slane %v5953, 4
        %v5997 = vsel %vm467, %v5977, %v5996
        %v5998 = vrot.slane %v5981, 4
        %v5999 = vsel %vm467, %v5998, %v5957
        %v6000 = vrot.slane %v5957, 4
        %v6001 = vsel %vm467, %v5981, %v6000
        %v6002 = vrot.slane %v5989, 4
        %v6003 = vsel %vm467, %v6002, %v5965
        %v6004 = vrot.slane %v5965, 4
        %v6005 = vsel %vm467, %v5989, %v6004
        %v6006 = vrot.slane %v5993, 4
        %v6007 = vsel %vm467, %v6006, %v5969
        %v6008 = vrot.slane %v5969, 4
        %v6009 = vsel %vm467, %v5993, %v6008
        %v6010 = vrot.slane %v5887, 4
        %v6011 = vsel %vm467, %v6010, %v5883
        %v6012 = vrot.slane %v5883, 4
        %v6013 = vsel %vm467, %v5887, %v6012
        %v6015 = vunpack.c.l.s4 1983009808
        %v6016 = vunpack.c.0.s8 %v6015
        %v6017 = vperm.slane %v6011, %v6016
        %v6019 = vunpack.c.l.s4 1983009808
        %v6020 = vunpack.c.0.s8 %v6019
        %v6021 = vperm.slane %v6013, %v6020
        %v6022 = vrot.slane %v5889, 4
        %v6023 = vsel %vm467, %v6022, %v5885
        %v6024 = vrot.slane %v5885, 4
        %v6025 = vsel %vm467, %v5889, %v6024
        %v6027 = vunpack.c.l.s4 1983009808
        %v6028 = vunpack.c.0.s8 %v6027
        %v6029 = vperm.slane %v6023, %v6028
        %v6031 = vunpack.c.l.s4 1983009808
        %v6032 = vunpack.c.0.s8 %v6031
        %v6033 = vperm.slane %v6025, %v6032
        %v6034 = vrot.slane %v5895, 4
        %v6035 = vsel %vm467, %v6034, %v5891
        %v6036 = vrot.slane %v5891, 4
        %v6037 = vsel %vm467, %v5895, %v6036
        %v6039 = vunpack.c.l.s4 1983009808
        %v6040 = vunpack.c.0.s8 %v6039
        %v6041 = vperm.slane %v6035, %v6040
        %v6043 = vunpack.c.l.s4 1983009808
        %v6044 = vunpack.c.0.s8 %v6043
        %v6045 = vperm.slane %v6037, %v6044
        %v6046 = vrot.slane %v5897, 4
        %v6047 = vsel %vm467, %v6046, %v5893
        %v6048 = vrot.slane %v5893, 4
        %v6049 = vsel %vm467, %v5897, %v6048
        %v6051 = vunpack.c.l.s4 1983009808
        %v6052 = vunpack.c.0.s8 %v6051
        %v6053 = vperm.slane %v6047, %v6052
        %v6055 = vunpack.c.l.s4 1983009808
        %v6056 = vunpack.c.0.s8 %v6055
        %v6057 = vperm.slane %v6049, %v6056
        %v6058 = vrot.slane %v6029, 4
        %v6059 = vsel %vm467, %v6058, %v6017
        %v6060 = vrot.slane %v6017, 4
        %v6061 = vsel %vm467, %v6029, %v6060
        %v6063 = vunpack.c.l.s4 1934713408
        %v6064 = vunpack.c.0.s8 %v6063
        %v6065 = vperm.slane %v6059, %v6064
        %v6067 = vunpack.c.l.s4 1934713408
        %v6068 = vunpack.c.0.s8 %v6067
        %v6069 = vperm.slane %v6061, %v6068
        %v6070 = vrot.slane %v6033, 4
        %v6071 = vsel %vm467, %v6070, %v6021
        %v6072 = vrot.slane %v6021, 4
        %v6073 = vsel %vm467, %v6033, %v6072
        %v6075 = vunpack.c.l.s4 1934713408
        %v6076 = vunpack.c.0.s8 %v6075
        %v6077 = vperm.slane %v6071, %v6076
        %v6079 = vunpack.c.l.s4 1934713408
        %v6080 = vunpack.c.0.s8 %v6079
        %v6081 = vperm.slane %v6073, %v6080
        %v6082 = vrot.slane %v6053, 4
        %v6083 = vsel %vm467, %v6082, %v6041
        %v6084 = vrot.slane %v6041, 4
        %v6085 = vsel %vm467, %v6053, %v6084
        %v6087 = vunpack.c.l.s4 1934713408
        %v6088 = vunpack.c.0.s8 %v6087
        %v6089 = vperm.slane %v6083, %v6088
        %v6091 = vunpack.c.l.s4 1934713408
        %v6092 = vunpack.c.0.s8 %v6091
        %v6093 = vperm.slane %v6085, %v6092
        %v6094 = vrot.slane %v6057, 4
        %v6095 = vsel %vm467, %v6094, %v6045
        %v6096 = vrot.slane %v6045, 4
        %v6097 = vsel %vm467, %v6057, %v6096
        %v6099 = vunpack.c.l.s4 1934713408
        %v6100 = vunpack.c.0.s8 %v6099
        %v6101 = vperm.slane %v6095, %v6100
        %v6103 = vunpack.c.l.s4 1934713408
        %v6104 = vunpack.c.0.s8 %v6103
        %v6105 = vperm.slane %v6097, %v6104
        %v6106 = vrot.slane %v6089, 4
        %v6107 = vsel %vm467, %v6106, %v6065
        %v6108 = vrot.slane %v6065, 4
        %v6109 = vsel %vm467, %v6089, %v6108
        %v6110 = vrot.slane %v6093, 4
        %v6111 = vsel %vm467, %v6110, %v6069
        %v6112 = vrot.slane %v6069, 4
        %v6113 = vsel %vm467, %v6093, %v6112
        %v6114 = vrot.slane %v6101, 4
        %v6115 = vsel %vm467, %v6114, %v6077
        %v6116 = vrot.slane %v6077, 4
        %v6117 = vsel %vm467, %v6101, %v6116
        %v6118 = vrot.slane %v6105, 4
        %v6119 = vsel %vm467, %v6118, %v6081
        %v6120 = vrot.slane %v6081, 4
        %v6121 = vsel %vm467, %v6105, %v6120
        %6123 = vrot.lane.b32.xlu0 %v5997, 16
        %v6124 = vpop.permute.xlu0 %6123
        %6127 = vrot.lane.b32.xlu0 %v5999, 32
        %v6128 = vpop.permute.xlu0 %6127
        %6131 = vrot.lane.b32.xlu0 %v6001, 48
        %v6132 = vpop.permute.xlu0 %6131
        %6135 = vrot.lane.b32.xlu0 %v6003, 64
        %v6136 = vpop.permute.xlu0 %6135
        %6139 = vrot.lane.b32.xlu0 %v6005, 80
        %v6140 = vpop.permute.xlu0 %6139
        %6143 = vrot.lane.b32.xlu0 %v6007, 96
        %v6144 = vpop.permute.xlu0 %6143
        %6147 = vrot.lane.b32.xlu0 %v6009, 112
        %v6148 = vpop.permute.xlu0 %6147
        %6151 = vrot.lane.b32.xlu0 %v6109, 16
        %v6152 = vpop.permute.xlu0 %6151
        %6155 = vrot.lane.b32.xlu0 %v6111, 32
        %v6156 = vpop.permute.xlu0 %6155
        %6159 = vrot.lane.b32.xlu0 %v6113, 48
        %v6160 = vpop.permute.xlu0 %6159
        %6163 = vrot.lane.b32.xlu0 %v6115, 64
        %v6164 = vpop.permute.xlu0 %6163
        %6167 = vrot.lane.b32.xlu0 %v6117, 80
        %v6168 = vpop.permute.xlu0 %6167
        %6171 = vrot.lane.b32.xlu0 %v6119, 96
        %v6172 = vpop.permute.xlu0 %6171
        %6175 = vrot.lane.b32.xlu0 %v6121, 112
        %v6176 = vpop.permute.xlu0 %6175
        %v6178 = vsel %vm967, %v5995, %v6124
        %v6179 = vsel %vm969, %v6178, %v6128
        %v6180 = vsel %vm971, %v6179, %v6132
        %v6181 = vsel %vm378, %v6180, %v6136
        %v6182 = vsel %vm974, %v6181, %v6140
        %v6183 = vsel %vm976, %v6182, %v6144
        %v6184 = vsel %vm978, %v6183, %v6148
        %v6185 = vsel %vm967, %v6107, %v6152
        %v6186 = vsel %vm969, %v6185, %v6156
        %v6187 = vsel %vm971, %v6186, %v6160
        %v6188 = vsel %vm378, %v6187, %v6164
        %v6189 = vsel %vm974, %v6188, %v6168
        %v6190 = vsel %vm976, %v6189, %v6172
        %v6191 = vsel %vm978, %v6190, %v6176
        %v6192 = vld [vmem:[#allocation4] sm:$0xff]
        %v6193 = vld [vmem:[#allocation4 + $0x8] sm:$0xff]
        %s6194 = scalar_lea.vmem %s5, 24
        %v6195 = vld [vmem:[%s6194] sm:$0xff]
        %v6197 = vsel %vm990, %v6195, 0
        %6199 = vmatpush.msra.mxu0 0.0
        %6200 = vmatpush.msra.mxu0 0.0
        %6201 = vmatpush.msra.mxu0 0.0
        %6202 = vmatpush.msra.mxu0 0.0
        %6203 = vmatpush.msra.mxu0 0.0
        %6204 = vmatpush.msra.mxu0 0.0
        %6205 = vmatpush.msra.mxu0 0.0
        %6206 = vmatpush.msra.mxu0 0.0
        %6207 = vmatpush.msra.mxu0 0.0
        %6208 = vmatpush.msra.mxu0 0.0
        %6209 = vmatpush.msra.mxu0 0.0
        %6210 = vmatpush.msra.mxu0 0.0
        %6211 = vmatpush.msra.mxu0 0.0
        %6212 = vmatpush.msra.mxu0 0.0
        %6213 = vmatpush.msra.mxu0 0.0
        %6214 = vmatpush.msra.mxu0 %v6184
        %6215 = vmatmul.f32.gmra.mxu0 %v6197
        %v6216 = vpop.f32.mrf.mxu0
        %v6217 = vadd.f32 0.0, %v6216
        %6218 = vdwg.mxu0
        %6219 = vmatpush.msra.mxu0 0.0
        %6220 = vmatpush.msra.mxu0 0.0
        %6221 = vmatpush.msra.mxu0 0.0
        %6222 = vmatpush.msra.mxu0 0.0
        %6223 = vmatpush.msra.mxu0 0.0
        %6224 = vmatpush.msra.mxu0 0.0
        %6225 = vmatpush.msra.mxu0 0.0
        %6226 = vmatpush.msra.mxu0 0.0
        %6227 = vmatpush.msra.mxu0 0.0
        %6228 = vmatpush.msra.mxu0 0.0
        %6229 = vmatpush.msra.mxu0 0.0
        %6230 = vmatpush.msra.mxu0 0.0
        %6231 = vmatpush.msra.mxu0 0.0
        %6232 = vmatpush.msra.mxu0 0.0
        %6233 = vmatpush.msra.mxu0 0.0
        %6234 = vmatpush.msra.mxu0 %v6191
        %6235 = vmatmul.f32.gmra.mxu0 %v6197
        %v6236 = vpop.f32.mrf.mxu0
        %v6237 = vadd.f32 0.0, %v6236
        %6238 = vdwg.mxu0
        %v6239 = vadd.f32 %v6192, %v6217
        %v6240 = vadd.f32 %v6193, %v6237
        %6241 = vst [vmem:[#allocation4] sm:$0xff] %v6239
        %6242 = vst [vmem:[#allocation4 + $0x8] sm:$0xff] %v6240
        %v6243 = vld [vmem:[#allocation3 + $0x1] sm:$0xff]
        %v6244 = vld [vmem:[#allocation3 + $0x9] sm:$0xff]
        %v6245 = vld [vmem:[#allocation3 + $0x19] sm:$0xff]
        %v6246 = vld [vmem:[#allocation3 + $0x21] sm:$0xff]
        %v6247 = vld [vmem:[#allocation3 + $0x31] sm:$0xff]
        %v6248 = vld [vmem:[#allocation3 + $0x39] sm:$0xff]
        %v6249 = vld [vmem:[#allocation3 + $0x49] sm:$0xff]
        %v6250 = vld [vmem:[#allocation3 + $0x51] sm:$0xff]
        %v6251 = vld [vmem:[#allocation3 + $0x61] sm:$0xff]
        %v6252 = vld [vmem:[#allocation3 + $0x69] sm:$0xff]
        %v6253 = vld [vmem:[#allocation3 + $0x79] sm:$0xff]
        %v6254 = vld [vmem:[#allocation3 + $0x81] sm:$0xff]
        %v6255 = vld [vmem:[#allocation3 + $0x91] sm:$0xff]
        %v6256 = vld [vmem:[#allocation3 + $0x99] sm:$0xff]
        %v6257 = vld [vmem:[#allocation3 + $0xa9] sm:$0xff]
        %v6258 = vld [vmem:[#allocation3 + $0xb1] sm:$0xff]
        %6275 = vrot.lane.b32.xlu0 %v6243, 127
        %v6276 = vpop.permute.xlu0 %6275
        %6277 = vrot.lane.b32.xlu0 %v6244, 127
        %v6278 = vpop.permute.xlu0 %6277
        %6279 = vrot.lane.b32.xlu0 %v6245, 127
        %v6280 = vpop.permute.xlu0 %6279
        %6281 = vrot.lane.b32.xlu0 %v6246, 127
        %v6282 = vpop.permute.xlu0 %6281
        %6283 = vrot.lane.b32.xlu0 %v6247, 127
        %v6284 = vpop.permute.xlu0 %6283
        %6285 = vrot.lane.b32.xlu0 %v6248, 127
        %v6286 = vpop.permute.xlu0 %6285
        %6287 = vrot.lane.b32.xlu0 %v6249, 127
        %v6288 = vpop.permute.xlu0 %6287
        %6289 = vrot.lane.b32.xlu0 %v6250, 127
        %v6290 = vpop.permute.xlu0 %6289
        %6291 = vrot.lane.b32.xlu0 %v6251, 127
        %v6292 = vpop.permute.xlu0 %6291
        %6293 = vrot.lane.b32.xlu0 %v6252, 127
        %v6294 = vpop.permute.xlu0 %6293
        %6295 = vrot.lane.b32.xlu0 %v6253, 127
        %v6296 = vpop.permute.xlu0 %6295
        %6297 = vrot.lane.b32.xlu0 %v6254, 127
        %v6298 = vpop.permute.xlu0 %6297
        %6299 = vrot.lane.b32.xlu0 %v6255, 127
        %v6300 = vpop.permute.xlu0 %6299
        %6301 = vrot.lane.b32.xlu0 %v6256, 127
        %v6302 = vpop.permute.xlu0 %6301
        %6303 = vrot.lane.b32.xlu0 %v6257, 127
        %v6304 = vpop.permute.xlu0 %6303
        %6305 = vrot.lane.b32.xlu0 %v6258, 127
        %v6306 = vpop.permute.xlu0 %6305
        %v6323 = vrot.slane %v6284, 4
        %v6324 = vsel %vm467, %v6323, %v6276
        %v6325 = vrot.slane %v6276, 4
        %v6326 = vsel %vm467, %v6284, %v6325
        %v6328 = vunpack.c.l.s4 1983009808
        %v6329 = vunpack.c.0.s8 %v6328
        %v6330 = vperm.slane %v6324, %v6329
        %v6332 = vunpack.c.l.s4 1983009808
        %v6333 = vunpack.c.0.s8 %v6332
        %v6334 = vperm.slane %v6326, %v6333
        %v6335 = vrot.slane %v6288, 4
        %v6336 = vsel %vm467, %v6335, %v6280
        %v6337 = vrot.slane %v6280, 4
        %v6338 = vsel %vm467, %v6288, %v6337
        %v6340 = vunpack.c.l.s4 1983009808
        %v6341 = vunpack.c.0.s8 %v6340
        %v6342 = vperm.slane %v6336, %v6341
        %v6344 = vunpack.c.l.s4 1983009808
        %v6345 = vunpack.c.0.s8 %v6344
        %v6346 = vperm.slane %v6338, %v6345
        %v6347 = vrot.slane %v6300, 4
        %v6348 = vsel %vm467, %v6347, %v6292
        %v6349 = vrot.slane %v6292, 4
        %v6350 = vsel %vm467, %v6300, %v6349
        %v6352 = vunpack.c.l.s4 1983009808
        %v6353 = vunpack.c.0.s8 %v6352
        %v6354 = vperm.slane %v6348, %v6353
        %v6356 = vunpack.c.l.s4 1983009808
        %v6357 = vunpack.c.0.s8 %v6356
        %v6358 = vperm.slane %v6350, %v6357
        %v6359 = vrot.slane %v6304, 4
        %v6360 = vsel %vm467, %v6359, %v6296
        %v6361 = vrot.slane %v6296, 4
        %v6362 = vsel %vm467, %v6304, %v6361
        %v6364 = vunpack.c.l.s4 1983009808
        %v6365 = vunpack.c.0.s8 %v6364
        %v6366 = vperm.slane %v6360, %v6365
        %v6368 = vunpack.c.l.s4 1983009808
        %v6369 = vunpack.c.0.s8 %v6368
        %v6370 = vperm.slane %v6362, %v6369
        %v6371 = vrot.slane %v6342, 4
        %v6372 = vsel %vm467, %v6371, %v6330
        %v6373 = vrot.slane %v6330, 4
        %v6374 = vsel %vm467, %v6342, %v6373
        %v6376 = vunpack.c.l.s4 1934713408
        %v6377 = vunpack.c.0.s8 %v6376
        %v6378 = vperm.slane %v6372, %v6377
        %v6380 = vunpack.c.l.s4 1934713408
        %v6381 = vunpack.c.0.s8 %v6380
        %v6382 = vperm.slane %v6374, %v6381
        %v6383 = vrot.slane %v6346, 4
        %v6384 = vsel %vm467, %v6383, %v6334
        %v6385 = vrot.slane %v6334, 4
        %v6386 = vsel %vm467, %v6346, %v6385
        %v6388 = vunpack.c.l.s4 1934713408
        %v6389 = vunpack.c.0.s8 %v6388
        %v6390 = vperm.slane %v6384, %v6389
        %v6392 = vunpack.c.l.s4 1934713408
        %v6393 = vunpack.c.0.s8 %v6392
        %v6394 = vperm.slane %v6386, %v6393
        %v6395 = vrot.slane %v6366, 4
        %v6396 = vsel %vm467, %v6395, %v6354
        %v6397 = vrot.slane %v6354, 4
        %v6398 = vsel %vm467, %v6366, %v6397
        %v6400 = vunpack.c.l.s4 1934713408
        %v6401 = vunpack.c.0.s8 %v6400
        %v6402 = vperm.slane %v6396, %v6401
        %v6404 = vunpack.c.l.s4 1934713408
        %v6405 = vunpack.c.0.s8 %v6404
        %v6406 = vperm.slane %v6398, %v6405
        %v6407 = vrot.slane %v6370, 4
        %v6408 = vsel %vm467, %v6407, %v6358
        %v6409 = vrot.slane %v6358, 4
        %v6410 = vsel %vm467, %v6370, %v6409
        %v6412 = vunpack.c.l.s4 1934713408
        %v6413 = vunpack.c.0.s8 %v6412
        %v6414 = vperm.slane %v6408, %v6413
        %v6416 = vunpack.c.l.s4 1934713408
        %v6417 = vunpack.c.0.s8 %v6416
        %v6418 = vperm.slane %v6410, %v6417
        %v6419 = vrot.slane %v6402, 4
        %v6420 = vsel %vm467, %v6419, %v6378
        %v6421 = vrot.slane %v6378, 4
        %v6422 = vsel %vm467, %v6402, %v6421
        %v6423 = vrot.slane %v6406, 4
        %v6424 = vsel %vm467, %v6423, %v6382
        %v6425 = vrot.slane %v6382, 4
        %v6426 = vsel %vm467, %v6406, %v6425
        %v6427 = vrot.slane %v6414, 4
        %v6428 = vsel %vm467, %v6427, %v6390
        %v6429 = vrot.slane %v6390, 4
        %v6430 = vsel %vm467, %v6414, %v6429
        %v6431 = vrot.slane %v6418, 4
        %v6432 = vsel %vm467, %v6431, %v6394
        %v6433 = vrot.slane %v6394, 4
        %v6434 = vsel %vm467, %v6418, %v6433
        %v6435 = vrot.slane %v6286, 4
        %v6436 = vsel %vm467, %v6435, %v6278
        %v6437 = vrot.slane %v6278, 4
        %v6438 = vsel %vm467, %v6286, %v6437
        %v6440 = vunpack.c.l.s4 1983009808
        %v6441 = vunpack.c.0.s8 %v6440
        %v6442 = vperm.slane %v6436, %v6441
        %v6444 = vunpack.c.l.s4 1983009808
        %v6445 = vunpack.c.0.s8 %v6444
        %v6446 = vperm.slane %v6438, %v6445
        %v6447 = vrot.slane %v6290, 4
        %v6448 = vsel %vm467, %v6447, %v6282
        %v6449 = vrot.slane %v6282, 4
        %v6450 = vsel %vm467, %v6290, %v6449
        %v6452 = vunpack.c.l.s4 1983009808
        %v6453 = vunpack.c.0.s8 %v6452
        %v6454 = vperm.slane %v6448, %v6453
        %v6456 = vunpack.c.l.s4 1983009808
        %v6457 = vunpack.c.0.s8 %v6456
        %v6458 = vperm.slane %v6450, %v6457
        %v6459 = vrot.slane %v6302, 4
        %v6460 = vsel %vm467, %v6459, %v6294
        %v6461 = vrot.slane %v6294, 4
        %v6462 = vsel %vm467, %v6302, %v6461
        %v6464 = vunpack.c.l.s4 1983009808
        %v6465 = vunpack.c.0.s8 %v6464
        %v6466 = vperm.slane %v6460, %v6465
        %v6468 = vunpack.c.l.s4 1983009808
        %v6469 = vunpack.c.0.s8 %v6468
        %v6470 = vperm.slane %v6462, %v6469
        %v6471 = vrot.slane %v6306, 4
        %v6472 = vsel %vm467, %v6471, %v6298
        %v6473 = vrot.slane %v6298, 4
        %v6474 = vsel %vm467, %v6306, %v6473
        %v6476 = vunpack.c.l.s4 1983009808
        %v6477 = vunpack.c.0.s8 %v6476
        %v6478 = vperm.slane %v6472, %v6477
        %v6480 = vunpack.c.l.s4 1983009808
        %v6481 = vunpack.c.0.s8 %v6480
        %v6482 = vperm.slane %v6474, %v6481
        %v6483 = vrot.slane %v6454, 4
        %v6484 = vsel %vm467, %v6483, %v6442
        %v6485 = vrot.slane %v6442, 4
        %v6486 = vsel %vm467, %v6454, %v6485
        %v6488 = vunpack.c.l.s4 1934713408
        %v6489 = vunpack.c.0.s8 %v6488
        %v6490 = vperm.slane %v6484, %v6489
        %v6492 = vunpack.c.l.s4 1934713408
        %v6493 = vunpack.c.0.s8 %v6492
        %v6494 = vperm.slane %v6486, %v6493
        %v6495 = vrot.slane %v6458, 4
        %v6496 = vsel %vm467, %v6495, %v6446
        %v6497 = vrot.slane %v6446, 4
        %v6498 = vsel %vm467, %v6458, %v6497
        %v6500 = vunpack.c.l.s4 1934713408
        %v6501 = vunpack.c.0.s8 %v6500
        %v6502 = vperm.slane %v6496, %v6501
        %v6504 = vunpack.c.l.s4 1934713408
        %v6505 = vunpack.c.0.s8 %v6504
        %v6506 = vperm.slane %v6498, %v6505
        %v6507 = vrot.slane %v6478, 4
        %v6508 = vsel %vm467, %v6507, %v6466
        %v6509 = vrot.slane %v6466, 4
        %v6510 = vsel %vm467, %v6478, %v6509
        %v6512 = vunpack.c.l.s4 1934713408
        %v6513 = vunpack.c.0.s8 %v6512
        %v6514 = vperm.slane %v6508, %v6513
        %v6516 = vunpack.c.l.s4 1934713408
        %v6517 = vunpack.c.0.s8 %v6516
        %v6518 = vperm.slane %v6510, %v6517
        %v6519 = vrot.slane %v6482, 4
        %v6520 = vsel %vm467, %v6519, %v6470
        %v6521 = vrot.slane %v6470, 4
        %v6522 = vsel %vm467, %v6482, %v6521
        %v6524 = vunpack.c.l.s4 1934713408
        %v6525 = vunpack.c.0.s8 %v6524
        %v6526 = vperm.slane %v6520, %v6525
        %v6528 = vunpack.c.l.s4 1934713408
        %v6529 = vunpack.c.0.s8 %v6528
        %v6530 = vperm.slane %v6522, %v6529
        %v6531 = vrot.slane %v6514, 4
        %v6532 = vsel %vm467, %v6531, %v6490
        %v6533 = vrot.slane %v6490, 4
        %v6534 = vsel %vm467, %v6514, %v6533
        %v6535 = vrot.slane %v6518, 4
        %v6536 = vsel %vm467, %v6535, %v6494
        %v6537 = vrot.slane %v6494, 4
        %v6538 = vsel %vm467, %v6518, %v6537
        %v6539 = vrot.slane %v6526, 4
        %v6540 = vsel %vm467, %v6539, %v6502
        %v6541 = vrot.slane %v6502, 4
        %v6542 = vsel %vm467, %v6526, %v6541
        %v6543 = vrot.slane %v6530, 4
        %v6544 = vsel %vm467, %v6543, %v6506
        %v6545 = vrot.slane %v6506, 4
        %v6546 = vsel %vm467, %v6530, %v6545
        %6548 = vrot.lane.b32.xlu0 %v6422, 16
        %v6549 = vpop.permute.xlu0 %6548
        %6552 = vrot.lane.b32.xlu0 %v6424, 32
        %v6553 = vpop.permute.xlu0 %6552
        %6556 = vrot.lane.b32.xlu0 %v6426, 48
        %v6557 = vpop.permute.xlu0 %6556
        %6560 = vrot.lane.b32.xlu0 %v6428, 64
        %v6561 = vpop.permute.xlu0 %6560
        %6564 = vrot.lane.b32.xlu0 %v6430, 80
        %v6565 = vpop.permute.xlu0 %6564
        %6568 = vrot.lane.b32.xlu0 %v6432, 96
        %v6569 = vpop.permute.xlu0 %6568
        %6572 = vrot.lane.b32.xlu0 %v6434, 112
        %v6573 = vpop.permute.xlu0 %6572
        %6576 = vrot.lane.b32.xlu0 %v6534, 16
        %v6577 = vpop.permute.xlu0 %6576
        %6580 = vrot.lane.b32.xlu0 %v6536, 32
        %v6581 = vpop.permute.xlu0 %6580
        %6584 = vrot.lane.b32.xlu0 %v6538, 48
        %v6585 = vpop.permute.xlu0 %6584
        %6588 = vrot.lane.b32.xlu0 %v6540, 64
        %v6589 = vpop.permute.xlu0 %6588
        %6592 = vrot.lane.b32.xlu0 %v6542, 80
        %v6593 = vpop.permute.xlu0 %6592
        %6596 = vrot.lane.b32.xlu0 %v6544, 96
        %v6597 = vpop.permute.xlu0 %6596
        %6600 = vrot.lane.b32.xlu0 %v6546, 112
        %v6601 = vpop.permute.xlu0 %6600
        %v6603 = vsel %vm967, %v6420, %v6549
        %v6604 = vsel %vm969, %v6603, %v6553
        %v6605 = vsel %vm971, %v6604, %v6557
        %v6606 = vsel %vm378, %v6605, %v6561
        %v6607 = vsel %vm974, %v6606, %v6565
        %v6608 = vsel %vm976, %v6607, %v6569
        %v6609 = vsel %vm978, %v6608, %v6573
        %v6610 = vsel %vm967, %v6532, %v6577
        %v6611 = vsel %vm969, %v6610, %v6581
        %v6612 = vsel %vm971, %v6611, %v6585
        %v6613 = vsel %vm378, %v6612, %v6589
        %v6614 = vsel %vm974, %v6613, %v6593
        %v6615 = vsel %vm976, %v6614, %v6597
        %v6616 = vsel %vm978, %v6615, %v6601
        %v6617 = vld [vmem:[#allocation4] sm:$0xff]
        %v6618 = vld [vmem:[#allocation4 + $0x8] sm:$0xff]
        %s6619 = scalar_lea.vmem %s5, 32
        %v6620 = vld [vmem:[%s6619] sm:$0xff]
        %v6622 = vsel %vm990, %v6620, 0
        %6624 = vmatpush.msra.mxu0 0.0
        %6625 = vmatpush.msra.mxu0 0.0
        %6626 = vmatpush.msra.mxu0 0.0
        %6627 = vmatpush.msra.mxu0 0.0
        %6628 = vmatpush.msra.mxu0 0.0
        %6629 = vmatpush.msra.mxu0 0.0
        %6630 = vmatpush.msra.mxu0 0.0
        %6631 = vmatpush.msra.mxu0 0.0
        %6632 = vmatpush.msra.mxu0 0.0
        %6633 = vmatpush.msra.mxu0 0.0
        %6634 = vmatpush.msra.mxu0 0.0
        %6635 = vmatpush.msra.mxu0 0.0
        %6636 = vmatpush.msra.mxu0 0.0
        %6637 = vmatpush.msra.mxu0 0.0
        %6638 = vmatpush.msra.mxu0 0.0
        %6639 = vmatpush.msra.mxu0 %v6609
        %6640 = vmatmul.f32.gmra.mxu0 %v6622
        %v6641 = vpop.f32.mrf.mxu0
        %v6642 = vadd.f32 0.0, %v6641
        %6643 = vdwg.mxu0
        %6644 = vmatpush.msra.mxu0 0.0
        %6645 = vmatpush.msra.mxu0 0.0
        %6646 = vmatpush.msra.mxu0 0.0
        %6647 = vmatpush.msra.mxu0 0.0
        %6648 = vmatpush.msra.mxu0 0.0
        %6649 = vmatpush.msra.mxu0 0.0
        %6650 = vmatpush.msra.mxu0 0.0
        %6651 = vmatpush.msra.mxu0 0.0
        %6652 = vmatpush.msra.mxu0 0.0
        %6653 = vmatpush.msra.mxu0 0.0
        %6654 = vmatpush.msra.mxu0 0.0
        %6655 = vmatpush.msra.mxu0 0.0
        %6656 = vmatpush.msra.mxu0 0.0
        %6657 = vmatpush.msra.mxu0 0.0
        %6658 = vmatpush.msra.mxu0 0.0
        %6659 = vmatpush.msra.mxu0 %v6616
        %6660 = vmatmul.f32.gmra.mxu0 %v6622
        %v6661 = vpop.f32.mrf.mxu0
        %v6662 = vadd.f32 0.0, %v6661
        %6663 = vdwg.mxu0
        %v6664 = vadd.f32 %v6617, %v6642
        %v6665 = vadd.f32 %v6618, %v6662
        %6666 = vst [vmem:[#allocation4] sm:$0xff] %v6664
        %6667 = vst [vmem:[#allocation4 + $0x8] sm:$0xff] %v6665
        %v6668 = vld [vmem:[#allocation3 + $0x1] sm:$0xff]
        %v6669 = vld [vmem:[#allocation3 + $0x9] sm:$0xff]
        %v6670 = vld [vmem:[#allocation3 + $0x19] sm:$0xff]
        %v6671 = vld [vmem:[#allocation3 + $0x21] sm:$0xff]
        %v6672 = vld [vmem:[#allocation3 + $0x31] sm:$0xff]
        %v6673 = vld [vmem:[#allocation3 + $0x39] sm:$0xff]
        %v6674 = vld [vmem:[#allocation3 + $0x49] sm:$0xff]
        %v6675 = vld [vmem:[#allocation3 + $0x51] sm:$0xff]
        %v6676 = vld [vmem:[#allocation3 + $0x61] sm:$0xff]
        %v6677 = vld [vmem:[#allocation3 + $0x69] sm:$0xff]
        %v6678 = vld [vmem:[#allocation3 + $0x79] sm:$0xff]
        %v6679 = vld [vmem:[#allocation3 + $0x81] sm:$0xff]
        %v6680 = vld [vmem:[#allocation3 + $0x91] sm:$0xff]
        %v6681 = vld [vmem:[#allocation3 + $0x99] sm:$0xff]
        %v6682 = vld [vmem:[#allocation3 + $0xa9] sm:$0xff]
        %v6683 = vld [vmem:[#allocation3 + $0xb1] sm:$0xff]
        %6700 = vrot.lane.b32.xlu0 %v6668, 126
        %v6701 = vpop.permute.xlu0 %6700
        %6702 = vrot.lane.b32.xlu0 %v6669, 126
        %v6703 = vpop.permute.xlu0 %6702
        %6704 = vrot.lane.b32.xlu0 %v6670, 126
        %v6705 = vpop.permute.xlu0 %6704
        %6706 = vrot.lane.b32.xlu0 %v6671, 126
        %v6707 = vpop.permute.xlu0 %6706
        %6708 = vrot.lane.b32.xlu0 %v6672, 126
        %v6709 = vpop.permute.xlu0 %6708
        %6710 = vrot.lane.b32.xlu0 %v6673, 126
        %v6711 = vpop.permute.xlu0 %6710
        %6712 = vrot.lane.b32.xlu0 %v6674, 126
        %v6713 = vpop.permute.xlu0 %6712
        %6714 = vrot.lane.b32.xlu0 %v6675, 126
        %v6715 = vpop.permute.xlu0 %6714
        %6716 = vrot.lane.b32.xlu0 %v6676, 126
        %v6717 = vpop.permute.xlu0 %6716
        %6718 = vrot.lane.b32.xlu0 %v6677, 126
        %v6719 = vpop.permute.xlu0 %6718
        %6720 = vrot.lane.b32.xlu0 %v6678, 126
        %v6721 = vpop.permute.xlu0 %6720
        %6722 = vrot.lane.b32.xlu0 %v6679, 126
        %v6723 = vpop.permute.xlu0 %6722
        %6724 = vrot.lane.b32.xlu0 %v6680, 126
        %v6725 = vpop.permute.xlu0 %6724
        %6726 = vrot.lane.b32.xlu0 %v6681, 126
        %v6727 = vpop.permute.xlu0 %6726
        %6728 = vrot.lane.b32.xlu0 %v6682, 126
        %v6729 = vpop.permute.xlu0 %6728
        %6730 = vrot.lane.b32.xlu0 %v6683, 126
        %v6731 = vpop.permute.xlu0 %6730
        %v6748 = vrot.slane %v6709, 4
        %v6749 = vsel %vm467, %v6748, %v6701
        %v6750 = vrot.slane %v6701, 4
        %v6751 = vsel %vm467, %v6709, %v6750
        %v6753 = vunpack.c.l.s4 1983009808
        %v6754 = vunpack.c.0.s8 %v6753
        %v6755 = vperm.slane %v6749, %v6754
        %v6757 = vunpack.c.l.s4 1983009808
        %v6758 = vunpack.c.0.s8 %v6757
        %v6759 = vperm.slane %v6751, %v6758
        %v6760 = vrot.slane %v6713, 4
        %v6761 = vsel %vm467, %v6760, %v6705
        %v6762 = vrot.slane %v6705, 4
        %v6763 = vsel %vm467, %v6713, %v6762
        %v6765 = vunpack.c.l.s4 1983009808
        %v6766 = vunpack.c.0.s8 %v6765
        %v6767 = vperm.slane %v6761, %v6766
        %v6769 = vunpack.c.l.s4 1983009808
        %v6770 = vunpack.c.0.s8 %v6769
        %v6771 = vperm.slane %v6763, %v6770
        %v6772 = vrot.slane %v6725, 4
        %v6773 = vsel %vm467, %v6772, %v6717
        %v6774 = vrot.slane %v6717, 4
        %v6775 = vsel %vm467, %v6725, %v6774
        %v6777 = vunpack.c.l.s4 1983009808
        %v6778 = vunpack.c.0.s8 %v6777
        %v6779 = vperm.slane %v6773, %v6778
        %v6781 = vunpack.c.l.s4 1983009808
        %v6782 = vunpack.c.0.s8 %v6781
        %v6783 = vperm.slane %v6775, %v6782
        %v6784 = vrot.slane %v6729, 4
        %v6785 = vsel %vm467, %v6784, %v6721
        %v6786 = vrot.slane %v6721, 4
        %v6787 = vsel %vm467, %v6729, %v6786
        %v6789 = vunpack.c.l.s4 1983009808
        %v6790 = vunpack.c.0.s8 %v6789
        %v6791 = vperm.slane %v6785, %v6790
        %v6793 = vunpack.c.l.s4 1983009808
        %v6794 = vunpack.c.0.s8 %v6793
        %v6795 = vperm.slane %v6787, %v6794
        %v6796 = vrot.slane %v6767, 4
        %v6797 = vsel %vm467, %v6796, %v6755
        %v6798 = vrot.slane %v6755, 4
        %v6799 = vsel %vm467, %v6767, %v6798
        %v6801 = vunpack.c.l.s4 1934713408
        %v6802 = vunpack.c.0.s8 %v6801
        %v6803 = vperm.slane %v6797, %v6802
        %v6805 = vunpack.c.l.s4 1934713408
        %v6806 = vunpack.c.0.s8 %v6805
        %v6807 = vperm.slane %v6799, %v6806
        %v6808 = vrot.slane %v6771, 4
        %v6809 = vsel %vm467, %v6808, %v6759
        %v6810 = vrot.slane %v6759, 4
        %v6811 = vsel %vm467, %v6771, %v6810
        %v6813 = vunpack.c.l.s4 1934713408
        %v6814 = vunpack.c.0.s8 %v6813
        %v6815 = vperm.slane %v6809, %v6814
        %v6817 = vunpack.c.l.s4 1934713408
        %v6818 = vunpack.c.0.s8 %v6817
        %v6819 = vperm.slane %v6811, %v6818
        %v6820 = vrot.slane %v6791, 4
        %v6821 = vsel %vm467, %v6820, %v6779
        %v6822 = vrot.slane %v6779, 4
        %v6823 = vsel %vm467, %v6791, %v6822
        %v6825 = vunpack.c.l.s4 1934713408
        %v6826 = vunpack.c.0.s8 %v6825
        %v6827 = vperm.slane %v6821, %v6826
        %v6829 = vunpack.c.l.s4 1934713408
        %v6830 = vunpack.c.0.s8 %v6829
        %v6831 = vperm.slane %v6823, %v6830
        %v6832 = vrot.slane %v6795, 4
        %v6833 = vsel %vm467, %v6832, %v6783
        %v6834 = vrot.slane %v6783, 4
        %v6835 = vsel %vm467, %v6795, %v6834
        %v6837 = vunpack.c.l.s4 1934713408
        %v6838 = vunpack.c.0.s8 %v6837
        %v6839 = vperm.slane %v6833, %v6838
        %v6841 = vunpack.c.l.s4 1934713408
        %v6842 = vunpack.c.0.s8 %v6841
        %v6843 = vperm.slane %v6835, %v6842
        %v6844 = vrot.slane %v6827, 4
        %v6845 = vsel %vm467, %v6844, %v6803
        %v6846 = vrot.slane %v6803, 4
        %v6847 = vsel %vm467, %v6827, %v6846
        %v6848 = vrot.slane %v6831, 4
        %v6849 = vsel %vm467, %v6848, %v6807
        %v6850 = vrot.slane %v6807, 4
        %v6851 = vsel %vm467, %v6831, %v6850
        %v6852 = vrot.slane %v6839, 4
        %v6853 = vsel %vm467, %v6852, %v6815
        %v6854 = vrot.slane %v6815, 4
        %v6855 = vsel %vm467, %v6839, %v6854
        %v6856 = vrot.slane %v6843, 4
        %v6857 = vsel %vm467, %v6856, %v6819
        %v6858 = vrot.slane %v6819, 4
        %v6859 = vsel %vm467, %v6843, %v6858
        %v6860 = vrot.slane %v6711, 4
        %v6861 = vsel %vm467, %v6860, %v6703
        %v6862 = vrot.slane %v6703, 4
        %v6863 = vsel %vm467, %v6711, %v6862
        %v6865 = vunpack.c.l.s4 1983009808
        %v6866 = vunpack.c.0.s8 %v6865
        %v6867 = vperm.slane %v6861, %v6866
        %v6869 = vunpack.c.l.s4 1983009808
        %v6870 = vunpack.c.0.s8 %v6869
        %v6871 = vperm.slane %v6863, %v6870
        %v6872 = vrot.slane %v6715, 4
        %v6873 = vsel %vm467, %v6872, %v6707
        %v6874 = vrot.slane %v6707, 4
        %v6875 = vsel %vm467, %v6715, %v6874
        %v6877 = vunpack.c.l.s4 1983009808
        %v6878 = vunpack.c.0.s8 %v6877
        %v6879 = vperm.slane %v6873, %v6878
        %v6881 = vunpack.c.l.s4 1983009808
        %v6882 = vunpack.c.0.s8 %v6881
        %v6883 = vperm.slane %v6875, %v6882
        %v6884 = vrot.slane %v6727, 4
        %v6885 = vsel %vm467, %v6884, %v6719
        %v6886 = vrot.slane %v6719, 4
        %v6887 = vsel %vm467, %v6727, %v6886
        %v6889 = vunpack.c.l.s4 1983009808
        %v6890 = vunpack.c.0.s8 %v6889
        %v6891 = vperm.slane %v6885, %v6890
        %v6893 = vunpack.c.l.s4 1983009808
        %v6894 = vunpack.c.0.s8 %v6893
        %v6895 = vperm.slane %v6887, %v6894
        %v6896 = vrot.slane %v6731, 4
        %v6897 = vsel %vm467, %v6896, %v6723
        %v6898 = vrot.slane %v6723, 4
        %v6899 = vsel %vm467, %v6731, %v6898
        %v6901 = vunpack.c.l.s4 1983009808
        %v6902 = vunpack.c.0.s8 %v6901
        %v6903 = vperm.slane %v6897, %v6902
        %v6905 = vunpack.c.l.s4 1983009808
        %v6906 = vunpack.c.0.s8 %v6905
        %v6907 = vperm.slane %v6899, %v6906
        %v6908 = vrot.slane %v6879, 4
        %v6909 = vsel %vm467, %v6908, %v6867
        %v6910 = vrot.slane %v6867, 4
        %v6911 = vsel %vm467, %v6879, %v6910
        %v6913 = vunpack.c.l.s4 1934713408
        %v6914 = vunpack.c.0.s8 %v6913
        %v6915 = vperm.slane %v6909, %v6914
        %v6917 = vunpack.c.l.s4 1934713408
        %v6918 = vunpack.c.0.s8 %v6917
        %v6919 = vperm.slane %v6911, %v6918
        %v6920 = vrot.slane %v6883, 4
        %v6921 = vsel %vm467, %v6920, %v6871
        %v6922 = vrot.slane %v6871, 4
        %v6923 = vsel %vm467, %v6883, %v6922
        %v6925 = vunpack.c.l.s4 1934713408
        %v6926 = vunpack.c.0.s8 %v6925
        %v6927 = vperm.slane %v6921, %v6926
        %v6929 = vunpack.c.l.s4 1934713408
        %v6930 = vunpack.c.0.s8 %v6929
        %v6931 = vperm.slane %v6923, %v6930
        %v6932 = vrot.slane %v6903, 4
        %v6933 = vsel %vm467, %v6932, %v6891
        %v6934 = vrot.slane %v6891, 4
        %v6935 = vsel %vm467, %v6903, %v6934
        %v6937 = vunpack.c.l.s4 1934713408
        %v6938 = vunpack.c.0.s8 %v6937
        %v6939 = vperm.slane %v6933, %v6938
        %v6941 = vunpack.c.l.s4 1934713408
        %v6942 = vunpack.c.0.s8 %v6941
        %v6943 = vperm.slane %v6935, %v6942
        %v6944 = vrot.slane %v6907, 4
        %v6945 = vsel %vm467, %v6944, %v6895
        %v6946 = vrot.slane %v6895, 4
        %v6947 = vsel %vm467, %v6907, %v6946
        %v6949 = vunpack.c.l.s4 1934713408
        %v6950 = vunpack.c.0.s8 %v6949
        %v6951 = vperm.slane %v6945, %v6950
        %v6953 = vunpack.c.l.s4 1934713408
        %v6954 = vunpack.c.0.s8 %v6953
        %v6955 = vperm.slane %v6947, %v6954
        %v6956 = vrot.slane %v6939, 4
        %v6957 = vsel %vm467, %v6956, %v6915
        %v6958 = vrot.slane %v6915, 4
        %v6959 = vsel %vm467, %v6939, %v6958
        %v6960 = vrot.slane %v6943, 4
        %v6961 = vsel %vm467, %v6960, %v6919
        %v6962 = vrot.slane %v6919, 4
        %v6963 = vsel %vm467, %v6943, %v6962
        %v6964 = vrot.slane %v6951, 4
        %v6965 = vsel %vm467, %v6964, %v6927
        %v6966 = vrot.slane %v6927, 4
        %v6967 = vsel %vm467, %v6951, %v6966
        %v6968 = vrot.slane %v6955, 4
        %v6969 = vsel %vm467, %v6968, %v6931
        %v6970 = vrot.slane %v6931, 4
        %v6971 = vsel %vm467, %v6955, %v6970
        %6973 = vrot.lane.b32.xlu0 %v6847, 16
        %v6974 = vpop.permute.xlu0 %6973
        %6977 = vrot.lane.b32.xlu0 %v6849, 32
        %v6978 = vpop.permute.xlu0 %6977
        %6981 = vrot.lane.b32.xlu0 %v6851, 48
        %v6982 = vpop.permute.xlu0 %6981
        %6985 = vrot.lane.b32.xlu0 %v6853, 64
        %v6986 = vpop.permute.xlu0 %6985
        %6989 = vrot.lane.b32.xlu0 %v6855, 80
        %v6990 = vpop.permute.xlu0 %6989
        %6993 = vrot.lane.b32.xlu0 %v6857, 96
        %v6994 = vpop.permute.xlu0 %6993
        %6997 = vrot.lane.b32.xlu0 %v6859, 112
        %v6998 = vpop.permute.xlu0 %6997
        %7001 = vrot.lane.b32.xlu0 %v6959, 16
        %v7002 = vpop.permute.xlu0 %7001
        %7005 = vrot.lane.b32.xlu0 %v6961, 32
        %v7006 = vpop.permute.xlu0 %7005
        %7009 = vrot.lane.b32.xlu0 %v6963, 48
        %v7010 = vpop.permute.xlu0 %7009
        %7013 = vrot.lane.b32.xlu0 %v6965, 64
        %v7014 = vpop.permute.xlu0 %7013
        %7017 = vrot.lane.b32.xlu0 %v6967, 80
        %v7018 = vpop.permute.xlu0 %7017
        %7021 = vrot.lane.b32.xlu0 %v6969, 96
        %v7022 = vpop.permute.xlu0 %7021
        %7025 = vrot.lane.b32.xlu0 %v6971, 112
        %v7026 = vpop.permute.xlu0 %7025
        %v7028 = vsel %vm967, %v6845, %v6974
        %v7029 = vsel %vm969, %v7028, %v6978
        %v7030 = vsel %vm971, %v7029, %v6982
        %v7031 = vsel %vm378, %v7030, %v6986
        %v7032 = vsel %vm974, %v7031, %v6990
        %v7033 = vsel %vm976, %v7032, %v6994
        %v7034 = vsel %vm978, %v7033, %v6998
        %v7035 = vsel %vm967, %v6957, %v7002
        %v7036 = vsel %vm969, %v7035, %v7006
        %v7037 = vsel %vm971, %v7036, %v7010
        %v7038 = vsel %vm378, %v7037, %v7014
        %v7039 = vsel %vm974, %v7038, %v7018
        %v7040 = vsel %vm976, %v7039, %v7022
        %v7041 = vsel %vm978, %v7040, %v7026
        %v7042 = vld [vmem:[#allocation4] sm:$0xff]
        %v7043 = vld [vmem:[#allocation4 + $0x8] sm:$0xff]
        %s7044 = scalar_lea.vmem %s5, 40
        %v7045 = vld [vmem:[%s7044] sm:$0xff]
        %v7047 = vsel %vm990, %v7045, 0
        %7049 = vmatpush.msra.mxu0 0.0
        %7050 = vmatpush.msra.mxu0 0.0
        %7051 = vmatpush.msra.mxu0 0.0
        %7052 = vmatpush.msra.mxu0 0.0
        %7053 = vmatpush.msra.mxu0 0.0
        %7054 = vmatpush.msra.mxu0 0.0
        %7055 = vmatpush.msra.mxu0 0.0
        %7056 = vmatpush.msra.mxu0 0.0
        %7057 = vmatpush.msra.mxu0 0.0
        %7058 = vmatpush.msra.mxu0 0.0
        %7059 = vmatpush.msra.mxu0 0.0
        %7060 = vmatpush.msra.mxu0 0.0
        %7061 = vmatpush.msra.mxu0 0.0
        %7062 = vmatpush.msra.mxu0 0.0
        %7063 = vmatpush.msra.mxu0 0.0
        %7064 = vmatpush.msra.mxu0 %v7034
        %7065 = vmatmul.f32.gmra.mxu0 %v7047
        %v7066 = vpop.f32.mrf.mxu0
        %v7067 = vadd.f32 0.0, %v7066
        %7068 = vdwg.mxu0
        %7069 = vmatpush.msra.mxu0 0.0
        %7070 = vmatpush.msra.mxu0 0.0
        %7071 = vmatpush.msra.mxu0 0.0
        %7072 = vmatpush.msra.mxu0 0.0
        %7073 = vmatpush.msra.mxu0 0.0
        %7074 = vmatpush.msra.mxu0 0.0
        %7075 = vmatpush.msra.mxu0 0.0
        %7076 = vmatpush.msra.mxu0 0.0
        %7077 = vmatpush.msra.mxu0 0.0
        %7078 = vmatpush.msra.mxu0 0.0
        %7079 = vmatpush.msra.mxu0 0.0
        %7080 = vmatpush.msra.mxu0 0.0
        %7081 = vmatpush.msra.mxu0 0.0
        %7082 = vmatpush.msra.mxu0 0.0
        %7083 = vmatpush.msra.mxu0 0.0
        %7084 = vmatpush.msra.mxu0 %v7041
        %7085 = vmatmul.f32.gmra.mxu0 %v7047
        %v7086 = vpop.f32.mrf.mxu0
        %v7087 = vadd.f32 0.0, %v7086
        %7088 = vdwg.mxu0
        %v7089 = vadd.f32 %v7042, %v7067
        %v7090 = vadd.f32 %v7043, %v7087
        %7091 = vst [vmem:[#allocation4] sm:$0xff] %v7089
        %7092 = vst [vmem:[#allocation4 + $0x8] sm:$0xff] %v7090
        %v7093 = vld [vmem:[#allocation3 + $0x2] sm:$0xff]
        %v7094 = vld [vmem:[#allocation3 + $0xa] sm:$0xff]
        %v7095 = vld [vmem:[#allocation3 + $0x1a] sm:$0xff]
        %v7096 = vld [vmem:[#allocation3 + $0x22] sm:$0xff]
        %v7097 = vld [vmem:[#allocation3 + $0x32] sm:$0xff]
        %v7098 = vld [vmem:[#allocation3 + $0x3a] sm:$0xff]
        %v7099 = vld [vmem:[#allocation3 + $0x4a] sm:$0xff]
        %v7100 = vld [vmem:[#allocation3 + $0x52] sm:$0xff]
        %v7101 = vld [vmem:[#allocation3 + $0x62] sm:$0xff]
        %v7102 = vld [vmem:[#allocation3 + $0x6a] sm:$0xff]
        %v7103 = vld [vmem:[#allocation3 + $0x7a] sm:$0xff]
        %v7104 = vld [vmem:[#allocation3 + $0x82] sm:$0xff]
        %v7105 = vld [vmem:[#allocation3 + $0x92] sm:$0xff]
        %v7106 = vld [vmem:[#allocation3 + $0x9a] sm:$0xff]
        %v7107 = vld [vmem:[#allocation3 + $0xaa] sm:$0xff]
        %v7108 = vld [vmem:[#allocation3 + $0xb2] sm:$0xff]
        %v7109 = vrot.slane %v7097, 4
        %v7110 = vsel %vm467, %v7109, %v7093
        %v7111 = vrot.slane %v7093, 4
        %v7112 = vsel %vm467, %v7097, %v7111
        %v7114 = vunpack.c.l.s4 1983009808
        %v7115 = vunpack.c.0.s8 %v7114
        %v7116 = vperm.slane %v7110, %v7115
        %v7118 = vunpack.c.l.s4 1983009808
        %v7119 = vunpack.c.0.s8 %v7118
        %v7120 = vperm.slane %v7112, %v7119
        %v7121 = vrot.slane %v7099, 4
        %v7122 = vsel %vm467, %v7121, %v7095
        %v7123 = vrot.slane %v7095, 4
        %v7124 = vsel %vm467, %v7099, %v7123
        %v7126 = vunpack.c.l.s4 1983009808
        %v7127 = vunpack.c.0.s8 %v7126
        %v7128 = vperm.slane %v7122, %v7127
        %v7130 = vunpack.c.l.s4 1983009808
        %v7131 = vunpack.c.0.s8 %v7130
        %v7132 = vperm.slane %v7124, %v7131
        %v7133 = vrot.slane %v7105, 4
        %v7134 = vsel %vm467, %v7133, %v7101
        %v7135 = vrot.slane %v7101, 4
        %v7136 = vsel %vm467, %v7105, %v7135
        %v7138 = vunpack.c.l.s4 1983009808
        %v7139 = vunpack.c.0.s8 %v7138
        %v7140 = vperm.slane %v7134, %v7139
        %v7142 = vunpack.c.l.s4 1983009808
        %v7143 = vunpack.c.0.s8 %v7142
        %v7144 = vperm.slane %v7136, %v7143
        %v7145 = vrot.slane %v7107, 4
        %v7146 = vsel %vm467, %v7145, %v7103
        %v7147 = vrot.slane %v7103, 4
        %v7148 = vsel %vm467, %v7107, %v7147
        %v7150 = vunpack.c.l.s4 1983009808
        %v7151 = vunpack.c.0.s8 %v7150
        %v7152 = vperm.slane %v7146, %v7151
        %v7154 = vunpack.c.l.s4 1983009808
        %v7155 = vunpack.c.0.s8 %v7154
        %v7156 = vperm.slane %v7148, %v7155
        %v7157 = vrot.slane %v7128, 4
        %v7158 = vsel %vm467, %v7157, %v7116
        %v7159 = vrot.slane %v7116, 4
        %v7160 = vsel %vm467, %v7128, %v7159
        %v7162 = vunpack.c.l.s4 1934713408
        %v7163 = vunpack.c.0.s8 %v7162
        %v7164 = vperm.slane %v7158, %v7163
        %v7166 = vunpack.c.l.s4 1934713408
        %v7167 = vunpack.c.0.s8 %v7166
        %v7168 = vperm.slane %v7160, %v7167
        %v7169 = vrot.slane %v7132, 4
        %v7170 = vsel %vm467, %v7169, %v7120
        %v7171 = vrot.slane %v7120, 4
        %v7172 = vsel %vm467, %v7132, %v7171
        %v7174 = vunpack.c.l.s4 1934713408
        %v7175 = vunpack.c.0.s8 %v7174
        %v7176 = vperm.slane %v7170, %v7175
        %v7178 = vunpack.c.l.s4 1934713408
        %v7179 = vunpack.c.0.s8 %v7178
        %v7180 = vperm.slane %v7172, %v7179
        %v7181 = vrot.slane %v7152, 4
        %v7182 = vsel %vm467, %v7181, %v7140
        %v7183 = vrot.slane %v7140, 4
        %v7184 = vsel %vm467, %v7152, %v7183
        %v7186 = vunpack.c.l.s4 1934713408
        %v7187 = vunpack.c.0.s8 %v7186
        %v7188 = vperm.slane %v7182, %v7187
        %v7190 = vunpack.c.l.s4 1934713408
        %v7191 = vunpack.c.0.s8 %v7190
        %v7192 = vperm.slane %v7184, %v7191
        %v7193 = vrot.slane %v7156, 4
        %v7194 = vsel %vm467, %v7193, %v7144
        %v7195 = vrot.slane %v7144, 4
        %v7196 = vsel %vm467, %v7156, %v7195
        %v7198 = vunpack.c.l.s4 1934713408
        %v7199 = vunpack.c.0.s8 %v7198
        %v7200 = vperm.slane %v7194, %v7199
        %v7202 = vunpack.c.l.s4 1934713408
        %v7203 = vunpack.c.0.s8 %v7202
        %v7204 = vperm.slane %v7196, %v7203
        %v7205 = vrot.slane %v7188, 4
        %v7206 = vsel %vm467, %v7205, %v7164
        %v7207 = vrot.slane %v7164, 4
        %v7208 = vsel %vm467, %v7188, %v7207
        %v7209 = vrot.slane %v7192, 4
        %v7210 = vsel %vm467, %v7209, %v7168
        %v7211 = vrot.slane %v7168, 4
        %v7212 = vsel %vm467, %v7192, %v7211
        %v7213 = vrot.slane %v7200, 4
        %v7214 = vsel %vm467, %v7213, %v7176
        %v7215 = vrot.slane %v7176, 4
        %v7216 = vsel %vm467, %v7200, %v7215
        %v7217 = vrot.slane %v7204, 4
        %v7218 = vsel %vm467, %v7217, %v7180
        %v7219 = vrot.slane %v7180, 4
        %v7220 = vsel %vm467, %v7204, %v7219
        %v7221 = vrot.slane %v7098, 4
        %v7222 = vsel %vm467, %v7221, %v7094
        %v7223 = vrot.slane %v7094, 4
        %v7224 = vsel %vm467, %v7098, %v7223
        %v7226 = vunpack.c.l.s4 1983009808
        %v7227 = vunpack.c.0.s8 %v7226
        %v7228 = vperm.slane %v7222, %v7227
        %v7230 = vunpack.c.l.s4 1983009808
        %v7231 = vunpack.c.0.s8 %v7230
        %v7232 = vperm.slane %v7224, %v7231
        %v7233 = vrot.slane %v7100, 4
        %v7234 = vsel %vm467, %v7233, %v7096
        %v7235 = vrot.slane %v7096, 4
        %v7236 = vsel %vm467, %v7100, %v7235
        %v7238 = vunpack.c.l.s4 1983009808
        %v7239 = vunpack.c.0.s8 %v7238
        %v7240 = vperm.slane %v7234, %v7239
        %v7242 = vunpack.c.l.s4 1983009808
        %v7243 = vunpack.c.0.s8 %v7242
        %v7244 = vperm.slane %v7236, %v7243
        %v7245 = vrot.slane %v7106, 4
        %v7246 = vsel %vm467, %v7245, %v7102
        %v7247 = vrot.slane %v7102, 4
        %v7248 = vsel %vm467, %v7106, %v7247
        %v7250 = vunpack.c.l.s4 1983009808
        %v7251 = vunpack.c.0.s8 %v7250
        %v7252 = vperm.slane %v7246, %v7251
        %v7254 = vunpack.c.l.s4 1983009808
        %v7255 = vunpack.c.0.s8 %v7254
        %v7256 = vperm.slane %v7248, %v7255
        %v7257 = vrot.slane %v7108, 4
        %v7258 = vsel %vm467, %v7257, %v7104
        %v7259 = vrot.slane %v7104, 4
        %v7260 = vsel %vm467, %v7108, %v7259
        %v7262 = vunpack.c.l.s4 1983009808
        %v7263 = vunpack.c.0.s8 %v7262
        %v7264 = vperm.slane %v7258, %v7263
        %v7266 = vunpack.c.l.s4 1983009808
        %v7267 = vunpack.c.0.s8 %v7266
        %v7268 = vperm.slane %v7260, %v7267
        %v7269 = vrot.slane %v7240, 4
        %v7270 = vsel %vm467, %v7269, %v7228
        %v7271 = vrot.slane %v7228, 4
        %v7272 = vsel %vm467, %v7240, %v7271
        %v7274 = vunpack.c.l.s4 1934713408
        %v7275 = vunpack.c.0.s8 %v7274
        %v7276 = vperm.slane %v7270, %v7275
        %v7278 = vunpack.c.l.s4 1934713408
        %v7279 = vunpack.c.0.s8 %v7278
        %v7280 = vperm.slane %v7272, %v7279
        %v7281 = vrot.slane %v7244, 4
        %v7282 = vsel %vm467, %v7281, %v7232
        %v7283 = vrot.slane %v7232, 4
        %v7284 = vsel %vm467, %v7244, %v7283
        %v7286 = vunpack.c.l.s4 1934713408
        %v7287 = vunpack.c.0.s8 %v7286
        %v7288 = vperm.slane %v7282, %v7287
        %v7290 = vunpack.c.l.s4 1934713408
        %v7291 = vunpack.c.0.s8 %v7290
        %v7292 = vperm.slane %v7284, %v7291
        %v7293 = vrot.slane %v7264, 4
        %v7294 = vsel %vm467, %v7293, %v7252
        %v7295 = vrot.slane %v7252, 4
        %v7296 = vsel %vm467, %v7264, %v7295
        %v7298 = vunpack.c.l.s4 1934713408
        %v7299 = vunpack.c.0.s8 %v7298
        %v7300 = vperm.slane %v7294, %v7299
        %v7302 = vunpack.c.l.s4 1934713408
        %v7303 = vunpack.c.0.s8 %v7302
        %v7304 = vperm.slane %v7296, %v7303
        %v7305 = vrot.slane %v7268, 4
        %v7306 = vsel %vm467, %v7305, %v7256
        %v7307 = vrot.slane %v7256, 4
        %v7308 = vsel %vm467, %v7268, %v7307
        %v7310 = vunpack.c.l.s4 1934713408
        %v7311 = vunpack.c.0.s8 %v7310
        %v7312 = vperm.slane %v7306, %v7311
        %v7314 = vunpack.c.l.s4 1934713408
        %v7315 = vunpack.c.0.s8 %v7314
        %v7316 = vperm.slane %v7308, %v7315
        %v7317 = vrot.slane %v7300, 4
        %v7318 = vsel %vm467, %v7317, %v7276
        %v7319 = vrot.slane %v7276, 4
        %v7320 = vsel %vm467, %v7300, %v7319
        %v7321 = vrot.slane %v7304, 4
        %v7322 = vsel %vm467, %v7321, %v7280
        %v7323 = vrot.slane %v7280, 4
        %v7324 = vsel %vm467, %v7304, %v7323
        %v7325 = vrot.slane %v7312, 4
        %v7326 = vsel %vm467, %v7325, %v7288
        %v7327 = vrot.slane %v7288, 4
        %v7328 = vsel %vm467, %v7312, %v7327
        %v7329 = vrot.slane %v7316, 4
        %v7330 = vsel %vm467, %v7329, %v7292
        %v7331 = vrot.slane %v7292, 4
        %v7332 = vsel %vm467, %v7316, %v7331
        %7334 = vrot.lane.b32.xlu0 %v7208, 16
        %v7335 = vpop.permute.xlu0 %7334
        %7338 = vrot.lane.b32.xlu0 %v7210, 32
        %v7339 = vpop.permute.xlu0 %7338
        %7342 = vrot.lane.b32.xlu0 %v7212, 48
        %v7343 = vpop.permute.xlu0 %7342
        %7346 = vrot.lane.b32.xlu0 %v7214, 64
        %v7347 = vpop.permute.xlu0 %7346
        %7350 = vrot.lane.b32.xlu0 %v7216, 80
        %v7351 = vpop.permute.xlu0 %7350
        %7354 = vrot.lane.b32.xlu0 %v7218, 96
        %v7355 = vpop.permute.xlu0 %7354
        %7358 = vrot.lane.b32.xlu0 %v7220, 112
        %v7359 = vpop.permute.xlu0 %7358
        %7362 = vrot.lane.b32.xlu0 %v7320, 16
        %v7363 = vpop.permute.xlu0 %7362
        %7366 = vrot.lane.b32.xlu0 %v7322, 32
        %v7367 = vpop.permute.xlu0 %7366
        %7370 = vrot.lane.b32.xlu0 %v7324, 48
        %v7371 = vpop.permute.xlu0 %7370
        %7374 = vrot.lane.b32.xlu0 %v7326, 64
        %v7375 = vpop.permute.xlu0 %7374
        %7378 = vrot.lane.b32.xlu0 %v7328, 80
        %v7379 = vpop.permute.xlu0 %7378
        %7382 = vrot.lane.b32.xlu0 %v7330, 96
        %v7383 = vpop.permute.xlu0 %7382
        %7386 = vrot.lane.b32.xlu0 %v7332, 112
        %v7387 = vpop.permute.xlu0 %7386
        %v7389 = vsel %vm967, %v7206, %v7335
        %v7390 = vsel %vm969, %v7389, %v7339
        %v7391 = vsel %vm971, %v7390, %v7343
        %v7392 = vsel %vm378, %v7391, %v7347
        %v7393 = vsel %vm974, %v7392, %v7351
        %v7394 = vsel %vm976, %v7393, %v7355
        %v7395 = vsel %vm978, %v7394, %v7359
        %v7396 = vsel %vm967, %v7318, %v7363
        %v7397 = vsel %vm969, %v7396, %v7367
        %v7398 = vsel %vm971, %v7397, %v7371
        %v7399 = vsel %vm378, %v7398, %v7375
        %v7400 = vsel %vm974, %v7399, %v7379
        %v7401 = vsel %vm976, %v7400, %v7383
        %v7402 = vsel %vm978, %v7401, %v7387
        %v7403 = vld [vmem:[#allocation4] sm:$0xff]
        %v7404 = vld [vmem:[#allocation4 + $0x8] sm:$0xff]
        %s7405 = scalar_lea.vmem %s5, 48
        %v7406 = vld [vmem:[%s7405] sm:$0xff]
        %v7408 = vsel %vm990, %v7406, 0
        %7410 = vmatpush.msra.mxu0 0.0
        %7411 = vmatpush.msra.mxu0 0.0
        %7412 = vmatpush.msra.mxu0 0.0
        %7413 = vmatpush.msra.mxu0 0.0
        %7414 = vmatpush.msra.mxu0 0.0
        %7415 = vmatpush.msra.mxu0 0.0
        %7416 = vmatpush.msra.mxu0 0.0
        %7417 = vmatpush.msra.mxu0 0.0
        %7418 = vmatpush.msra.mxu0 0.0
        %7419 = vmatpush.msra.mxu0 0.0
        %7420 = vmatpush.msra.mxu0 0.0
        %7421 = vmatpush.msra.mxu0 0.0
        %7422 = vmatpush.msra.mxu0 0.0
        %7423 = vmatpush.msra.mxu0 0.0
        %7424 = vmatpush.msra.mxu0 0.0
        %7425 = vmatpush.msra.mxu0 %v7395
        %7426 = vmatmul.f32.gmra.mxu0 %v7408
        %v7427 = vpop.f32.mrf.mxu0
        %v7428 = vadd.f32 0.0, %v7427
        %7429 = vdwg.mxu0
        %7430 = vmatpush.msra.mxu0 0.0
        %7431 = vmatpush.msra.mxu0 0.0
        %7432 = vmatpush.msra.mxu0 0.0
        %7433 = vmatpush.msra.mxu0 0.0
        %7434 = vmatpush.msra.mxu0 0.0
        %7435 = vmatpush.msra.mxu0 0.0
        %7436 = vmatpush.msra.mxu0 0.0
        %7437 = vmatpush.msra.mxu0 0.0
        %7438 = vmatpush.msra.mxu0 0.0
        %7439 = vmatpush.msra.mxu0 0.0
        %7440 = vmatpush.msra.mxu0 0.0
        %7441 = vmatpush.msra.mxu0 0.0
        %7442 = vmatpush.msra.mxu0 0.0
        %7443 = vmatpush.msra.mxu0 0.0
        %7444 = vmatpush.msra.mxu0 0.0
        %7445 = vmatpush.msra.mxu0 %v7402
        %7446 = vmatmul.f32.gmra.mxu0 %v7408
        %v7447 = vpop.f32.mrf.mxu0
        %v7448 = vadd.f32 0.0, %v7447
        %7449 = vdwg.mxu0
        %v7450 = vadd.f32 %v7403, %v7428
        %v7451 = vadd.f32 %v7404, %v7448
        %7452 = vst [vmem:[#allocation4] sm:$0xff] %v7450
        %7453 = vst [vmem:[#allocation4 + $0x8] sm:$0xff] %v7451
        %v7454 = vld [vmem:[#allocation3 + $0x2] sm:$0xff]
        %v7455 = vld [vmem:[#allocation3 + $0xa] sm:$0xff]
        %v7456 = vld [vmem:[#allocation3 + $0x1a] sm:$0xff]
        %v7457 = vld [vmem:[#allocation3 + $0x22] sm:$0xff]
        %v7458 = vld [vmem:[#allocation3 + $0x32] sm:$0xff]
        %v7459 = vld [vmem:[#allocation3 + $0x3a] sm:$0xff]
        %v7460 = vld [vmem:[#allocation3 + $0x4a] sm:$0xff]
        %v7461 = vld [vmem:[#allocation3 + $0x52] sm:$0xff]
        %v7462 = vld [vmem:[#allocation3 + $0x62] sm:$0xff]
        %v7463 = vld [vmem:[#allocation3 + $0x6a] sm:$0xff]
        %v7464 = vld [vmem:[#allocation3 + $0x7a] sm:$0xff]
        %v7465 = vld [vmem:[#allocation3 + $0x82] sm:$0xff]
        %v7466 = vld [vmem:[#allocation3 + $0x92] sm:$0xff]
        %v7467 = vld [vmem:[#allocation3 + $0x9a] sm:$0xff]
        %v7468 = vld [vmem:[#allocation3 + $0xaa] sm:$0xff]
        %v7469 = vld [vmem:[#allocation3 + $0xb2] sm:$0xff]
        %7486 = vrot.lane.b32.xlu0 %v7454, 127
        %v7487 = vpop.permute.xlu0 %7486
        %7488 = vrot.lane.b32.xlu0 %v7455, 127
        %v7489 = vpop.permute.xlu0 %7488
        %7490 = vrot.lane.b32.xlu0 %v7456, 127
        %v7491 = vpop.permute.xlu0 %7490
        %7492 = vrot.lane.b32.xlu0 %v7457, 127
        %v7493 = vpop.permute.xlu0 %7492
        %7494 = vrot.lane.b32.xlu0 %v7458, 127
        %v7495 = vpop.permute.xlu0 %7494
        %7496 = vrot.lane.b32.xlu0 %v7459, 127
        %v7497 = vpop.permute.xlu0 %7496
        %7498 = vrot.lane.b32.xlu0 %v7460, 127
        %v7499 = vpop.permute.xlu0 %7498
        %7500 = vrot.lane.b32.xlu0 %v7461, 127
        %v7501 = vpop.permute.xlu0 %7500
        %7502 = vrot.lane.b32.xlu0 %v7462, 127
        %v7503 = vpop.permute.xlu0 %7502
        %7504 = vrot.lane.b32.xlu0 %v7463, 127
        %v7505 = vpop.permute.xlu0 %7504
        %7506 = vrot.lane.b32.xlu0 %v7464, 127
        %v7507 = vpop.permute.xlu0 %7506
        %7508 = vrot.lane.b32.xlu0 %v7465, 127
        %v7509 = vpop.permute.xlu0 %7508
        %7510 = vrot.lane.b32.xlu0 %v7466, 127
        %v7511 = vpop.permute.xlu0 %7510
        %7512 = vrot.lane.b32.xlu0 %v7467, 127
        %v7513 = vpop.permute.xlu0 %7512
        %7514 = vrot.lane.b32.xlu0 %v7468, 127
        %v7515 = vpop.permute.xlu0 %7514
        %7516 = vrot.lane.b32.xlu0 %v7469, 127
        %v7517 = vpop.permute.xlu0 %7516
        %v7534 = vrot.slane %v7495, 4
        %v7535 = vsel %vm467, %v7534, %v7487
        %v7536 = vrot.slane %v7487, 4
        %v7537 = vsel %vm467, %v7495, %v7536
        %v7539 = vunpack.c.l.s4 1983009808
        %v7540 = vunpack.c.0.s8 %v7539
        %v7541 = vperm.slane %v7535, %v7540
        %v7543 = vunpack.c.l.s4 1983009808
        %v7544 = vunpack.c.0.s8 %v7543
        %v7545 = vperm.slane %v7537, %v7544
        %v7546 = vrot.slane %v7499, 4
        %v7547 = vsel %vm467, %v7546, %v7491
        %v7548 = vrot.slane %v7491, 4
        %v7549 = vsel %vm467, %v7499, %v7548
        %v7551 = vunpack.c.l.s4 1983009808
        %v7552 = vunpack.c.0.s8 %v7551
        %v7553 = vperm.slane %v7547, %v7552
        %v7555 = vunpack.c.l.s4 1983009808
        %v7556 = vunpack.c.0.s8 %v7555
        %v7557 = vperm.slane %v7549, %v7556
        %v7558 = vrot.slane %v7511, 4
        %v7559 = vsel %vm467, %v7558, %v7503
        %v7560 = vrot.slane %v7503, 4
        %v7561 = vsel %vm467, %v7511, %v7560
        %v7563 = vunpack.c.l.s4 1983009808
        %v7564 = vunpack.c.0.s8 %v7563
        %v7565 = vperm.slane %v7559, %v7564
        %v7567 = vunpack.c.l.s4 1983009808
        %v7568 = vunpack.c.0.s8 %v7567
        %v7569 = vperm.slane %v7561, %v7568
        %v7570 = vrot.slane %v7515, 4
        %v7571 = vsel %vm467, %v7570, %v7507
        %v7572 = vrot.slane %v7507, 4
        %v7573 = vsel %vm467, %v7515, %v7572
        %v7575 = vunpack.c.l.s4 1983009808
        %v7576 = vunpack.c.0.s8 %v7575
        %v7577 = vperm.slane %v7571, %v7576
        %v7579 = vunpack.c.l.s4 1983009808
        %v7580 = vunpack.c.0.s8 %v7579
        %v7581 = vperm.slane %v7573, %v7580
        %v7582 = vrot.slane %v7553, 4
        %v7583 = vsel %vm467, %v7582, %v7541
        %v7584 = vrot.slane %v7541, 4
        %v7585 = vsel %vm467, %v7553, %v7584
        %v7587 = vunpack.c.l.s4 1934713408
        %v7588 = vunpack.c.0.s8 %v7587
        %v7589 = vperm.slane %v7583, %v7588
        %v7591 = vunpack.c.l.s4 1934713408
        %v7592 = vunpack.c.0.s8 %v7591
        %v7593 = vperm.slane %v7585, %v7592
        %v7594 = vrot.slane %v7557, 4
        %v7595 = vsel %vm467, %v7594, %v7545
        %v7596 = vrot.slane %v7545, 4
        %v7597 = vsel %vm467, %v7557, %v7596
        %v7599 = vunpack.c.l.s4 1934713408
        %v7600 = vunpack.c.0.s8 %v7599
        %v7601 = vperm.slane %v7595, %v7600
        %v7603 = vunpack.c.l.s4 1934713408
        %v7604 = vunpack.c.0.s8 %v7603
        %v7605 = vperm.slane %v7597, %v7604
        %v7606 = vrot.slane %v7577, 4
        %v7607 = vsel %vm467, %v7606, %v7565
        %v7608 = vrot.slane %v7565, 4
        %v7609 = vsel %vm467, %v7577, %v7608
        %v7611 = vunpack.c.l.s4 1934713408
        %v7612 = vunpack.c.0.s8 %v7611
        %v7613 = vperm.slane %v7607, %v7612
        %v7615 = vunpack.c.l.s4 1934713408
        %v7616 = vunpack.c.0.s8 %v7615
        %v7617 = vperm.slane %v7609, %v7616
        %v7618 = vrot.slane %v7581, 4
        %v7619 = vsel %vm467, %v7618, %v7569
        %v7620 = vrot.slane %v7569, 4
        %v7621 = vsel %vm467, %v7581, %v7620
        %v7623 = vunpack.c.l.s4 1934713408
        %v7624 = vunpack.c.0.s8 %v7623
        %v7625 = vperm.slane %v7619, %v7624
        %v7627 = vunpack.c.l.s4 1934713408
        %v7628 = vunpack.c.0.s8 %v7627
        %v7629 = vperm.slane %v7621, %v7628
        %v7630 = vrot.slane %v7613, 4
        %v7631 = vsel %vm467, %v7630, %v7589
        %v7632 = vrot.slane %v7589, 4
        %v7633 = vsel %vm467, %v7613, %v7632
        %v7634 = vrot.slane %v7617, 4
        %v7635 = vsel %vm467, %v7634, %v7593
        %v7636 = vrot.slane %v7593, 4
        %v7637 = vsel %vm467, %v7617, %v7636
        %v7638 = vrot.slane %v7625, 4
        %v7639 = vsel %vm467, %v7638, %v7601
        %v7640 = vrot.slane %v7601, 4
        %v7641 = vsel %vm467, %v7625, %v7640
        %v7642 = vrot.slane %v7629, 4
        %v7643 = vsel %vm467, %v7642, %v7605
        %v7644 = vrot.slane %v7605, 4
        %v7645 = vsel %vm467, %v7629, %v7644
        %v7646 = vrot.slane %v7497, 4
        %v7647 = vsel %vm467, %v7646, %v7489
        %v7648 = vrot.slane %v7489, 4
        %v7649 = vsel %vm467, %v7497, %v7648
        %v7651 = vunpack.c.l.s4 1983009808
        %v7652 = vunpack.c.0.s8 %v7651
        %v7653 = vperm.slane %v7647, %v7652
        %v7655 = vunpack.c.l.s4 1983009808
        %v7656 = vunpack.c.0.s8 %v7655
        %v7657 = vperm.slane %v7649, %v7656
        %v7658 = vrot.slane %v7501, 4
        %v7659 = vsel %vm467, %v7658, %v7493
        %v7660 = vrot.slane %v7493, 4
        %v7661 = vsel %vm467, %v7501, %v7660
        %v7663 = vunpack.c.l.s4 1983009808
        %v7664 = vunpack.c.0.s8 %v7663
        %v7665 = vperm.slane %v7659, %v7664
        %v7667 = vunpack.c.l.s4 1983009808
        %v7668 = vunpack.c.0.s8 %v7667
        %v7669 = vperm.slane %v7661, %v7668
        %v7670 = vrot.slane %v7513, 4
        %v7671 = vsel %vm467, %v7670, %v7505
        %v7672 = vrot.slane %v7505, 4
        %v7673 = vsel %vm467, %v7513, %v7672
        %v7675 = vunpack.c.l.s4 1983009808
        %v7676 = vunpack.c.0.s8 %v7675
        %v7677 = vperm.slane %v7671, %v7676
        %v7679 = vunpack.c.l.s4 1983009808
        %v7680 = vunpack.c.0.s8 %v7679
        %v7681 = vperm.slane %v7673, %v7680
        %v7682 = vrot.slane %v7517, 4
        %v7683 = vsel %vm467, %v7682, %v7509
        %v7684 = vrot.slane %v7509, 4
        %v7685 = vsel %vm467, %v7517, %v7684
        %v7687 = vunpack.c.l.s4 1983009808
        %v7688 = vunpack.c.0.s8 %v7687
        %v7689 = vperm.slane %v7683, %v7688
        %v7691 = vunpack.c.l.s4 1983009808
        %v7692 = vunpack.c.0.s8 %v7691
        %v7693 = vperm.slane %v7685, %v7692
        %v7694 = vrot.slane %v7665, 4
        %v7695 = vsel %vm467, %v7694, %v7653
        %v7696 = vrot.slane %v7653, 4
        %v7697 = vsel %vm467, %v7665, %v7696
        %v7699 = vunpack.c.l.s4 1934713408
        %v7700 = vunpack.c.0.s8 %v7699
        %v7701 = vperm.slane %v7695, %v7700
        %v7703 = vunpack.c.l.s4 1934713408
        %v7704 = vunpack.c.0.s8 %v7703
        %v7705 = vperm.slane %v7697, %v7704
        %v7706 = vrot.slane %v7669, 4
        %v7707 = vsel %vm467, %v7706, %v7657
        %v7708 = vrot.slane %v7657, 4
        %v7709 = vsel %vm467, %v7669, %v7708
        %v7711 = vunpack.c.l.s4 1934713408
        %v7712 = vunpack.c.0.s8 %v7711
        %v7713 = vperm.slane %v7707, %v7712
        %v7715 = vunpack.c.l.s4 1934713408
        %v7716 = vunpack.c.0.s8 %v7715
        %v7717 = vperm.slane %v7709, %v7716
        %v7718 = vrot.slane %v7689, 4
        %v7719 = vsel %vm467, %v7718, %v7677
        %v7720 = vrot.slane %v7677, 4
        %v7721 = vsel %vm467, %v7689, %v7720
        %v7723 = vunpack.c.l.s4 1934713408
        %v7724 = vunpack.c.0.s8 %v7723
        %v7725 = vperm.slane %v7719, %v7724
        %v7727 = vunpack.c.l.s4 1934713408
        %v7728 = vunpack.c.0.s8 %v7727
        %v7729 = vperm.slane %v7721, %v7728
        %v7730 = vrot.slane %v7693, 4
        %v7731 = vsel %vm467, %v7730, %v7681
        %v7732 = vrot.slane %v7681, 4
        %v7733 = vsel %vm467, %v7693, %v7732
        %v7735 = vunpack.c.l.s4 1934713408
        %v7736 = vunpack.c.0.s8 %v7735
        %v7737 = vperm.slane %v7731, %v7736
        %v7739 = vunpack.c.l.s4 1934713408
        %v7740 = vunpack.c.0.s8 %v7739
        %v7741 = vperm.slane %v7733, %v7740
        %v7742 = vrot.slane %v7725, 4
        %v7743 = vsel %vm467, %v7742, %v7701
        %v7744 = vrot.slane %v7701, 4
        %v7745 = vsel %vm467, %v7725, %v7744
        %v7746 = vrot.slane %v7729, 4
        %v7747 = vsel %vm467, %v7746, %v7705
        %v7748 = vrot.slane %v7705, 4
        %v7749 = vsel %vm467, %v7729, %v7748
        %v7750 = vrot.slane %v7737, 4
        %v7751 = vsel %vm467, %v7750, %v7713
        %v7752 = vrot.slane %v7713, 4
        %v7753 = vsel %vm467, %v7737, %v7752
        %v7754 = vrot.slane %v7741, 4
        %v7755 = vsel %vm467, %v7754, %v7717
        %v7756 = vrot.slane %v7717, 4
        %v7757 = vsel %vm467, %v7741, %v7756
        %7759 = vrot.lane.b32.xlu0 %v7633, 16
        %v7760 = vpop.permute.xlu0 %7759
        %7763 = vrot.lane.b32.xlu0 %v7635, 32
        %v7764 = vpop.permute.xlu0 %7763
        %7767 = vrot.lane.b32.xlu0 %v7637, 48
        %v7768 = vpop.permute.xlu0 %7767
        %7771 = vrot.lane.b32.xlu0 %v7639, 64
        %v7772 = vpop.permute.xlu0 %7771
        %7775 = vrot.lane.b32.xlu0 %v7641, 80
        %v7776 = vpop.permute.xlu0 %7775
        %7779 = vrot.lane.b32.xlu0 %v7643, 96
        %v7780 = vpop.permute.xlu0 %7779
        %7783 = vrot.lane.b32.xlu0 %v7645, 112
        %v7784 = vpop.permute.xlu0 %7783
        %7787 = vrot.lane.b32.xlu0 %v7745, 16
        %v7788 = vpop.permute.xlu0 %7787
        %7791 = vrot.lane.b32.xlu0 %v7747, 32
        %v7792 = vpop.permute.xlu0 %7791
        %7795 = vrot.lane.b32.xlu0 %v7749, 48
        %v7796 = vpop.permute.xlu0 %7795
        %7799 = vrot.lane.b32.xlu0 %v7751, 64
        %v7800 = vpop.permute.xlu0 %7799
        %7803 = vrot.lane.b32.xlu0 %v7753, 80
        %v7804 = vpop.permute.xlu0 %7803
        %7807 = vrot.lane.b32.xlu0 %v7755, 96
        %v7808 = vpop.permute.xlu0 %7807
        %7811 = vrot.lane.b32.xlu0 %v7757, 112
        %v7812 = vpop.permute.xlu0 %7811
        %v7814 = vsel %vm967, %v7631, %v7760
        %v7815 = vsel %vm969, %v7814, %v7764
        %v7816 = vsel %vm971, %v7815, %v7768
        %v7817 = vsel %vm378, %v7816, %v7772
        %v7818 = vsel %vm974, %v7817, %v7776
        %v7819 = vsel %vm976, %v7818, %v7780
        %v7820 = vsel %vm978, %v7819, %v7784
        %v7821 = vsel %vm967, %v7743, %v7788
        %v7822 = vsel %vm969, %v7821, %v7792
        %v7823 = vsel %vm971, %v7822, %v7796
        %v7824 = vsel %vm378, %v7823, %v7800
        %v7825 = vsel %vm974, %v7824, %v7804
        %v7826 = vsel %vm976, %v7825, %v7808
        %v7827 = vsel %vm978, %v7826, %v7812
        %v7828 = vld [vmem:[#allocation4] sm:$0xff]
        %v7829 = vld [vmem:[#allocation4 + $0x8] sm:$0xff]
        %s7830 = scalar_lea.vmem %s5, 56
        %v7831 = vld [vmem:[%s7830] sm:$0xff]
        %v7833 = vsel %vm990, %v7831, 0
        %7835 = vmatpush.msra.mxu0 0.0
        %7836 = vmatpush.msra.mxu0 0.0
        %7837 = vmatpush.msra.mxu0 0.0
        %7838 = vmatpush.msra.mxu0 0.0
        %7839 = vmatpush.msra.mxu0 0.0
        %7840 = vmatpush.msra.mxu0 0.0
        %7841 = vmatpush.msra.mxu0 0.0
        %7842 = vmatpush.msra.mxu0 0.0
        %7843 = vmatpush.msra.mxu0 0.0
        %7844 = vmatpush.msra.mxu0 0.0
        %7845 = vmatpush.msra.mxu0 0.0
        %7846 = vmatpush.msra.mxu0 0.0
        %7847 = vmatpush.msra.mxu0 0.0
        %7848 = vmatpush.msra.mxu0 0.0
        %7849 = vmatpush.msra.mxu0 0.0
        %7850 = vmatpush.msra.mxu0 %v7820
        %7851 = vmatmul.f32.gmra.mxu0 %v7833
        %v7852 = vpop.f32.mrf.mxu0
        %v7853 = vadd.f32 0.0, %v7852
        %7854 = vdwg.mxu0
        %7855 = vmatpush.msra.mxu0 0.0
        %7856 = vmatpush.msra.mxu0 0.0
        %7857 = vmatpush.msra.mxu0 0.0
        %7858 = vmatpush.msra.mxu0 0.0
        %7859 = vmatpush.msra.mxu0 0.0
        %7860 = vmatpush.msra.mxu0 0.0
        %7861 = vmatpush.msra.mxu0 0.0
        %7862 = vmatpush.msra.mxu0 0.0
        %7863 = vmatpush.msra.mxu0 0.0
        %7864 = vmatpush.msra.mxu0 0.0
        %7865 = vmatpush.msra.mxu0 0.0
        %7866 = vmatpush.msra.mxu0 0.0
        %7867 = vmatpush.msra.mxu0 0.0
        %7868 = vmatpush.msra.mxu0 0.0
        %7869 = vmatpush.msra.mxu0 0.0
        %7870 = vmatpush.msra.mxu0 %v7827
        %7871 = vmatmul.f32.gmra.mxu0 %v7833
        %v7872 = vpop.f32.mrf.mxu0
        %v7873 = vadd.f32 0.0, %v7872
        %7874 = vdwg.mxu0
        %v7875 = vadd.f32 %v7828, %v7853
        %v7876 = vadd.f32 %v7829, %v7873
        %7877 = vst [vmem:[#allocation4] sm:$0xff] %v7875
        %7878 = vst [vmem:[#allocation4 + $0x8] sm:$0xff] %v7876
        %v7879 = vld [vmem:[#allocation3 + $0x2] sm:$0xff]
        %v7880 = vld [vmem:[#allocation3 + $0xa] sm:$0xff]
        %v7881 = vld [vmem:[#allocation3 + $0x1a] sm:$0xff]
        %v7882 = vld [vmem:[#allocation3 + $0x22] sm:$0xff]
        %v7883 = vld [vmem:[#allocation3 + $0x32] sm:$0xff]
        %v7884 = vld [vmem:[#allocation3 + $0x3a] sm:$0xff]
        %v7885 = vld [vmem:[#allocation3 + $0x4a] sm:$0xff]
        %v7886 = vld [vmem:[#allocation3 + $0x52] sm:$0xff]
        %v7887 = vld [vmem:[#allocation3 + $0x62] sm:$0xff]
        %v7888 = vld [vmem:[#allocation3 + $0x6a] sm:$0xff]
        %v7889 = vld [vmem:[#allocation3 + $0x7a] sm:$0xff]
        %v7890 = vld [vmem:[#allocation3 + $0x82] sm:$0xff]
        %v7891 = vld [vmem:[#allocation3 + $0x92] sm:$0xff]
        %v7892 = vld [vmem:[#allocation3 + $0x9a] sm:$0xff]
        %v7893 = vld [vmem:[#allocation3 + $0xaa] sm:$0xff]
        %v7894 = vld [vmem:[#allocation3 + $0xb2] sm:$0xff]
        %7911 = vrot.lane.b32.xlu0 %v7879, 126
        %v7912 = vpop.permute.xlu0 %7911
        %7913 = vrot.lane.b32.xlu0 %v7880, 126
        %v7914 = vpop.permute.xlu0 %7913
        %7915 = vrot.lane.b32.xlu0 %v7881, 126
        %v7916 = vpop.permute.xlu0 %7915
        %7917 = vrot.lane.b32.xlu0 %v7882, 126
        %v7918 = vpop.permute.xlu0 %7917
        %7919 = vrot.lane.b32.xlu0 %v7883, 126
        %v7920 = vpop.permute.xlu0 %7919
        %7921 = vrot.lane.b32.xlu0 %v7884, 126
        %v7922 = vpop.permute.xlu0 %7921
        %7923 = vrot.lane.b32.xlu0 %v7885, 126
        %v7924 = vpop.permute.xlu0 %7923
        %7925 = vrot.lane.b32.xlu0 %v7886, 126
        %v7926 = vpop.permute.xlu0 %7925
        %7927 = vrot.lane.b32.xlu0 %v7887, 126
        %v7928 = vpop.permute.xlu0 %7927
        %7929 = vrot.lane.b32.xlu0 %v7888, 126
        %v7930 = vpop.permute.xlu0 %7929
        %7931 = vrot.lane.b32.xlu0 %v7889, 126
        %v7932 = vpop.permute.xlu0 %7931
        %7933 = vrot.lane.b32.xlu0 %v7890, 126
        %v7934 = vpop.permute.xlu0 %7933
        %7935 = vrot.lane.b32.xlu0 %v7891, 126
        %v7936 = vpop.permute.xlu0 %7935
        %7937 = vrot.lane.b32.xlu0 %v7892, 126
        %v7938 = vpop.permute.xlu0 %7937
        %7939 = vrot.lane.b32.xlu0 %v7893, 126
        %v7940 = vpop.permute.xlu0 %7939
        %7941 = vrot.lane.b32.xlu0 %v7894, 126
        %v7942 = vpop.permute.xlu0 %7941
        %v7959 = vrot.slane %v7920, 4
        %v7960 = vsel %vm467, %v7959, %v7912
        %v7961 = vrot.slane %v7912, 4
        %v7962 = vsel %vm467, %v7920, %v7961
        %v7964 = vunpack.c.l.s4 1983009808
        %v7965 = vunpack.c.0.s8 %v7964
        %v7966 = vperm.slane %v7960, %v7965
        %v7968 = vunpack.c.l.s4 1983009808
        %v7969 = vunpack.c.0.s8 %v7968
        %v7970 = vperm.slane %v7962, %v7969
        %v7971 = vrot.slane %v7924, 4
        %v7972 = vsel %vm467, %v7971, %v7916
        %v7973 = vrot.slane %v7916, 4
        %v7974 = vsel %vm467, %v7924, %v7973
        %v7976 = vunpack.c.l.s4 1983009808
        %v7977 = vunpack.c.0.s8 %v7976
        %v7978 = vperm.slane %v7972, %v7977
        %v7980 = vunpack.c.l.s4 1983009808
        %v7981 = vunpack.c.0.s8 %v7980
        %v7982 = vperm.slane %v7974, %v7981
        %v7983 = vrot.slane %v7936, 4
        %v7984 = vsel %vm467, %v7983, %v7928
        %v7985 = vrot.slane %v7928, 4
        %v7986 = vsel %vm467, %v7936, %v7985
        %v7988 = vunpack.c.l.s4 1983009808
        %v7989 = vunpack.c.0.s8 %v7988
        %v7990 = vperm.slane %v7984, %v7989
        %v7992 = vunpack.c.l.s4 1983009808
        %v7993 = vunpack.c.0.s8 %v7992
        %v7994 = vperm.slane %v7986, %v7993
        %v7995 = vrot.slane %v7940, 4
        %v7996 = vsel %vm467, %v7995, %v7932
        %v7997 = vrot.slane %v7932, 4
        %v7998 = vsel %vm467, %v7940, %v7997
        %v8000 = vunpack.c.l.s4 1983009808
        %v8001 = vunpack.c.0.s8 %v8000
        %v8002 = vperm.slane %v7996, %v8001
        %v8004 = vunpack.c.l.s4 1983009808
        %v8005 = vunpack.c.0.s8 %v8004
        %v8006 = vperm.slane %v7998, %v8005
        %v8007 = vrot.slane %v7978, 4
        %v8008 = vsel %vm467, %v8007, %v7966
        %v8009 = vrot.slane %v7966, 4
        %v8010 = vsel %vm467, %v7978, %v8009
        %v8012 = vunpack.c.l.s4 1934713408
        %v8013 = vunpack.c.0.s8 %v8012
        %v8014 = vperm.slane %v8008, %v8013
        %v8016 = vunpack.c.l.s4 1934713408
        %v8017 = vunpack.c.0.s8 %v8016
        %v8018 = vperm.slane %v8010, %v8017
        %v8019 = vrot.slane %v7982, 4
        %v8020 = vsel %vm467, %v8019, %v7970
        %v8021 = vrot.slane %v7970, 4
        %v8022 = vsel %vm467, %v7982, %v8021
        %v8024 = vunpack.c.l.s4 1934713408
        %v8025 = vunpack.c.0.s8 %v8024
        %v8026 = vperm.slane %v8020, %v8025
        %v8028 = vunpack.c.l.s4 1934713408
        %v8029 = vunpack.c.0.s8 %v8028
        %v8030 = vperm.slane %v8022, %v8029
        %v8031 = vrot.slane %v8002, 4
        %v8032 = vsel %vm467, %v8031, %v7990
        %v8033 = vrot.slane %v7990, 4
        %v8034 = vsel %vm467, %v8002, %v8033
        %v8036 = vunpack.c.l.s4 1934713408
        %v8037 = vunpack.c.0.s8 %v8036
        %v8038 = vperm.slane %v8032, %v8037
        %v8040 = vunpack.c.l.s4 1934713408
        %v8041 = vunpack.c.0.s8 %v8040
        %v8042 = vperm.slane %v8034, %v8041
        %v8043 = vrot.slane %v8006, 4
        %v8044 = vsel %vm467, %v8043, %v7994
        %v8045 = vrot.slane %v7994, 4
        %v8046 = vsel %vm467, %v8006, %v8045
        %v8048 = vunpack.c.l.s4 1934713408
        %v8049 = vunpack.c.0.s8 %v8048
        %v8050 = vperm.slane %v8044, %v8049
        %v8052 = vunpack.c.l.s4 1934713408
        %v8053 = vunpack.c.0.s8 %v8052
        %v8054 = vperm.slane %v8046, %v8053
        %v8055 = vrot.slane %v8038, 4
        %v8056 = vsel %vm467, %v8055, %v8014
        %v8057 = vrot.slane %v8014, 4
        %v8058 = vsel %vm467, %v8038, %v8057
        %v8059 = vrot.slane %v8042, 4
        %v8060 = vsel %vm467, %v8059, %v8018
        %v8061 = vrot.slane %v8018, 4
        %v8062 = vsel %vm467, %v8042, %v8061
        %v8063 = vrot.slane %v8050, 4
        %v8064 = vsel %vm467, %v8063, %v8026
        %v8065 = vrot.slane %v8026, 4
        %v8066 = vsel %vm467, %v8050, %v8065
        %v8067 = vrot.slane %v8054, 4
        %v8068 = vsel %vm467, %v8067, %v8030
        %v8069 = vrot.slane %v8030, 4
        %v8070 = vsel %vm467, %v8054, %v8069
        %v8071 = vrot.slane %v7922, 4
        %v8072 = vsel %vm467, %v8071, %v7914
        %v8073 = vrot.slane %v7914, 4
        %v8074 = vsel %vm467, %v7922, %v8073
        %v8076 = vunpack.c.l.s4 1983009808
        %v8077 = vunpack.c.0.s8 %v8076
        %v8078 = vperm.slane %v8072, %v8077
        %v8080 = vunpack.c.l.s4 1983009808
        %v8081 = vunpack.c.0.s8 %v8080
        %v8082 = vperm.slane %v8074, %v8081
        %v8083 = vrot.slane %v7926, 4
        %v8084 = vsel %vm467, %v8083, %v7918
        %v8085 = vrot.slane %v7918, 4
        %v8086 = vsel %vm467, %v7926, %v8085
        %v8088 = vunpack.c.l.s4 1983009808
        %v8089 = vunpack.c.0.s8 %v8088
        %v8090 = vperm.slane %v8084, %v8089
        %v8092 = vunpack.c.l.s4 1983009808
        %v8093 = vunpack.c.0.s8 %v8092
        %v8094 = vperm.slane %v8086, %v8093
        %v8095 = vrot.slane %v7938, 4
        %v8096 = vsel %vm467, %v8095, %v7930
        %v8097 = vrot.slane %v7930, 4
        %v8098 = vsel %vm467, %v7938, %v8097
        %v8100 = vunpack.c.l.s4 1983009808
        %v8101 = vunpack.c.0.s8 %v8100
        %v8102 = vperm.slane %v8096, %v8101
        %v8104 = vunpack.c.l.s4 1983009808
        %v8105 = vunpack.c.0.s8 %v8104
        %v8106 = vperm.slane %v8098, %v8105
        %v8107 = vrot.slane %v7942, 4
        %v8108 = vsel %vm467, %v8107, %v7934
        %v8109 = vrot.slane %v7934, 4
        %v8110 = vsel %vm467, %v7942, %v8109
        %v8112 = vunpack.c.l.s4 1983009808
        %v8113 = vunpack.c.0.s8 %v8112
        %v8114 = vperm.slane %v8108, %v8113
        %v8116 = vunpack.c.l.s4 1983009808
        %v8117 = vunpack.c.0.s8 %v8116
        %v8118 = vperm.slane %v8110, %v8117
        %v8119 = vrot.slane %v8090, 4
        %v8120 = vsel %vm467, %v8119, %v8078
        %v8121 = vrot.slane %v8078, 4
        %v8122 = vsel %vm467, %v8090, %v8121
        %v8124 = vunpack.c.l.s4 1934713408
        %v8125 = vunpack.c.0.s8 %v8124
        %v8126 = vperm.slane %v8120, %v8125
        %v8128 = vunpack.c.l.s4 1934713408
        %v8129 = vunpack.c.0.s8 %v8128
        %v8130 = vperm.slane %v8122, %v8129
        %v8131 = vrot.slane %v8094, 4
        %v8132 = vsel %vm467, %v8131, %v8082
        %v8133 = vrot.slane %v8082, 4
        %v8134 = vsel %vm467, %v8094, %v8133
        %v8136 = vunpack.c.l.s4 1934713408
        %v8137 = vunpack.c.0.s8 %v8136
        %v8138 = vperm.slane %v8132, %v8137
        %v8140 = vunpack.c.l.s4 1934713408
        %v8141 = vunpack.c.0.s8 %v8140
        %v8142 = vperm.slane %v8134, %v8141
        %v8143 = vrot.slane %v8114, 4
        %v8144 = vsel %vm467, %v8143, %v8102
        %v8145 = vrot.slane %v8102, 4
        %v8146 = vsel %vm467, %v8114, %v8145
        %v8148 = vunpack.c.l.s4 1934713408
        %v8149 = vunpack.c.0.s8 %v8148
        %v8150 = vperm.slane %v8144, %v8149
        %v8152 = vunpack.c.l.s4 1934713408
        %v8153 = vunpack.c.0.s8 %v8152
        %v8154 = vperm.slane %v8146, %v8153
        %v8155 = vrot.slane %v8118, 4
        %v8156 = vsel %vm467, %v8155, %v8106
        %v8157 = vrot.slane %v8106, 4
        %v8158 = vsel %vm467, %v8118, %v8157
        %v8160 = vunpack.c.l.s4 1934713408
        %v8161 = vunpack.c.0.s8 %v8160
        %v8162 = vperm.slane %v8156, %v8161
        %v8164 = vunpack.c.l.s4 1934713408
        %v8165 = vunpack.c.0.s8 %v8164
        %v8166 = vperm.slane %v8158, %v8165
        %v8167 = vrot.slane %v8150, 4
        %v8168 = vsel %vm467, %v8167, %v8126
        %v8169 = vrot.slane %v8126, 4
        %v8170 = vsel %vm467, %v8150, %v8169
        %v8171 = vrot.slane %v8154, 4
        %v8172 = vsel %vm467, %v8171, %v8130
        %v8173 = vrot.slane %v8130, 4
        %v8174 = vsel %vm467, %v8154, %v8173
        %v8175 = vrot.slane %v8162, 4
        %v8176 = vsel %vm467, %v8175, %v8138
        %v8177 = vrot.slane %v8138, 4
        %v8178 = vsel %vm467, %v8162, %v8177
        %v8179 = vrot.slane %v8166, 4
        %v8180 = vsel %vm467, %v8179, %v8142
        %v8181 = vrot.slane %v8142, 4
        %v8182 = vsel %vm467, %v8166, %v8181
        %8184 = vrot.lane.b32.xlu0 %v8058, 16
        %v8185 = vpop.permute.xlu0 %8184
        %8188 = vrot.lane.b32.xlu0 %v8060, 32
        %v8189 = vpop.permute.xlu0 %8188
        %8192 = vrot.lane.b32.xlu0 %v8062, 48
        %v8193 = vpop.permute.xlu0 %8192
        %8196 = vrot.lane.b32.xlu0 %v8064, 64
        %v8197 = vpop.permute.xlu0 %8196
        %8200 = vrot.lane.b32.xlu0 %v8066, 80
        %v8201 = vpop.permute.xlu0 %8200
        %8204 = vrot.lane.b32.xlu0 %v8068, 96
        %v8205 = vpop.permute.xlu0 %8204
        %8208 = vrot.lane.b32.xlu0 %v8070, 112
        %v8209 = vpop.permute.xlu0 %8208
        %8212 = vrot.lane.b32.xlu0 %v8170, 16
        %v8213 = vpop.permute.xlu0 %8212
        %8216 = vrot.lane.b32.xlu0 %v8172, 32
        %v8217 = vpop.permute.xlu0 %8216
        %8220 = vrot.lane.b32.xlu0 %v8174, 48
        %v8221 = vpop.permute.xlu0 %8220
        %8224 = vrot.lane.b32.xlu0 %v8176, 64
        %v8225 = vpop.permute.xlu0 %8224
        %8228 = vrot.lane.b32.xlu0 %v8178, 80
        %v8229 = vpop.permute.xlu0 %8228
        %8232 = vrot.lane.b32.xlu0 %v8180, 96
        %v8233 = vpop.permute.xlu0 %8232
        %8236 = vrot.lane.b32.xlu0 %v8182, 112
        %v8237 = vpop.permute.xlu0 %8236
        %v8239 = vsel %vm967, %v8056, %v8185
        %v8240 = vsel %vm969, %v8239, %v8189
        %v8241 = vsel %vm971, %v8240, %v8193
        %v8242 = vsel %vm378, %v8241, %v8197
        %v8243 = vsel %vm974, %v8242, %v8201
        %v8244 = vsel %vm976, %v8243, %v8205
        %v8245 = vsel %vm978, %v8244, %v8209
        %v8246 = vsel %vm967, %v8168, %v8213
        %v8247 = vsel %vm969, %v8246, %v8217
        %v8248 = vsel %vm971, %v8247, %v8221
        %v8249 = vsel %vm378, %v8248, %v8225
        %v8250 = vsel %vm974, %v8249, %v8229
        %v8251 = vsel %vm976, %v8250, %v8233
        %v8252 = vsel %vm978, %v8251, %v8237
        %v8253 = vld [vmem:[#allocation4] sm:$0xff]
        %v8254 = vld [vmem:[#allocation4 + $0x8] sm:$0xff]
        %s8255 = scalar_lea.vmem %s5, 64
        %v8256 = vld [vmem:[%s8255] sm:$0xff]
        %v8258 = vsel %vm990, %v8256, 0
        %8260 = vmatpush.msra.mxu0 0.0
        %8261 = vmatpush.msra.mxu0 0.0
        %8262 = vmatpush.msra.mxu0 0.0
        %8263 = vmatpush.msra.mxu0 0.0
        %8264 = vmatpush.msra.mxu0 0.0
        %8265 = vmatpush.msra.mxu0 0.0
        %8266 = vmatpush.msra.mxu0 0.0
        %8267 = vmatpush.msra.mxu0 0.0
        %8268 = vmatpush.msra.mxu0 0.0
        %8269 = vmatpush.msra.mxu0 0.0
        %8270 = vmatpush.msra.mxu0 0.0
        %8271 = vmatpush.msra.mxu0 0.0
        %8272 = vmatpush.msra.mxu0 0.0
        %8273 = vmatpush.msra.mxu0 0.0
        %8274 = vmatpush.msra.mxu0 0.0
        %8275 = vmatpush.msra.mxu0 %v8245
        %8276 = vmatmul.f32.gmra.mxu0 %v8258
        %v8277 = vpop.f32.mrf.mxu0
        %v8278 = vadd.f32 0.0, %v8277
        %8279 = vdwg.mxu0
        %8280 = vmatpush.msra.mxu0 0.0
        %8281 = vmatpush.msra.mxu0 0.0
        %8282 = vmatpush.msra.mxu0 0.0
        %8283 = vmatpush.msra.mxu0 0.0
        %8284 = vmatpush.msra.mxu0 0.0
        %8285 = vmatpush.msra.mxu0 0.0
        %8286 = vmatpush.msra.mxu0 0.0
        %8287 = vmatpush.msra.mxu0 0.0
        %8288 = vmatpush.msra.mxu0 0.0
        %8289 = vmatpush.msra.mxu0 0.0
        %8290 = vmatpush.msra.mxu0 0.0
        %8291 = vmatpush.msra.mxu0 0.0
        %8292 = vmatpush.msra.mxu0 0.0
        %8293 = vmatpush.msra.mxu0 0.0
        %8294 = vmatpush.msra.mxu0 0.0
        %8295 = vmatpush.msra.mxu0 %v8252
        %8296 = vmatmul.f32.gmra.mxu0 %v8258
        %v8297 = vpop.f32.mrf.mxu0
        %v8298 = vadd.f32 0.0, %v8297
        %8299 = vdwg.mxu0
        %v8300 = vadd.f32 %v8253, %v8278
        %v8301 = vadd.f32 %v8254, %v8298
        %8302 = vst [vmem:[#allocation4] sm:$0xff] %v8300
        %8303 = vst [vmem:[#allocation4 + $0x8] sm:$0xff] %v8301
        %v8304 = vld [vmem:[#allocation4] sm:$0xff]
        %v8305 = vld [vmem:[#allocation4 + $0x8] sm:$0xff]
        %v8306 = vld [vmem:[%s6] sm:$0xff]
        %8308 = vset.pattern.permute.xlu0 0
        %8309 = vperm.xlu0 %8308, %v8306
        %v8310 = vpop.permute.xlu0 %8309
        %v8312 = vadd.f32 %v8304, %v8310
        %v8313 = vadd.f32 %v8305, %v8310
        %v8314 = vmax.f32 %v8312, 0.0
        %v8315 = vmax.f32 %v8313, 0.0
        %8316 = vst [vmem:[%s301] sm:$0xff] %v8314
        %8317 = vst [vmem:[%s301 + $0x8] sm:$0xff] %v8315
        %s8318 = sand.u32 %s187, 1
        %s8319 = scalar_lea.sflag [#allocation7], %s8318
        %s8320 = sand.u32 %s187, 1
        %s8321 = smul.addr %s8320, 16
        %s8322 = scalar_lea.vmem [#allocation8], %s8321
        // Predicated region
        $region53: #{tpu_custom_call.1} parent=47 // pred_check
          %p8323 = pneg %p197
        $region54: #{tpu_custom_call.1} parent=47 // pred_check_branch
          %8325 = sbr.rel (%p8323) target = $region56
        $region55: #{tpu_custom_call.1} parent=47 // pred_region
          %8327 = vsyncadd %s8319, 0
          %s8328 = smul.addr %s22, 2
          %s8329 = smul.addr %s8328, 8
          %s8330 = scalar_lea.hbm %s7, %s8329
          %s8332 = sshll.u32 %s8322, 4
          %s8333 = int_to_ptr.vmem [resolvable:$true] %s8332
          %s8334 = sshll.u32 %s8330, 4
          %s8335 = int_to_ptr.hbm [resolvable:$true] %s8334
          %8337 = dma.vmem_to_hbm [thread:$0]  %s8333, 256, %s8335, %s8319
        $region56: #{tpu_custom_call.1} parent=47 // pred_fallthru
          _
      $region48: #{tpu_custom_call.1} parent=5 // pred_fallthru
        _
      %p8338 = scmp.le.s32.totalorder 2, %s17
      // Predicated region
      $region57: #{tpu_custom_call.1} parent=5 // pred_check
        %p8339 = pneg %p8338
      $region58: #{tpu_custom_call.1} parent=5 // pred_check_branch
        %8341 = sbr.rel (%p8339) target = $region60
      $region59: #{tpu_custom_call.1} parent=5 // pred_region
        %s8342 = ssub.s32 %s17, 2
        // Predicated region
        $region61: #{tpu_custom_call.1} parent=59 // pred_check
          %p8343 = pneg %p203
        $region62: #{tpu_custom_call.1} parent=59 // pred_check_branch
          %8345 = sbr.rel (%p8343) target = $region64
        $region63: #{tpu_custom_call.1} parent=59 // pred_region
          %s8346 = sand.u32 %s188, 1
          %s8347 = scalar_lea.sflag [#allocation7], %s8346
          %s8348 = sand.u32 %s188, 1
          %s8349 = smul.addr %s8348, 16
          %s8350 = scalar_lea.vmem [#allocation8], %s8349
          %8352 = dma.done %s8347, 256
        $region64: #{tpu_custom_call.1} parent=59 // pred_fallthru
          _
      $region60: #{tpu_custom_call.1} parent=5 // pred_fallthru
        _
    $region6: #{tpu_custom_call.1} parent=1 // loop_footer
      %s21 = sadd.s32 1, %s17
    $region7: #{tpu_custom_call.1} parent=1 // loop_footer_branch
      %16 = sbr.rel target = $region3
    $region8: #{tpu_custom_call.1} parent=1 // loop_exit
      _
    %8353 = vsyncpa [#allocation6], 1
    %s8354 = scalar_lea.sflag [#allocation6], 1
    %8355 = vsyncpa %s8354, 1
    %8356 = vsyncpa [#allocation7], 1
    %s8357 = scalar_lea.sflag [#allocation7], 1
    %8358 = vsyncpa %s8357, 1

</llo_original>
